<compile_context>
chip_gen: v6e
topology: v6e:2x2x1
jax: 0.10.0
libtpu: 0.0.40
codegen_flags: <defaults>
</compile_context>

<pallas_src>
import functools

import jax
import jax.numpy as jnp
from jax import lax
from jax.experimental import pallas as pl
from jax.experimental.pallas import tpu as pltpu


# True channel counts of the (adjusted) chain.
_CIN = 3
_C1 = 32        # features  : 3   -> 32   (3x3, pad 1)
_C2 = 128       # features1 : 32  -> 128  (3x3, pad 1)
_C3 = 448       # mid 1x1   : 128 -> 448
_C4 = 1000      # head 1x1  : 448 -> 1000

# Padded / folded sizes used inside the kernel.
_K1P = 32            # 9 * 3 = 27 layer-1 folded taps, padded to 32
_C1P = 128           # layer-1 out channels padded 32 -> 128
_K2 = 9 * _C1P       # 1152: layer-2 folded contraction (9 taps x 128)
_C4P = 1024          # folded 1x1 out channels padded 1000 -> 1024
_PAD = 24            # zero-pad rows around the flat h1 scratch (>= W+1, mult of 8)


def _fused_forward_kernel(xk_ref, mxl_ref, mxr_ref, w1_ref, b1_ref,
                          w2_ref, b2_ref, w34t_ref, b34t_ref,
                          o_ref, h1pad_ref, slab_ref, *, H, W):
    """One grid step = one image.  All intermediates stay on-chip."""
    M = H * W

    # ---- layer 1 (3x3): taps folded into the contraction dim -> one K=32 dot.
    h1 = jnp.dot(xk_ref[0], w1_ref[...], preferred_element_type=jnp.float32)
    h1 = h1 + b1_ref[...]                                   # (M, 128) f32

    # ---- stage h1 in a flat, row-padded f32 scratch (zero bands = y-halo).
    zero_band = jnp.zeros((_PAD, _C1P), jnp.float32)
    h1pad_ref[0:_PAD, :] = zero_band                        # cheap: 2 x 12 KB
    h1pad_ref[_PAD + M:_PAD + M + _PAD, :] = zero_band
    h1pad_ref[_PAD:_PAD + M, :] = h1

    # ---- layer-2 im2col slab: 9 statically shifted, x-edge-masked copies.
    mxl = mxl_ref[...]                                      # (M,1): 0 where x==0
    mxr = mxr_ref[...]                                      # (M,1): 0 where x==W-1
    for ky in range(3):
        for kx in range(3):
            dy, dx = ky - 1, kx - 1
            start = _PAD + dy * W + dx                      # static
            tap = h1pad_ref[start:start + M, :]             # (M, 128) f32
            if dx == -1:
                tap = tap * mxl
            elif dx == 1:
                tap = tap * mxr
            k = ky * 3 + kx
            slab_ref[:, k * _C1P:(k + 1) * _C1P] = tap.astype(jnp.bfloat16)

    # ---- layer 2 (3x3): single K=1152 MXU dot, f32 accumulation.
    h2 = jnp.dot(slab_ref[...], w2_ref[...], preferred_element_type=jnp.float32)
    h2 = (h2 + b2_ref[...]).astype(jnp.bfloat16)            # (M, 128)

    # ---- layers 3+4 (two 1x1 convs folded into one weight), computed in
    #      transposed orientation so the output is (C4, M): lane-dense store,
    #      no wrapper-side transpose.
    out_t = lax.dot_general(w34t_ref[...], h2, (((1,), (1,)), ((), ())),
                            preferred_element_type=jnp.float32)   # (C4P, M)
    o_ref[0] = (out_t[:_C4, :] + b34t_ref[0:_C4, :]).astype(o_ref.dtype)


def _init_conv_params(key, cin, cout, ksize):
    kw_key, kb_key = jax.random.split(key)
    fan_in = cin * ksize * ksize
    bound = 1.0 / (fan_in ** 0.5)
    w = jax.random.uniform(kw_key, (ksize, ksize, cin, cout), jnp.float32,
                           minval=-bound, maxval=bound)
    b = jax.random.uniform(kb_key, (cout,), jnp.float32,
                           minval=-bound, maxval=bound)
    return w, b


def init_params(key):
    k1, k2, k3, k4 = jax.random.split(key, 4)
    p1 = _init_conv_params(k1, _CIN, _C1, 3)   # Conv2d(3, 32, 3, 1, 1)
    p2 = _init_conv_params(k2, _C1, _C2, 3)    # TODO(synk): spec declares in=64
    p3 = _init_conv_params(k3, _C2, _C3, 1)    # TODO(synk): spec declares in=32
    p4 = _init_conv_params(k4, _C3, _C4, 1)    # Conv2d(448, 1000, 1, 1, 0)
    return (p1, p2, p3, p4)


def _prep_params(params):
    """Fold / zero-pad HWIO weights to lane-dense, MXU-ready matrices."""
    (w1, b1), (w2, b2), (w3, b3), (w4, b4) = params
    # layer 1: fold (ky,kx,cin) -> K, pad 27->32 and out 32->128.
    w1p = jnp.zeros((_K1P, _C1P), jnp.float32)
    w1p = w1p.at[:9 * _CIN, :_C1].set(w1.reshape(9 * _CIN, _C1))
    b1p = jnp.zeros((1, _C1P), jnp.float32).at[0, :_C1].set(b1)
    # layer 2: pad cin 32->128 per tap, fold 9 taps into K=1152.
    w2p = jnp.zeros((3, 3, _C1P, _C2), jnp.float32)
    w2p = w2p.at[:, :, :_C1, :].set(w2).reshape(_K2, _C2)
    b2p = b2.reshape(1, _C2)
    # layers 3+4: exact algebraic fold of the two 1x1 convs, in f32, then bf16.
    w3m = w3.reshape(_C2, _C3)
    w4m = w4.reshape(_C3, _C4)
    w34 = w3m @ w4m                                         # (128, 1000) f32
    b34 = b3 @ w4m + b4                                     # (1000,)     f32
    w34t = jnp.zeros((_C4P, _C2), jnp.float32).at[:_C4, :].set(w34.T)
    b34t = jnp.zeros((_C4P, 1), jnp.float32).at[:_C4, 0].set(b34)
    bf = jnp.bfloat16
    return (w1p.astype(bf), b1p, w2p.astype(bf), b2p, w34t.astype(bf), b34t)


def _fold_conv3x3_input(x_nhwc):
    """im2col fold of the 3-channel input: (N,H,W,3) -> (N, H*W, 32) bf16."""
    # TODO(synk): could be moved in-kernel to shave a few wrapper XLA ops.
    N, H, W, C = x_nhwc.shape
    xp = jnp.pad(x_nhwc, ((0, 0), (1, 1), (1, 1), (0, 0)))
    taps = [xp[:, ky:ky + H, kx:kx + W, :]
            for ky in range(3) for kx in range(3)]
    xk = jnp.concatenate(taps, axis=-1)                     # (N, H, W, 27)
    xk = jnp.pad(xk, ((0, 0), (0, 0), (0, 0), (0, _K1P - 9 * C)))
    return xk.reshape(N, H * W, _K1P).astype(jnp.bfloat16)


def model_forward(v1_nchw, params):
    N, Cin, H, W = v1_nchw.shape
    assert Cin == _CIN
    M = H * W
    assert _PAD >= W + 1 and M % 8 == 0

    x_nhwc = jnp.transpose(v1_nchw, (0, 2, 3, 1))           # NCHW -> NHWC (tiny)
    xk = _fold_conv3x3_input(x_nhwc)
    w1p, b1p, w2p, b2p, w34t, b34t = _prep_params(params)

    # x-edge validity masks for the layer-2 left/right taps (host precomputed).
    x_idx = jnp.arange(M, dtype=jnp.int32) % W
    mxl = (x_idx != 0).astype(jnp.float32).reshape(M, 1)
    mxr = (x_idx != W - 1).astype(jnp.float32).reshape(M, 1)

    kernel = functools.partial(_fused_forward_kernel, H=H, W=W)
    out = pl.pallas_call(
        kernel,
        out_shape=jax.ShapeDtypeStruct((N, _C4, M), jnp.float32),
        grid=(N,),
        in_specs=[
            pl.BlockSpec((1, M, _K1P), lambda n: (n, 0, 0)),   # folded input
            pl.BlockSpec((M, 1), lambda n: (0, 0)),            # mask x>0
            pl.BlockSpec((M, 1), lambda n: (0, 0)),            # mask x<W-1
            pl.BlockSpec((_K1P, _C1P), lambda n: (0, 0)),      # w1 folded
            pl.BlockSpec((1, _C1P), lambda n: (0, 0)),         # b1
            pl.BlockSpec((_K2, _C2), lambda n: (0, 0)),        # w2 folded
            pl.BlockSpec((1, _C2), lambda n: (0, 0)),          # b2
            pl.BlockSpec((_C4P, _C2), lambda n: (0, 0)),       # (W3@W4)^T
            pl.BlockSpec((_C4P, 1), lambda n: (0, 0)),         # b3@W4+b4
        ],
        out_specs=pl.BlockSpec((1, _C4, M), lambda n: (n, 0, 0)),
        scratch_shapes=[
            pltpu.VMEM((M + 2 * _PAD, _C1P), jnp.float32),     # flat padded h1
            pltpu.VMEM((M, _K2), jnp.bfloat16),                # layer-2 im2col slab
        ],
        compiler_params=pltpu.CompilerParams(
            dimension_semantics=("parallel",),     # batch across TCs on v7x
            vmem_limit_bytes=48 * 1024 * 1024),    # well within v7x's 64 MiB
    )(xk, mxl, mxr, w1p, b1p, w2p, b2p, w34t, b34t)

    conv_out = out.reshape(N, _C4, H, W)          # free reshape, already NCHW
    # torch.split(v1, [1, 1, 1], dim=1) — pure slicing, done in the wrapper.
    splits = (v1_nchw[:, 0:1], v1_nchw[:, 1:2], v1_nchw[:, 2:3])
    return conv_out, splits


if __name__ == "__main__":
    key = jax.random.PRNGKey(0)
    k_x, k_p = jax.random.split(key)
    v1 = jax.random.normal(k_x, (2, 3, 16, 16), dtype=jnp.float32)  # NCHW
    params = init_params(k_p)

    conv_out, splits = jax.jit(model_forward)(v1, params)
    jax.block_until_ready(conv_out)
    jax.block_until_ready(splits)

    assert conv_out.shape == (2, 1000, 16, 16), conv_out.shape
    assert all(s.shape == (2, 1, 16, 16) for s in splits)
    assert bool(jnp.isfinite(conv_out).all())
    print("KERNEL_OK")
</pallas_src>

<mosaic_0001>
module attributes {stable_mosaic.version = 11 : i64} {
  func.func @_fused_forward_kernel(%arg0: i32, %arg1: memref<1x256x32xbf16, #tpu.memory_space<vmem>>, %arg2: memref<256x1xf32, #tpu.memory_space<vmem>>, %arg3: memref<256x1xf32, #tpu.memory_space<vmem>>, %arg4: memref<32x128xbf16, #tpu.memory_space<vmem>>, %arg5: memref<1x128xf32, #tpu.memory_space<vmem>>, %arg6: memref<1152x128xbf16, #tpu.memory_space<vmem>>, %arg7: memref<1x128xf32, #tpu.memory_space<vmem>>, %arg8: memref<1024x128xbf16, #tpu.memory_space<vmem>>, %arg9: memref<1024x1xf32, #tpu.memory_space<vmem>>, %arg10: memref<1x1000x256xf32, #tpu.memory_space<vmem>>, %arg11: memref<304x128xf32, #tpu.memory_space<vmem>>, %arg12: memref<256x1152xbf16, #tpu.memory_space<vmem>>) attributes {dimension_semantics = [#tpu.dimension_semantics<parallel>], iteration_bounds = array<i64: 2>, scalar_prefetch = 0 : i64, scratch_operands = 2 : i64, tpu.core_type = #tpu.core_type<tc>, window_params = [{transform_indices = @transform_0, window_bounds = array<i64: 1, 256, 32>}, {pipeline_mode = #tpu.pipeline_mode<synchronous>, transform_indices = @transform_1, window_bounds = array<i64: 256, 1>}, {pipeline_mode = #tpu.pipeline_mode<synchronous>, transform_indices = @transform_2, window_bounds = array<i64: 256, 1>}, {pipeline_mode = #tpu.pipeline_mode<synchronous>, transform_indices = @transform_3, window_bounds = array<i64: 32, 128>}, {pipeline_mode = #tpu.pipeline_mode<synchronous>, transform_indices = @transform_4, window_bounds = array<i64: 1, 128>}, {pipeline_mode = #tpu.pipeline_mode<synchronous>, transform_indices = @transform_5, window_bounds = array<i64: 1152, 128>}, {pipeline_mode = #tpu.pipeline_mode<synchronous>, transform_indices = @transform_6, window_bounds = array<i64: 1, 128>}, {pipeline_mode = #tpu.pipeline_mode<synchronous>, transform_indices = @transform_7, window_bounds = array<i64: 1024, 128>}, {pipeline_mode = #tpu.pipeline_mode<synchronous>, transform_indices = @transform_8, window_bounds = array<i64: 1024, 1>}, {transform_indices = @transform_9, window_bounds = array<i64: 1, 1000, 256>}]} {
    %c0 = arith.constant 0 : index
    %c0_0 = arith.constant 0 : index
    %c0_1 = arith.constant 0 : index
    %0 = vector.load %arg1[%c0, %c0_0, %c0_1] : memref<1x256x32xbf16, #tpu.memory_space<vmem>>, vector<1x256x32xbf16>
    %1 = vector.shape_cast %0 : vector<1x256x32xbf16> to vector<256x32xbf16>
    %c0_2 = arith.constant 0 : index
    %c0_3 = arith.constant 0 : index
    %2 = vector.load %arg4[%c0_2, %c0_3] : memref<32x128xbf16, #tpu.memory_space<vmem>>, vector<32x128xbf16>
    %cst = arith.constant dense<0.000000e+00> : vector<256x128xf32>
    %3 = tpu.matmul %1, %2, %cst {dimension_numbers = #tpu.dot_dimension_numbers<[1], [0], [0], [1], [0, 0, 1, 1], [], []>} : vector<256x32xbf16>, vector<32x128xbf16>, vector<256x128xf32> -> vector<256x128xf32>
    %c0_4 = arith.constant 0 : index
    %c0_5 = arith.constant 0 : index
    %4 = vector.load %arg5[%c0_4, %c0_5] : memref<1x128xf32, #tpu.memory_space<vmem>>, vector<1x128xf32>
    %5 = vector.broadcast %4 : vector<1x128xf32> to vector<256x128xf32>
    %6 = arith.addf %3, %5 : vector<256x128xf32>
    %cst_6 = arith.constant 0.000000e+00 : f32
    %7 = vector.broadcast %cst_6 : f32 to vector<24x128xf32>
    %c0_7 = arith.constant 0 : index
    %c0_8 = arith.constant 0 : index
    %8 = vector.load %arg11[%c0_7, %c0_8] : memref<304x128xf32, #tpu.memory_space<vmem>>, vector<24x128xf32>
    tpu.vector_store %arg11[%c0_7, %c0_8], %7 {strides = array<i32>} : memref<304x128xf32, #tpu.memory_space<vmem>>, vector<24x128xf32>,
    %c280 = arith.constant 280 : index
    %c0_9 = arith.constant 0 : index
    %9 = vector.load %arg11[%c280, %c0_9] : memref<304x128xf32, #tpu.memory_space<vmem>>, vector<24x128xf32>
    tpu.vector_store %arg11[%c280, %c0_9], %7 {strides = array<i32>} : memref<304x128xf32, #tpu.memory_space<vmem>>, vector<24x128xf32>,
    %c24 = arith.constant 24 : index
    %c0_10 = arith.constant 0 : index
    %10 = vector.load %arg11[%c24, %c0_10] : memref<304x128xf32, #tpu.memory_space<vmem>>, vector<256x128xf32>
    tpu.vector_store %arg11[%c24, %c0_10], %6 {strides = array<i32>} : memref<304x128xf32, #tpu.memory_space<vmem>>, vector<256x128xf32>,
    %c0_11 = arith.constant 0 : index
    %c0_12 = arith.constant 0 : index
    %11 = vector.load %arg2[%c0_11, %c0_12] : memref<256x1xf32, #tpu.memory_space<vmem>>, vector<256x1xf32>
    %c0_13 = arith.constant 0 : index
    %c0_14 = arith.constant 0 : index
    %12 = vector.load %arg3[%c0_13, %c0_14] : memref<256x1xf32, #tpu.memory_space<vmem>>, vector<256x1xf32>
    %c7 = arith.constant 7 : index
    %c0_15 = arith.constant 0 : index
    %13 = vector.load %arg11[%c7, %c0_15] : memref<304x128xf32, #tpu.memory_space<vmem>>, vector<256x128xf32>
    %14 = vector.broadcast %11 : vector<256x1xf32> to vector<256x128xf32>
    %15 = arith.mulf %13, %14 : vector<256x128xf32>
    %16 = arith.truncf %15 : vector<256x128xf32> to vector<256x128xbf16>
    %c0_16 = arith.constant 0 : index
    %c0_17 = arith.constant 0 : index
    %17 = vector.load %arg12[%c0_16, %c0_17] : memref<256x1152xbf16, #tpu.memory_space<vmem>>, vector<256x128xbf16>
    tpu.vector_store %arg12[%c0_16, %c0_17], %16 {strides = array<i32>} : memref<256x1152xbf16, #tpu.memory_space<vmem>>, vector<256x128xbf16>,
    %c8 = arith.constant 8 : index
    %c0_18 = arith.constant 0 : index
    %18 = vector.load %arg11[%c8, %c0_18] : memref<304x128xf32, #tpu.memory_space<vmem>>, vector<256x128xf32>
    %19 = arith.truncf %18 : vector<256x128xf32> to vector<256x128xbf16>
    %c0_19 = arith.constant 0 : index
    %c128 = arith.constant 128 : index
    %20 = vector.load %arg12[%c0_19, %c128] : memref<256x1152xbf16, #tpu.memory_space<vmem>>, vector<256x128xbf16>
    tpu.vector_store %arg12[%c0_19, %c128], %19 {strides = array<i32>} : memref<256x1152xbf16, #tpu.memory_space<vmem>>, vector<256x128xbf16>,
    %c9 = arith.constant 9 : index
    %c0_20 = arith.constant 0 : index
    %21 = vector.load %arg11[%c9, %c0_20] : memref<304x128xf32, #tpu.memory_space<vmem>>, vector<256x128xf32>
    %22 = vector.broadcast %12 : vector<256x1xf32> to vector<256x128xf32>
    %23 = arith.mulf %21, %22 : vector<256x128xf32>
    %24 = arith.truncf %23 : vector<256x128xf32> to vector<256x128xbf16>
    %c0_21 = arith.constant 0 : index
    %c256 = arith.constant 256 : index
    %25 = vector.load %arg12[%c0_21, %c256] : memref<256x1152xbf16, #tpu.memory_space<vmem>>, vector<256x128xbf16>
    tpu.vector_store %arg12[%c0_21, %c256], %24 {strides = array<i32>} : memref<256x1152xbf16, #tpu.memory_space<vmem>>, vector<256x128xbf16>,
    %c23 = arith.constant 23 : index
    %c0_22 = arith.constant 0 : index
    %26 = vector.load %arg11[%c23, %c0_22] : memref<304x128xf32, #tpu.memory_space<vmem>>, vector<256x128xf32>
    %27 = vector.broadcast %11 : vector<256x1xf32> to vector<256x128xf32>
    %28 = arith.mulf %26, %27 : vector<256x128xf32>
    %29 = arith.truncf %28 : vector<256x128xf32> to vector<256x128xbf16>
    %c0_23 = arith.constant 0 : index
    %c384 = arith.constant 384 : index
    %30 = vector.load %arg12[%c0_23, %c384] : memref<256x1152xbf16, #tpu.memory_space<vmem>>, vector<256x128xbf16>
    tpu.vector_store %arg12[%c0_23, %c384], %29 {strides = array<i32>} : memref<256x1152xbf16, #tpu.memory_space<vmem>>, vector<256x128xbf16>,
    %c24_24 = arith.constant 24 : index
    %c0_25 = arith.constant 0 : index
    %31 = vector.load %arg11[%c24_24, %c0_25] : memref<304x128xf32, #tpu.memory_space<vmem>>, vector<256x128xf32>
    %32 = arith.truncf %31 : vector<256x128xf32> to vector<256x128xbf16>
    %c0_26 = arith.constant 0 : index
    %c512 = arith.constant 512 : index
    %33 = vector.load %arg12[%c0_26, %c512] : memref<256x1152xbf16, #tpu.memory_space<vmem>>, vector<256x128xbf16>
    tpu.vector_store %arg12[%c0_26, %c512], %32 {strides = array<i32>} : memref<256x1152xbf16, #tpu.memory_space<vmem>>, vector<256x128xbf16>,
    %c25 = arith.constant 25 : index
    %c0_27 = arith.constant 0 : index
    %34 = vector.load %arg11[%c25, %c0_27] : memref<304x128xf32, #tpu.memory_space<vmem>>, vector<256x128xf32>
    %35 = vector.broadcast %12 : vector<256x1xf32> to vector<256x128xf32>
    %36 = arith.mulf %34, %35 : vector<256x128xf32>
    %37 = arith.truncf %36 : vector<256x128xf32> to vector<256x128xbf16>
    %c0_28 = arith.constant 0 : index
    %c640 = arith.constant 640 : index
    %38 = vector.load %arg12[%c0_28, %c640] : memref<256x1152xbf16, #tpu.memory_space<vmem>>, vector<256x128xbf16>
    tpu.vector_store %arg12[%c0_28, %c640], %37 {strides = array<i32>} : memref<256x1152xbf16, #tpu.memory_space<vmem>>, vector<256x128xbf16>,
    %c39 = arith.constant 39 : index
    %c0_29 = arith.constant 0 : index
    %39 = vector.load %arg11[%c39, %c0_29] : memref<304x128xf32, #tpu.memory_space<vmem>>, vector<256x128xf32>
    %40 = vector.broadcast %11 : vector<256x1xf32> to vector<256x128xf32>
    %41 = arith.mulf %39, %40 : vector<256x128xf32>
    %42 = arith.truncf %41 : vector<256x128xf32> to vector<256x128xbf16>
    %c0_30 = arith.constant 0 : index
    %c768 = arith.constant 768 : index
    %43 = vector.load %arg12[%c0_30, %c768] : memref<256x1152xbf16, #tpu.memory_space<vmem>>, vector<256x128xbf16>
    tpu.vector_store %arg12[%c0_30, %c768], %42 {strides = array<i32>} : memref<256x1152xbf16, #tpu.memory_space<vmem>>, vector<256x128xbf16>,
    %c40 = arith.constant 40 : index
    %c0_31 = arith.constant 0 : index
    %44 = vector.load %arg11[%c40, %c0_31] : memref<304x128xf32, #tpu.memory_space<vmem>>, vector<256x128xf32>
    %45 = arith.truncf %44 : vector<256x128xf32> to vector<256x128xbf16>
    %c0_32 = arith.constant 0 : index
    %c896 = arith.constant 896 : index
    %46 = vector.load %arg12[%c0_32, %c896] : memref<256x1152xbf16, #tpu.memory_space<vmem>>, vector<256x128xbf16>
    tpu.vector_store %arg12[%c0_32, %c896], %45 {strides = array<i32>} : memref<256x1152xbf16, #tpu.memory_space<vmem>>, vector<256x128xbf16>,
    %c41 = arith.constant 41 : index
    %c0_33 = arith.constant 0 : index
    %47 = vector.load %arg11[%c41, %c0_33] : memref<304x128xf32, #tpu.memory_space<vmem>>, vector<256x128xf32>
    %48 = vector.broadcast %12 : vector<256x1xf32> to vector<256x128xf32>
    %49 = arith.mulf %47, %48 : vector<256x128xf32>
    %50 = arith.truncf %49 : vector<256x128xf32> to vector<256x128xbf16>
    %c0_34 = arith.constant 0 : index
    %c1024 = arith.constant 1024 : index
    %51 = vector.load %arg12[%c0_34, %c1024] : memref<256x1152xbf16, #tpu.memory_space<vmem>>, vector<256x128xbf16>
    tpu.vector_store %arg12[%c0_34, %c1024], %50 {strides = array<i32>} : memref<256x1152xbf16, #tpu.memory_space<vmem>>, vector<256x128xbf16>,
    %c0_35 = arith.constant 0 : index
    %c0_36 = arith.constant 0 : index
    %52 = vector.load %arg12[%c0_35, %c0_36] : memref<256x1152xbf16, #tpu.memory_space<vmem>>, vector<256x1152xbf16>
    %c0_37 = arith.constant 0 : index
    %c0_38 = arith.constant 0 : index
    %53 = vector.load %arg6[%c0_37, %c0_38] : memref<1152x128xbf16, #tpu.memory_space<vmem>>, vector<1152x128xbf16>
    %cst_39 = arith.constant dense<0.000000e+00> : vector<256x128xf32>
    %54 = tpu.matmul %52, %53, %cst_39 {dimension_numbers = #tpu.dot_dimension_numbers<[1], [0], [0], [1], [0, 0, 1, 1], [], []>} : vector<256x1152xbf16>, vector<1152x128xbf16>, vector<256x128xf32> -> vector<256x128xf32>
    %c0_40 = arith.constant 0 : index
    %c0_41 = arith.constant 0 : index
    %55 = vector.load %arg7[%c0_40, %c0_41] : memref<1x128xf32, #tpu.memory_space<vmem>>, vector<1x128xf32>
    %56 = vector.broadcast %55 : vector<1x128xf32> to vector<256x128xf32>
    %57 = arith.addf %54, %56 : vector<256x128xf32>
    %58 = arith.truncf %57 : vector<256x128xf32> to vector<256x128xbf16>
    %c0_42 = arith.constant 0 : index
    %c0_43 = arith.constant 0 : index
    %59 = vector.load %arg8[%c0_42, %c0_43] : memref<1024x128xbf16, #tpu.memory_space<vmem>>, vector<1024x128xbf16>
    %cst_44 = arith.constant dense<0.000000e+00> : vector<1024x256xf32>
    %60 = tpu.matmul %59, %58, %cst_44 {dimension_numbers = #tpu.dot_dimension_numbers<[1], [1], [0], [0], [0, 0, 1, 0], [], []>} : vector<1024x128xbf16>, vector<256x128xbf16>, vector<1024x256xf32> -> vector<1024x256xf32>
    %61 = vector.extract_strided_slice %60 {offsets = [0, 0], sizes = [1000, 256], strides = [1, 1]} : vector<1024x256xf32> to vector<1000x256xf32>
    %c0_45 = arith.constant 0 : index
    %c0_46 = arith.constant 0 : index
    %62 = vector.load %arg9[%c0_45, %c0_46] : memref<1024x1xf32, #tpu.memory_space<vmem>>, vector<1000x1xf32>
    %63 = vector.broadcast %62 : vector<1000x1xf32> to vector<1000x256xf32>
    %64 = arith.addf %61, %63 : vector<1000x256xf32>
    %c0_47 = arith.constant 0 : index
    %c0_48 = arith.constant 0 : index
    %c0_49 = arith.constant 0 : index
    %65 = vector.load %arg10[%c0_47, %c0_48, %c0_49] : memref<1x1000x256xf32, #tpu.memory_space<vmem>>, vector<1x1000x256xf32>
    %66 = vector.shape_cast %65 : vector<1x1000x256xf32> to vector<1000x256xf32>
    %67 = vector.shape_cast %64 : vector<1000x256xf32> to vector<1x1000x256xf32>
    tpu.vector_store %arg10[%c0_47, %c0_48, %c0_49], %67 {strides = array<i32>} : memref<1x1000x256xf32, #tpu.memory_space<vmem>>, vector<1x1000x256xf32>,
    return
  }
  func.func @transform_0(%arg0: i32) -> (i32, i32, i32) {
    %c0_i32 = arith.constant 0 : i32
    %c0_i32_0 = arith.constant 0 : i32
    %c0_i32_1 = arith.constant 0 : i32
    return %arg0, %c0_i32, %c0_i32_0 : i32, i32, i32
  }
  func.func @transform_1(%arg0: i32) -> (i32, i32) {
    %c0_i32 = arith.constant 0 : i32
    %c0_i32_0 = arith.constant 0 : i32
    %c0_i32_1 = arith.constant 0 : i32
    return %c0_i32, %c0_i32_0 : i32, i32
  }
  func.func @transform_2(%arg0: i32) -> (i32, i32) {
    %c0_i32 = arith.constant 0 : i32
    %c0_i32_0 = arith.constant 0 : i32
    %c0_i32_1 = arith.constant 0 : i32
    return %c0_i32, %c0_i32_0 : i32, i32
  }
  func.func @transform_3(%arg0: i32) -> (i32, i32) {
    %c0_i32 = arith.constant 0 : i32
    %c0_i32_0 = arith.constant 0 : i32
    %c0_i32_1 = arith.constant 0 : i32
    return %c0_i32, %c0_i32_0 : i32, i32
  }
  func.func @transform_4(%arg0: i32) -> (i32, i32) {
    %c0_i32 = arith.constant 0 : i32
    %c0_i32_0 = arith.constant 0 : i32
    %c0_i32_1 = arith.constant 0 : i32
    return %c0_i32, %c0_i32_0 : i32, i32
  }
  func.func @transform_5(%arg0: i32) -> (i32, i32) {
    %c0_i32 = arith.constant 0 : i32
    %c0_i32_0 = arith.constant 0 : i32
    %c0_i32_1 = arith.constant 0 : i32
    return %c0_i32, %c0_i32_0 : i32, i32
  }
  func.func @transform_6(%arg0: i32) -> (i32, i32) {
    %c0_i32 = arith.constant 0 : i32
    %c0_i32_0 = arith.constant 0 : i32
    %c0_i32_1 = arith.constant 0 : i32
    return %c0_i32, %c0_i32_0 : i32, i32
  }
  func.func @transform_7(%arg0: i32) -> (i32, i32) {
    %c0_i32 = arith.constant 0 : i32
    %c0_i32_0 = arith.constant 0 : i32
    %c0_i32_1 = arith.constant 0 : i32
    return %c0_i32, %c0_i32_0 : i32, i32
  }
  func.func @transform_8(%arg0: i32) -> (i32, i32) {
    %c0_i32 = arith.constant 0 : i32
    %c0_i32_0 = arith.constant 0 : i32
    %c0_i32_1 = arith.constant 0 : i32
    return %c0_i32, %c0_i32_0 : i32, i32
  }
  func.func @transform_9(%arg0: i32) -> (i32, i32, i32) {
    %c0_i32 = arith.constant 0 : i32
    %c0_i32_0 = arith.constant 0 : i32
    %c0_i32_1 = arith.constant 0 : i32
    return %arg0, %c0_i32, %c0_i32_0 : i32, i32, i32
  }
}

</mosaic_0001>

<llo_original>
// kernel: model_forward.1
$region0: #{model_forward.1}
  #allocation0 [shape = 'u32[]', space=smem, size = 0x4, offset = 0x4, fixed_abs, tag = 'smem constant byte address 0x4 - core index']
  #allocation1 [shape = 'u32[144,128]{1,0:T(1,128)}', space=vmem, size = 0x12000, scoped, tag = 'internal scratch']
  #allocation2 [shape = 'f32[304,128]{1,0:T(8,128)}', space=vmem, size = 0x26000, scoped, tag = 'scratch operand']
  #allocation3 [shape = 'bf16[256,1152]{1,0:T(8,128)(2,1)}', space=vmem, size = 0x90000, scoped, tag = 'scratch operand']
  %s0 = inlined_call_operand.vmem [shape: bf16[2,256,32], index: 0, kind: input, shape index: {}]
  %s1 = inlined_call_operand.vmem [shape: f32[256,1], index: 1, kind: input, shape index: {}]
  %s2 = inlined_call_operand.vmem [shape: f32[256,1], index: 2, kind: input, shape index: {}]
  %s3 = inlined_call_operand.vmem [shape: bf16[32,128], index: 3, kind: input, shape index: {}]
  %s4 = inlined_call_operand.vmem [shape: f32[1,128], index: 4, kind: input, shape index: {}]
  %s5 = inlined_call_operand.vmem [shape: bf16[1152,128], index: 5, kind: input, shape index: {}]
  %s6 = inlined_call_operand.vmem [shape: f32[1,128], index: 6, kind: input, shape index: {}]
  %s7 = inlined_call_operand.vmem [shape: bf16[1024,128], index: 7, kind: input, shape index: {}]
  %s8 = inlined_call_operand.vmem [shape: f32[1024,1], index: 8, kind: input, shape index: {}]
  %s9 = inlined_call_operand.vmem [shape: f32[2,1000,256], index: 9, kind: output, shape index: {}]
  %s10 = sld [smem:[#allocation0]]
  $region69: #{model_forward.1} parent=0
    _
  %s12 = ssub.s32 1, %s10
  %s13 = scalar_select 0, %s12, %s10
  loop: start=0, step=1, limit=4
  $region2: #{model_forward.1} parent=0 // loop_pre_header
    _
  $region3: #{model_forward.1} parent=0 // loop_header
    %s15 = sphi 0, %s19
    %p16 = scmp.ge.s32.totalorder %s15, 4
    %s25 = sphi 0, %s27
    %s28 = sphi 0, %s25
    %s29 = sphi 0, %s28
    %s45 = sphi 0, %s29
    %s49 = sphi 0, %s49
    %s51 = sphi 0, %s49
    %s52 = sphi 0, %s51
    %s66 = sphi 0, %s52
    %s70 = sphi 0, %s70
    %s72 = sphi 0, %s70
    %s73 = sphi 0, %s72
    %s87 = sphi 0, %s73
    %s91 = sphi 0, %s91
    %s93 = sphi 0, %s91
    %s94 = sphi 0, %s93
    %s108 = sphi 0, %s94
    %s112 = sphi 0, %s112
    %s114 = sphi 0, %s112
    %s115 = sphi 0, %s114
    %s129 = sphi 0, %s115
    %s133 = sphi 0, %s133
    %s135 = sphi 0, %s133
    %s136 = sphi 0, %s135
    %s150 = sphi 0, %s136
    %s154 = sphi 0, %s154
    %s156 = sphi 0, %s154
    %s157 = sphi 0, %s156
    %s171 = sphi 0, %s157
    %s175 = sphi 0, %s175
    %s177 = sphi 0, %s175
    %s178 = sphi 0, %s177
    %s192 = sphi 0, %s178
    %s196 = sphi 0, %s196
    %s198 = sphi 0, %s196
    %s199 = sphi 0, %s198
    %s213 = sphi 0, %s199
    %s219 = sphi 0, %s221
    %s222 = sphi 0, %s219
    %s223 = sphi 0, %s222
    %s239 = sphi 0, %s223
  $region4: #{model_forward.1} parent=0 // loop_header_branch
    %18 = sbr.rel (%p16) target = $region8
  $region5: #{model_forward.1} parent=0 // loop_body
    %s20 = ssub.s32 %s15, 1
    %s21 = ssub.s32 %s15, 2
    %s22 = sadd.s32 %s15, 1
    %s23 = ssub.s32 %s15, %s22
    %p24 = scmp.eq.s32.totalorder %s23, 0
    %s26 = sadd.s32 %s25, 1
    %s27 = scalar_select %p24, %s25, %s26
    %p30 = pneg %p24
    %p31 = scmp.eq.s32.totalorder %s15, 1
    %p32 = por %p30, %p31
    %p33 = scmp.ne.s32.totalorder %s25, %s28
    %p34 = scmp.eq.s32.totalorder %s15, 0
    %p35 = por %p33, %p34
    %p36 = scmp.ne.s32.totalorder %s25, %s28
    %p37 = scmp.eq.s32.totalorder %s20, 1
    %p38 = por %p36, %p37
    %p39 = scmp.ne.s32.totalorder %s28, %s29
    %p40 = scmp.eq.s32.totalorder %s20, 0
    %p41 = por %p39, %p40
    %p42 = scmp.ne.s32.totalorder %s28, %s29
    %p43 = scmp.eq.s32.totalorder %s21, 1
    %p44 = por %p42, %p43
    %p46 = scmp.ne.s32.totalorder %s29, %s45
    %p47 = scmp.eq.s32.totalorder %s21, 0
    %p48 = por %p46, %p47
    %s50 = sadd.s32 %s49, 1
    %p53 = scmp.eq.s32.totalorder %s15, 1
    %p54 = scmp.ne.s32.totalorder %s49, %s51
    %p55 = scmp.eq.s32.totalorder %s15, 0
    %p56 = por %p54, %p55
    %p57 = scmp.ne.s32.totalorder %s49, %s51
    %p58 = scmp.eq.s32.totalorder %s20, 1
    %p59 = por %p57, %p58
    %p60 = scmp.ne.s32.totalorder %s51, %s52
    %p61 = scmp.eq.s32.totalorder %s20, 0
    %p62 = por %p60, %p61
    %p63 = scmp.ne.s32.totalorder %s51, %s52
    %p64 = scmp.eq.s32.totalorder %s21, 1
    %p65 = por %p63, %p64
    %p67 = scmp.ne.s32.totalorder %s52, %s66
    %p68 = scmp.eq.s32.totalorder %s21, 0
    %p69 = por %p67, %p68
    %s71 = sadd.s32 %s70, 1
    %p74 = scmp.eq.s32.totalorder %s15, 1
    %p75 = scmp.ne.s32.totalorder %s70, %s72
    %p76 = scmp.eq.s32.totalorder %s15, 0
    %p77 = por %p75, %p76
    %p78 = scmp.ne.s32.totalorder %s70, %s72
    %p79 = scmp.eq.s32.totalorder %s20, 1
    %p80 = por %p78, %p79
    %p81 = scmp.ne.s32.totalorder %s72, %s73
    %p82 = scmp.eq.s32.totalorder %s20, 0
    %p83 = por %p81, %p82
    %p84 = scmp.ne.s32.totalorder %s72, %s73
    %p85 = scmp.eq.s32.totalorder %s21, 1
    %p86 = por %p84, %p85
    %p88 = scmp.ne.s32.totalorder %s73, %s87
    %p89 = scmp.eq.s32.totalorder %s21, 0
    %p90 = por %p88, %p89
    %s92 = sadd.s32 %s91, 1
    %p95 = scmp.eq.s32.totalorder %s15, 1
    %p96 = scmp.ne.s32.totalorder %s91, %s93
    %p97 = scmp.eq.s32.totalorder %s15, 0
    %p98 = por %p96, %p97
    %p99 = scmp.ne.s32.totalorder %s91, %s93
    %p100 = scmp.eq.s32.totalorder %s20, 1
    %p101 = por %p99, %p100
    %p102 = scmp.ne.s32.totalorder %s93, %s94
    %p103 = scmp.eq.s32.totalorder %s20, 0
    %p104 = por %p102, %p103
    %p105 = scmp.ne.s32.totalorder %s93, %s94
    %p106 = scmp.eq.s32.totalorder %s21, 1
    %p107 = por %p105, %p106
    %p109 = scmp.ne.s32.totalorder %s94, %s108
    %p110 = scmp.eq.s32.totalorder %s21, 0
    %p111 = por %p109, %p110
    %s113 = sadd.s32 %s112, 1
    %p116 = scmp.eq.s32.totalorder %s15, 1
    %p117 = scmp.ne.s32.totalorder %s112, %s114
    %p118 = scmp.eq.s32.totalorder %s15, 0
    %p119 = por %p117, %p118
    %p120 = scmp.ne.s32.totalorder %s112, %s114
    %p121 = scmp.eq.s32.totalorder %s20, 1
    %p122 = por %p120, %p121
    %p123 = scmp.ne.s32.totalorder %s114, %s115
    %p124 = scmp.eq.s32.totalorder %s20, 0
    %p125 = por %p123, %p124
    %p126 = scmp.ne.s32.totalorder %s114, %s115
    %p127 = scmp.eq.s32.totalorder %s21, 1
    %p128 = por %p126, %p127
    %p130 = scmp.ne.s32.totalorder %s115, %s129
    %p131 = scmp.eq.s32.totalorder %s21, 0
    %p132 = por %p130, %p131
    %s134 = sadd.s32 %s133, 1
    %p137 = scmp.eq.s32.totalorder %s15, 1
    %p138 = scmp.ne.s32.totalorder %s133, %s135
    %p139 = scmp.eq.s32.totalorder %s15, 0
    %p140 = por %p138, %p139
    %p141 = scmp.ne.s32.totalorder %s133, %s135
    %p142 = scmp.eq.s32.totalorder %s20, 1
    %p143 = por %p141, %p142
    %p144 = scmp.ne.s32.totalorder %s135, %s136
    %p145 = scmp.eq.s32.totalorder %s20, 0
    %p146 = por %p144, %p145
    %p147 = scmp.ne.s32.totalorder %s135, %s136
    %p148 = scmp.eq.s32.totalorder %s21, 1
    %p149 = por %p147, %p148
    %p151 = scmp.ne.s32.totalorder %s136, %s150
    %p152 = scmp.eq.s32.totalorder %s21, 0
    %p153 = por %p151, %p152
    %s155 = sadd.s32 %s154, 1
    %p158 = scmp.eq.s32.totalorder %s15, 1
    %p159 = scmp.ne.s32.totalorder %s154, %s156
    %p160 = scmp.eq.s32.totalorder %s15, 0
    %p161 = por %p159, %p160
    %p162 = scmp.ne.s32.totalorder %s154, %s156
    %p163 = scmp.eq.s32.totalorder %s20, 1
    %p164 = por %p162, %p163
    %p165 = scmp.ne.s32.totalorder %s156, %s157
    %p166 = scmp.eq.s32.totalorder %s20, 0
    %p167 = por %p165, %p166
    %p168 = scmp.ne.s32.totalorder %s156, %s157
    %p169 = scmp.eq.s32.totalorder %s21, 1
    %p170 = por %p168, %p169
    %p172 = scmp.ne.s32.totalorder %s157, %s171
    %p173 = scmp.eq.s32.totalorder %s21, 0
    %p174 = por %p172, %p173
    %s176 = sadd.s32 %s175, 1
    %p179 = scmp.eq.s32.totalorder %s15, 1
    %p180 = scmp.ne.s32.totalorder %s175, %s177
    %p181 = scmp.eq.s32.totalorder %s15, 0
    %p182 = por %p180, %p181
    %p183 = scmp.ne.s32.totalorder %s175, %s177
    %p184 = scmp.eq.s32.totalorder %s20, 1
    %p185 = por %p183, %p184
    %p186 = scmp.ne.s32.totalorder %s177, %s178
    %p187 = scmp.eq.s32.totalorder %s20, 0
    %p188 = por %p186, %p187
    %p189 = scmp.ne.s32.totalorder %s177, %s178
    %p190 = scmp.eq.s32.totalorder %s21, 1
    %p191 = por %p189, %p190
    %p193 = scmp.ne.s32.totalorder %s178, %s192
    %p194 = scmp.eq.s32.totalorder %s21, 0
    %p195 = por %p193, %p194
    %s197 = sadd.s32 %s196, 1
    %p200 = scmp.eq.s32.totalorder %s15, 1
    %p201 = scmp.ne.s32.totalorder %s196, %s198
    %p202 = scmp.eq.s32.totalorder %s15, 0
    %p203 = por %p201, %p202
    %p204 = scmp.ne.s32.totalorder %s196, %s198
    %p205 = scmp.eq.s32.totalorder %s20, 1
    %p206 = por %p204, %p205
    %p207 = scmp.ne.s32.totalorder %s198, %s199
    %p208 = scmp.eq.s32.totalorder %s20, 0
    %p209 = por %p207, %p208
    %p210 = scmp.ne.s32.totalorder %s198, %s199
    %p211 = scmp.eq.s32.totalorder %s21, 1
    %p212 = por %p210, %p211
    %p214 = scmp.ne.s32.totalorder %s199, %s213
    %p215 = scmp.eq.s32.totalorder %s21, 0
    %p216 = por %p214, %p215
    %s217 = ssub.s32 %s15, %s22
    %p218 = scmp.eq.s32.totalorder %s217, 0
    %s220 = sadd.s32 %s219, 1
    %s221 = scalar_select %p218, %s219, %s220
    %p224 = pneg %p218
    %p225 = scmp.eq.s32.totalorder %s15, 1
    %p226 = por %p224, %p225
    %p227 = scmp.ne.s32.totalorder %s219, %s222
    %p228 = scmp.eq.s32.totalorder %s15, 0
    %p229 = por %p227, %p228
    %p230 = scmp.ne.s32.totalorder %s219, %s222
    %p231 = scmp.eq.s32.totalorder %s20, 1
    %p232 = por %p230, %p231
    %p233 = scmp.ne.s32.totalorder %s222, %s223
    %p234 = scmp.eq.s32.totalorder %s20, 0
    %p235 = por %p233, %p234
    %p236 = scmp.ne.s32.totalorder %s222, %s223
    %p237 = scmp.eq.s32.totalorder %s21, 1
    %p238 = por %p236, %p237
    %p240 = scmp.ne.s32.totalorder %s223, %s239
    %p241 = scmp.eq.s32.totalorder %s21, 0
    %p242 = por %p240, %p241
    %p243 = scmp.le.s32.totalorder 1, %s15
    %p244 = scmp.lt.s32.totalorder %s15, 3
    %p245 = pnand %p243, %p244
    %p246 = pneg %p245
    // Predicated region
    $region9: #{model_forward.1} parent=5 // pred_check
      _
    $region10: #{model_forward.1} parent=5 // pred_check_branch
      %248 = sbr.rel (%p245) target = $region12
    $region11: #{model_forward.1} parent=5 // pred_region
      %s249 = ssub.s32 %s15, 1
      // Predicated region
      $region13: #{model_forward.1} parent=11 // pred_check
        %p250 = pneg %p62
      $region14: #{model_forward.1} parent=11 // pred_check_branch
        %252 = sbr.rel (%p250) target = $region16
      $region15: #{model_forward.1} parent=11 // pred_region
        _
      $region16: #{model_forward.1} parent=11 // pred_fallthru
        _
      // Predicated region
      $region17: #{model_forward.1} parent=11 // pred_check
        %p253 = pneg %p83
      $region18: #{model_forward.1} parent=11 // pred_check_branch
        %255 = sbr.rel (%p253) target = $region20
      $region19: #{model_forward.1} parent=11 // pred_region
        _
      $region20: #{model_forward.1} parent=11 // pred_fallthru
        _
      // Predicated region
      $region21: #{model_forward.1} parent=11 // pred_check
        %p256 = pneg %p104
      $region22: #{model_forward.1} parent=11 // pred_check_branch
        %258 = sbr.rel (%p256) target = $region24
      $region23: #{model_forward.1} parent=11 // pred_region
        _
      $region24: #{model_forward.1} parent=11 // pred_fallthru
        _
      // Predicated region
      $region25: #{model_forward.1} parent=11 // pred_check
        %p259 = pneg %p125
      $region26: #{model_forward.1} parent=11 // pred_check_branch
        %261 = sbr.rel (%p259) target = $region28
      $region27: #{model_forward.1} parent=11 // pred_region
        _
      $region28: #{model_forward.1} parent=11 // pred_fallthru
        _
      // Predicated region
      $region29: #{model_forward.1} parent=11 // pred_check
        %p262 = pneg %p146
      $region30: #{model_forward.1} parent=11 // pred_check_branch
        %264 = sbr.rel (%p262) target = $region32
      $region31: #{model_forward.1} parent=11 // pred_region
        _
      $region32: #{model_forward.1} parent=11 // pred_fallthru
        _
      // Predicated region
      $region33: #{model_forward.1} parent=11 // pred_check
        %p265 = pneg %p167
      $region34: #{model_forward.1} parent=11 // pred_check_branch
        %267 = sbr.rel (%p265) target = $region36
      $region35: #{model_forward.1} parent=11 // pred_region
        _
      $region36: #{model_forward.1} parent=11 // pred_fallthru
        _
      // Predicated region
      $region37: #{model_forward.1} parent=11 // pred_check
        %p268 = pneg %p188
      $region38: #{model_forward.1} parent=11 // pred_check_branch
        %270 = sbr.rel (%p268) target = $region40
      $region39: #{model_forward.1} parent=11 // pred_region
        _
      $region40: #{model_forward.1} parent=11 // pred_fallthru
        _
      // Predicated region
      $region41: #{model_forward.1} parent=11 // pred_check
        %p271 = pneg %p209
      $region42: #{model_forward.1} parent=11 // pred_check_branch
        %273 = sbr.rel (%p271) target = $region44
      $region43: #{model_forward.1} parent=11 // pred_region
        _
      $region44: #{model_forward.1} parent=11 // pred_fallthru
        _
    $region12: #{model_forward.1} parent=5 // pred_fallthru
      _
    %p274 = scmp.lt.s32.totalorder %s15, 2
    // Predicated region
    $region45: #{model_forward.1} parent=5 // pred_check
      %p275 = pneg %p274
    $region46: #{model_forward.1} parent=5 // pred_check_branch
      %277 = sbr.rel (%p275) target = $region48
    $region47: #{model_forward.1} parent=5 // pred_region
      // Predicated region
      $region49: #{model_forward.1} parent=47 // pred_check
        %p278 = pneg %p35
      $region50: #{model_forward.1} parent=47 // pred_check_branch
        %280 = sbr.rel (%p278) target = $region52
      $region51: #{model_forward.1} parent=47 // pred_region
        %p281 = scmp.lt.s32.totalorder %s15, 1
        %s282 = scalar_select %p281, %s15, 1
        %s283 = smul.addr %s282, 32
        %s284 = smul.addr %s283, 4
        %s285 = scalar_lea.vmem %s0, %s284
      $region52: #{model_forward.1} parent=47 // pred_fallthru
        _
    $region48: #{model_forward.1} parent=5 // pred_fallthru
      _
    %p286 = scmp.le.s32.totalorder 1, %s15
    %p287 = scmp.lt.s32.totalorder %s15, 3
    %p288 = pnand %p286, %p287
    %p289 = pneg %p288
    // Predicated region
    $region53: #{model_forward.1} parent=5 // pred_check
      _
    $region54: #{model_forward.1} parent=5 // pred_check_branch
      %291 = sbr.rel (%p288) target = $region56
    $region55: #{model_forward.1} parent=5 // pred_region
      %s292 = ssub.s32 %s15, 1
      %p293 = scmp.lt.s32.totalorder %s20, 1
      %s294 = scalar_select %p293, %s20, 1
      %s295 = smul.addr %s294, 32
      %s296 = smul.addr %s295, 4
      %s297 = scalar_lea.vmem %s0, %s296
      %p298 = pneg %p41
      %p299 = pneg %p38
      %p300 = pneg %p62
      %p301 = pneg %p59
      %p302 = pneg %p83
      %p303 = pneg %p80
      %p304 = pneg %p104
      %p305 = pneg %p101
      %p306 = pneg %p125
      %p307 = pneg %p122
      %p308 = pneg %p146
      %p309 = pneg %p143
      %p310 = pneg %p167
      %p311 = pneg %p164
      %p312 = pneg %p188
      %p313 = pneg %p185
      %p314 = pneg %p209
      %p315 = pneg %p206
      %p316 = pneg %p235
      %p317 = pneg %p232
      %p318 = scmp.lt.s32.totalorder %s20, 1
      %s319 = scalar_select %p318, %s20, 1
      %s320 = smul.addr %s319, 250
      %s321 = smul.addr %s320, 8
      %s322 = scalar_lea.vmem %s9, %s321
      %p323 = scmp.lt.s32.totalorder %s20, 1
      %s324 = scalar_select %p323, %s20, 1
      %s325 = smul.addr %s324, 32
      %s326 = smul.addr %s325, 4
      %s327 = scalar_lea.vmem %s0, %s326
      %p328 = scmp.lt.s32.totalorder %s20, 1
      %s329 = scalar_select %p328, %s20, 1
      %s330 = smul.addr %s329, 250
      %s331 = smul.addr %s330, 8
      %s332 = scalar_lea.vmem %s9, %s331
      %v334 = vld [vmem:[%s327] sm:$0xf]
      %v335 = vld [vmem:[%s327 + $0x4] sm:$0xf]
      %v336 = vld [vmem:[%s327 + $0x8] sm:$0xf]
      %v337 = vld [vmem:[%s327 + $0xc] sm:$0xf]
      %v338 = vld [vmem:[%s327 + $0x10] sm:$0xf]
      %v339 = vld [vmem:[%s327 + $0x14] sm:$0xf]
      %v340 = vld [vmem:[%s327 + $0x18] sm:$0xf]
      %v341 = vld [vmem:[%s327 + $0x1c] sm:$0xf]
      %v342 = vld [vmem:[%s327 + $0x20] sm:$0xf]
      %v343 = vld [vmem:[%s327 + $0x24] sm:$0xf]
      %v344 = vld [vmem:[%s327 + $0x28] sm:$0xf]
      %v345 = vld [vmem:[%s327 + $0x2c] sm:$0xf]
      %v346 = vld [vmem:[%s327 + $0x30] sm:$0xf]
      %v347 = vld [vmem:[%s327 + $0x34] sm:$0xf]
      %v348 = vld [vmem:[%s327 + $0x38] sm:$0xf]
      %v349 = vld [vmem:[%s327 + $0x3c] sm:$0xf]
      %v350 = vld [vmem:[%s327 + $0x40] sm:$0xf]
      %v351 = vld [vmem:[%s327 + $0x44] sm:$0xf]
      %v352 = vld [vmem:[%s327 + $0x48] sm:$0xf]
      %v353 = vld [vmem:[%s327 + $0x4c] sm:$0xf]
      %v354 = vld [vmem:[%s327 + $0x50] sm:$0xf]
      %v355 = vld [vmem:[%s327 + $0x54] sm:$0xf]
      %v356 = vld [vmem:[%s327 + $0x58] sm:$0xf]
      %v357 = vld [vmem:[%s327 + $0x5c] sm:$0xf]
      %v358 = vld [vmem:[%s327 + $0x60] sm:$0xf]
      %v359 = vld [vmem:[%s327 + $0x64] sm:$0xf]
      %v360 = vld [vmem:[%s327 + $0x68] sm:$0xf]
      %v361 = vld [vmem:[%s327 + $0x6c] sm:$0xf]
      %v362 = vld [vmem:[%s327 + $0x70] sm:$0xf]
      %v363 = vld [vmem:[%s327 + $0x74] sm:$0xf]
      %v364 = vld [vmem:[%s327 + $0x78] sm:$0xf]
      %v365 = vld [vmem:[%s327 + $0x7c] sm:$0xf]
      %v366 = vld [vmem:[%s3] sm:$0xf]
      %v367 = vld [vmem:[%s3 + $0x4] sm:$0xf]
      %v368 = vld [vmem:[%s3 + $0x8] sm:$0xf]
      %v369 = vld [vmem:[%s3 + $0xc] sm:$0xf]
      %v370 = vld [vmem:[%s4] sm:$0x1]
      %v372 = vlaneseq
      %v373 = vshrl.u32 %v372, 7
      %v374 = vsub.s32 0, %v373
      %v375 = vrot.slane %v370, %v374
      %v409 = vunpack.c.l.b16 %v334
      %v410 = vunpack.c.l.b16 %v335
      %v411 = vunpack.c.l.b16 %v336
      %v412 = vunpack.c.l.b16 %v337
      %v413 = vunpack.c.l.b16 %v338
      %v414 = vunpack.c.l.b16 %v339
      %v415 = vunpack.c.l.b16 %v340
      %v416 = vunpack.c.l.b16 %v341
      %v417 = vunpack.c.l.b16 %v342
      %v418 = vunpack.c.l.b16 %v343
      %v419 = vunpack.c.l.b16 %v344
      %v420 = vunpack.c.l.b16 %v345
      %v421 = vunpack.c.l.b16 %v346
      %v422 = vunpack.c.l.b16 %v347
      %v423 = vunpack.c.l.b16 %v348
      %v424 = vunpack.c.l.b16 %v349
      %v425 = vunpack.c.l.b16 %v350
      %v426 = vunpack.c.l.b16 %v351
      %v427 = vunpack.c.l.b16 %v352
      %v428 = vunpack.c.l.b16 %v353
      %v429 = vunpack.c.l.b16 %v354
      %v430 = vunpack.c.l.b16 %v355
      %v431 = vunpack.c.l.b16 %v356
      %v432 = vunpack.c.l.b16 %v357
      %v433 = vunpack.c.l.b16 %v358
      %v434 = vunpack.c.l.b16 %v359
      %v435 = vunpack.c.l.b16 %v360
      %v436 = vunpack.c.l.b16 %v361
      %v437 = vunpack.c.l.b16 %v362
      %v438 = vunpack.c.l.b16 %v363
      %v439 = vunpack.c.l.b16 %v364
      %v440 = vunpack.c.l.b16 %v365
      %v441 = vpack.c.b16 %v410, %v409
      %v442 = vpack.c.b16 %v412, %v411
      %v443 = vpack.c.b16 %v414, %v413
      %v444 = vpack.c.b16 %v416, %v415
      %v445 = vpack.c.b16 %v418, %v417
      %v446 = vpack.c.b16 %v420, %v419
      %v447 = vpack.c.b16 %v422, %v421
      %v448 = vpack.c.b16 %v424, %v423
      %v449 = vpack.c.b16 %v426, %v425
      %v450 = vpack.c.b16 %v428, %v427
      %v451 = vpack.c.b16 %v430, %v429
      %v452 = vpack.c.b16 %v432, %v431
      %v453 = vpack.c.b16 %v434, %v433
      %v454 = vpack.c.b16 %v436, %v435
      %v455 = vpack.c.b16 %v438, %v437
      %v456 = vpack.c.b16 %v440, %v439
      %v461 = vunpack.c.l.b16 %v366
      %v462 = vunpack.c.l.b16 %v367
      %v463 = vunpack.c.l.b16 %v368
      %v464 = vunpack.c.l.b16 %v369
      %v465 = vpack.c.b16 %v462, %v461
      %v466 = vpack.c.b16 %v464, %v463
      %vm469 = vcmask 261120
      %v471 = vsel %vm469, %v441, 0
      %v474 = vsel %vm469, %v442, 0
      %v477 = vsel %vm469, %v443, 0
      %v480 = vsel %vm469, %v444, 0
      %v483 = vsel %vm469, %v445, 0
      %v486 = vsel %vm469, %v446, 0
      %v489 = vsel %vm469, %v447, 0
      %v492 = vsel %vm469, %v448, 0
      %v495 = vsel %vm469, %v449, 0
      %v498 = vsel %vm469, %v450, 0
      %v501 = vsel %vm469, %v451, 0
      %v504 = vsel %vm469, %v452, 0
      %v507 = vsel %vm469, %v453, 0
      %v510 = vsel %vm469, %v454, 0
      %v513 = vsel %vm469, %v455, 0
      %v516 = vsel %vm469, %v456, 0
      %518 = vmatprep.subr.bf16.mxu0 0
      %519 = vmatpush1.bf16.msra.mxu0 0
      %520 = vmatprep.subr.bf16.mxu0 0
      %521 = vmatpush1.bf16.msra.mxu0 0
      %522 = vmatprep.subr.bf16.mxu0 0
      %523 = vmatpush1.bf16.msra.mxu0 0
      %524 = vmatprep.subr.bf16.mxu0 0
      %525 = vmatpush1.bf16.msra.mxu0 0
      %526 = vmatprep.subr.bf16.mxu0 0
      %527 = vmatpush1.bf16.msra.mxu0 0
      %528 = vmatprep.subr.bf16.mxu0 0
      %529 = vmatpush1.bf16.msra.mxu0 0
      %530 = vmatprep.subr.bf16.mxu0 0
      %531 = vmatpush1.bf16.msra.mxu0 %v466
      %532 = vmatprep.subr.bf16.mxu0 0
      %533 = vmatpush1.bf16.msra.mxu0 %v465
      %534 = vmatprep.subr.bf16.mxu0 0
      %535 = vmatpush2.bf16.msra.mxu0 0
      %536 = vmatprep.subr.bf16.mxu0 0
      %537 = vmatpush2.bf16.msra.mxu0 0
      %538 = vmatprep.subr.bf16.mxu0 0
      %539 = vmatpush2.bf16.msra.mxu0 0
      %540 = vmatprep.subr.bf16.mxu0 0
      %541 = vmatpush2.bf16.msra.mxu0 0
      %542 = vmatprep.subr.bf16.mxu0 0
      %543 = vmatpush2.bf16.msra.mxu0 0
      %544 = vmatprep.subr.bf16.mxu0 0
      %545 = vmatpush2.bf16.msra.mxu0 0
      %546 = vmatprep.subr.bf16.mxu0 0
      %547 = vmatpush2.bf16.msra.mxu0 0
      %548 = vmatprep.subr.bf16.mxu0 0
      %549 = vmatpush2.bf16.msra.mxu0 0
      %550 = vmatprep.mubr.bf16.mxu0 0
      %551 = vmatmul.mubr.bf16.gmra.mxu0 %v471
      %v552 = vpop.f32.mrf.mxu0
      %v553 = vadd.f32 %v375, %v552
      %v554 = vpop.f32.mrf.mxu0
      %v555 = vpop.f32.mrf.mxu0
      %v556 = vadd.f32 %v375, %v555
      %v557 = vpop.f32.mrf.mxu0
      %558 = vmatprep.mubr.bf16.mxu0 0
      %559 = vmatmul.mubr.bf16.gmra.mxu0 %v474
      %v560 = vpop.f32.mrf.mxu0
      %v561 = vadd.f32 %v375, %v560
      %v562 = vpop.f32.mrf.mxu0
      %v563 = vpop.f32.mrf.mxu0
      %v564 = vadd.f32 %v375, %v563
      %v565 = vpop.f32.mrf.mxu0
      %566 = vmatprep.mubr.bf16.mxu0 0
      %567 = vmatmul.mubr.bf16.gmra.mxu0 %v477
      %v568 = vpop.f32.mrf.mxu0
      %v569 = vadd.f32 %v375, %v568
      %v570 = vpop.f32.mrf.mxu0
      %v571 = vpop.f32.mrf.mxu0
      %v572 = vadd.f32 %v375, %v571
      %v573 = vpop.f32.mrf.mxu0
      %574 = vmatprep.mubr.bf16.mxu0 0
      %575 = vmatmul.mubr.bf16.gmra.mxu0 %v480
      %v576 = vpop.f32.mrf.mxu0
      %v577 = vadd.f32 %v375, %v576
      %v578 = vpop.f32.mrf.mxu0
      %v579 = vpop.f32.mrf.mxu0
      %v580 = vadd.f32 %v375, %v579
      %v581 = vpop.f32.mrf.mxu0
      %582 = vmatprep.mubr.bf16.mxu0 0
      %583 = vmatmul.mubr.bf16.gmra.mxu0 %v483
      %v584 = vpop.f32.mrf.mxu0
      %v585 = vadd.f32 %v375, %v584
      %v586 = vpop.f32.mrf.mxu0
      %v587 = vpop.f32.mrf.mxu0
      %v588 = vadd.f32 %v375, %v587
      %v589 = vpop.f32.mrf.mxu0
      %590 = vmatprep.mubr.bf16.mxu0 0
      %591 = vmatmul.mubr.bf16.gmra.mxu0 %v486
      %v592 = vpop.f32.mrf.mxu0
      %v593 = vadd.f32 %v375, %v592
      %v594 = vpop.f32.mrf.mxu0
      %v595 = vpop.f32.mrf.mxu0
      %v596 = vadd.f32 %v375, %v595
      %v597 = vpop.f32.mrf.mxu0
      %598 = vmatprep.mubr.bf16.mxu0 0
      %599 = vmatmul.mubr.bf16.gmra.mxu0 %v489
      %v600 = vpop.f32.mrf.mxu0
      %v601 = vadd.f32 %v375, %v600
      %v602 = vpop.f32.mrf.mxu0
      %v603 = vpop.f32.mrf.mxu0
      %v604 = vadd.f32 %v375, %v603
      %v605 = vpop.f32.mrf.mxu0
      %606 = vmatprep.mubr.bf16.mxu0 0
      %607 = vmatmul.mubr.bf16.gmra.mxu0 %v492
      %v608 = vpop.f32.mrf.mxu0
      %v609 = vadd.f32 %v375, %v608
      %v610 = vpop.f32.mrf.mxu0
      %v611 = vpop.f32.mrf.mxu0
      %v612 = vadd.f32 %v375, %v611
      %v613 = vpop.f32.mrf.mxu0
      %614 = vmatprep.mubr.bf16.mxu0 0
      %615 = vmatmul.mubr.bf16.gmra.mxu0 %v495
      %v616 = vpop.f32.mrf.mxu0
      %v617 = vadd.f32 %v375, %v616
      %v618 = vpop.f32.mrf.mxu0
      %v619 = vpop.f32.mrf.mxu0
      %v620 = vadd.f32 %v375, %v619
      %v621 = vpop.f32.mrf.mxu0
      %622 = vmatprep.mubr.bf16.mxu0 0
      %623 = vmatmul.mubr.bf16.gmra.mxu0 %v498
      %v624 = vpop.f32.mrf.mxu0
      %v625 = vadd.f32 %v375, %v624
      %v626 = vpop.f32.mrf.mxu0
      %v627 = vpop.f32.mrf.mxu0
      %v628 = vadd.f32 %v375, %v627
      %v629 = vpop.f32.mrf.mxu0
      %630 = vmatprep.mubr.bf16.mxu0 0
      %631 = vmatmul.mubr.bf16.gmra.mxu0 %v501
      %v632 = vpop.f32.mrf.mxu0
      %v633 = vadd.f32 %v375, %v632
      %v634 = vpop.f32.mrf.mxu0
      %v635 = vpop.f32.mrf.mxu0
      %v636 = vadd.f32 %v375, %v635
      %v637 = vpop.f32.mrf.mxu0
      %638 = vmatprep.mubr.bf16.mxu0 0
      %639 = vmatmul.mubr.bf16.gmra.mxu0 %v504
      %v640 = vpop.f32.mrf.mxu0
      %v641 = vadd.f32 %v375, %v640
      %v642 = vpop.f32.mrf.mxu0
      %v643 = vpop.f32.mrf.mxu0
      %v644 = vadd.f32 %v375, %v643
      %v645 = vpop.f32.mrf.mxu0
      %646 = vmatprep.mubr.bf16.mxu0 0
      %647 = vmatmul.mubr.bf16.gmra.mxu0 %v507
      %v648 = vpop.f32.mrf.mxu0
      %v649 = vadd.f32 %v375, %v648
      %v650 = vpop.f32.mrf.mxu0
      %v651 = vpop.f32.mrf.mxu0
      %v652 = vadd.f32 %v375, %v651
      %v653 = vpop.f32.mrf.mxu0
      %654 = vmatprep.mubr.bf16.mxu0 0
      %655 = vmatmul.mubr.bf16.gmra.mxu0 %v510
      %v656 = vpop.f32.mrf.mxu0
      %v657 = vadd.f32 %v375, %v656
      %v658 = vpop.f32.mrf.mxu0
      %v659 = vpop.f32.mrf.mxu0
      %v660 = vadd.f32 %v375, %v659
      %v661 = vpop.f32.mrf.mxu0
      %662 = vmatprep.mubr.bf16.mxu0 0
      %663 = vmatmul.mubr.bf16.gmra.mxu0 %v513
      %v664 = vpop.f32.mrf.mxu0
      %v665 = vadd.f32 %v375, %v664
      %v666 = vpop.f32.mrf.mxu0
      %v667 = vpop.f32.mrf.mxu0
      %v668 = vadd.f32 %v375, %v667
      %v669 = vpop.f32.mrf.mxu0
      %670 = vmatprep.mubr.bf16.mxu0 0
      %671 = vmatmul.mubr.bf16.gmra.mxu0 %v516
      %v672 = vpop.f32.mrf.mxu0
      %v673 = vadd.f32 %v375, %v672
      %v674 = vpop.f32.mrf.mxu0
      %v675 = vpop.f32.mrf.mxu0
      %v676 = vadd.f32 %v375, %v675
      %v677 = vpop.f32.mrf.mxu0
      %678 = vdwg.mxu0
      %679 = vst [vmem:[#allocation2] sm:$0xff] 0.0
      %680 = vst [vmem:[#allocation2 + $0x8] sm:$0xff] 0.0
      %681 = vst [vmem:[#allocation2 + $0x10] sm:$0xff] 0.0
      %682 = vst [vmem:[#allocation2 + $0x118] sm:$0xff] 0.0
      %683 = vst [vmem:[#allocation2 + $0x120] sm:$0xff] 0.0
      %684 = vst [vmem:[#allocation2 + $0x128] sm:$0xff] 0.0
      %685 = vst [vmem:[#allocation2 + $0x18] sm:$0xff] %v553
      %686 = vst [vmem:[#allocation2 + $0x20] sm:$0xff] %v556
      %687 = vst [vmem:[#allocation2 + $0x28] sm:$0xff] %v561
      %688 = vst [vmem:[#allocation2 + $0x30] sm:$0xff] %v564
      %689 = vst [vmem:[#allocation2 + $0x38] sm:$0xff] %v569
      %690 = vst [vmem:[#allocation2 + $0x40] sm:$0xff] %v572
      %691 = vst [vmem:[#allocation2 + $0x48] sm:$0xff] %v577
      %692 = vst [vmem:[#allocation2 + $0x50] sm:$0xff] %v580
      %693 = vst [vmem:[#allocation2 + $0x58] sm:$0xff] %v585
      %694 = vst [vmem:[#allocation2 + $0x60] sm:$0xff] %v588
      %695 = vst [vmem:[#allocation2 + $0x68] sm:$0xff] %v593
      %696 = vst [vmem:[#allocation2 + $0x70] sm:$0xff] %v596
      %697 = vst [vmem:[#allocation2 + $0x78] sm:$0xff] %v601
      %698 = vst [vmem:[#allocation2 + $0x80] sm:$0xff] %v604
      %699 = vst [vmem:[#allocation2 + $0x88] sm:$0xff] %v609
      %700 = vst [vmem:[#allocation2 + $0x90] sm:$0xff] %v612
      %701 = vst [vmem:[#allocation2 + $0x98] sm:$0xff] %v617
      %702 = vst [vmem:[#allocation2 + $0xa0] sm:$0xff] %v620
      %703 = vst [vmem:[#allocation2 + $0xa8] sm:$0xff] %v625
      %704 = vst [vmem:[#allocation2 + $0xb0] sm:$0xff] %v628
      %705 = vst [vmem:[#allocation2 + $0xb8] sm:$0xff] %v633
      %706 = vst [vmem:[#allocation2 + $0xc0] sm:$0xff] %v636
      %707 = vst [vmem:[#allocation2 + $0xc8] sm:$0xff] %v641
      %708 = vst [vmem:[#allocation2 + $0xd0] sm:$0xff] %v644
      %709 = vst [vmem:[#allocation2 + $0xd8] sm:$0xff] %v649
      %710 = vst [vmem:[#allocation2 + $0xe0] sm:$0xff] %v652
      %711 = vst [vmem:[#allocation2 + $0xe8] sm:$0xff] %v657
      %712 = vst [vmem:[#allocation2 + $0xf0] sm:$0xff] %v660
      %713 = vst [vmem:[#allocation2 + $0xf8] sm:$0xff] %v665
      %714 = vst [vmem:[#allocation2 + $0x100] sm:$0xff] %v668
      %715 = vst [vmem:[#allocation2 + $0x108] sm:$0xff] %v673
      %716 = vst [vmem:[#allocation2 + $0x110] sm:$0xff] %v676
      %v717 = vld [vmem:[%s1] sm:$0xff]
      %v718 = vld [vmem:[%s1 + $0x8] sm:$0xff]
      %v719 = vld [vmem:[%s1 + $0x10] sm:$0xff]
      %v720 = vld [vmem:[%s1 + $0x18] sm:$0xff]
      %v721 = vld [vmem:[%s1 + $0x20] sm:$0xff]
      %v722 = vld [vmem:[%s1 + $0x28] sm:$0xff]
      %v723 = vld [vmem:[%s1 + $0x30] sm:$0xff]
      %v724 = vld [vmem:[%s1 + $0x38] sm:$0xff]
      %v725 = vld [vmem:[%s1 + $0x40] sm:$0xff]
      %v726 = vld [vmem:[%s1 + $0x48] sm:$0xff]
      %v727 = vld [vmem:[%s1 + $0x50] sm:$0xff]
      %v728 = vld [vmem:[%s1 + $0x58] sm:$0xff]
      %v729 = vld [vmem:[%s1 + $0x60] sm:$0xff]
      %v730 = vld [vmem:[%s1 + $0x68] sm:$0xff]
      %v731 = vld [vmem:[%s1 + $0x70] sm:$0xff]
      %v732 = vld [vmem:[%s1 + $0x78] sm:$0xff]
      %v733 = vld [vmem:[%s1 + $0x80] sm:$0xff]
      %v734 = vld [vmem:[%s1 + $0x88] sm:$0xff]
      %v735 = vld [vmem:[%s1 + $0x90] sm:$0xff]
      %v736 = vld [vmem:[%s1 + $0x98] sm:$0xff]
      %v737 = vld [vmem:[%s1 + $0xa0] sm:$0xff]
      %v738 = vld [vmem:[%s1 + $0xa8] sm:$0xff]
      %v739 = vld [vmem:[%s1 + $0xb0] sm:$0xff]
      %v740 = vld [vmem:[%s1 + $0xb8] sm:$0xff]
      %v741 = vld [vmem:[%s1 + $0xc0] sm:$0xff]
      %v742 = vld [vmem:[%s1 + $0xc8] sm:$0xff]
      %v743 = vld [vmem:[%s1 + $0xd0] sm:$0xff]
      %v744 = vld [vmem:[%s1 + $0xd8] sm:$0xff]
      %v745 = vld [vmem:[%s1 + $0xe0] sm:$0xff]
      %v746 = vld [vmem:[%s1 + $0xe8] sm:$0xff]
      %v747 = vld [vmem:[%s1 + $0xf0] sm:$0xff]
      %v748 = vld [vmem:[%s1 + $0xf8] sm:$0xff]
      %v749 = vld [vmem:[%s2] sm:$0xff]
      %v750 = vld [vmem:[%s2 + $0x8] sm:$0xff]
      %v751 = vld [vmem:[%s2 + $0x10] sm:$0xff]
      %v752 = vld [vmem:[%s2 + $0x18] sm:$0xff]
      %v753 = vld [vmem:[%s2 + $0x20] sm:$0xff]
      %v754 = vld [vmem:[%s2 + $0x28] sm:$0xff]
      %v755 = vld [vmem:[%s2 + $0x30] sm:$0xff]
      %v756 = vld [vmem:[%s2 + $0x38] sm:$0xff]
      %v757 = vld [vmem:[%s2 + $0x40] sm:$0xff]
      %v758 = vld [vmem:[%s2 + $0x48] sm:$0xff]
      %v759 = vld [vmem:[%s2 + $0x50] sm:$0xff]
      %v760 = vld [vmem:[%s2 + $0x58] sm:$0xff]
      %v761 = vld [vmem:[%s2 + $0x60] sm:$0xff]
      %v762 = vld [vmem:[%s2 + $0x68] sm:$0xff]
      %v763 = vld [vmem:[%s2 + $0x70] sm:$0xff]
      %v764 = vld [vmem:[%s2 + $0x78] sm:$0xff]
      %v765 = vld [vmem:[%s2 + $0x80] sm:$0xff]
      %v766 = vld [vmem:[%s2 + $0x88] sm:$0xff]
      %v767 = vld [vmem:[%s2 + $0x90] sm:$0xff]
      %v768 = vld [vmem:[%s2 + $0x98] sm:$0xff]
      %v769 = vld [vmem:[%s2 + $0xa0] sm:$0xff]
      %v770 = vld [vmem:[%s2 + $0xa8] sm:$0xff]
      %v771 = vld [vmem:[%s2 + $0xb0] sm:$0xff]
      %v772 = vld [vmem:[%s2 + $0xb8] sm:$0xff]
      %v773 = vld [vmem:[%s2 + $0xc0] sm:$0xff]
      %v774 = vld [vmem:[%s2 + $0xc8] sm:$0xff]
      %v775 = vld [vmem:[%s2 + $0xd0] sm:$0xff]
      %v776 = vld [vmem:[%s2 + $0xd8] sm:$0xff]
      %v777 = vld [vmem:[%s2 + $0xe0] sm:$0xff]
      %v778 = vld [vmem:[%s2 + $0xe8] sm:$0xff]
      %v779 = vld [vmem:[%s2 + $0xf0] sm:$0xff]
      %v780 = vld [vmem:[%s2 + $0xf8] sm:$0xff]
      %v781 = vld [vmem:[#allocation2 + $0x7] sm:$0xff]
      %v782 = vld [vmem:[#allocation2 + $0xf] sm:$0xff]
      %v783 = vld [vmem:[#allocation2 + $0x17] sm:$0xff]
      %v784 = vld [vmem:[#allocation2 + $0x1f] sm:$0xff]
      %v785 = vld [vmem:[#allocation2 + $0x27] sm:$0xff]
      %v786 = vld [vmem:[#allocation2 + $0x2f] sm:$0xff]
      %v787 = vld [vmem:[#allocation2 + $0x37] sm:$0xff]
      %v788 = vld [vmem:[#allocation2 + $0x3f] sm:$0xff]
      %v789 = vld [vmem:[#allocation2 + $0x47] sm:$0xff]
      %v790 = vld [vmem:[#allocation2 + $0x4f] sm:$0xff]
      %v791 = vld [vmem:[#allocation2 + $0x57] sm:$0xff]
      %v792 = vld [vmem:[#allocation2 + $0x5f] sm:$0xff]
      %v793 = vld [vmem:[#allocation2 + $0x67] sm:$0xff]
      %v794 = vld [vmem:[#allocation2 + $0x6f] sm:$0xff]
      %v795 = vld [vmem:[#allocation2 + $0x77] sm:$0xff]
      %v796 = vld [vmem:[#allocation2 + $0x7f] sm:$0xff]
      %v797 = vld [vmem:[#allocation2 + $0x87] sm:$0xff]
      %v798 = vld [vmem:[#allocation2 + $0x8f] sm:$0xff]
      %v799 = vld [vmem:[#allocation2 + $0x97] sm:$0xff]
      %v800 = vld [vmem:[#allocation2 + $0x9f] sm:$0xff]
      %v801 = vld [vmem:[#allocation2 + $0xa7] sm:$0xff]
      %v802 = vld [vmem:[#allocation2 + $0xaf] sm:$0xff]
      %v803 = vld [vmem:[#allocation2 + $0xb7] sm:$0xff]
      %v804 = vld [vmem:[#allocation2 + $0xbf] sm:$0xff]
      %v805 = vld [vmem:[#allocation2 + $0xc7] sm:$0xff]
      %v806 = vld [vmem:[#allocation2 + $0xcf] sm:$0xff]
      %v807 = vld [vmem:[#allocation2 + $0xd7] sm:$0xff]
      %v808 = vld [vmem:[#allocation2 + $0xdf] sm:$0xff]
      %v809 = vld [vmem:[#allocation2 + $0xe7] sm:$0xff]
      %v810 = vld [vmem:[#allocation2 + $0xef] sm:$0xff]
      %v811 = vld [vmem:[#allocation2 + $0xf7] sm:$0xff]
      %v812 = vld [vmem:[#allocation2 + $0xff] sm:$0xff]
      %814 = vset.pattern.permute.xlu0 0
      %815 = vperm.xlu0 %814, %v717
      %v816 = vpop.permute.xlu0 %815
      %819 = vset.pattern.permute.xlu0 0
      %820 = vperm.xlu0 %819, %v718
      %v821 = vpop.permute.xlu0 %820
      %824 = vset.pattern.permute.xlu0 0
      %825 = vperm.xlu0 %824, %v719
      %v826 = vpop.permute.xlu0 %825
      %829 = vset.pattern.permute.xlu0 0
      %830 = vperm.xlu0 %829, %v720
      %v831 = vpop.permute.xlu0 %830
      %834 = vset.pattern.permute.xlu0 0
      %835 = vperm.xlu0 %834, %v721
      %v836 = vpop.permute.xlu0 %835
      %839 = vset.pattern.permute.xlu0 0
      %840 = vperm.xlu0 %839, %v722
      %v841 = vpop.permute.xlu0 %840
      %844 = vset.pattern.permute.xlu0 0
      %845 = vperm.xlu0 %844, %v723
      %v846 = vpop.permute.xlu0 %845
      %849 = vset.pattern.permute.xlu0 0
      %850 = vperm.xlu0 %849, %v724
      %v851 = vpop.permute.xlu0 %850
      %854 = vset.pattern.permute.xlu0 0
      %855 = vperm.xlu0 %854, %v725
      %v856 = vpop.permute.xlu0 %855
      %859 = vset.pattern.permute.xlu0 0
      %860 = vperm.xlu0 %859, %v726
      %v861 = vpop.permute.xlu0 %860
      %864 = vset.pattern.permute.xlu0 0
      %865 = vperm.xlu0 %864, %v727
      %v866 = vpop.permute.xlu0 %865
      %869 = vset.pattern.permute.xlu0 0
      %870 = vperm.xlu0 %869, %v728
      %v871 = vpop.permute.xlu0 %870
      %874 = vset.pattern.permute.xlu0 0
      %875 = vperm.xlu0 %874, %v729
      %v876 = vpop.permute.xlu0 %875
      %879 = vset.pattern.permute.xlu0 0
      %880 = vperm.xlu0 %879, %v730
      %v881 = vpop.permute.xlu0 %880
      %884 = vset.pattern.permute.xlu0 0
      %885 = vperm.xlu0 %884, %v731
      %v886 = vpop.permute.xlu0 %885
      %889 = vset.pattern.permute.xlu0 0
      %890 = vperm.xlu0 %889, %v732
      %v891 = vpop.permute.xlu0 %890
      %894 = vset.pattern.permute.xlu0 0
      %895 = vperm.xlu0 %894, %v733
      %v896 = vpop.permute.xlu0 %895
      %899 = vset.pattern.permute.xlu0 0
      %900 = vperm.xlu0 %899, %v734
      %v901 = vpop.permute.xlu0 %900
      %904 = vset.pattern.permute.xlu0 0
      %905 = vperm.xlu0 %904, %v735
      %v906 = vpop.permute.xlu0 %905
      %909 = vset.pattern.permute.xlu0 0
      %910 = vperm.xlu0 %909, %v736
      %v911 = vpop.permute.xlu0 %910
      %914 = vset.pattern.permute.xlu0 0
      %915 = vperm.xlu0 %914, %v737
      %v916 = vpop.permute.xlu0 %915
      %919 = vset.pattern.permute.xlu0 0
      %920 = vperm.xlu0 %919, %v738
      %v921 = vpop.permute.xlu0 %920
      %924 = vset.pattern.permute.xlu0 0
      %925 = vperm.xlu0 %924, %v739
      %v926 = vpop.permute.xlu0 %925
      %929 = vset.pattern.permute.xlu0 0
      %930 = vperm.xlu0 %929, %v740
      %v931 = vpop.permute.xlu0 %930
      %934 = vset.pattern.permute.xlu0 0
      %935 = vperm.xlu0 %934, %v741
      %v936 = vpop.permute.xlu0 %935
      %939 = vset.pattern.permute.xlu0 0
      %940 = vperm.xlu0 %939, %v742
      %v941 = vpop.permute.xlu0 %940
      %944 = vset.pattern.permute.xlu0 0
      %945 = vperm.xlu0 %944, %v743
      %v946 = vpop.permute.xlu0 %945
      %949 = vset.pattern.permute.xlu0 0
      %950 = vperm.xlu0 %949, %v744
      %v951 = vpop.permute.xlu0 %950
      %954 = vset.pattern.permute.xlu0 0
      %955 = vperm.xlu0 %954, %v745
      %v956 = vpop.permute.xlu0 %955
      %959 = vset.pattern.permute.xlu0 0
      %960 = vperm.xlu0 %959, %v746
      %v961 = vpop.permute.xlu0 %960
      %964 = vset.pattern.permute.xlu0 0
      %965 = vperm.xlu0 %964, %v747
      %v966 = vpop.permute.xlu0 %965
      %969 = vset.pattern.permute.xlu0 0
      %970 = vperm.xlu0 %969, %v748
      %v971 = vpop.permute.xlu0 %970
      %v973 = vmul.f32 %v781, %v816
      %v974 = vmul.f32 %v782, %v821
      %v975 = vmul.f32 %v783, %v826
      %v976 = vmul.f32 %v784, %v831
      %v977 = vmul.f32 %v785, %v836
      %v978 = vmul.f32 %v786, %v841
      %v979 = vmul.f32 %v787, %v846
      %v980 = vmul.f32 %v788, %v851
      %v981 = vmul.f32 %v789, %v856
      %v982 = vmul.f32 %v790, %v861
      %v983 = vmul.f32 %v791, %v866
      %v984 = vmul.f32 %v792, %v871
      %v985 = vmul.f32 %v793, %v876
      %v986 = vmul.f32 %v794, %v881
      %v987 = vmul.f32 %v795, %v886
      %v988 = vmul.f32 %v796, %v891
      %v989 = vmul.f32 %v797, %v896
      %v990 = vmul.f32 %v798, %v901
      %v991 = vmul.f32 %v799, %v906
      %v992 = vmul.f32 %v800, %v911
      %v993 = vmul.f32 %v801, %v916
      %v994 = vmul.f32 %v802, %v921
      %v995 = vmul.f32 %v803, %v926
      %v996 = vmul.f32 %v804, %v931
      %v997 = vmul.f32 %v805, %v936
      %v998 = vmul.f32 %v806, %v941
      %v999 = vmul.f32 %v807, %v946
      %v1000 = vmul.f32 %v808, %v951
      %v1001 = vmul.f32 %v809, %v956
      %v1002 = vmul.f32 %v810, %v961
      %v1003 = vmul.f32 %v811, %v966
      %v1004 = vmul.f32 %v812, %v971
      %v1005 = vpack.c.bf16 %v974, %v973
      %v1006 = vpack.c.bf16 %v976, %v975
      %v1007 = vpack.c.bf16 %v978, %v977
      %v1008 = vpack.c.bf16 %v980, %v979
      %v1009 = vpack.c.bf16 %v982, %v981
      %v1010 = vpack.c.bf16 %v984, %v983
      %v1011 = vpack.c.bf16 %v986, %v985
      %v1012 = vpack.c.bf16 %v988, %v987
      %v1013 = vpack.c.bf16 %v990, %v989
      %v1014 = vpack.c.bf16 %v992, %v991
      %v1015 = vpack.c.bf16 %v994, %v993
      %v1016 = vpack.c.bf16 %v996, %v995
      %v1017 = vpack.c.bf16 %v998, %v997
      %v1018 = vpack.c.bf16 %v1000, %v999
      %v1019 = vpack.c.bf16 %v1002, %v1001
      %v1020 = vpack.c.bf16 %v1004, %v1003
      %v1037 = vunpack.c.l.b16 %v1005
      %v1038 = vunpack.c.h.b16 %v1005
      %v1039 = vunpack.c.l.b16 %v1006
      %v1040 = vunpack.c.h.b16 %v1006
      %v1041 = vunpack.c.l.b16 %v1007
      %v1042 = vunpack.c.h.b16 %v1007
      %v1043 = vunpack.c.l.b16 %v1008
      %v1044 = vunpack.c.h.b16 %v1008
      %v1045 = vunpack.c.l.b16 %v1009
      %v1046 = vunpack.c.h.b16 %v1009
      %v1047 = vunpack.c.l.b16 %v1010
      %v1048 = vunpack.c.h.b16 %v1010
      %v1049 = vunpack.c.l.b16 %v1011
      %v1050 = vunpack.c.h.b16 %v1011
      %v1051 = vunpack.c.l.b16 %v1012
      %v1052 = vunpack.c.h.b16 %v1012
      %v1053 = vunpack.c.l.b16 %v1013
      %v1054 = vunpack.c.h.b16 %v1013
      %v1055 = vunpack.c.l.b16 %v1014
      %v1056 = vunpack.c.h.b16 %v1014
      %v1057 = vunpack.c.l.b16 %v1015
      %v1058 = vunpack.c.h.b16 %v1015
      %v1059 = vunpack.c.l.b16 %v1016
      %v1060 = vunpack.c.h.b16 %v1016
      %v1061 = vunpack.c.l.b16 %v1017
      %v1062 = vunpack.c.h.b16 %v1017
      %v1063 = vunpack.c.l.b16 %v1018
      %v1064 = vunpack.c.h.b16 %v1018
      %v1065 = vunpack.c.l.b16 %v1019
      %v1066 = vunpack.c.h.b16 %v1019
      %v1067 = vunpack.c.l.b16 %v1020
      %v1068 = vunpack.c.h.b16 %v1020
      %v1069 = vpack.c.b16 %v1037, %v1037
      %v1070 = vpack.c.b16 %v1038, %v1038
      %v1071 = vpack.c.b16 %v1039, %v1039
      %v1072 = vpack.c.b16 %v1040, %v1040
      %v1073 = vpack.c.b16 %v1041, %v1041
      %v1074 = vpack.c.b16 %v1042, %v1042
      %v1075 = vpack.c.b16 %v1043, %v1043
      %v1076 = vpack.c.b16 %v1044, %v1044
      %v1077 = vpack.c.b16 %v1045, %v1045
      %v1078 = vpack.c.b16 %v1046, %v1046
      %v1079 = vpack.c.b16 %v1047, %v1047
      %v1080 = vpack.c.b16 %v1048, %v1048
      %v1081 = vpack.c.b16 %v1049, %v1049
      %v1082 = vpack.c.b16 %v1050, %v1050
      %v1083 = vpack.c.b16 %v1051, %v1051
      %v1084 = vpack.c.b16 %v1052, %v1052
      %v1085 = vpack.c.b16 %v1053, %v1053
      %v1086 = vpack.c.b16 %v1054, %v1054
      %v1087 = vpack.c.b16 %v1055, %v1055
      %v1088 = vpack.c.b16 %v1056, %v1056
      %v1089 = vpack.c.b16 %v1057, %v1057
      %v1090 = vpack.c.b16 %v1058, %v1058
      %v1091 = vpack.c.b16 %v1059, %v1059
      %v1092 = vpack.c.b16 %v1060, %v1060
      %v1093 = vpack.c.b16 %v1061, %v1061
      %v1094 = vpack.c.b16 %v1062, %v1062
      %v1095 = vpack.c.b16 %v1063, %v1063
      %v1096 = vpack.c.b16 %v1064, %v1064
      %v1097 = vpack.c.b16 %v1065, %v1065
      %v1098 = vpack.c.b16 %v1066, %v1066
      %v1099 = vpack.c.b16 %v1067, %v1067
      %v1100 = vpack.c.b16 %v1068, %v1068
      %1133 = vst [vmem:[#allocation3] sm:$0xf] %v1069
      %1134 = vst [vmem:[#allocation3 + $0x24] sm:$0xf] %v1070
      %1135 = vst [vmem:[#allocation3 + $0x48] sm:$0xf] %v1071
      %1136 = vst [vmem:[#allocation3 + $0x6c] sm:$0xf] %v1072
      %1137 = vst [vmem:[#allocation3 + $0x90] sm:$0xf] %v1073
      %1138 = vst [vmem:[#allocation3 + $0xb4] sm:$0xf] %v1074
      %1139 = vst [vmem:[#allocation3 + $0xd8] sm:$0xf] %v1075
      %1140 = vst [vmem:[#allocation3 + $0xfc] sm:$0xf] %v1076
      %1141 = vst [vmem:[#allocation3 + $0x120] sm:$0xf] %v1077
      %1142 = vst [vmem:[#allocation3 + $0x144] sm:$0xf] %v1078
      %1143 = vst [vmem:[#allocation3 + $0x168] sm:$0xf] %v1079
      %1144 = vst [vmem:[#allocation3 + $0x18c] sm:$0xf] %v1080
      %1145 = vst [vmem:[#allocation3 + $0x1b0] sm:$0xf] %v1081
      %1146 = vst [vmem:[#allocation3 + $0x1d4] sm:$0xf] %v1082
      %1147 = vst [vmem:[#allocation3 + $0x1f8] sm:$0xf] %v1083
      %1148 = vst [vmem:[#allocation3 + $0x21c] sm:$0xf] %v1084
      %1149 = vst [vmem:[#allocation3 + $0x240] sm:$0xf] %v1085
      %1150 = vst [vmem:[#allocation3 + $0x264] sm:$0xf] %v1086
      %1151 = vst [vmem:[#allocation3 + $0x288] sm:$0xf] %v1087
      %1152 = vst [vmem:[#allocation3 + $0x2ac] sm:$0xf] %v1088
      %1153 = vst [vmem:[#allocation3 + $0x2d0] sm:$0xf] %v1089
      %1154 = vst [vmem:[#allocation3 + $0x2f4] sm:$0xf] %v1090
      %1155 = vst [vmem:[#allocation3 + $0x318] sm:$0xf] %v1091
      %1156 = vst [vmem:[#allocation3 + $0x33c] sm:$0xf] %v1092
      %1157 = vst [vmem:[#allocation3 + $0x360] sm:$0xf] %v1093
      %1158 = vst [vmem:[#allocation3 + $0x384] sm:$0xf] %v1094
      %1159 = vst [vmem:[#allocation3 + $0x3a8] sm:$0xf] %v1095
      %1160 = vst [vmem:[#allocation3 + $0x3cc] sm:$0xf] %v1096
      %1161 = vst [vmem:[#allocation3 + $0x3f0] sm:$0xf] %v1097
      %1162 = vst [vmem:[#allocation3 + $0x414] sm:$0xf] %v1098
      %1163 = vst [vmem:[#allocation3 + $0x438] sm:$0xf] %v1099
      %1164 = vst [vmem:[#allocation3 + $0x45c] sm:$0xf] %v1100
      %v1165 = vld [vmem:[#allocation2 + $0x8] sm:$0xff]
      %v1166 = vld [vmem:[#allocation2 + $0x10] sm:$0xff]
      %v1167 = vld [vmem:[#allocation2 + $0x18] sm:$0xff]
      %v1168 = vld [vmem:[#allocation2 + $0x20] sm:$0xff]
      %v1169 = vld [vmem:[#allocation2 + $0x28] sm:$0xff]
      %v1170 = vld [vmem:[#allocation2 + $0x30] sm:$0xff]
      %v1171 = vld [vmem:[#allocation2 + $0x38] sm:$0xff]
      %v1172 = vld [vmem:[#allocation2 + $0x40] sm:$0xff]
      %v1173 = vld [vmem:[#allocation2 + $0x48] sm:$0xff]
      %v1174 = vld [vmem:[#allocation2 + $0x50] sm:$0xff]
      %v1175 = vld [vmem:[#allocation2 + $0x58] sm:$0xff]
      %v1176 = vld [vmem:[#allocation2 + $0x60] sm:$0xff]
      %v1177 = vld [vmem:[#allocation2 + $0x68] sm:$0xff]
      %v1178 = vld [vmem:[#allocation2 + $0x70] sm:$0xff]
      %v1179 = vld [vmem:[#allocation2 + $0x78] sm:$0xff]
      %v1180 = vld [vmem:[#allocation2 + $0x80] sm:$0xff]
      %v1181 = vld [vmem:[#allocation2 + $0x88] sm:$0xff]
      %v1182 = vld [vmem:[#allocation2 + $0x90] sm:$0xff]
      %v1183 = vld [vmem:[#allocation2 + $0x98] sm:$0xff]
      %v1184 = vld [vmem:[#allocation2 + $0xa0] sm:$0xff]
      %v1185 = vld [vmem:[#allocation2 + $0xa8] sm:$0xff]
      %v1186 = vld [vmem:[#allocation2 + $0xb0] sm:$0xff]
      %v1187 = vld [vmem:[#allocation2 + $0xb8] sm:$0xff]
      %v1188 = vld [vmem:[#allocation2 + $0xc0] sm:$0xff]
      %v1189 = vld [vmem:[#allocation2 + $0xc8] sm:$0xff]
      %v1190 = vld [vmem:[#allocation2 + $0xd0] sm:$0xff]
      %v1191 = vld [vmem:[#allocation2 + $0xd8] sm:$0xff]
      %v1192 = vld [vmem:[#allocation2 + $0xe0] sm:$0xff]
      %v1193 = vld [vmem:[#allocation2 + $0xe8] sm:$0xff]
      %v1194 = vld [vmem:[#allocation2 + $0xf0] sm:$0xff]
      %v1195 = vld [vmem:[#allocation2 + $0xf8] sm:$0xff]
      %v1196 = vld [vmem:[#allocation2 + $0x100] sm:$0xff]
      %v1197 = vpack.c.bf16 %v1166, %v1165
      %v1198 = vpack.c.bf16 %v1168, %v1167
      %v1199 = vpack.c.bf16 %v1170, %v1169
      %v1200 = vpack.c.bf16 %v1172, %v1171
      %v1201 = vpack.c.bf16 %v1174, %v1173
      %v1202 = vpack.c.bf16 %v1176, %v1175
      %v1203 = vpack.c.bf16 %v1178, %v1177
      %v1204 = vpack.c.bf16 %v1180, %v1179
      %v1205 = vpack.c.bf16 %v1182, %v1181
      %v1206 = vpack.c.bf16 %v1184, %v1183
      %v1207 = vpack.c.bf16 %v1186, %v1185
      %v1208 = vpack.c.bf16 %v1188, %v1187
      %v1209 = vpack.c.bf16 %v1190, %v1189
      %v1210 = vpack.c.bf16 %v1192, %v1191
      %v1211 = vpack.c.bf16 %v1194, %v1193
      %v1212 = vpack.c.bf16 %v1196, %v1195
      %v1229 = vunpack.c.l.b16 %v1197
      %v1230 = vunpack.c.h.b16 %v1197
      %v1231 = vunpack.c.l.b16 %v1198
      %v1232 = vunpack.c.h.b16 %v1198
      %v1233 = vunpack.c.l.b16 %v1199
      %v1234 = vunpack.c.h.b16 %v1199
      %v1235 = vunpack.c.l.b16 %v1200
      %v1236 = vunpack.c.h.b16 %v1200
      %v1237 = vunpack.c.l.b16 %v1201
      %v1238 = vunpack.c.h.b16 %v1201
      %v1239 = vunpack.c.l.b16 %v1202
      %v1240 = vunpack.c.h.b16 %v1202
      %v1241 = vunpack.c.l.b16 %v1203
      %v1242 = vunpack.c.h.b16 %v1203
      %v1243 = vunpack.c.l.b16 %v1204
      %v1244 = vunpack.c.h.b16 %v1204
      %v1245 = vunpack.c.l.b16 %v1205
      %v1246 = vunpack.c.h.b16 %v1205
      %v1247 = vunpack.c.l.b16 %v1206
      %v1248 = vunpack.c.h.b16 %v1206
      %v1249 = vunpack.c.l.b16 %v1207
      %v1250 = vunpack.c.h.b16 %v1207
      %v1251 = vunpack.c.l.b16 %v1208
      %v1252 = vunpack.c.h.b16 %v1208
      %v1253 = vunpack.c.l.b16 %v1209
      %v1254 = vunpack.c.h.b16 %v1209
      %v1255 = vunpack.c.l.b16 %v1210
      %v1256 = vunpack.c.h.b16 %v1210
      %v1257 = vunpack.c.l.b16 %v1211
      %v1258 = vunpack.c.h.b16 %v1211
      %v1259 = vunpack.c.l.b16 %v1212
      %v1260 = vunpack.c.h.b16 %v1212
      %v1261 = vpack.c.b16 %v1229, %v1229
      %v1262 = vpack.c.b16 %v1230, %v1230
      %v1263 = vpack.c.b16 %v1231, %v1231
      %v1264 = vpack.c.b16 %v1232, %v1232
      %v1265 = vpack.c.b16 %v1233, %v1233
      %v1266 = vpack.c.b16 %v1234, %v1234
      %v1267 = vpack.c.b16 %v1235, %v1235
      %v1268 = vpack.c.b16 %v1236, %v1236
      %v1269 = vpack.c.b16 %v1237, %v1237
      %v1270 = vpack.c.b16 %v1238, %v1238
      %v1271 = vpack.c.b16 %v1239, %v1239
      %v1272 = vpack.c.b16 %v1240, %v1240
      %v1273 = vpack.c.b16 %v1241, %v1241
      %v1274 = vpack.c.b16 %v1242, %v1242
      %v1275 = vpack.c.b16 %v1243, %v1243
      %v1276 = vpack.c.b16 %v1244, %v1244
      %v1277 = vpack.c.b16 %v1245, %v1245
      %v1278 = vpack.c.b16 %v1246, %v1246
      %v1279 = vpack.c.b16 %v1247, %v1247
      %v1280 = vpack.c.b16 %v1248, %v1248
      %v1281 = vpack.c.b16 %v1249, %v1249
      %v1282 = vpack.c.b16 %v1250, %v1250
      %v1283 = vpack.c.b16 %v1251, %v1251
      %v1284 = vpack.c.b16 %v1252, %v1252
      %v1285 = vpack.c.b16 %v1253, %v1253
      %v1286 = vpack.c.b16 %v1254, %v1254
      %v1287 = vpack.c.b16 %v1255, %v1255
      %v1288 = vpack.c.b16 %v1256, %v1256
      %v1289 = vpack.c.b16 %v1257, %v1257
      %v1290 = vpack.c.b16 %v1258, %v1258
      %v1291 = vpack.c.b16 %v1259, %v1259
      %v1292 = vpack.c.b16 %v1260, %v1260
      %1325 = vst [vmem:[#allocation3 + $0x4] sm:$0xf] %v1261
      %1326 = vst [vmem:[#allocation3 + $0x28] sm:$0xf] %v1262
      %1327 = vst [vmem:[#allocation3 + $0x4c] sm:$0xf] %v1263
      %1328 = vst [vmem:[#allocation3 + $0x70] sm:$0xf] %v1264
      %1329 = vst [vmem:[#allocation3 + $0x94] sm:$0xf] %v1265
      %1330 = vst [vmem:[#allocation3 + $0xb8] sm:$0xf] %v1266
      %1331 = vst [vmem:[#allocation3 + $0xdc] sm:$0xf] %v1267
      %1332 = vst [vmem:[#allocation3 + $0x100] sm:$0xf] %v1268
      %1333 = vst [vmem:[#allocation3 + $0x124] sm:$0xf] %v1269
      %1334 = vst [vmem:[#allocation3 + $0x148] sm:$0xf] %v1270
      %1335 = vst [vmem:[#allocation3 + $0x16c] sm:$0xf] %v1271
      %1336 = vst [vmem:[#allocation3 + $0x190] sm:$0xf] %v1272
      %1337 = vst [vmem:[#allocation3 + $0x1b4] sm:$0xf] %v1273
      %1338 = vst [vmem:[#allocation3 + $0x1d8] sm:$0xf] %v1274
      %1339 = vst [vmem:[#allocation3 + $0x1fc] sm:$0xf] %v1275
      %1340 = vst [vmem:[#allocation3 + $0x220] sm:$0xf] %v1276
      %1341 = vst [vmem:[#allocation3 + $0x244] sm:$0xf] %v1277
      %1342 = vst [vmem:[#allocation3 + $0x268] sm:$0xf] %v1278
      %1343 = vst [vmem:[#allocation3 + $0x28c] sm:$0xf] %v1279
      %1344 = vst [vmem:[#allocation3 + $0x2b0] sm:$0xf] %v1280
      %1345 = vst [vmem:[#allocation3 + $0x2d4] sm:$0xf] %v1281
      %1346 = vst [vmem:[#allocation3 + $0x2f8] sm:$0xf] %v1282
      %1347 = vst [vmem:[#allocation3 + $0x31c] sm:$0xf] %v1283
      %1348 = vst [vmem:[#allocation3 + $0x340] sm:$0xf] %v1284
      %1349 = vst [vmem:[#allocation3 + $0x364] sm:$0xf] %v1285
      %1350 = vst [vmem:[#allocation3 + $0x388] sm:$0xf] %v1286
      %1351 = vst [vmem:[#allocation3 + $0x3ac] sm:$0xf] %v1287
      %1352 = vst [vmem:[#allocation3 + $0x3d0] sm:$0xf] %v1288
      %1353 = vst [vmem:[#allocation3 + $0x3f4] sm:$0xf] %v1289
      %1354 = vst [vmem:[#allocation3 + $0x418] sm:$0xf] %v1290
      %1355 = vst [vmem:[#allocation3 + $0x43c] sm:$0xf] %v1291
      %1356 = vst [vmem:[#allocation3 + $0x460] sm:$0xf] %v1292
      %v1357 = vld [vmem:[#allocation2 + $0x9] sm:$0xff]
      %v1358 = vld [vmem:[#allocation2 + $0x11] sm:$0xff]
      %v1359 = vld [vmem:[#allocation2 + $0x19] sm:$0xff]
      %v1360 = vld [vmem:[#allocation2 + $0x21] sm:$0xff]
      %v1361 = vld [vmem:[#allocation2 + $0x29] sm:$0xff]
      %v1362 = vld [vmem:[#allocation2 + $0x31] sm:$0xff]
      %v1363 = vld [vmem:[#allocation2 + $0x39] sm:$0xff]
      %v1364 = vld [vmem:[#allocation2 + $0x41] sm:$0xff]
      %v1365 = vld [vmem:[#allocation2 + $0x49] sm:$0xff]
      %v1366 = vld [vmem:[#allocation2 + $0x51] sm:$0xff]
      %v1367 = vld [vmem:[#allocation2 + $0x59] sm:$0xff]
      %v1368 = vld [vmem:[#allocation2 + $0x61] sm:$0xff]
      %v1369 = vld [vmem:[#allocation2 + $0x69] sm:$0xff]
      %v1370 = vld [vmem:[#allocation2 + $0x71] sm:$0xff]
      %v1371 = vld [vmem:[#allocation2 + $0x79] sm:$0xff]
      %v1372 = vld [vmem:[#allocation2 + $0x81] sm:$0xff]
      %v1373 = vld [vmem:[#allocation2 + $0x89] sm:$0xff]
      %v1374 = vld [vmem:[#allocation2 + $0x91] sm:$0xff]
      %v1375 = vld [vmem:[#allocation2 + $0x99] sm:$0xff]
      %v1376 = vld [vmem:[#allocation2 + $0xa1] sm:$0xff]
      %v1377 = vld [vmem:[#allocation2 + $0xa9] sm:$0xff]
      %v1378 = vld [vmem:[#allocation2 + $0xb1] sm:$0xff]
      %v1379 = vld [vmem:[#allocation2 + $0xb9] sm:$0xff]
      %v1380 = vld [vmem:[#allocation2 + $0xc1] sm:$0xff]
      %v1381 = vld [vmem:[#allocation2 + $0xc9] sm:$0xff]
      %v1382 = vld [vmem:[#allocation2 + $0xd1] sm:$0xff]
      %v1383 = vld [vmem:[#allocation2 + $0xd9] sm:$0xff]
      %v1384 = vld [vmem:[#allocation2 + $0xe1] sm:$0xff]
      %v1385 = vld [vmem:[#allocation2 + $0xe9] sm:$0xff]
      %v1386 = vld [vmem:[#allocation2 + $0xf1] sm:$0xff]
      %v1387 = vld [vmem:[#allocation2 + $0xf9] sm:$0xff]
      %v1388 = vld [vmem:[#allocation2 + $0x101] sm:$0xff]
      %1390 = vset.pattern.permute.xlu0 0
      %1391 = vperm.xlu0 %1390, %v749
      %v1392 = vpop.permute.xlu0 %1391
      %1395 = vset.pattern.permute.xlu0 0
      %1396 = vperm.xlu0 %1395, %v750
      %v1397 = vpop.permute.xlu0 %1396
      %1400 = vset.pattern.permute.xlu0 0
      %1401 = vperm.xlu0 %1400, %v751
      %v1402 = vpop.permute.xlu0 %1401
      %1405 = vset.pattern.permute.xlu0 0
      %1406 = vperm.xlu0 %1405, %v752
      %v1407 = vpop.permute.xlu0 %1406
      %1410 = vset.pattern.permute.xlu0 0
      %1411 = vperm.xlu0 %1410, %v753
      %v1412 = vpop.permute.xlu0 %1411
      %1415 = vset.pattern.permute.xlu0 0
      %1416 = vperm.xlu0 %1415, %v754
      %v1417 = vpop.permute.xlu0 %1416
      %1420 = vset.pattern.permute.xlu0 0
      %1421 = vperm.xlu0 %1420, %v755
      %v1422 = vpop.permute.xlu0 %1421
      %1425 = vset.pattern.permute.xlu0 0
      %1426 = vperm.xlu0 %1425, %v756
      %v1427 = vpop.permute.xlu0 %1426
      %1430 = vset.pattern.permute.xlu0 0
      %1431 = vperm.xlu0 %1430, %v757
      %v1432 = vpop.permute.xlu0 %1431
      %1435 = vset.pattern.permute.xlu0 0
      %1436 = vperm.xlu0 %1435, %v758
      %v1437 = vpop.permute.xlu0 %1436
      %1440 = vset.pattern.permute.xlu0 0
      %1441 = vperm.xlu0 %1440, %v759
      %v1442 = vpop.permute.xlu0 %1441
      %1445 = vset.pattern.permute.xlu0 0
      %1446 = vperm.xlu0 %1445, %v760
      %v1447 = vpop.permute.xlu0 %1446
      %1450 = vset.pattern.permute.xlu0 0
      %1451 = vperm.xlu0 %1450, %v761
      %v1452 = vpop.permute.xlu0 %1451
      %1455 = vset.pattern.permute.xlu0 0
      %1456 = vperm.xlu0 %1455, %v762
      %v1457 = vpop.permute.xlu0 %1456
      %1460 = vset.pattern.permute.xlu0 0
      %1461 = vperm.xlu0 %1460, %v763
      %v1462 = vpop.permute.xlu0 %1461
      %1465 = vset.pattern.permute.xlu0 0
      %1466 = vperm.xlu0 %1465, %v764
      %v1467 = vpop.permute.xlu0 %1466
      %1470 = vset.pattern.permute.xlu0 0
      %1471 = vperm.xlu0 %1470, %v765
      %v1472 = vpop.permute.xlu0 %1471
      %1475 = vset.pattern.permute.xlu0 0
      %1476 = vperm.xlu0 %1475, %v766
      %v1477 = vpop.permute.xlu0 %1476
      %1480 = vset.pattern.permute.xlu0 0
      %1481 = vperm.xlu0 %1480, %v767
      %v1482 = vpop.permute.xlu0 %1481
      %1485 = vset.pattern.permute.xlu0 0
      %1486 = vperm.xlu0 %1485, %v768
      %v1487 = vpop.permute.xlu0 %1486
      %1490 = vset.pattern.permute.xlu0 0
      %1491 = vperm.xlu0 %1490, %v769
      %v1492 = vpop.permute.xlu0 %1491
      %1495 = vset.pattern.permute.xlu0 0
      %1496 = vperm.xlu0 %1495, %v770
      %v1497 = vpop.permute.xlu0 %1496
      %1500 = vset.pattern.permute.xlu0 0
      %1501 = vperm.xlu0 %1500, %v771
      %v1502 = vpop.permute.xlu0 %1501
      %1505 = vset.pattern.permute.xlu0 0
      %1506 = vperm.xlu0 %1505, %v772
      %v1507 = vpop.permute.xlu0 %1506
      %1510 = vset.pattern.permute.xlu0 0
      %1511 = vperm.xlu0 %1510, %v773
      %v1512 = vpop.permute.xlu0 %1511
      %1515 = vset.pattern.permute.xlu0 0
      %1516 = vperm.xlu0 %1515, %v774
      %v1517 = vpop.permute.xlu0 %1516
      %1520 = vset.pattern.permute.xlu0 0
      %1521 = vperm.xlu0 %1520, %v775
      %v1522 = vpop.permute.xlu0 %1521
      %1525 = vset.pattern.permute.xlu0 0
      %1526 = vperm.xlu0 %1525, %v776
      %v1527 = vpop.permute.xlu0 %1526
      %1530 = vset.pattern.permute.xlu0 0
      %1531 = vperm.xlu0 %1530, %v777
      %v1532 = vpop.permute.xlu0 %1531
      %1535 = vset.pattern.permute.xlu0 0
      %1536 = vperm.xlu0 %1535, %v778
      %v1537 = vpop.permute.xlu0 %1536
      %1540 = vset.pattern.permute.xlu0 0
      %1541 = vperm.xlu0 %1540, %v779
      %v1542 = vpop.permute.xlu0 %1541
      %1545 = vset.pattern.permute.xlu0 0
      %1546 = vperm.xlu0 %1545, %v780
      %v1547 = vpop.permute.xlu0 %1546
      %v1549 = vmul.f32 %v1357, %v1392
      %v1550 = vmul.f32 %v1358, %v1397
      %v1551 = vmul.f32 %v1359, %v1402
      %v1552 = vmul.f32 %v1360, %v1407
      %v1553 = vmul.f32 %v1361, %v1412
      %v1554 = vmul.f32 %v1362, %v1417
      %v1555 = vmul.f32 %v1363, %v1422
      %v1556 = vmul.f32 %v1364, %v1427
      %v1557 = vmul.f32 %v1365, %v1432
      %v1558 = vmul.f32 %v1366, %v1437
      %v1559 = vmul.f32 %v1367, %v1442
      %v1560 = vmul.f32 %v1368, %v1447
      %v1561 = vmul.f32 %v1369, %v1452
      %v1562 = vmul.f32 %v1370, %v1457
      %v1563 = vmul.f32 %v1371, %v1462
      %v1564 = vmul.f32 %v1372, %v1467
      %v1565 = vmul.f32 %v1373, %v1472
      %v1566 = vmul.f32 %v1374, %v1477
      %v1567 = vmul.f32 %v1375, %v1482
      %v1568 = vmul.f32 %v1376, %v1487
      %v1569 = vmul.f32 %v1377, %v1492
      %v1570 = vmul.f32 %v1378, %v1497
      %v1571 = vmul.f32 %v1379, %v1502
      %v1572 = vmul.f32 %v1380, %v1507
      %v1573 = vmul.f32 %v1381, %v1512
      %v1574 = vmul.f32 %v1382, %v1517
      %v1575 = vmul.f32 %v1383, %v1522
      %v1576 = vmul.f32 %v1384, %v1527
      %v1577 = vmul.f32 %v1385, %v1532
      %v1578 = vmul.f32 %v1386, %v1537
      %v1579 = vmul.f32 %v1387, %v1542
      %v1580 = vmul.f32 %v1388, %v1547
      %v1581 = vpack.c.bf16 %v1550, %v1549
      %v1582 = vpack.c.bf16 %v1552, %v1551
      %v1583 = vpack.c.bf16 %v1554, %v1553
      %v1584 = vpack.c.bf16 %v1556, %v1555
      %v1585 = vpack.c.bf16 %v1558, %v1557
      %v1586 = vpack.c.bf16 %v1560, %v1559
      %v1587 = vpack.c.bf16 %v1562, %v1561
      %v1588 = vpack.c.bf16 %v1564, %v1563
      %v1589 = vpack.c.bf16 %v1566, %v1565
      %v1590 = vpack.c.bf16 %v1568, %v1567
      %v1591 = vpack.c.bf16 %v1570, %v1569
      %v1592 = vpack.c.bf16 %v1572, %v1571
      %v1593 = vpack.c.bf16 %v1574, %v1573
      %v1594 = vpack.c.bf16 %v1576, %v1575
      %v1595 = vpack.c.bf16 %v1578, %v1577
      %v1596 = vpack.c.bf16 %v1580, %v1579
      %v1613 = vunpack.c.l.b16 %v1581
      %v1614 = vunpack.c.h.b16 %v1581
      %v1615 = vunpack.c.l.b16 %v1582
      %v1616 = vunpack.c.h.b16 %v1582
      %v1617 = vunpack.c.l.b16 %v1583
      %v1618 = vunpack.c.h.b16 %v1583
      %v1619 = vunpack.c.l.b16 %v1584
      %v1620 = vunpack.c.h.b16 %v1584
      %v1621 = vunpack.c.l.b16 %v1585
      %v1622 = vunpack.c.h.b16 %v1585
      %v1623 = vunpack.c.l.b16 %v1586
      %v1624 = vunpack.c.h.b16 %v1586
      %v1625 = vunpack.c.l.b16 %v1587
      %v1626 = vunpack.c.h.b16 %v1587
      %v1627 = vunpack.c.l.b16 %v1588
      %v1628 = vunpack.c.h.b16 %v1588
      %v1629 = vunpack.c.l.b16 %v1589
      %v1630 = vunpack.c.h.b16 %v1589
      %v1631 = vunpack.c.l.b16 %v1590
      %v1632 = vunpack.c.h.b16 %v1590
      %v1633 = vunpack.c.l.b16 %v1591
      %v1634 = vunpack.c.h.b16 %v1591
      %v1635 = vunpack.c.l.b16 %v1592
      %v1636 = vunpack.c.h.b16 %v1592
      %v1637 = vunpack.c.l.b16 %v1593
      %v1638 = vunpack.c.h.b16 %v1593
      %v1639 = vunpack.c.l.b16 %v1594
      %v1640 = vunpack.c.h.b16 %v1594
      %v1641 = vunpack.c.l.b16 %v1595
      %v1642 = vunpack.c.h.b16 %v1595
      %v1643 = vunpack.c.l.b16 %v1596
      %v1644 = vunpack.c.h.b16 %v1596
      %v1645 = vpack.c.b16 %v1613, %v1613
      %v1646 = vpack.c.b16 %v1614, %v1614
      %v1647 = vpack.c.b16 %v1615, %v1615
      %v1648 = vpack.c.b16 %v1616, %v1616
      %v1649 = vpack.c.b16 %v1617, %v1617
      %v1650 = vpack.c.b16 %v1618, %v1618
      %v1651 = vpack.c.b16 %v1619, %v1619
      %v1652 = vpack.c.b16 %v1620, %v1620
      %v1653 = vpack.c.b16 %v1621, %v1621
      %v1654 = vpack.c.b16 %v1622, %v1622
      %v1655 = vpack.c.b16 %v1623, %v1623
      %v1656 = vpack.c.b16 %v1624, %v1624
      %v1657 = vpack.c.b16 %v1625, %v1625
      %v1658 = vpack.c.b16 %v1626, %v1626
      %v1659 = vpack.c.b16 %v1627, %v1627
      %v1660 = vpack.c.b16 %v1628, %v1628
      %v1661 = vpack.c.b16 %v1629, %v1629
      %v1662 = vpack.c.b16 %v1630, %v1630
      %v1663 = vpack.c.b16 %v1631, %v1631
      %v1664 = vpack.c.b16 %v1632, %v1632
      %v1665 = vpack.c.b16 %v1633, %v1633
      %v1666 = vpack.c.b16 %v1634, %v1634
      %v1667 = vpack.c.b16 %v1635, %v1635
      %v1668 = vpack.c.b16 %v1636, %v1636
      %v1669 = vpack.c.b16 %v1637, %v1637
      %v1670 = vpack.c.b16 %v1638, %v1638
      %v1671 = vpack.c.b16 %v1639, %v1639
      %v1672 = vpack.c.b16 %v1640, %v1640
      %v1673 = vpack.c.b16 %v1641, %v1641
      %v1674 = vpack.c.b16 %v1642, %v1642
      %v1675 = vpack.c.b16 %v1643, %v1643
      %v1676 = vpack.c.b16 %v1644, %v1644
      %1709 = vst [vmem:[#allocation3 + $0x8] sm:$0xf] %v1645
      %1710 = vst [vmem:[#allocation3 + $0x2c] sm:$0xf] %v1646
      %1711 = vst [vmem:[#allocation3 + $0x50] sm:$0xf] %v1647
      %1712 = vst [vmem:[#allocation3 + $0x74] sm:$0xf] %v1648
      %1713 = vst [vmem:[#allocation3 + $0x98] sm:$0xf] %v1649
      %1714 = vst [vmem:[#allocation3 + $0xbc] sm:$0xf] %v1650
      %1715 = vst [vmem:[#allocation3 + $0xe0] sm:$0xf] %v1651
      %1716 = vst [vmem:[#allocation3 + $0x104] sm:$0xf] %v1652
      %1717 = vst [vmem:[#allocation3 + $0x128] sm:$0xf] %v1653
      %1718 = vst [vmem:[#allocation3 + $0x14c] sm:$0xf] %v1654
      %1719 = vst [vmem:[#allocation3 + $0x170] sm:$0xf] %v1655
      %1720 = vst [vmem:[#allocation3 + $0x194] sm:$0xf] %v1656
      %1721 = vst [vmem:[#allocation3 + $0x1b8] sm:$0xf] %v1657
      %1722 = vst [vmem:[#allocation3 + $0x1dc] sm:$0xf] %v1658
      %1723 = vst [vmem:[#allocation3 + $0x200] sm:$0xf] %v1659
      %1724 = vst [vmem:[#allocation3 + $0x224] sm:$0xf] %v1660
      %1725 = vst [vmem:[#allocation3 + $0x248] sm:$0xf] %v1661
      %1726 = vst [vmem:[#allocation3 + $0x26c] sm:$0xf] %v1662
      %1727 = vst [vmem:[#allocation3 + $0x290] sm:$0xf] %v1663
      %1728 = vst [vmem:[#allocation3 + $0x2b4] sm:$0xf] %v1664
      %1729 = vst [vmem:[#allocation3 + $0x2d8] sm:$0xf] %v1665
      %1730 = vst [vmem:[#allocation3 + $0x2fc] sm:$0xf] %v1666
      %1731 = vst [vmem:[#allocation3 + $0x320] sm:$0xf] %v1667
      %1732 = vst [vmem:[#allocation3 + $0x344] sm:$0xf] %v1668
      %1733 = vst [vmem:[#allocation3 + $0x368] sm:$0xf] %v1669
      %1734 = vst [vmem:[#allocation3 + $0x38c] sm:$0xf] %v1670
      %1735 = vst [vmem:[#allocation3 + $0x3b0] sm:$0xf] %v1671
      %1736 = vst [vmem:[#allocation3 + $0x3d4] sm:$0xf] %v1672
      %1737 = vst [vmem:[#allocation3 + $0x3f8] sm:$0xf] %v1673
      %1738 = vst [vmem:[#allocation3 + $0x41c] sm:$0xf] %v1674
      %1739 = vst [vmem:[#allocation3 + $0x440] sm:$0xf] %v1675
      %1740 = vst [vmem:[#allocation3 + $0x464] sm:$0xf] %v1676
      %v1741 = vld [vmem:[#allocation2 + $0x17] sm:$0xff]
      %v1742 = vld [vmem:[#allocation2 + $0x1f] sm:$0xff]
      %v1743 = vld [vmem:[#allocation2 + $0x27] sm:$0xff]
      %v1744 = vld [vmem:[#allocation2 + $0x2f] sm:$0xff]
      %v1745 = vld [vmem:[#allocation2 + $0x37] sm:$0xff]
      %v1746 = vld [vmem:[#allocation2 + $0x3f] sm:$0xff]
      %v1747 = vld [vmem:[#allocation2 + $0x47] sm:$0xff]
      %v1748 = vld [vmem:[#allocation2 + $0x4f] sm:$0xff]
      %v1749 = vld [vmem:[#allocation2 + $0x57] sm:$0xff]
      %v1750 = vld [vmem:[#allocation2 + $0x5f] sm:$0xff]
      %v1751 = vld [vmem:[#allocation2 + $0x67] sm:$0xff]
      %v1752 = vld [vmem:[#allocation2 + $0x6f] sm:$0xff]
      %v1753 = vld [vmem:[#allocation2 + $0x77] sm:$0xff]
      %v1754 = vld [vmem:[#allocation2 + $0x7f] sm:$0xff]
      %v1755 = vld [vmem:[#allocation2 + $0x87] sm:$0xff]
      %v1756 = vld [vmem:[#allocation2 + $0x8f] sm:$0xff]
      %v1757 = vld [vmem:[#allocation2 + $0x97] sm:$0xff]
      %v1758 = vld [vmem:[#allocation2 + $0x9f] sm:$0xff]
      %v1759 = vld [vmem:[#allocation2 + $0xa7] sm:$0xff]
      %v1760 = vld [vmem:[#allocation2 + $0xaf] sm:$0xff]
      %v1761 = vld [vmem:[#allocation2 + $0xb7] sm:$0xff]
      %v1762 = vld [vmem:[#allocation2 + $0xbf] sm:$0xff]
      %v1763 = vld [vmem:[#allocation2 + $0xc7] sm:$0xff]
      %v1764 = vld [vmem:[#allocation2 + $0xcf] sm:$0xff]
      %v1765 = vld [vmem:[#allocation2 + $0xd7] sm:$0xff]
      %v1766 = vld [vmem:[#allocation2 + $0xdf] sm:$0xff]
      %v1767 = vld [vmem:[#allocation2 + $0xe7] sm:$0xff]
      %v1768 = vld [vmem:[#allocation2 + $0xef] sm:$0xff]
      %v1769 = vld [vmem:[#allocation2 + $0xf7] sm:$0xff]
      %v1770 = vld [vmem:[#allocation2 + $0xff] sm:$0xff]
      %v1771 = vld [vmem:[#allocation2 + $0x107] sm:$0xff]
      %v1772 = vld [vmem:[#allocation2 + $0x10f] sm:$0xff]
      %v1773 = vmul.f32 %v1741, %v816
      %v1774 = vmul.f32 %v1742, %v821
      %v1775 = vmul.f32 %v1743, %v826
      %v1776 = vmul.f32 %v1744, %v831
      %v1777 = vmul.f32 %v1745, %v836
      %v1778 = vmul.f32 %v1746, %v841
      %v1779 = vmul.f32 %v1747, %v846
      %v1780 = vmul.f32 %v1748, %v851
      %v1781 = vmul.f32 %v1749, %v856
      %v1782 = vmul.f32 %v1750, %v861
      %v1783 = vmul.f32 %v1751, %v866
      %v1784 = vmul.f32 %v1752, %v871
      %v1785 = vmul.f32 %v1753, %v876
      %v1786 = vmul.f32 %v1754, %v881
      %v1787 = vmul.f32 %v1755, %v886
      %v1788 = vmul.f32 %v1756, %v891
      %v1789 = vmul.f32 %v1757, %v896
      %v1790 = vmul.f32 %v1758, %v901
      %v1791 = vmul.f32 %v1759, %v906
      %v1792 = vmul.f32 %v1760, %v911
      %v1793 = vmul.f32 %v1761, %v916
      %v1794 = vmul.f32 %v1762, %v921
      %v1795 = vmul.f32 %v1763, %v926
      %v1796 = vmul.f32 %v1764, %v931
      %v1797 = vmul.f32 %v1765, %v936
      %v1798 = vmul.f32 %v1766, %v941
      %v1799 = vmul.f32 %v1767, %v946
      %v1800 = vmul.f32 %v1768, %v951
      %v1801 = vmul.f32 %v1769, %v956
      %v1802 = vmul.f32 %v1770, %v961
      %v1803 = vmul.f32 %v1771, %v966
      %v1804 = vmul.f32 %v1772, %v971
      %v1805 = vpack.c.bf16 %v1774, %v1773
      %v1806 = vpack.c.bf16 %v1776, %v1775
      %v1807 = vpack.c.bf16 %v1778, %v1777
      %v1808 = vpack.c.bf16 %v1780, %v1779
      %v1809 = vpack.c.bf16 %v1782, %v1781
      %v1810 = vpack.c.bf16 %v1784, %v1783
      %v1811 = vpack.c.bf16 %v1786, %v1785
      %v1812 = vpack.c.bf16 %v1788, %v1787
      %v1813 = vpack.c.bf16 %v1790, %v1789
      %v1814 = vpack.c.bf16 %v1792, %v1791
      %v1815 = vpack.c.bf16 %v1794, %v1793
      %v1816 = vpack.c.bf16 %v1796, %v1795
      %v1817 = vpack.c.bf16 %v1798, %v1797
      %v1818 = vpack.c.bf16 %v1800, %v1799
      %v1819 = vpack.c.bf16 %v1802, %v1801
      %v1820 = vpack.c.bf16 %v1804, %v1803
      %v1837 = vunpack.c.l.b16 %v1805
      %v1838 = vunpack.c.h.b16 %v1805
      %v1839 = vunpack.c.l.b16 %v1806
      %v1840 = vunpack.c.h.b16 %v1806
      %v1841 = vunpack.c.l.b16 %v1807
      %v1842 = vunpack.c.h.b16 %v1807
      %v1843 = vunpack.c.l.b16 %v1808
      %v1844 = vunpack.c.h.b16 %v1808
      %v1845 = vunpack.c.l.b16 %v1809
      %v1846 = vunpack.c.h.b16 %v1809
      %v1847 = vunpack.c.l.b16 %v1810
      %v1848 = vunpack.c.h.b16 %v1810
      %v1849 = vunpack.c.l.b16 %v1811
      %v1850 = vunpack.c.h.b16 %v1811
      %v1851 = vunpack.c.l.b16 %v1812
      %v1852 = vunpack.c.h.b16 %v1812
      %v1853 = vunpack.c.l.b16 %v1813
      %v1854 = vunpack.c.h.b16 %v1813
      %v1855 = vunpack.c.l.b16 %v1814
      %v1856 = vunpack.c.h.b16 %v1814
      %v1857 = vunpack.c.l.b16 %v1815
      %v1858 = vunpack.c.h.b16 %v1815
      %v1859 = vunpack.c.l.b16 %v1816
      %v1860 = vunpack.c.h.b16 %v1816
      %v1861 = vunpack.c.l.b16 %v1817
      %v1862 = vunpack.c.h.b16 %v1817
      %v1863 = vunpack.c.l.b16 %v1818
      %v1864 = vunpack.c.h.b16 %v1818
      %v1865 = vunpack.c.l.b16 %v1819
      %v1866 = vunpack.c.h.b16 %v1819
      %v1867 = vunpack.c.l.b16 %v1820
      %v1868 = vunpack.c.h.b16 %v1820
      %v1869 = vpack.c.b16 %v1837, %v1837
      %v1870 = vpack.c.b16 %v1838, %v1838
      %v1871 = vpack.c.b16 %v1839, %v1839
      %v1872 = vpack.c.b16 %v1840, %v1840
      %v1873 = vpack.c.b16 %v1841, %v1841
      %v1874 = vpack.c.b16 %v1842, %v1842
      %v1875 = vpack.c.b16 %v1843, %v1843
      %v1876 = vpack.c.b16 %v1844, %v1844
      %v1877 = vpack.c.b16 %v1845, %v1845
      %v1878 = vpack.c.b16 %v1846, %v1846
      %v1879 = vpack.c.b16 %v1847, %v1847
      %v1880 = vpack.c.b16 %v1848, %v1848
      %v1881 = vpack.c.b16 %v1849, %v1849
      %v1882 = vpack.c.b16 %v1850, %v1850
      %v1883 = vpack.c.b16 %v1851, %v1851
      %v1884 = vpack.c.b16 %v1852, %v1852
      %v1885 = vpack.c.b16 %v1853, %v1853
      %v1886 = vpack.c.b16 %v1854, %v1854
      %v1887 = vpack.c.b16 %v1855, %v1855
      %v1888 = vpack.c.b16 %v1856, %v1856
      %v1889 = vpack.c.b16 %v1857, %v1857
      %v1890 = vpack.c.b16 %v1858, %v1858
      %v1891 = vpack.c.b16 %v1859, %v1859
      %v1892 = vpack.c.b16 %v1860, %v1860
      %v1893 = vpack.c.b16 %v1861, %v1861
      %v1894 = vpack.c.b16 %v1862, %v1862
      %v1895 = vpack.c.b16 %v1863, %v1863
      %v1896 = vpack.c.b16 %v1864, %v1864
      %v1897 = vpack.c.b16 %v1865, %v1865
      %v1898 = vpack.c.b16 %v1866, %v1866
      %v1899 = vpack.c.b16 %v1867, %v1867
      %v1900 = vpack.c.b16 %v1868, %v1868
      %1933 = vst [vmem:[#allocation3 + $0xc] sm:$0xf] %v1869
      %1934 = vst [vmem:[#allocation3 + $0x30] sm:$0xf] %v1870
      %1935 = vst [vmem:[#allocation3 + $0x54] sm:$0xf] %v1871
      %1936 = vst [vmem:[#allocation3 + $0x78] sm:$0xf] %v1872
      %1937 = vst [vmem:[#allocation3 + $0x9c] sm:$0xf] %v1873
      %1938 = vst [vmem:[#allocation3 + $0xc0] sm:$0xf] %v1874
      %1939 = vst [vmem:[#allocation3 + $0xe4] sm:$0xf] %v1875
      %1940 = vst [vmem:[#allocation3 + $0x108] sm:$0xf] %v1876
      %1941 = vst [vmem:[#allocation3 + $0x12c] sm:$0xf] %v1877
      %1942 = vst [vmem:[#allocation3 + $0x150] sm:$0xf] %v1878
      %1943 = vst [vmem:[#allocation3 + $0x174] sm:$0xf] %v1879
      %1944 = vst [vmem:[#allocation3 + $0x198] sm:$0xf] %v1880
      %1945 = vst [vmem:[#allocation3 + $0x1bc] sm:$0xf] %v1881
      %1946 = vst [vmem:[#allocation3 + $0x1e0] sm:$0xf] %v1882
      %1947 = vst [vmem:[#allocation3 + $0x204] sm:$0xf] %v1883
      %1948 = vst [vmem:[#allocation3 + $0x228] sm:$0xf] %v1884
      %1949 = vst [vmem:[#allocation3 + $0x24c] sm:$0xf] %v1885
      %1950 = vst [vmem:[#allocation3 + $0x270] sm:$0xf] %v1886
      %1951 = vst [vmem:[#allocation3 + $0x294] sm:$0xf] %v1887
      %1952 = vst [vmem:[#allocation3 + $0x2b8] sm:$0xf] %v1888
      %1953 = vst [vmem:[#allocation3 + $0x2dc] sm:$0xf] %v1889
      %1954 = vst [vmem:[#allocation3 + $0x300] sm:$0xf] %v1890
      %1955 = vst [vmem:[#allocation3 + $0x324] sm:$0xf] %v1891
      %1956 = vst [vmem:[#allocation3 + $0x348] sm:$0xf] %v1892
      %1957 = vst [vmem:[#allocation3 + $0x36c] sm:$0xf] %v1893
      %1958 = vst [vmem:[#allocation3 + $0x390] sm:$0xf] %v1894
      %1959 = vst [vmem:[#allocation3 + $0x3b4] sm:$0xf] %v1895
      %1960 = vst [vmem:[#allocation3 + $0x3d8] sm:$0xf] %v1896
      %1961 = vst [vmem:[#allocation3 + $0x3fc] sm:$0xf] %v1897
      %1962 = vst [vmem:[#allocation3 + $0x420] sm:$0xf] %v1898
      %1963 = vst [vmem:[#allocation3 + $0x444] sm:$0xf] %v1899
      %1964 = vst [vmem:[#allocation3 + $0x468] sm:$0xf] %v1900
      %v1965 = vld [vmem:[#allocation2 + $0x18] sm:$0xff]
      %v1966 = vld [vmem:[#allocation2 + $0x20] sm:$0xff]
      %v1967 = vld [vmem:[#allocation2 + $0x28] sm:$0xff]
      %v1968 = vld [vmem:[#allocation2 + $0x30] sm:$0xff]
      %v1969 = vld [vmem:[#allocation2 + $0x38] sm:$0xff]
      %v1970 = vld [vmem:[#allocation2 + $0x40] sm:$0xff]
      %v1971 = vld [vmem:[#allocation2 + $0x48] sm:$0xff]
      %v1972 = vld [vmem:[#allocation2 + $0x50] sm:$0xff]
      %v1973 = vld [vmem:[#allocation2 + $0x58] sm:$0xff]
      %v1974 = vld [vmem:[#allocation2 + $0x60] sm:$0xff]
      %v1975 = vld [vmem:[#allocation2 + $0x68] sm:$0xff]
      %v1976 = vld [vmem:[#allocation2 + $0x70] sm:$0xff]
      %v1977 = vld [vmem:[#allocation2 + $0x78] sm:$0xff]
      %v1978 = vld [vmem:[#allocation2 + $0x80] sm:$0xff]
      %v1979 = vld [vmem:[#allocation2 + $0x88] sm:$0xff]
      %v1980 = vld [vmem:[#allocation2 + $0x90] sm:$0xff]
      %v1981 = vld [vmem:[#allocation2 + $0x98] sm:$0xff]
      %v1982 = vld [vmem:[#allocation2 + $0xa0] sm:$0xff]
      %v1983 = vld [vmem:[#allocation2 + $0xa8] sm:$0xff]
      %v1984 = vld [vmem:[#allocation2 + $0xb0] sm:$0xff]
      %v1985 = vld [vmem:[#allocation2 + $0xb8] sm:$0xff]
      %v1986 = vld [vmem:[#allocation2 + $0xc0] sm:$0xff]
      %v1987 = vld [vmem:[#allocation2 + $0xc8] sm:$0xff]
      %v1988 = vld [vmem:[#allocation2 + $0xd0] sm:$0xff]
      %v1989 = vld [vmem:[#allocation2 + $0xd8] sm:$0xff]
      %v1990 = vld [vmem:[#allocation2 + $0xe0] sm:$0xff]
      %v1991 = vld [vmem:[#allocation2 + $0xe8] sm:$0xff]
      %v1992 = vld [vmem:[#allocation2 + $0xf0] sm:$0xff]
      %v1993 = vld [vmem:[#allocation2 + $0xf8] sm:$0xff]
      %v1994 = vld [vmem:[#allocation2 + $0x100] sm:$0xff]
      %v1995 = vld [vmem:[#allocation2 + $0x108] sm:$0xff]
      %v1996 = vld [vmem:[#allocation2 + $0x110] sm:$0xff]
      %v1997 = vpack.c.bf16 %v1966, %v1965
      %v1998 = vpack.c.bf16 %v1968, %v1967
      %v1999 = vpack.c.bf16 %v1970, %v1969
      %v2000 = vpack.c.bf16 %v1972, %v1971
      %v2001 = vpack.c.bf16 %v1974, %v1973
      %v2002 = vpack.c.bf16 %v1976, %v1975
      %v2003 = vpack.c.bf16 %v1978, %v1977
      %v2004 = vpack.c.bf16 %v1980, %v1979
      %v2005 = vpack.c.bf16 %v1982, %v1981
      %v2006 = vpack.c.bf16 %v1984, %v1983
      %v2007 = vpack.c.bf16 %v1986, %v1985
      %v2008 = vpack.c.bf16 %v1988, %v1987
      %v2009 = vpack.c.bf16 %v1990, %v1989
      %v2010 = vpack.c.bf16 %v1992, %v1991
      %v2011 = vpack.c.bf16 %v1994, %v1993
      %v2012 = vpack.c.bf16 %v1996, %v1995
      %v2029 = vunpack.c.l.b16 %v1997
      %v2030 = vunpack.c.h.b16 %v1997
      %v2031 = vunpack.c.l.b16 %v1998
      %v2032 = vunpack.c.h.b16 %v1998
      %v2033 = vunpack.c.l.b16 %v1999
      %v2034 = vunpack.c.h.b16 %v1999
      %v2035 = vunpack.c.l.b16 %v2000
      %v2036 = vunpack.c.h.b16 %v2000
      %v2037 = vunpack.c.l.b16 %v2001
      %v2038 = vunpack.c.h.b16 %v2001
      %v2039 = vunpack.c.l.b16 %v2002
      %v2040 = vunpack.c.h.b16 %v2002
      %v2041 = vunpack.c.l.b16 %v2003
      %v2042 = vunpack.c.h.b16 %v2003
      %v2043 = vunpack.c.l.b16 %v2004
      %v2044 = vunpack.c.h.b16 %v2004
      %v2045 = vunpack.c.l.b16 %v2005
      %v2046 = vunpack.c.h.b16 %v2005
      %v2047 = vunpack.c.l.b16 %v2006
      %v2048 = vunpack.c.h.b16 %v2006
      %v2049 = vunpack.c.l.b16 %v2007
      %v2050 = vunpack.c.h.b16 %v2007
      %v2051 = vunpack.c.l.b16 %v2008
      %v2052 = vunpack.c.h.b16 %v2008
      %v2053 = vunpack.c.l.b16 %v2009
      %v2054 = vunpack.c.h.b16 %v2009
      %v2055 = vunpack.c.l.b16 %v2010
      %v2056 = vunpack.c.h.b16 %v2010
      %v2057 = vunpack.c.l.b16 %v2011
      %v2058 = vunpack.c.h.b16 %v2011
      %v2059 = vunpack.c.l.b16 %v2012
      %v2060 = vunpack.c.h.b16 %v2012
      %v2061 = vpack.c.b16 %v2029, %v2029
      %v2062 = vpack.c.b16 %v2030, %v2030
      %v2063 = vpack.c.b16 %v2031, %v2031
      %v2064 = vpack.c.b16 %v2032, %v2032
      %v2065 = vpack.c.b16 %v2033, %v2033
      %v2066 = vpack.c.b16 %v2034, %v2034
      %v2067 = vpack.c.b16 %v2035, %v2035
      %v2068 = vpack.c.b16 %v2036, %v2036
      %v2069 = vpack.c.b16 %v2037, %v2037
      %v2070 = vpack.c.b16 %v2038, %v2038
      %v2071 = vpack.c.b16 %v2039, %v2039
      %v2072 = vpack.c.b16 %v2040, %v2040
      %v2073 = vpack.c.b16 %v2041, %v2041
      %v2074 = vpack.c.b16 %v2042, %v2042
      %v2075 = vpack.c.b16 %v2043, %v2043
      %v2076 = vpack.c.b16 %v2044, %v2044
      %v2077 = vpack.c.b16 %v2045, %v2045
      %v2078 = vpack.c.b16 %v2046, %v2046
      %v2079 = vpack.c.b16 %v2047, %v2047
      %v2080 = vpack.c.b16 %v2048, %v2048
      %v2081 = vpack.c.b16 %v2049, %v2049
      %v2082 = vpack.c.b16 %v2050, %v2050
      %v2083 = vpack.c.b16 %v2051, %v2051
      %v2084 = vpack.c.b16 %v2052, %v2052
      %v2085 = vpack.c.b16 %v2053, %v2053
      %v2086 = vpack.c.b16 %v2054, %v2054
      %v2087 = vpack.c.b16 %v2055, %v2055
      %v2088 = vpack.c.b16 %v2056, %v2056
      %v2089 = vpack.c.b16 %v2057, %v2057
      %v2090 = vpack.c.b16 %v2058, %v2058
      %v2091 = vpack.c.b16 %v2059, %v2059
      %v2092 = vpack.c.b16 %v2060, %v2060
      %2125 = vst [vmem:[#allocation3 + $0x10] sm:$0xf] %v2061
      %2126 = vst [vmem:[#allocation3 + $0x34] sm:$0xf] %v2062
      %2127 = vst [vmem:[#allocation3 + $0x58] sm:$0xf] %v2063
      %2128 = vst [vmem:[#allocation3 + $0x7c] sm:$0xf] %v2064
      %2129 = vst [vmem:[#allocation3 + $0xa0] sm:$0xf] %v2065
      %2130 = vst [vmem:[#allocation3 + $0xc4] sm:$0xf] %v2066
      %2131 = vst [vmem:[#allocation3 + $0xe8] sm:$0xf] %v2067
      %2132 = vst [vmem:[#allocation3 + $0x10c] sm:$0xf] %v2068
      %2133 = vst [vmem:[#allocation3 + $0x130] sm:$0xf] %v2069
      %2134 = vst [vmem:[#allocation3 + $0x154] sm:$0xf] %v2070
      %2135 = vst [vmem:[#allocation3 + $0x178] sm:$0xf] %v2071
      %2136 = vst [vmem:[#allocation3 + $0x19c] sm:$0xf] %v2072
      %2137 = vst [vmem:[#allocation3 + $0x1c0] sm:$0xf] %v2073
      %2138 = vst [vmem:[#allocation3 + $0x1e4] sm:$0xf] %v2074
      %2139 = vst [vmem:[#allocation3 + $0x208] sm:$0xf] %v2075
      %2140 = vst [vmem:[#allocation3 + $0x22c] sm:$0xf] %v2076
      %2141 = vst [vmem:[#allocation3 + $0x250] sm:$0xf] %v2077
      %2142 = vst [vmem:[#allocation3 + $0x274] sm:$0xf] %v2078
      %2143 = vst [vmem:[#allocation3 + $0x298] sm:$0xf] %v2079
      %2144 = vst [vmem:[#allocation3 + $0x2bc] sm:$0xf] %v2080
      %2145 = vst [vmem:[#allocation3 + $0x2e0] sm:$0xf] %v2081
      %2146 = vst [vmem:[#allocation3 + $0x304] sm:$0xf] %v2082
      %2147 = vst [vmem:[#allocation3 + $0x328] sm:$0xf] %v2083
      %2148 = vst [vmem:[#allocation3 + $0x34c] sm:$0xf] %v2084
      %2149 = vst [vmem:[#allocation3 + $0x370] sm:$0xf] %v2085
      %2150 = vst [vmem:[#allocation3 + $0x394] sm:$0xf] %v2086
      %2151 = vst [vmem:[#allocation3 + $0x3b8] sm:$0xf] %v2087
      %2152 = vst [vmem:[#allocation3 + $0x3dc] sm:$0xf] %v2088
      %2153 = vst [vmem:[#allocation3 + $0x400] sm:$0xf] %v2089
      %2154 = vst [vmem:[#allocation3 + $0x424] sm:$0xf] %v2090
      %2155 = vst [vmem:[#allocation3 + $0x448] sm:$0xf] %v2091
      %2156 = vst [vmem:[#allocation3 + $0x46c] sm:$0xf] %v2092
      %v2157 = vld [vmem:[#allocation2 + $0x19] sm:$0xff]
      %v2158 = vld [vmem:[#allocation2 + $0x21] sm:$0xff]
      %v2159 = vld [vmem:[#allocation2 + $0x29] sm:$0xff]
      %v2160 = vld [vmem:[#allocation2 + $0x31] sm:$0xff]
      %v2161 = vld [vmem:[#allocation2 + $0x39] sm:$0xff]
      %v2162 = vld [vmem:[#allocation2 + $0x41] sm:$0xff]
      %v2163 = vld [vmem:[#allocation2 + $0x49] sm:$0xff]
      %v2164 = vld [vmem:[#allocation2 + $0x51] sm:$0xff]
      %v2165 = vld [vmem:[#allocation2 + $0x59] sm:$0xff]
      %v2166 = vld [vmem:[#allocation2 + $0x61] sm:$0xff]
      %v2167 = vld [vmem:[#allocation2 + $0x69] sm:$0xff]
      %v2168 = vld [vmem:[#allocation2 + $0x71] sm:$0xff]
      %v2169 = vld [vmem:[#allocation2 + $0x79] sm:$0xff]
      %v2170 = vld [vmem:[#allocation2 + $0x81] sm:$0xff]
      %v2171 = vld [vmem:[#allocation2 + $0x89] sm:$0xff]
      %v2172 = vld [vmem:[#allocation2 + $0x91] sm:$0xff]
      %v2173 = vld [vmem:[#allocation2 + $0x99] sm:$0xff]
      %v2174 = vld [vmem:[#allocation2 + $0xa1] sm:$0xff]
      %v2175 = vld [vmem:[#allocation2 + $0xa9] sm:$0xff]
      %v2176 = vld [vmem:[#allocation2 + $0xb1] sm:$0xff]
      %v2177 = vld [vmem:[#allocation2 + $0xb9] sm:$0xff]
      %v2178 = vld [vmem:[#allocation2 + $0xc1] sm:$0xff]
      %v2179 = vld [vmem:[#allocation2 + $0xc9] sm:$0xff]
      %v2180 = vld [vmem:[#allocation2 + $0xd1] sm:$0xff]
      %v2181 = vld [vmem:[#allocation2 + $0xd9] sm:$0xff]
      %v2182 = vld [vmem:[#allocation2 + $0xe1] sm:$0xff]
      %v2183 = vld [vmem:[#allocation2 + $0xe9] sm:$0xff]
      %v2184 = vld [vmem:[#allocation2 + $0xf1] sm:$0xff]
      %v2185 = vld [vmem:[#allocation2 + $0xf9] sm:$0xff]
      %v2186 = vld [vmem:[#allocation2 + $0x101] sm:$0xff]
      %v2187 = vld [vmem:[#allocation2 + $0x109] sm:$0xff]
      %v2188 = vld [vmem:[#allocation2 + $0x111] sm:$0xff]
      %v2189 = vmul.f32 %v2157, %v1392
      %v2190 = vmul.f32 %v2158, %v1397
      %v2191 = vmul.f32 %v2159, %v1402
      %v2192 = vmul.f32 %v2160, %v1407
      %v2193 = vmul.f32 %v2161, %v1412
      %v2194 = vmul.f32 %v2162, %v1417
      %v2195 = vmul.f32 %v2163, %v1422
      %v2196 = vmul.f32 %v2164, %v1427
      %v2197 = vmul.f32 %v2165, %v1432
      %v2198 = vmul.f32 %v2166, %v1437
      %v2199 = vmul.f32 %v2167, %v1442
      %v2200 = vmul.f32 %v2168, %v1447
      %v2201 = vmul.f32 %v2169, %v1452
      %v2202 = vmul.f32 %v2170, %v1457
      %v2203 = vmul.f32 %v2171, %v1462
      %v2204 = vmul.f32 %v2172, %v1467
      %v2205 = vmul.f32 %v2173, %v1472
      %v2206 = vmul.f32 %v2174, %v1477
      %v2207 = vmul.f32 %v2175, %v1482
      %v2208 = vmul.f32 %v2176, %v1487
      %v2209 = vmul.f32 %v2177, %v1492
      %v2210 = vmul.f32 %v2178, %v1497
      %v2211 = vmul.f32 %v2179, %v1502
      %v2212 = vmul.f32 %v2180, %v1507
      %v2213 = vmul.f32 %v2181, %v1512
      %v2214 = vmul.f32 %v2182, %v1517
      %v2215 = vmul.f32 %v2183, %v1522
      %v2216 = vmul.f32 %v2184, %v1527
      %v2217 = vmul.f32 %v2185, %v1532
      %v2218 = vmul.f32 %v2186, %v1537
      %v2219 = vmul.f32 %v2187, %v1542
      %v2220 = vmul.f32 %v2188, %v1547
      %v2221 = vpack.c.bf16 %v2190, %v2189
      %v2222 = vpack.c.bf16 %v2192, %v2191
      %v2223 = vpack.c.bf16 %v2194, %v2193
      %v2224 = vpack.c.bf16 %v2196, %v2195
      %v2225 = vpack.c.bf16 %v2198, %v2197
      %v2226 = vpack.c.bf16 %v2200, %v2199
      %v2227 = vpack.c.bf16 %v2202, %v2201
      %v2228 = vpack.c.bf16 %v2204, %v2203
      %v2229 = vpack.c.bf16 %v2206, %v2205
      %v2230 = vpack.c.bf16 %v2208, %v2207
      %v2231 = vpack.c.bf16 %v2210, %v2209
      %v2232 = vpack.c.bf16 %v2212, %v2211
      %v2233 = vpack.c.bf16 %v2214, %v2213
      %v2234 = vpack.c.bf16 %v2216, %v2215
      %v2235 = vpack.c.bf16 %v2218, %v2217
      %v2236 = vpack.c.bf16 %v2220, %v2219
      %v2253 = vunpack.c.l.b16 %v2221
      %v2254 = vunpack.c.h.b16 %v2221
      %v2255 = vunpack.c.l.b16 %v2222
      %v2256 = vunpack.c.h.b16 %v2222
      %v2257 = vunpack.c.l.b16 %v2223
      %v2258 = vunpack.c.h.b16 %v2223
      %v2259 = vunpack.c.l.b16 %v2224
      %v2260 = vunpack.c.h.b16 %v2224
      %v2261 = vunpack.c.l.b16 %v2225
      %v2262 = vunpack.c.h.b16 %v2225
      %v2263 = vunpack.c.l.b16 %v2226
      %v2264 = vunpack.c.h.b16 %v2226
      %v2265 = vunpack.c.l.b16 %v2227
      %v2266 = vunpack.c.h.b16 %v2227
      %v2267 = vunpack.c.l.b16 %v2228
      %v2268 = vunpack.c.h.b16 %v2228
      %v2269 = vunpack.c.l.b16 %v2229
      %v2270 = vunpack.c.h.b16 %v2229
      %v2271 = vunpack.c.l.b16 %v2230
      %v2272 = vunpack.c.h.b16 %v2230
      %v2273 = vunpack.c.l.b16 %v2231
      %v2274 = vunpack.c.h.b16 %v2231
      %v2275 = vunpack.c.l.b16 %v2232
      %v2276 = vunpack.c.h.b16 %v2232
      %v2277 = vunpack.c.l.b16 %v2233
      %v2278 = vunpack.c.h.b16 %v2233
      %v2279 = vunpack.c.l.b16 %v2234
      %v2280 = vunpack.c.h.b16 %v2234
      %v2281 = vunpack.c.l.b16 %v2235
      %v2282 = vunpack.c.h.b16 %v2235
      %v2283 = vunpack.c.l.b16 %v2236
      %v2284 = vunpack.c.h.b16 %v2236
      %v2285 = vpack.c.b16 %v2253, %v2253
      %v2286 = vpack.c.b16 %v2254, %v2254
      %v2287 = vpack.c.b16 %v2255, %v2255
      %v2288 = vpack.c.b16 %v2256, %v2256
      %v2289 = vpack.c.b16 %v2257, %v2257
      %v2290 = vpack.c.b16 %v2258, %v2258
      %v2291 = vpack.c.b16 %v2259, %v2259
      %v2292 = vpack.c.b16 %v2260, %v2260
      %v2293 = vpack.c.b16 %v2261, %v2261
      %v2294 = vpack.c.b16 %v2262, %v2262
      %v2295 = vpack.c.b16 %v2263, %v2263
      %v2296 = vpack.c.b16 %v2264, %v2264
      %v2297 = vpack.c.b16 %v2265, %v2265
      %v2298 = vpack.c.b16 %v2266, %v2266
      %v2299 = vpack.c.b16 %v2267, %v2267
      %v2300 = vpack.c.b16 %v2268, %v2268
      %v2301 = vpack.c.b16 %v2269, %v2269
      %v2302 = vpack.c.b16 %v2270, %v2270
      %v2303 = vpack.c.b16 %v2271, %v2271
      %v2304 = vpack.c.b16 %v2272, %v2272
      %v2305 = vpack.c.b16 %v2273, %v2273
      %v2306 = vpack.c.b16 %v2274, %v2274
      %v2307 = vpack.c.b16 %v2275, %v2275
      %v2308 = vpack.c.b16 %v2276, %v2276
      %v2309 = vpack.c.b16 %v2277, %v2277
      %v2310 = vpack.c.b16 %v2278, %v2278
      %v2311 = vpack.c.b16 %v2279, %v2279
      %v2312 = vpack.c.b16 %v2280, %v2280
      %v2313 = vpack.c.b16 %v2281, %v2281
      %v2314 = vpack.c.b16 %v2282, %v2282
      %v2315 = vpack.c.b16 %v2283, %v2283
      %v2316 = vpack.c.b16 %v2284, %v2284
      %2349 = vst [vmem:[#allocation3 + $0x14] sm:$0xf] %v2285
      %2350 = vst [vmem:[#allocation3 + $0x38] sm:$0xf] %v2286
      %2351 = vst [vmem:[#allocation3 + $0x5c] sm:$0xf] %v2287
      %2352 = vst [vmem:[#allocation3 + $0x80] sm:$0xf] %v2288
      %2353 = vst [vmem:[#allocation3 + $0xa4] sm:$0xf] %v2289
      %2354 = vst [vmem:[#allocation3 + $0xc8] sm:$0xf] %v2290
      %2355 = vst [vmem:[#allocation3 + $0xec] sm:$0xf] %v2291
      %2356 = vst [vmem:[#allocation3 + $0x110] sm:$0xf] %v2292
      %2357 = vst [vmem:[#allocation3 + $0x134] sm:$0xf] %v2293
      %2358 = vst [vmem:[#allocation3 + $0x158] sm:$0xf] %v2294
      %2359 = vst [vmem:[#allocation3 + $0x17c] sm:$0xf] %v2295
      %2360 = vst [vmem:[#allocation3 + $0x1a0] sm:$0xf] %v2296
      %2361 = vst [vmem:[#allocation3 + $0x1c4] sm:$0xf] %v2297
      %2362 = vst [vmem:[#allocation3 + $0x1e8] sm:$0xf] %v2298
      %2363 = vst [vmem:[#allocation3 + $0x20c] sm:$0xf] %v2299
      %2364 = vst [vmem:[#allocation3 + $0x230] sm:$0xf] %v2300
      %2365 = vst [vmem:[#allocation3 + $0x254] sm:$0xf] %v2301
      %2366 = vst [vmem:[#allocation3 + $0x278] sm:$0xf] %v2302
      %2367 = vst [vmem:[#allocation3 + $0x29c] sm:$0xf] %v2303
      %2368 = vst [vmem:[#allocation3 + $0x2c0] sm:$0xf] %v2304
      %2369 = vst [vmem:[#allocation3 + $0x2e4] sm:$0xf] %v2305
      %2370 = vst [vmem:[#allocation3 + $0x308] sm:$0xf] %v2306
      %2371 = vst [vmem:[#allocation3 + $0x32c] sm:$0xf] %v2307
      %2372 = vst [vmem:[#allocation3 + $0x350] sm:$0xf] %v2308
      %2373 = vst [vmem:[#allocation3 + $0x374] sm:$0xf] %v2309
      %2374 = vst [vmem:[#allocation3 + $0x398] sm:$0xf] %v2310
      %2375 = vst [vmem:[#allocation3 + $0x3bc] sm:$0xf] %v2311
      %2376 = vst [vmem:[#allocation3 + $0x3e0] sm:$0xf] %v2312
      %2377 = vst [vmem:[#allocation3 + $0x404] sm:$0xf] %v2313
      %2378 = vst [vmem:[#allocation3 + $0x428] sm:$0xf] %v2314
      %2379 = vst [vmem:[#allocation3 + $0x44c] sm:$0xf] %v2315
      %2380 = vst [vmem:[#allocation3 + $0x470] sm:$0xf] %v2316
      %v2381 = vld [vmem:[#allocation2 + $0x27] sm:$0xff]
      %v2382 = vld [vmem:[#allocation2 + $0x2f] sm:$0xff]
      %v2383 = vld [vmem:[#allocation2 + $0x37] sm:$0xff]
      %v2384 = vld [vmem:[#allocation2 + $0x3f] sm:$0xff]
      %v2385 = vld [vmem:[#allocation2 + $0x47] sm:$0xff]
      %v2386 = vld [vmem:[#allocation2 + $0x4f] sm:$0xff]
      %v2387 = vld [vmem:[#allocation2 + $0x57] sm:$0xff]
      %v2388 = vld [vmem:[#allocation2 + $0x5f] sm:$0xff]
      %v2389 = vld [vmem:[#allocation2 + $0x67] sm:$0xff]
      %v2390 = vld [vmem:[#allocation2 + $0x6f] sm:$0xff]
      %v2391 = vld [vmem:[#allocation2 + $0x77] sm:$0xff]
      %v2392 = vld [vmem:[#allocation2 + $0x7f] sm:$0xff]
      %v2393 = vld [vmem:[#allocation2 + $0x87] sm:$0xff]
      %v2394 = vld [vmem:[#allocation2 + $0x8f] sm:$0xff]
      %v2395 = vld [vmem:[#allocation2 + $0x97] sm:$0xff]
      %v2396 = vld [vmem:[#allocation2 + $0x9f] sm:$0xff]
      %v2397 = vld [vmem:[#allocation2 + $0xa7] sm:$0xff]
      %v2398 = vld [vmem:[#allocation2 + $0xaf] sm:$0xff]
      %v2399 = vld [vmem:[#allocation2 + $0xb7] sm:$0xff]
      %v2400 = vld [vmem:[#allocation2 + $0xbf] sm:$0xff]
      %v2401 = vld [vmem:[#allocation2 + $0xc7] sm:$0xff]
      %v2402 = vld [vmem:[#allocation2 + $0xcf] sm:$0xff]
      %v2403 = vld [vmem:[#allocation2 + $0xd7] sm:$0xff]
      %v2404 = vld [vmem:[#allocation2 + $0xdf] sm:$0xff]
      %v2405 = vld [vmem:[#allocation2 + $0xe7] sm:$0xff]
      %v2406 = vld [vmem:[#allocation2 + $0xef] sm:$0xff]
      %v2407 = vld [vmem:[#allocation2 + $0xf7] sm:$0xff]
      %v2408 = vld [vmem:[#allocation2 + $0xff] sm:$0xff]
      %v2409 = vld [vmem:[#allocation2 + $0x107] sm:$0xff]
      %v2410 = vld [vmem:[#allocation2 + $0x10f] sm:$0xff]
      %v2411 = vld [vmem:[#allocation2 + $0x117] sm:$0xff]
      %v2412 = vld [vmem:[#allocation2 + $0x11f] sm:$0xff]
      %v2413 = vmul.f32 %v2381, %v816
      %v2414 = vmul.f32 %v2382, %v821
      %v2415 = vmul.f32 %v2383, %v826
      %v2416 = vmul.f32 %v2384, %v831
      %v2417 = vmul.f32 %v2385, %v836
      %v2418 = vmul.f32 %v2386, %v841
      %v2419 = vmul.f32 %v2387, %v846
      %v2420 = vmul.f32 %v2388, %v851
      %v2421 = vmul.f32 %v2389, %v856
      %v2422 = vmul.f32 %v2390, %v861
      %v2423 = vmul.f32 %v2391, %v866
      %v2424 = vmul.f32 %v2392, %v871
      %v2425 = vmul.f32 %v2393, %v876
      %v2426 = vmul.f32 %v2394, %v881
      %v2427 = vmul.f32 %v2395, %v886
      %v2428 = vmul.f32 %v2396, %v891
      %v2429 = vmul.f32 %v2397, %v896
      %v2430 = vmul.f32 %v2398, %v901
      %v2431 = vmul.f32 %v2399, %v906
      %v2432 = vmul.f32 %v2400, %v911
      %v2433 = vmul.f32 %v2401, %v916
      %v2434 = vmul.f32 %v2402, %v921
      %v2435 = vmul.f32 %v2403, %v926
      %v2436 = vmul.f32 %v2404, %v931
      %v2437 = vmul.f32 %v2405, %v936
      %v2438 = vmul.f32 %v2406, %v941
      %v2439 = vmul.f32 %v2407, %v946
      %v2440 = vmul.f32 %v2408, %v951
      %v2441 = vmul.f32 %v2409, %v956
      %v2442 = vmul.f32 %v2410, %v961
      %v2443 = vmul.f32 %v2411, %v966
      %v2444 = vmul.f32 %v2412, %v971
      %v2445 = vpack.c.bf16 %v2414, %v2413
      %v2446 = vpack.c.bf16 %v2416, %v2415
      %v2447 = vpack.c.bf16 %v2418, %v2417
      %v2448 = vpack.c.bf16 %v2420, %v2419
      %v2449 = vpack.c.bf16 %v2422, %v2421
      %v2450 = vpack.c.bf16 %v2424, %v2423
      %v2451 = vpack.c.bf16 %v2426, %v2425
      %v2452 = vpack.c.bf16 %v2428, %v2427
      %v2453 = vpack.c.bf16 %v2430, %v2429
      %v2454 = vpack.c.bf16 %v2432, %v2431
      %v2455 = vpack.c.bf16 %v2434, %v2433
      %v2456 = vpack.c.bf16 %v2436, %v2435
      %v2457 = vpack.c.bf16 %v2438, %v2437
      %v2458 = vpack.c.bf16 %v2440, %v2439
      %v2459 = vpack.c.bf16 %v2442, %v2441
      %v2460 = vpack.c.bf16 %v2444, %v2443
      %v2477 = vunpack.c.l.b16 %v2445
      %v2478 = vunpack.c.h.b16 %v2445
      %v2479 = vunpack.c.l.b16 %v2446
      %v2480 = vunpack.c.h.b16 %v2446
      %v2481 = vunpack.c.l.b16 %v2447
      %v2482 = vunpack.c.h.b16 %v2447
      %v2483 = vunpack.c.l.b16 %v2448
      %v2484 = vunpack.c.h.b16 %v2448
      %v2485 = vunpack.c.l.b16 %v2449
      %v2486 = vunpack.c.h.b16 %v2449
      %v2487 = vunpack.c.l.b16 %v2450
      %v2488 = vunpack.c.h.b16 %v2450
      %v2489 = vunpack.c.l.b16 %v2451
      %v2490 = vunpack.c.h.b16 %v2451
      %v2491 = vunpack.c.l.b16 %v2452
      %v2492 = vunpack.c.h.b16 %v2452
      %v2493 = vunpack.c.l.b16 %v2453
      %v2494 = vunpack.c.h.b16 %v2453
      %v2495 = vunpack.c.l.b16 %v2454
      %v2496 = vunpack.c.h.b16 %v2454
      %v2497 = vunpack.c.l.b16 %v2455
      %v2498 = vunpack.c.h.b16 %v2455
      %v2499 = vunpack.c.l.b16 %v2456
      %v2500 = vunpack.c.h.b16 %v2456
      %v2501 = vunpack.c.l.b16 %v2457
      %v2502 = vunpack.c.h.b16 %v2457
      %v2503 = vunpack.c.l.b16 %v2458
      %v2504 = vunpack.c.h.b16 %v2458
      %v2505 = vunpack.c.l.b16 %v2459
      %v2506 = vunpack.c.h.b16 %v2459
      %v2507 = vunpack.c.l.b16 %v2460
      %v2508 = vunpack.c.h.b16 %v2460
      %v2509 = vpack.c.b16 %v2477, %v2477
      %v2510 = vpack.c.b16 %v2478, %v2478
      %v2511 = vpack.c.b16 %v2479, %v2479
      %v2512 = vpack.c.b16 %v2480, %v2480
      %v2513 = vpack.c.b16 %v2481, %v2481
      %v2514 = vpack.c.b16 %v2482, %v2482
      %v2515 = vpack.c.b16 %v2483, %v2483
      %v2516 = vpack.c.b16 %v2484, %v2484
      %v2517 = vpack.c.b16 %v2485, %v2485
      %v2518 = vpack.c.b16 %v2486, %v2486
      %v2519 = vpack.c.b16 %v2487, %v2487
      %v2520 = vpack.c.b16 %v2488, %v2488
      %v2521 = vpack.c.b16 %v2489, %v2489
      %v2522 = vpack.c.b16 %v2490, %v2490
      %v2523 = vpack.c.b16 %v2491, %v2491
      %v2524 = vpack.c.b16 %v2492, %v2492
      %v2525 = vpack.c.b16 %v2493, %v2493
      %v2526 = vpack.c.b16 %v2494, %v2494
      %v2527 = vpack.c.b16 %v2495, %v2495
      %v2528 = vpack.c.b16 %v2496, %v2496
      %v2529 = vpack.c.b16 %v2497, %v2497
      %v2530 = vpack.c.b16 %v2498, %v2498
      %v2531 = vpack.c.b16 %v2499, %v2499
      %v2532 = vpack.c.b16 %v2500, %v2500
      %v2533 = vpack.c.b16 %v2501, %v2501
      %v2534 = vpack.c.b16 %v2502, %v2502
      %v2535 = vpack.c.b16 %v2503, %v2503
      %v2536 = vpack.c.b16 %v2504, %v2504
      %v2537 = vpack.c.b16 %v2505, %v2505
      %v2538 = vpack.c.b16 %v2506, %v2506
      %v2539 = vpack.c.b16 %v2507, %v2507
      %v2540 = vpack.c.b16 %v2508, %v2508
      %2573 = vst [vmem:[#allocation3 + $0x18] sm:$0xf] %v2509
      %2574 = vst [vmem:[#allocation3 + $0x3c] sm:$0xf] %v2510
      %2575 = vst [vmem:[#allocation3 + $0x60] sm:$0xf] %v2511
      %2576 = vst [vmem:[#allocation3 + $0x84] sm:$0xf] %v2512
      %2577 = vst [vmem:[#allocation3 + $0xa8] sm:$0xf] %v2513
      %2578 = vst [vmem:[#allocation3 + $0xcc] sm:$0xf] %v2514
      %2579 = vst [vmem:[#allocation3 + $0xf0] sm:$0xf] %v2515
      %2580 = vst [vmem:[#allocation3 + $0x114] sm:$0xf] %v2516
      %2581 = vst [vmem:[#allocation3 + $0x138] sm:$0xf] %v2517
      %2582 = vst [vmem:[#allocation3 + $0x15c] sm:$0xf] %v2518
      %2583 = vst [vmem:[#allocation3 + $0x180] sm:$0xf] %v2519
      %2584 = vst [vmem:[#allocation3 + $0x1a4] sm:$0xf] %v2520
      %2585 = vst [vmem:[#allocation3 + $0x1c8] sm:$0xf] %v2521
      %2586 = vst [vmem:[#allocation3 + $0x1ec] sm:$0xf] %v2522
      %2587 = vst [vmem:[#allocation3 + $0x210] sm:$0xf] %v2523
      %2588 = vst [vmem:[#allocation3 + $0x234] sm:$0xf] %v2524
      %2589 = vst [vmem:[#allocation3 + $0x258] sm:$0xf] %v2525
      %2590 = vst [vmem:[#allocation3 + $0x27c] sm:$0xf] %v2526
      %2591 = vst [vmem:[#allocation3 + $0x2a0] sm:$0xf] %v2527
      %2592 = vst [vmem:[#allocation3 + $0x2c4] sm:$0xf] %v2528
      %2593 = vst [vmem:[#allocation3 + $0x2e8] sm:$0xf] %v2529
      %2594 = vst [vmem:[#allocation3 + $0x30c] sm:$0xf] %v2530
      %2595 = vst [vmem:[#allocation3 + $0x330] sm:$0xf] %v2531
      %2596 = vst [vmem:[#allocation3 + $0x354] sm:$0xf] %v2532
      %2597 = vst [vmem:[#allocation3 + $0x378] sm:$0xf] %v2533
      %2598 = vst [vmem:[#allocation3 + $0x39c] sm:$0xf] %v2534
      %2599 = vst [vmem:[#allocation3 + $0x3c0] sm:$0xf] %v2535
      %2600 = vst [vmem:[#allocation3 + $0x3e4] sm:$0xf] %v2536
      %2601 = vst [vmem:[#allocation3 + $0x408] sm:$0xf] %v2537
      %2602 = vst [vmem:[#allocation3 + $0x42c] sm:$0xf] %v2538
      %2603 = vst [vmem:[#allocation3 + $0x450] sm:$0xf] %v2539
      %2604 = vst [vmem:[#allocation3 + $0x474] sm:$0xf] %v2540
      %v2605 = vld [vmem:[#allocation2 + $0x28] sm:$0xff]
      %v2606 = vld [vmem:[#allocation2 + $0x30] sm:$0xff]
      %v2607 = vld [vmem:[#allocation2 + $0x38] sm:$0xff]
      %v2608 = vld [vmem:[#allocation2 + $0x40] sm:$0xff]
      %v2609 = vld [vmem:[#allocation2 + $0x48] sm:$0xff]
      %v2610 = vld [vmem:[#allocation2 + $0x50] sm:$0xff]
      %v2611 = vld [vmem:[#allocation2 + $0x58] sm:$0xff]
      %v2612 = vld [vmem:[#allocation2 + $0x60] sm:$0xff]
      %v2613 = vld [vmem:[#allocation2 + $0x68] sm:$0xff]
      %v2614 = vld [vmem:[#allocation2 + $0x70] sm:$0xff]
      %v2615 = vld [vmem:[#allocation2 + $0x78] sm:$0xff]
      %v2616 = vld [vmem:[#allocation2 + $0x80] sm:$0xff]
      %v2617 = vld [vmem:[#allocation2 + $0x88] sm:$0xff]
      %v2618 = vld [vmem:[#allocation2 + $0x90] sm:$0xff]
      %v2619 = vld [vmem:[#allocation2 + $0x98] sm:$0xff]
      %v2620 = vld [vmem:[#allocation2 + $0xa0] sm:$0xff]
      %v2621 = vld [vmem:[#allocation2 + $0xa8] sm:$0xff]
      %v2622 = vld [vmem:[#allocation2 + $0xb0] sm:$0xff]
      %v2623 = vld [vmem:[#allocation2 + $0xb8] sm:$0xff]
      %v2624 = vld [vmem:[#allocation2 + $0xc0] sm:$0xff]
      %v2625 = vld [vmem:[#allocation2 + $0xc8] sm:$0xff]
      %v2626 = vld [vmem:[#allocation2 + $0xd0] sm:$0xff]
      %v2627 = vld [vmem:[#allocation2 + $0xd8] sm:$0xff]
      %v2628 = vld [vmem:[#allocation2 + $0xe0] sm:$0xff]
      %v2629 = vld [vmem:[#allocation2 + $0xe8] sm:$0xff]
      %v2630 = vld [vmem:[#allocation2 + $0xf0] sm:$0xff]
      %v2631 = vld [vmem:[#allocation2 + $0xf8] sm:$0xff]
      %v2632 = vld [vmem:[#allocation2 + $0x100] sm:$0xff]
      %v2633 = vld [vmem:[#allocation2 + $0x108] sm:$0xff]
      %v2634 = vld [vmem:[#allocation2 + $0x110] sm:$0xff]
      %v2635 = vld [vmem:[#allocation2 + $0x118] sm:$0xff]
      %v2636 = vld [vmem:[#allocation2 + $0x120] sm:$0xff]
      %v2637 = vpack.c.bf16 %v2606, %v2605
      %v2638 = vpack.c.bf16 %v2608, %v2607
      %v2639 = vpack.c.bf16 %v2610, %v2609
      %v2640 = vpack.c.bf16 %v2612, %v2611
      %v2641 = vpack.c.bf16 %v2614, %v2613
      %v2642 = vpack.c.bf16 %v2616, %v2615
      %v2643 = vpack.c.bf16 %v2618, %v2617
      %v2644 = vpack.c.bf16 %v2620, %v2619
      %v2645 = vpack.c.bf16 %v2622, %v2621
      %v2646 = vpack.c.bf16 %v2624, %v2623
      %v2647 = vpack.c.bf16 %v2626, %v2625
      %v2648 = vpack.c.bf16 %v2628, %v2627
      %v2649 = vpack.c.bf16 %v2630, %v2629
      %v2650 = vpack.c.bf16 %v2632, %v2631
      %v2651 = vpack.c.bf16 %v2634, %v2633
      %v2652 = vpack.c.bf16 %v2636, %v2635
      %v2669 = vunpack.c.l.b16 %v2637
      %v2670 = vunpack.c.h.b16 %v2637
      %v2671 = vunpack.c.l.b16 %v2638
      %v2672 = vunpack.c.h.b16 %v2638
      %v2673 = vunpack.c.l.b16 %v2639
      %v2674 = vunpack.c.h.b16 %v2639
      %v2675 = vunpack.c.l.b16 %v2640
      %v2676 = vunpack.c.h.b16 %v2640
      %v2677 = vunpack.c.l.b16 %v2641
      %v2678 = vunpack.c.h.b16 %v2641
      %v2679 = vunpack.c.l.b16 %v2642
      %v2680 = vunpack.c.h.b16 %v2642
      %v2681 = vunpack.c.l.b16 %v2643
      %v2682 = vunpack.c.h.b16 %v2643
      %v2683 = vunpack.c.l.b16 %v2644
      %v2684 = vunpack.c.h.b16 %v2644
      %v2685 = vunpack.c.l.b16 %v2645
      %v2686 = vunpack.c.h.b16 %v2645
      %v2687 = vunpack.c.l.b16 %v2646
      %v2688 = vunpack.c.h.b16 %v2646
      %v2689 = vunpack.c.l.b16 %v2647
      %v2690 = vunpack.c.h.b16 %v2647
      %v2691 = vunpack.c.l.b16 %v2648
      %v2692 = vunpack.c.h.b16 %v2648
      %v2693 = vunpack.c.l.b16 %v2649
      %v2694 = vunpack.c.h.b16 %v2649
      %v2695 = vunpack.c.l.b16 %v2650
      %v2696 = vunpack.c.h.b16 %v2650
      %v2697 = vunpack.c.l.b16 %v2651
      %v2698 = vunpack.c.h.b16 %v2651
      %v2699 = vunpack.c.l.b16 %v2652
      %v2700 = vunpack.c.h.b16 %v2652
      %v2701 = vpack.c.b16 %v2669, %v2669
      %v2702 = vpack.c.b16 %v2670, %v2670
      %v2703 = vpack.c.b16 %v2671, %v2671
      %v2704 = vpack.c.b16 %v2672, %v2672
      %v2705 = vpack.c.b16 %v2673, %v2673
      %v2706 = vpack.c.b16 %v2674, %v2674
      %v2707 = vpack.c.b16 %v2675, %v2675
      %v2708 = vpack.c.b16 %v2676, %v2676
      %v2709 = vpack.c.b16 %v2677, %v2677
      %v2710 = vpack.c.b16 %v2678, %v2678
      %v2711 = vpack.c.b16 %v2679, %v2679
      %v2712 = vpack.c.b16 %v2680, %v2680
      %v2713 = vpack.c.b16 %v2681, %v2681
      %v2714 = vpack.c.b16 %v2682, %v2682
      %v2715 = vpack.c.b16 %v2683, %v2683
      %v2716 = vpack.c.b16 %v2684, %v2684
      %v2717 = vpack.c.b16 %v2685, %v2685
      %v2718 = vpack.c.b16 %v2686, %v2686
      %v2719 = vpack.c.b16 %v2687, %v2687
      %v2720 = vpack.c.b16 %v2688, %v2688
      %v2721 = vpack.c.b16 %v2689, %v2689
      %v2722 = vpack.c.b16 %v2690, %v2690
      %v2723 = vpack.c.b16 %v2691, %v2691
      %v2724 = vpack.c.b16 %v2692, %v2692
      %v2725 = vpack.c.b16 %v2693, %v2693
      %v2726 = vpack.c.b16 %v2694, %v2694
      %v2727 = vpack.c.b16 %v2695, %v2695
      %v2728 = vpack.c.b16 %v2696, %v2696
      %v2729 = vpack.c.b16 %v2697, %v2697
      %v2730 = vpack.c.b16 %v2698, %v2698
      %v2731 = vpack.c.b16 %v2699, %v2699
      %v2732 = vpack.c.b16 %v2700, %v2700
      %2765 = vst [vmem:[#allocation3 + $0x1c] sm:$0xf] %v2701
      %2766 = vst [vmem:[#allocation3 + $0x40] sm:$0xf] %v2702
      %2767 = vst [vmem:[#allocation3 + $0x64] sm:$0xf] %v2703
      %2768 = vst [vmem:[#allocation3 + $0x88] sm:$0xf] %v2704
      %2769 = vst [vmem:[#allocation3 + $0xac] sm:$0xf] %v2705
      %2770 = vst [vmem:[#allocation3 + $0xd0] sm:$0xf] %v2706
      %2771 = vst [vmem:[#allocation3 + $0xf4] sm:$0xf] %v2707
      %2772 = vst [vmem:[#allocation3 + $0x118] sm:$0xf] %v2708
      %2773 = vst [vmem:[#allocation3 + $0x13c] sm:$0xf] %v2709
      %2774 = vst [vmem:[#allocation3 + $0x160] sm:$0xf] %v2710
      %2775 = vst [vmem:[#allocation3 + $0x184] sm:$0xf] %v2711
      %2776 = vst [vmem:[#allocation3 + $0x1a8] sm:$0xf] %v2712
      %2777 = vst [vmem:[#allocation3 + $0x1cc] sm:$0xf] %v2713
      %2778 = vst [vmem:[#allocation3 + $0x1f0] sm:$0xf] %v2714
      %2779 = vst [vmem:[#allocation3 + $0x214] sm:$0xf] %v2715
      %2780 = vst [vmem:[#allocation3 + $0x238] sm:$0xf] %v2716
      %2781 = vst [vmem:[#allocation3 + $0x25c] sm:$0xf] %v2717
      %2782 = vst [vmem:[#allocation3 + $0x280] sm:$0xf] %v2718
      %2783 = vst [vmem:[#allocation3 + $0x2a4] sm:$0xf] %v2719
      %2784 = vst [vmem:[#allocation3 + $0x2c8] sm:$0xf] %v2720
      %2785 = vst [vmem:[#allocation3 + $0x2ec] sm:$0xf] %v2721
      %2786 = vst [vmem:[#allocation3 + $0x310] sm:$0xf] %v2722
      %2787 = vst [vmem:[#allocation3 + $0x334] sm:$0xf] %v2723
      %2788 = vst [vmem:[#allocation3 + $0x358] sm:$0xf] %v2724
      %2789 = vst [vmem:[#allocation3 + $0x37c] sm:$0xf] %v2725
      %2790 = vst [vmem:[#allocation3 + $0x3a0] sm:$0xf] %v2726
      %2791 = vst [vmem:[#allocation3 + $0x3c4] sm:$0xf] %v2727
      %2792 = vst [vmem:[#allocation3 + $0x3e8] sm:$0xf] %v2728
      %2793 = vst [vmem:[#allocation3 + $0x40c] sm:$0xf] %v2729
      %2794 = vst [vmem:[#allocation3 + $0x430] sm:$0xf] %v2730
      %2795 = vst [vmem:[#allocation3 + $0x454] sm:$0xf] %v2731
      %2796 = vst [vmem:[#allocation3 + $0x478] sm:$0xf] %v2732
      %v2797 = vld [vmem:[#allocation2 + $0x29] sm:$0xff]
      %v2798 = vld [vmem:[#allocation2 + $0x31] sm:$0xff]
      %v2799 = vld [vmem:[#allocation2 + $0x39] sm:$0xff]
      %v2800 = vld [vmem:[#allocation2 + $0x41] sm:$0xff]
      %v2801 = vld [vmem:[#allocation2 + $0x49] sm:$0xff]
      %v2802 = vld [vmem:[#allocation2 + $0x51] sm:$0xff]
      %v2803 = vld [vmem:[#allocation2 + $0x59] sm:$0xff]
      %v2804 = vld [vmem:[#allocation2 + $0x61] sm:$0xff]
      %v2805 = vld [vmem:[#allocation2 + $0x69] sm:$0xff]
      %v2806 = vld [vmem:[#allocation2 + $0x71] sm:$0xff]
      %v2807 = vld [vmem:[#allocation2 + $0x79] sm:$0xff]
      %v2808 = vld [vmem:[#allocation2 + $0x81] sm:$0xff]
      %v2809 = vld [vmem:[#allocation2 + $0x89] sm:$0xff]
      %v2810 = vld [vmem:[#allocation2 + $0x91] sm:$0xff]
      %v2811 = vld [vmem:[#allocation2 + $0x99] sm:$0xff]
      %v2812 = vld [vmem:[#allocation2 + $0xa1] sm:$0xff]
      %v2813 = vld [vmem:[#allocation2 + $0xa9] sm:$0xff]
      %v2814 = vld [vmem:[#allocation2 + $0xb1] sm:$0xff]
      %v2815 = vld [vmem:[#allocation2 + $0xb9] sm:$0xff]
      %v2816 = vld [vmem:[#allocation2 + $0xc1] sm:$0xff]
      %v2817 = vld [vmem:[#allocation2 + $0xc9] sm:$0xff]
      %v2818 = vld [vmem:[#allocation2 + $0xd1] sm:$0xff]
      %v2819 = vld [vmem:[#allocation2 + $0xd9] sm:$0xff]
      %v2820 = vld [vmem:[#allocation2 + $0xe1] sm:$0xff]
      %v2821 = vld [vmem:[#allocation2 + $0xe9] sm:$0xff]
      %v2822 = vld [vmem:[#allocation2 + $0xf1] sm:$0xff]
      %v2823 = vld [vmem:[#allocation2 + $0xf9] sm:$0xff]
      %v2824 = vld [vmem:[#allocation2 + $0x101] sm:$0xff]
      %v2825 = vld [vmem:[#allocation2 + $0x109] sm:$0xff]
      %v2826 = vld [vmem:[#allocation2 + $0x111] sm:$0xff]
      %v2827 = vld [vmem:[#allocation2 + $0x119] sm:$0xff]
      %v2828 = vld [vmem:[#allocation2 + $0x121] sm:$0xff]
      %v2829 = vmul.f32 %v2797, %v1392
      %v2830 = vmul.f32 %v2798, %v1397
      %v2831 = vmul.f32 %v2799, %v1402
      %v2832 = vmul.f32 %v2800, %v1407
      %v2833 = vmul.f32 %v2801, %v1412
      %v2834 = vmul.f32 %v2802, %v1417
      %v2835 = vmul.f32 %v2803, %v1422
      %v2836 = vmul.f32 %v2804, %v1427
      %v2837 = vmul.f32 %v2805, %v1432
      %v2838 = vmul.f32 %v2806, %v1437
      %v2839 = vmul.f32 %v2807, %v1442
      %v2840 = vmul.f32 %v2808, %v1447
      %v2841 = vmul.f32 %v2809, %v1452
      %v2842 = vmul.f32 %v2810, %v1457
      %v2843 = vmul.f32 %v2811, %v1462
      %v2844 = vmul.f32 %v2812, %v1467
      %v2845 = vmul.f32 %v2813, %v1472
      %v2846 = vmul.f32 %v2814, %v1477
      %v2847 = vmul.f32 %v2815, %v1482
      %v2848 = vmul.f32 %v2816, %v1487
      %v2849 = vmul.f32 %v2817, %v1492
      %v2850 = vmul.f32 %v2818, %v1497
      %v2851 = vmul.f32 %v2819, %v1502
      %v2852 = vmul.f32 %v2820, %v1507
      %v2853 = vmul.f32 %v2821, %v1512
      %v2854 = vmul.f32 %v2822, %v1517
      %v2855 = vmul.f32 %v2823, %v1522
      %v2856 = vmul.f32 %v2824, %v1527
      %v2857 = vmul.f32 %v2825, %v1532
      %v2858 = vmul.f32 %v2826, %v1537
      %v2859 = vmul.f32 %v2827, %v1542
      %v2860 = vmul.f32 %v2828, %v1547
      %v2861 = vpack.c.bf16 %v2830, %v2829
      %v2862 = vpack.c.bf16 %v2832, %v2831
      %v2863 = vpack.c.bf16 %v2834, %v2833
      %v2864 = vpack.c.bf16 %v2836, %v2835
      %v2865 = vpack.c.bf16 %v2838, %v2837
      %v2866 = vpack.c.bf16 %v2840, %v2839
      %v2867 = vpack.c.bf16 %v2842, %v2841
      %v2868 = vpack.c.bf16 %v2844, %v2843
      %v2869 = vpack.c.bf16 %v2846, %v2845
      %v2870 = vpack.c.bf16 %v2848, %v2847
      %v2871 = vpack.c.bf16 %v2850, %v2849
      %v2872 = vpack.c.bf16 %v2852, %v2851
      %v2873 = vpack.c.bf16 %v2854, %v2853
      %v2874 = vpack.c.bf16 %v2856, %v2855
      %v2875 = vpack.c.bf16 %v2858, %v2857
      %v2876 = vpack.c.bf16 %v2860, %v2859
      %v2893 = vunpack.c.l.b16 %v2861
      %v2894 = vunpack.c.h.b16 %v2861
      %v2895 = vunpack.c.l.b16 %v2862
      %v2896 = vunpack.c.h.b16 %v2862
      %v2897 = vunpack.c.l.b16 %v2863
      %v2898 = vunpack.c.h.b16 %v2863
      %v2899 = vunpack.c.l.b16 %v2864
      %v2900 = vunpack.c.h.b16 %v2864
      %v2901 = vunpack.c.l.b16 %v2865
      %v2902 = vunpack.c.h.b16 %v2865
      %v2903 = vunpack.c.l.b16 %v2866
      %v2904 = vunpack.c.h.b16 %v2866
      %v2905 = vunpack.c.l.b16 %v2867
      %v2906 = vunpack.c.h.b16 %v2867
      %v2907 = vunpack.c.l.b16 %v2868
      %v2908 = vunpack.c.h.b16 %v2868
      %v2909 = vunpack.c.l.b16 %v2869
      %v2910 = vunpack.c.h.b16 %v2869
      %v2911 = vunpack.c.l.b16 %v2870
      %v2912 = vunpack.c.h.b16 %v2870
      %v2913 = vunpack.c.l.b16 %v2871
      %v2914 = vunpack.c.h.b16 %v2871
      %v2915 = vunpack.c.l.b16 %v2872
      %v2916 = vunpack.c.h.b16 %v2872
      %v2917 = vunpack.c.l.b16 %v2873
      %v2918 = vunpack.c.h.b16 %v2873
      %v2919 = vunpack.c.l.b16 %v2874
      %v2920 = vunpack.c.h.b16 %v2874
      %v2921 = vunpack.c.l.b16 %v2875
      %v2922 = vunpack.c.h.b16 %v2875
      %v2923 = vunpack.c.l.b16 %v2876
      %v2924 = vunpack.c.h.b16 %v2876
      %v2925 = vpack.c.b16 %v2893, %v2893
      %v2926 = vpack.c.b16 %v2894, %v2894
      %v2927 = vpack.c.b16 %v2895, %v2895
      %v2928 = vpack.c.b16 %v2896, %v2896
      %v2929 = vpack.c.b16 %v2897, %v2897
      %v2930 = vpack.c.b16 %v2898, %v2898
      %v2931 = vpack.c.b16 %v2899, %v2899
      %v2932 = vpack.c.b16 %v2900, %v2900
      %v2933 = vpack.c.b16 %v2901, %v2901
      %v2934 = vpack.c.b16 %v2902, %v2902
      %v2935 = vpack.c.b16 %v2903, %v2903
      %v2936 = vpack.c.b16 %v2904, %v2904
      %v2937 = vpack.c.b16 %v2905, %v2905
      %v2938 = vpack.c.b16 %v2906, %v2906
      %v2939 = vpack.c.b16 %v2907, %v2907
      %v2940 = vpack.c.b16 %v2908, %v2908
      %v2941 = vpack.c.b16 %v2909, %v2909
      %v2942 = vpack.c.b16 %v2910, %v2910
      %v2943 = vpack.c.b16 %v2911, %v2911
      %v2944 = vpack.c.b16 %v2912, %v2912
      %v2945 = vpack.c.b16 %v2913, %v2913
      %v2946 = vpack.c.b16 %v2914, %v2914
      %v2947 = vpack.c.b16 %v2915, %v2915
      %v2948 = vpack.c.b16 %v2916, %v2916
      %v2949 = vpack.c.b16 %v2917, %v2917
      %v2950 = vpack.c.b16 %v2918, %v2918
      %v2951 = vpack.c.b16 %v2919, %v2919
      %v2952 = vpack.c.b16 %v2920, %v2920
      %v2953 = vpack.c.b16 %v2921, %v2921
      %v2954 = vpack.c.b16 %v2922, %v2922
      %v2955 = vpack.c.b16 %v2923, %v2923
      %v2956 = vpack.c.b16 %v2924, %v2924
      %2989 = vst [vmem:[#allocation3 + $0x20] sm:$0xf] %v2925
      %2990 = vst [vmem:[#allocation3 + $0x44] sm:$0xf] %v2926
      %2991 = vst [vmem:[#allocation3 + $0x68] sm:$0xf] %v2927
      %2992 = vst [vmem:[#allocation3 + $0x8c] sm:$0xf] %v2928
      %2993 = vst [vmem:[#allocation3 + $0xb0] sm:$0xf] %v2929
      %2994 = vst [vmem:[#allocation3 + $0xd4] sm:$0xf] %v2930
      %2995 = vst [vmem:[#allocation3 + $0xf8] sm:$0xf] %v2931
      %2996 = vst [vmem:[#allocation3 + $0x11c] sm:$0xf] %v2932
      %2997 = vst [vmem:[#allocation3 + $0x140] sm:$0xf] %v2933
      %2998 = vst [vmem:[#allocation3 + $0x164] sm:$0xf] %v2934
      %2999 = vst [vmem:[#allocation3 + $0x188] sm:$0xf] %v2935
      %3000 = vst [vmem:[#allocation3 + $0x1ac] sm:$0xf] %v2936
      %3001 = vst [vmem:[#allocation3 + $0x1d0] sm:$0xf] %v2937
      %3002 = vst [vmem:[#allocation3 + $0x1f4] sm:$0xf] %v2938
      %3003 = vst [vmem:[#allocation3 + $0x218] sm:$0xf] %v2939
      %3004 = vst [vmem:[#allocation3 + $0x23c] sm:$0xf] %v2940
      %3005 = vst [vmem:[#allocation3 + $0x260] sm:$0xf] %v2941
      %3006 = vst [vmem:[#allocation3 + $0x284] sm:$0xf] %v2942
      %3007 = vst [vmem:[#allocation3 + $0x2a8] sm:$0xf] %v2943
      %3008 = vst [vmem:[#allocation3 + $0x2cc] sm:$0xf] %v2944
      %3009 = vst [vmem:[#allocation3 + $0x2f0] sm:$0xf] %v2945
      %3010 = vst [vmem:[#allocation3 + $0x314] sm:$0xf] %v2946
      %3011 = vst [vmem:[#allocation3 + $0x338] sm:$0xf] %v2947
      %3012 = vst [vmem:[#allocation3 + $0x35c] sm:$0xf] %v2948
      %3013 = vst [vmem:[#allocation3 + $0x380] sm:$0xf] %v2949
      %3014 = vst [vmem:[#allocation3 + $0x3a4] sm:$0xf] %v2950
      %3015 = vst [vmem:[#allocation3 + $0x3c8] sm:$0xf] %v2951
      %3016 = vst [vmem:[#allocation3 + $0x3ec] sm:$0xf] %v2952
      %3017 = vst [vmem:[#allocation3 + $0x410] sm:$0xf] %v2953
      %3018 = vst [vmem:[#allocation3 + $0x434] sm:$0xf] %v2954
      %3019 = vst [vmem:[#allocation3 + $0x458] sm:$0xf] %v2955
      %3020 = vst [vmem:[#allocation3 + $0x47c] sm:$0xf] %v2956
      %v3021 = vld [vmem:[#allocation3] sm:$0xff]
      %v3022 = vld [vmem:[#allocation3 + $0x8] sm:$0xff]
      %v3023 = vld [vmem:[#allocation3 + $0x10] sm:$0xff]
      %v3024 = vld [vmem:[#allocation3 + $0x18] sm:$0xff]
      %v3025 = vld [vmem:[#allocation3 + $0x20] sm:$0xf]
      %v3026 = vld [vmem:[#allocation3 + $0x24] sm:$0xff]
      %v3027 = vld [vmem:[#allocation3 + $0x2c] sm:$0xff]
      %v3028 = vld [vmem:[#allocation3 + $0x34] sm:$0xff]
      %v3029 = vld [vmem:[#allocation3 + $0x3c] sm:$0xff]
      %v3030 = vld [vmem:[#allocation3 + $0x44] sm:$0xf]
      %v3031 = vld [vmem:[#allocation3 + $0x48] sm:$0xff]
      %v3032 = vld [vmem:[#allocation3 + $0x50] sm:$0xff]
      %v3033 = vld [vmem:[#allocation3 + $0x58] sm:$0xff]
      %v3034 = vld [vmem:[#allocation3 + $0x60] sm:$0xff]
      %v3035 = vld [vmem:[#allocation3 + $0x68] sm:$0xf]
      %v3036 = vld [vmem:[#allocation3 + $0x6c] sm:$0xff]
      %v3037 = vld [vmem:[#allocation3 + $0x74] sm:$0xff]
      %v3038 = vld [vmem:[#allocation3 + $0x7c] sm:$0xff]
      %v3039 = vld [vmem:[#allocation3 + $0x84] sm:$0xff]
      %v3040 = vld [vmem:[#allocation3 + $0x8c] sm:$0xf]
      %v3041 = vld [vmem:[#allocation3 + $0x90] sm:$0xff]
      %v3042 = vld [vmem:[#allocation3 + $0x98] sm:$0xff]
      %v3043 = vld [vmem:[#allocation3 + $0xa0] sm:$0xff]
      %v3044 = vld [vmem:[#allocation3 + $0xa8] sm:$0xff]
      %v3045 = vld [vmem:[#allocation3 + $0xb0] sm:$0xf]
      %v3046 = vld [vmem:[#allocation3 + $0xb4] sm:$0xff]
      %v3047 = vld [vmem:[#allocation3 + $0xbc] sm:$0xff]
      %v3048 = vld [vmem:[#allocation3 + $0xc4] sm:$0xff]
      %v3049 = vld [vmem:[#allocation3 + $0xcc] sm:$0xff]
      %v3050 = vld [vmem:[#allocation3 + $0xd4] sm:$0xf]
      %v3051 = vld [vmem:[#allocation3 + $0xd8] sm:$0xff]
      %v3052 = vld [vmem:[#allocation3 + $0xe0] sm:$0xff]
      %v3053 = vld [vmem:[#allocation3 + $0xe8] sm:$0xff]
      %v3054 = vld [vmem:[#allocation3 + $0xf0] sm:$0xff]
      %v3055 = vld [vmem:[#allocation3 + $0xf8] sm:$0xf]
      %v3056 = vld [vmem:[#allocation3 + $0xfc] sm:$0xff]
      %v3057 = vld [vmem:[#allocation3 + $0x104] sm:$0xff]
      %v3058 = vld [vmem:[#allocation3 + $0x10c] sm:$0xff]
      %v3059 = vld [vmem:[#allocation3 + $0x114] sm:$0xff]
      %v3060 = vld [vmem:[#allocation3 + $0x11c] sm:$0xf]
      %v3061 = vld [vmem:[#allocation3 + $0x120] sm:$0xff]
      %v3062 = vld [vmem:[#allocation3 + $0x128] sm:$0xff]
      %v3063 = vld [vmem:[#allocation3 + $0x130] sm:$0xff]
      %v3064 = vld [vmem:[#allocation3 + $0x138] sm:$0xff]
      %v3065 = vld [vmem:[#allocation3 + $0x140] sm:$0xf]
      %v3066 = vld [vmem:[#allocation3 + $0x144] sm:$0xff]
      %v3067 = vld [vmem:[#allocation3 + $0x14c] sm:$0xff]
      %v3068 = vld [vmem:[#allocation3 + $0x154] sm:$0xff]
      %v3069 = vld [vmem:[#allocation3 + $0x15c] sm:$0xff]
      %v3070 = vld [vmem:[#allocation3 + $0x164] sm:$0xf]
      %v3071 = vld [vmem:[#allocation3 + $0x168] sm:$0xff]
      %v3072 = vld [vmem:[#allocation3 + $0x170] sm:$0xff]
      %v3073 = vld [vmem:[#allocation3 + $0x178] sm:$0xff]
      %v3074 = vld [vmem:[#allocation3 + $0x180] sm:$0xff]
      %v3075 = vld [vmem:[#allocation3 + $0x188] sm:$0xf]
      %v3076 = vld [vmem:[#allocation3 + $0x18c] sm:$0xff]
      %v3077 = vld [vmem:[#allocation3 + $0x194] sm:$0xff]
      %v3078 = vld [vmem:[#allocation3 + $0x19c] sm:$0xff]
      %v3079 = vld [vmem:[#allocation3 + $0x1a4] sm:$0xff]
      %v3080 = vld [vmem:[#allocation3 + $0x1ac] sm:$0xf]
      %v3081 = vld [vmem:[#allocation3 + $0x1b0] sm:$0xff]
      %v3082 = vld [vmem:[#allocation3 + $0x1b8] sm:$0xff]
      %v3083 = vld [vmem:[#allocation3 + $0x1c0] sm:$0xff]
      %v3084 = vld [vmem:[#allocation3 + $0x1c8] sm:$0xff]
      %v3085 = vld [vmem:[#allocation3 + $0x1d0] sm:$0xf]
      %v3086 = vld [vmem:[#allocation3 + $0x1d4] sm:$0xff]
      %v3087 = vld [vmem:[#allocation3 + $0x1dc] sm:$0xff]
      %v3088 = vld [vmem:[#allocation3 + $0x1e4] sm:$0xff]
      %v3089 = vld [vmem:[#allocation3 + $0x1ec] sm:$0xff]
      %v3090 = vld [vmem:[#allocation3 + $0x1f4] sm:$0xf]
      %v3091 = vld [vmem:[#allocation3 + $0x1f8] sm:$0xff]
      %v3092 = vld [vmem:[#allocation3 + $0x200] sm:$0xff]
      %v3093 = vld [vmem:[#allocation3 + $0x208] sm:$0xff]
      %v3094 = vld [vmem:[#allocation3 + $0x210] sm:$0xff]
      %v3095 = vld [vmem:[#allocation3 + $0x218] sm:$0xf]
      %v3096 = vld [vmem:[#allocation3 + $0x21c] sm:$0xff]
      %v3097 = vld [vmem:[#allocation3 + $0x224] sm:$0xff]
      %v3098 = vld [vmem:[#allocation3 + $0x22c] sm:$0xff]
      %v3099 = vld [vmem:[#allocation3 + $0x234] sm:$0xff]
      %v3100 = vld [vmem:[#allocation3 + $0x23c] sm:$0xf]
      %v3101 = vld [vmem:[#allocation3 + $0x240] sm:$0xff]
      %v3102 = vld [vmem:[#allocation3 + $0x248] sm:$0xff]
      %v3103 = vld [vmem:[#allocation3 + $0x250] sm:$0xff]
      %v3104 = vld [vmem:[#allocation3 + $0x258] sm:$0xff]
      %v3105 = vld [vmem:[#allocation3 + $0x260] sm:$0xf]
      %v3106 = vld [vmem:[#allocation3 + $0x264] sm:$0xff]
      %v3107 = vld [vmem:[#allocation3 + $0x26c] sm:$0xff]
      %v3108 = vld [vmem:[#allocation3 + $0x274] sm:$0xff]
      %v3109 = vld [vmem:[#allocation3 + $0x27c] sm:$0xff]
      %v3110 = vld [vmem:[#allocation3 + $0x284] sm:$0xf]
      %v3111 = vld [vmem:[#allocation3 + $0x288] sm:$0xff]
      %v3112 = vld [vmem:[#allocation3 + $0x290] sm:$0xff]
      %v3113 = vld [vmem:[#allocation3 + $0x298] sm:$0xff]
      %v3114 = vld [vmem:[#allocation3 + $0x2a0] sm:$0xff]
      %v3115 = vld [vmem:[#allocation3 + $0x2a8] sm:$0xf]
      %v3116 = vld [vmem:[#allocation3 + $0x2ac] sm:$0xff]
      %v3117 = vld [vmem:[#allocation3 + $0x2b4] sm:$0xff]
      %v3118 = vld [vmem:[#allocation3 + $0x2bc] sm:$0xff]
      %v3119 = vld [vmem:[#allocation3 + $0x2c4] sm:$0xff]
      %v3120 = vld [vmem:[#allocation3 + $0x2cc] sm:$0xf]
      %v3121 = vld [vmem:[#allocation3 + $0x2d0] sm:$0xff]
      %v3122 = vld [vmem:[#allocation3 + $0x2d8] sm:$0xff]
      %v3123 = vld [vmem:[#allocation3 + $0x2e0] sm:$0xff]
      %v3124 = vld [vmem:[#allocation3 + $0x2e8] sm:$0xff]
      %v3125 = vld [vmem:[#allocation3 + $0x2f0] sm:$0xf]
      %v3126 = vld [vmem:[#allocation3 + $0x2f4] sm:$0xff]
      %v3127 = vld [vmem:[#allocation3 + $0x2fc] sm:$0xff]
      %v3128 = vld [vmem:[#allocation3 + $0x304] sm:$0xff]
      %v3129 = vld [vmem:[#allocation3 + $0x30c] sm:$0xff]
      %v3130 = vld [vmem:[#allocation3 + $0x314] sm:$0xf]
      %v3131 = vld [vmem:[#allocation3 + $0x318] sm:$0xff]
      %v3132 = vld [vmem:[#allocation3 + $0x320] sm:$0xff]
      %v3133 = vld [vmem:[#allocation3 + $0x328] sm:$0xff]
      %v3134 = vld [vmem:[#allocation3 + $0x330] sm:$0xff]
      %v3135 = vld [vmem:[#allocation3 + $0x338] sm:$0xf]
      %v3136 = vld [vmem:[#allocation3 + $0x33c] sm:$0xff]
      %v3137 = vld [vmem:[#allocation3 + $0x344] sm:$0xff]
      %v3138 = vld [vmem:[#allocation3 + $0x34c] sm:$0xff]
      %v3139 = vld [vmem:[#allocation3 + $0x354] sm:$0xff]
      %v3140 = vld [vmem:[#allocation3 + $0x35c] sm:$0xf]
      %v3141 = vld [vmem:[#allocation3 + $0x360] sm:$0xff]
      %v3142 = vld [vmem:[#allocation3 + $0x368] sm:$0xff]
      %v3143 = vld [vmem:[#allocation3 + $0x370] sm:$0xff]
      %v3144 = vld [vmem:[#allocation3 + $0x378] sm:$0xff]
      %v3145 = vld [vmem:[#allocation3 + $0x380] sm:$0xf]
      %v3146 = vld [vmem:[#allocation3 + $0x384] sm:$0xff]
      %v3147 = vld [vmem:[#allocation3 + $0x38c] sm:$0xff]
      %v3148 = vld [vmem:[#allocation3 + $0x394] sm:$0xff]
      %v3149 = vld [vmem:[#allocation3 + $0x39c] sm:$0xff]
      %v3150 = vld [vmem:[#allocation3 + $0x3a4] sm:$0xf]
      %v3151 = vld [vmem:[#allocation3 + $0x3a8] sm:$0xff]
      %v3152 = vld [vmem:[#allocation3 + $0x3b0] sm:$0xff]
      %v3153 = vld [vmem:[#allocation3 + $0x3b8] sm:$0xff]
      %v3154 = vld [vmem:[#allocation3 + $0x3c0] sm:$0xff]
      %v3155 = vld [vmem:[#allocation3 + $0x3c8] sm:$0xf]
      %v3156 = vld [vmem:[#allocation3 + $0x3cc] sm:$0xff]
      %v3157 = vld [vmem:[#allocation3 + $0x3d4] sm:$0xff]
      %v3158 = vld [vmem:[#allocation3 + $0x3dc] sm:$0xff]
      %v3159 = vld [vmem:[#allocation3 + $0x3e4] sm:$0xff]
      %v3160 = vld [vmem:[#allocation3 + $0x3ec] sm:$0xf]
      %v3161 = vld [vmem:[#allocation3 + $0x3f0] sm:$0xff]
      %v3162 = vld [vmem:[#allocation3 + $0x3f8] sm:$0xff]
      %v3163 = vld [vmem:[#allocation3 + $0x400] sm:$0xff]
      %v3164 = vld [vmem:[#allocation3 + $0x408] sm:$0xff]
      %v3165 = vld [vmem:[#allocation3 + $0x410] sm:$0xf]
      %v3166 = vld [vmem:[#allocation3 + $0x414] sm:$0xff]
      %v3167 = vld [vmem:[#allocation3 + $0x41c] sm:$0xff]
      %v3168 = vld [vmem:[#allocation3 + $0x424] sm:$0xff]
      %v3169 = vld [vmem:[#allocation3 + $0x42c] sm:$0xff]
      %v3170 = vld [vmem:[#allocation3 + $0x434] sm:$0xf]
      %v3171 = vld [vmem:[#allocation3 + $0x438] sm:$0xff]
      %v3172 = vld [vmem:[#allocation3 + $0x440] sm:$0xff]
      %v3173 = vld [vmem:[#allocation3 + $0x448] sm:$0xff]
      %v3174 = vld [vmem:[#allocation3 + $0x450] sm:$0xff]
      %v3175 = vld [vmem:[#allocation3 + $0x458] sm:$0xf]
      %v3176 = vld [vmem:[#allocation3 + $0x45c] sm:$0xff]
      %v3177 = vld [vmem:[#allocation3 + $0x464] sm:$0xff]
      %v3178 = vld [vmem:[#allocation3 + $0x46c] sm:$0xff]
      %v3179 = vld [vmem:[#allocation3 + $0x474] sm:$0xff]
      %v3180 = vld [vmem:[#allocation3 + $0x47c] sm:$0xf]
      %v3181 = vld [vmem:[%s5] sm:$0xf]
      %v3182 = vld [vmem:[%s5 + $0x4] sm:$0xf]
      %v3183 = vld [vmem:[%s5 + $0x8] sm:$0xf]
      %v3184 = vld [vmem:[%s5 + $0xc] sm:$0xf]
      %v3185 = vld [vmem:[%s5 + $0x10] sm:$0xf]
      %v3186 = vld [vmem:[%s5 + $0x14] sm:$0xf]
      %v3187 = vld [vmem:[%s5 + $0x18] sm:$0xf]
      %v3188 = vld [vmem:[%s5 + $0x1c] sm:$0xf]
      %v3189 = vld [vmem:[%s5 + $0x20] sm:$0xf]
      %v3190 = vld [vmem:[%s5 + $0x24] sm:$0xf]
      %v3191 = vld [vmem:[%s5 + $0x28] sm:$0xf]
      %v3192 = vld [vmem:[%s5 + $0x2c] sm:$0xf]
      %v3193 = vld [vmem:[%s5 + $0x30] sm:$0xf]
      %v3194 = vld [vmem:[%s5 + $0x34] sm:$0xf]
      %v3195 = vld [vmem:[%s5 + $0x38] sm:$0xf]
      %v3196 = vld [vmem:[%s5 + $0x3c] sm:$0xf]
      %v3197 = vld [vmem:[%s5 + $0x40] sm:$0xf]
      %v3198 = vld [vmem:[%s5 + $0x44] sm:$0xf]
      %v3199 = vld [vmem:[%s5 + $0x48] sm:$0xf]
      %v3200 = vld [vmem:[%s5 + $0x4c] sm:$0xf]
      %v3201 = vld [vmem:[%s5 + $0x50] sm:$0xf]
      %v3202 = vld [vmem:[%s5 + $0x54] sm:$0xf]
      %v3203 = vld [vmem:[%s5 + $0x58] sm:$0xf]
      %v3204 = vld [vmem:[%s5 + $0x5c] sm:$0xf]
      %v3205 = vld [vmem:[%s5 + $0x60] sm:$0xf]
      %v3206 = vld [vmem:[%s5 + $0x64] sm:$0xf]
      %v3207 = vld [vmem:[%s5 + $0x68] sm:$0xf]
      %v3208 = vld [vmem:[%s5 + $0x6c] sm:$0xf]
      %v3209 = vld [vmem:[%s5 + $0x70] sm:$0xf]
      %v3210 = vld [vmem:[%s5 + $0x74] sm:$0xf]
      %v3211 = vld [vmem:[%s5 + $0x78] sm:$0xf]
      %v3212 = vld [vmem:[%s5 + $0x7c] sm:$0xf]
      %v3213 = vld [vmem:[%s5 + $0x80] sm:$0xf]
      %v3214 = vld [vmem:[%s5 + $0x84] sm:$0xf]
      %v3215 = vld [vmem:[%s5 + $0x88] sm:$0xf]
      %v3216 = vld [vmem:[%s5 + $0x8c] sm:$0xf]
      %v3217 = vld [vmem:[%s5 + $0x90] sm:$0xf]
      %v3218 = vld [vmem:[%s5 + $0x94] sm:$0xf]
      %v3219 = vld [vmem:[%s5 + $0x98] sm:$0xf]
      %v3220 = vld [vmem:[%s5 + $0x9c] sm:$0xf]
      %v3221 = vld [vmem:[%s5 + $0xa0] sm:$0xf]
      %v3222 = vld [vmem:[%s5 + $0xa4] sm:$0xf]
      %v3223 = vld [vmem:[%s5 + $0xa8] sm:$0xf]
      %v3224 = vld [vmem:[%s5 + $0xac] sm:$0xf]
      %v3225 = vld [vmem:[%s5 + $0xb0] sm:$0xf]
      %v3226 = vld [vmem:[%s5 + $0xb4] sm:$0xf]
      %v3227 = vld [vmem:[%s5 + $0xb8] sm:$0xf]
      %v3228 = vld [vmem:[%s5 + $0xbc] sm:$0xf]
      %v3229 = vld [vmem:[%s5 + $0xc0] sm:$0xf]
      %v3230 = vld [vmem:[%s5 + $0xc4] sm:$0xf]
      %v3231 = vld [vmem:[%s5 + $0xc8] sm:$0xf]
      %v3232 = vld [vmem:[%s5 + $0xcc] sm:$0xf]
      %v3233 = vld [vmem:[%s5 + $0xd0] sm:$0xf]
      %v3234 = vld [vmem:[%s5 + $0xd4] sm:$0xf]
      %v3235 = vld [vmem:[%s5 + $0xd8] sm:$0xf]
      %v3236 = vld [vmem:[%s5 + $0xdc] sm:$0xf]
      %v3237 = vld [vmem:[%s5 + $0xe0] sm:$0xf]
      %v3238 = vld [vmem:[%s5 + $0xe4] sm:$0xf]
      %v3239 = vld [vmem:[%s5 + $0xe8] sm:$0xf]
      %v3240 = vld [vmem:[%s5 + $0xec] sm:$0xf]
      %v3241 = vld [vmem:[%s5 + $0xf0] sm:$0xf]
      %v3242 = vld [vmem:[%s5 + $0xf4] sm:$0xf]
      %v3243 = vld [vmem:[%s5 + $0xf8] sm:$0xf]
      %v3244 = vld [vmem:[%s5 + $0xfc] sm:$0xf]
      %v3245 = vld [vmem:[%s5 + $0x100] sm:$0xf]
      %v3246 = vld [vmem:[%s5 + $0x104] sm:$0xf]
      %v3247 = vld [vmem:[%s5 + $0x108] sm:$0xf]
      %v3248 = vld [vmem:[%s5 + $0x10c] sm:$0xf]
      %v3249 = vld [vmem:[%s5 + $0x110] sm:$0xf]
      %v3250 = vld [vmem:[%s5 + $0x114] sm:$0xf]
      %v3251 = vld [vmem:[%s5 + $0x118] sm:$0xf]
      %v3252 = vld [vmem:[%s5 + $0x11c] sm:$0xf]
      %v3253 = vld [vmem:[%s5 + $0x120] sm:$0xf]
      %v3254 = vld [vmem:[%s5 + $0x124] sm:$0xf]
      %v3255 = vld [vmem:[%s5 + $0x128] sm:$0xf]
      %v3256 = vld [vmem:[%s5 + $0x12c] sm:$0xf]
      %v3257 = vld [vmem:[%s5 + $0x130] sm:$0xf]
      %v3258 = vld [vmem:[%s5 + $0x134] sm:$0xf]
      %v3259 = vld [vmem:[%s5 + $0x138] sm:$0xf]
      %v3260 = vld [vmem:[%s5 + $0x13c] sm:$0xf]
      %v3261 = vld [vmem:[%s5 + $0x140] sm:$0xf]
      %v3262 = vld [vmem:[%s5 + $0x144] sm:$0xf]
      %v3263 = vld [vmem:[%s5 + $0x148] sm:$0xf]
      %v3264 = vld [vmem:[%s5 + $0x14c] sm:$0xf]
      %v3265 = vld [vmem:[%s5 + $0x150] sm:$0xf]
      %v3266 = vld [vmem:[%s5 + $0x154] sm:$0xf]
      %v3267 = vld [vmem:[%s5 + $0x158] sm:$0xf]
      %v3268 = vld [vmem:[%s5 + $0x15c] sm:$0xf]
      %v3269 = vld [vmem:[%s5 + $0x160] sm:$0xf]
      %v3270 = vld [vmem:[%s5 + $0x164] sm:$0xf]
      %v3271 = vld [vmem:[%s5 + $0x168] sm:$0xf]
      %v3272 = vld [vmem:[%s5 + $0x16c] sm:$0xf]
      %v3273 = vld [vmem:[%s5 + $0x170] sm:$0xf]
      %v3274 = vld [vmem:[%s5 + $0x174] sm:$0xf]
      %v3275 = vld [vmem:[%s5 + $0x178] sm:$0xf]
      %v3276 = vld [vmem:[%s5 + $0x17c] sm:$0xf]
      %v3277 = vld [vmem:[%s5 + $0x180] sm:$0xf]
      %v3278 = vld [vmem:[%s5 + $0x184] sm:$0xf]
      %v3279 = vld [vmem:[%s5 + $0x188] sm:$0xf]
      %v3280 = vld [vmem:[%s5 + $0x18c] sm:$0xf]
      %v3281 = vld [vmem:[%s5 + $0x190] sm:$0xf]
      %v3282 = vld [vmem:[%s5 + $0x194] sm:$0xf]
      %v3283 = vld [vmem:[%s5 + $0x198] sm:$0xf]
      %v3284 = vld [vmem:[%s5 + $0x19c] sm:$0xf]
      %v3285 = vld [vmem:[%s5 + $0x1a0] sm:$0xf]
      %v3286 = vld [vmem:[%s5 + $0x1a4] sm:$0xf]
      %v3287 = vld [vmem:[%s5 + $0x1a8] sm:$0xf]
      %v3288 = vld [vmem:[%s5 + $0x1ac] sm:$0xf]
      %v3289 = vld [vmem:[%s5 + $0x1b0] sm:$0xf]
      %v3290 = vld [vmem:[%s5 + $0x1b4] sm:$0xf]
      %v3291 = vld [vmem:[%s5 + $0x1b8] sm:$0xf]
      %v3292 = vld [vmem:[%s5 + $0x1bc] sm:$0xf]
      %v3293 = vld [vmem:[%s5 + $0x1c0] sm:$0xf]
      %v3294 = vld [vmem:[%s5 + $0x1c4] sm:$0xf]
      %v3295 = vld [vmem:[%s5 + $0x1c8] sm:$0xf]
      %v3296 = vld [vmem:[%s5 + $0x1cc] sm:$0xf]
      %v3297 = vld [vmem:[%s5 + $0x1d0] sm:$0xf]
      %v3298 = vld [vmem:[%s5 + $0x1d4] sm:$0xf]
      %v3299 = vld [vmem:[%s5 + $0x1d8] sm:$0xf]
      %v3300 = vld [vmem:[%s5 + $0x1dc] sm:$0xf]
      %v3301 = vld [vmem:[%s5 + $0x1e0] sm:$0xf]
      %v3302 = vld [vmem:[%s5 + $0x1e4] sm:$0xf]
      %v3303 = vld [vmem:[%s5 + $0x1e8] sm:$0xf]
      %v3304 = vld [vmem:[%s5 + $0x1ec] sm:$0xf]
      %v3305 = vld [vmem:[%s5 + $0x1f0] sm:$0xf]
      %v3306 = vld [vmem:[%s5 + $0x1f4] sm:$0xf]
      %v3307 = vld [vmem:[%s5 + $0x1f8] sm:$0xf]
      %v3308 = vld [vmem:[%s5 + $0x1fc] sm:$0xf]
      %v3309 = vld [vmem:[%s5 + $0x200] sm:$0xf]
      %v3310 = vld [vmem:[%s5 + $0x204] sm:$0xf]
      %v3311 = vld [vmem:[%s5 + $0x208] sm:$0xf]
      %v3312 = vld [vmem:[%s5 + $0x20c] sm:$0xf]
      %v3313 = vld [vmem:[%s5 + $0x210] sm:$0xf]
      %v3314 = vld [vmem:[%s5 + $0x214] sm:$0xf]
      %v3315 = vld [vmem:[%s5 + $0x218] sm:$0xf]
      %v3316 = vld [vmem:[%s5 + $0x21c] sm:$0xf]
      %v3317 = vld [vmem:[%s5 + $0x220] sm:$0xf]
      %v3318 = vld [vmem:[%s5 + $0x224] sm:$0xf]
      %v3319 = vld [vmem:[%s5 + $0x228] sm:$0xf]
      %v3320 = vld [vmem:[%s5 + $0x22c] sm:$0xf]
      %v3321 = vld [vmem:[%s5 + $0x230] sm:$0xf]
      %v3322 = vld [vmem:[%s5 + $0x234] sm:$0xf]
      %v3323 = vld [vmem:[%s5 + $0x238] sm:$0xf]
      %v3324 = vld [vmem:[%s5 + $0x23c] sm:$0xf]
      %v3325 = vld [vmem:[%s6] sm:$0x1]
      %v3327 = vlaneseq
      %v3328 = vshrl.u32 %v3327, 7
      %v3329 = vsub.s32 0, %v3328
      %v3330 = vrot.slane %v3325, %v3329
      %v3492 = vunpack.c.l.b16 %v3021
      %v3493 = vunpack.c.h.b16 %v3021
      %v3494 = vunpack.c.l.b16 %v3022
      %v3495 = vunpack.c.h.b16 %v3022
      %v3496 = vunpack.c.l.b16 %v3023
      %v3497 = vunpack.c.h.b16 %v3023
      %v3498 = vunpack.c.l.b16 %v3024
      %v3499 = vunpack.c.h.b16 %v3024
      %v3500 = vunpack.c.l.b16 %v3025
      %v3501 = vunpack.c.l.b16 %v3026
      %v3502 = vunpack.c.h.b16 %v3026
      %v3503 = vunpack.c.l.b16 %v3027
      %v3504 = vunpack.c.h.b16 %v3027
      %v3505 = vunpack.c.l.b16 %v3028
      %v3506 = vunpack.c.h.b16 %v3028
      %v3507 = vunpack.c.l.b16 %v3029
      %v3508 = vunpack.c.h.b16 %v3029
      %v3509 = vunpack.c.l.b16 %v3030
      %v3510 = vunpack.c.l.b16 %v3031
      %v3511 = vunpack.c.h.b16 %v3031
      %v3512 = vunpack.c.l.b16 %v3032
      %v3513 = vunpack.c.h.b16 %v3032
      %v3514 = vunpack.c.l.b16 %v3033
      %v3515 = vunpack.c.h.b16 %v3033
      %v3516 = vunpack.c.l.b16 %v3034
      %v3517 = vunpack.c.h.b16 %v3034
      %v3518 = vunpack.c.l.b16 %v3035
      %v3519 = vunpack.c.l.b16 %v3036
      %v3520 = vunpack.c.h.b16 %v3036
      %v3521 = vunpack.c.l.b16 %v3037
      %v3522 = vunpack.c.h.b16 %v3037
      %v3523 = vunpack.c.l.b16 %v3038
      %v3524 = vunpack.c.h.b16 %v3038
      %v3525 = vunpack.c.l.b16 %v3039
      %v3526 = vunpack.c.h.b16 %v3039
      %v3527 = vunpack.c.l.b16 %v3040
      %v3528 = vunpack.c.l.b16 %v3041
      %v3529 = vunpack.c.h.b16 %v3041
      %v3530 = vunpack.c.l.b16 %v3042
      %v3531 = vunpack.c.h.b16 %v3042
      %v3532 = vunpack.c.l.b16 %v3043
      %v3533 = vunpack.c.h.b16 %v3043
      %v3534 = vunpack.c.l.b16 %v3044
      %v3535 = vunpack.c.h.b16 %v3044
      %v3536 = vunpack.c.l.b16 %v3045
      %v3537 = vunpack.c.l.b16 %v3046
      %v3538 = vunpack.c.h.b16 %v3046
      %v3539 = vunpack.c.l.b16 %v3047
      %v3540 = vunpack.c.h.b16 %v3047
      %v3541 = vunpack.c.l.b16 %v3048
      %v3542 = vunpack.c.h.b16 %v3048
      %v3543 = vunpack.c.l.b16 %v3049
      %v3544 = vunpack.c.h.b16 %v3049
      %v3545 = vunpack.c.l.b16 %v3050
      %v3546 = vunpack.c.l.b16 %v3051
      %v3547 = vunpack.c.h.b16 %v3051
      %v3548 = vunpack.c.l.b16 %v3052
      %v3549 = vunpack.c.h.b16 %v3052
      %v3550 = vunpack.c.l.b16 %v3053
      %v3551 = vunpack.c.h.b16 %v3053
      %v3552 = vunpack.c.l.b16 %v3054
      %v3553 = vunpack.c.h.b16 %v3054
      %v3554 = vunpack.c.l.b16 %v3055
      %v3555 = vunpack.c.l.b16 %v3056
      %v3556 = vunpack.c.h.b16 %v3056
      %v3557 = vunpack.c.l.b16 %v3057
      %v3558 = vunpack.c.h.b16 %v3057
      %v3559 = vunpack.c.l.b16 %v3058
      %v3560 = vunpack.c.h.b16 %v3058
      %v3561 = vunpack.c.l.b16 %v3059
      %v3562 = vunpack.c.h.b16 %v3059
      %v3563 = vunpack.c.l.b16 %v3060
      %v3564 = vunpack.c.l.b16 %v3061
      %v3565 = vunpack.c.h.b16 %v3061
      %v3566 = vunpack.c.l.b16 %v3062
      %v3567 = vunpack.c.h.b16 %v3062
      %v3568 = vunpack.c.l.b16 %v3063
      %v3569 = vunpack.c.h.b16 %v3063
      %v3570 = vunpack.c.l.b16 %v3064
      %v3571 = vunpack.c.h.b16 %v3064
      %v3572 = vunpack.c.l.b16 %v3065
      %v3573 = vunpack.c.l.b16 %v3066
      %v3574 = vunpack.c.h.b16 %v3066
      %v3575 = vunpack.c.l.b16 %v3067
      %v3576 = vunpack.c.h.b16 %v3067
      %v3577 = vunpack.c.l.b16 %v3068
      %v3578 = vunpack.c.h.b16 %v3068
      %v3579 = vunpack.c.l.b16 %v3069
      %v3580 = vunpack.c.h.b16 %v3069
      %v3581 = vunpack.c.l.b16 %v3070
      %v3582 = vunpack.c.l.b16 %v3071
      %v3583 = vunpack.c.h.b16 %v3071
      %v3584 = vunpack.c.l.b16 %v3072
      %v3585 = vunpack.c.h.b16 %v3072
      %v3586 = vunpack.c.l.b16 %v3073
      %v3587 = vunpack.c.h.b16 %v3073
      %v3588 = vunpack.c.l.b16 %v3074
      %v3589 = vunpack.c.h.b16 %v3074
      %v3590 = vunpack.c.l.b16 %v3075
      %v3591 = vunpack.c.l.b16 %v3076
      %v3592 = vunpack.c.h.b16 %v3076
      %v3593 = vunpack.c.l.b16 %v3077
      %v3594 = vunpack.c.h.b16 %v3077
      %v3595 = vunpack.c.l.b16 %v3078
      %v3596 = vunpack.c.h.b16 %v3078
      %v3597 = vunpack.c.l.b16 %v3079
      %v3598 = vunpack.c.h.b16 %v3079
      %v3599 = vunpack.c.l.b16 %v3080
      %v3600 = vunpack.c.l.b16 %v3081
      %v3601 = vunpack.c.h.b16 %v3081
      %v3602 = vunpack.c.l.b16 %v3082
      %v3603 = vunpack.c.h.b16 %v3082
      %v3604 = vunpack.c.l.b16 %v3083
      %v3605 = vunpack.c.h.b16 %v3083
      %v3606 = vunpack.c.l.b16 %v3084
      %v3607 = vunpack.c.h.b16 %v3084
      %v3608 = vunpack.c.l.b16 %v3085
      %v3609 = vunpack.c.l.b16 %v3086
      %v3610 = vunpack.c.h.b16 %v3086
      %v3611 = vunpack.c.l.b16 %v3087
      %v3612 = vunpack.c.h.b16 %v3087
      %v3613 = vunpack.c.l.b16 %v3088
      %v3614 = vunpack.c.h.b16 %v3088
      %v3615 = vunpack.c.l.b16 %v3089
      %v3616 = vunpack.c.h.b16 %v3089
      %v3617 = vunpack.c.l.b16 %v3090
      %v3618 = vunpack.c.l.b16 %v3091
      %v3619 = vunpack.c.h.b16 %v3091
      %v3620 = vunpack.c.l.b16 %v3092
      %v3621 = vunpack.c.h.b16 %v3092
      %v3622 = vunpack.c.l.b16 %v3093
      %v3623 = vunpack.c.h.b16 %v3093
      %v3624 = vunpack.c.l.b16 %v3094
      %v3625 = vunpack.c.h.b16 %v3094
      %v3626 = vunpack.c.l.b16 %v3095
      %v3627 = vunpack.c.l.b16 %v3096
      %v3628 = vunpack.c.h.b16 %v3096
      %v3629 = vunpack.c.l.b16 %v3097
      %v3630 = vunpack.c.h.b16 %v3097
      %v3631 = vunpack.c.l.b16 %v3098
      %v3632 = vunpack.c.h.b16 %v3098
      %v3633 = vunpack.c.l.b16 %v3099
      %v3634 = vunpack.c.h.b16 %v3099
      %v3635 = vunpack.c.l.b16 %v3100
      %v3636 = vunpack.c.l.b16 %v3101
      %v3637 = vunpack.c.h.b16 %v3101
      %v3638 = vunpack.c.l.b16 %v3102
      %v3639 = vunpack.c.h.b16 %v3102
      %v3640 = vunpack.c.l.b16 %v3103
      %v3641 = vunpack.c.h.b16 %v3103
      %v3642 = vunpack.c.l.b16 %v3104
      %v3643 = vunpack.c.h.b16 %v3104
      %v3644 = vunpack.c.l.b16 %v3105
      %v3645 = vunpack.c.l.b16 %v3106
      %v3646 = vunpack.c.h.b16 %v3106
      %v3647 = vunpack.c.l.b16 %v3107
      %v3648 = vunpack.c.h.b16 %v3107
      %v3649 = vunpack.c.l.b16 %v3108
      %v3650 = vunpack.c.h.b16 %v3108
      %v3651 = vunpack.c.l.b16 %v3109
      %v3652 = vunpack.c.h.b16 %v3109
      %v3653 = vunpack.c.l.b16 %v3110
      %v3654 = vunpack.c.l.b16 %v3111
      %v3655 = vunpack.c.h.b16 %v3111
      %v3656 = vunpack.c.l.b16 %v3112
      %v3657 = vunpack.c.h.b16 %v3112
      %v3658 = vunpack.c.l.b16 %v3113
      %v3659 = vunpack.c.h.b16 %v3113
      %v3660 = vunpack.c.l.b16 %v3114
      %v3661 = vunpack.c.h.b16 %v3114
      %v3662 = vunpack.c.l.b16 %v3115
      %v3663 = vunpack.c.l.b16 %v3116
      %v3664 = vunpack.c.h.b16 %v3116
      %v3665 = vunpack.c.l.b16 %v3117
      %v3666 = vunpack.c.h.b16 %v3117
      %v3667 = vunpack.c.l.b16 %v3118
      %v3668 = vunpack.c.h.b16 %v3118
      %v3669 = vunpack.c.l.b16 %v3119
      %v3670 = vunpack.c.h.b16 %v3119
      %v3671 = vunpack.c.l.b16 %v3120
      %v3672 = vunpack.c.l.b16 %v3121
      %v3673 = vunpack.c.h.b16 %v3121
      %v3674 = vunpack.c.l.b16 %v3122
      %v3675 = vunpack.c.h.b16 %v3122
      %v3676 = vunpack.c.l.b16 %v3123
      %v3677 = vunpack.c.h.b16 %v3123
      %v3678 = vunpack.c.l.b16 %v3124
      %v3679 = vunpack.c.h.b16 %v3124
      %v3680 = vunpack.c.l.b16 %v3125
      %v3681 = vunpack.c.l.b16 %v3126
      %v3682 = vunpack.c.h.b16 %v3126
      %v3683 = vunpack.c.l.b16 %v3127
      %v3684 = vunpack.c.h.b16 %v3127
      %v3685 = vunpack.c.l.b16 %v3128
      %v3686 = vunpack.c.h.b16 %v3128
      %v3687 = vunpack.c.l.b16 %v3129
      %v3688 = vunpack.c.h.b16 %v3129
      %v3689 = vunpack.c.l.b16 %v3130
      %v3690 = vunpack.c.l.b16 %v3131
      %v3691 = vunpack.c.h.b16 %v3131
      %v3692 = vunpack.c.l.b16 %v3132
      %v3693 = vunpack.c.h.b16 %v3132
      %v3694 = vunpack.c.l.b16 %v3133
      %v3695 = vunpack.c.h.b16 %v3133
      %v3696 = vunpack.c.l.b16 %v3134
      %v3697 = vunpack.c.h.b16 %v3134
      %v3698 = vunpack.c.l.b16 %v3135
      %v3699 = vunpack.c.l.b16 %v3136
      %v3700 = vunpack.c.h.b16 %v3136
      %v3701 = vunpack.c.l.b16 %v3137
      %v3702 = vunpack.c.h.b16 %v3137
      %v3703 = vunpack.c.l.b16 %v3138
      %v3704 = vunpack.c.h.b16 %v3138
      %v3705 = vunpack.c.l.b16 %v3139
      %v3706 = vunpack.c.h.b16 %v3139
      %v3707 = vunpack.c.l.b16 %v3140
      %v3708 = vunpack.c.l.b16 %v3141
      %v3709 = vunpack.c.h.b16 %v3141
      %v3710 = vunpack.c.l.b16 %v3142
      %v3711 = vunpack.c.h.b16 %v3142
      %v3712 = vunpack.c.l.b16 %v3143
      %v3713 = vunpack.c.h.b16 %v3143
      %v3714 = vunpack.c.l.b16 %v3144
      %v3715 = vunpack.c.h.b16 %v3144
      %v3716 = vunpack.c.l.b16 %v3145
      %v3717 = vunpack.c.l.b16 %v3146
      %v3718 = vunpack.c.h.b16 %v3146
      %v3719 = vunpack.c.l.b16 %v3147
      %v3720 = vunpack.c.h.b16 %v3147
      %v3721 = vunpack.c.l.b16 %v3148
      %v3722 = vunpack.c.h.b16 %v3148
      %v3723 = vunpack.c.l.b16 %v3149
      %v3724 = vunpack.c.h.b16 %v3149
      %v3725 = vunpack.c.l.b16 %v3150
      %v3726 = vunpack.c.l.b16 %v3151
      %v3727 = vunpack.c.h.b16 %v3151
      %v3728 = vunpack.c.l.b16 %v3152
      %v3729 = vunpack.c.h.b16 %v3152
      %v3730 = vunpack.c.l.b16 %v3153
      %v3731 = vunpack.c.h.b16 %v3153
      %v3732 = vunpack.c.l.b16 %v3154
      %v3733 = vunpack.c.h.b16 %v3154
      %v3734 = vunpack.c.l.b16 %v3155
      %v3735 = vunpack.c.l.b16 %v3156
      %v3736 = vunpack.c.h.b16 %v3156
      %v3737 = vunpack.c.l.b16 %v3157
      %v3738 = vunpack.c.h.b16 %v3157
      %v3739 = vunpack.c.l.b16 %v3158
      %v3740 = vunpack.c.h.b16 %v3158
      %v3741 = vunpack.c.l.b16 %v3159
      %v3742 = vunpack.c.h.b16 %v3159
      %v3743 = vunpack.c.l.b16 %v3160
      %v3744 = vunpack.c.l.b16 %v3161
      %v3745 = vunpack.c.h.b16 %v3161
      %v3746 = vunpack.c.l.b16 %v3162
      %v3747 = vunpack.c.h.b16 %v3162
      %v3748 = vunpack.c.l.b16 %v3163
      %v3749 = vunpack.c.h.b16 %v3163
      %v3750 = vunpack.c.l.b16 %v3164
      %v3751 = vunpack.c.h.b16 %v3164
      %v3752 = vunpack.c.l.b16 %v3165
      %v3753 = vunpack.c.l.b16 %v3166
      %v3754 = vunpack.c.h.b16 %v3166
      %v3755 = vunpack.c.l.b16 %v3167
      %v3756 = vunpack.c.h.b16 %v3167
      %v3757 = vunpack.c.l.b16 %v3168
      %v3758 = vunpack.c.h.b16 %v3168
      %v3759 = vunpack.c.l.b16 %v3169
      %v3760 = vunpack.c.h.b16 %v3169
      %v3761 = vunpack.c.l.b16 %v3170
      %v3762 = vunpack.c.l.b16 %v3171
      %v3763 = vunpack.c.h.b16 %v3171
      %v3764 = vunpack.c.l.b16 %v3172
      %v3765 = vunpack.c.h.b16 %v3172
      %v3766 = vunpack.c.l.b16 %v3173
      %v3767 = vunpack.c.h.b16 %v3173
      %v3768 = vunpack.c.l.b16 %v3174
      %v3769 = vunpack.c.h.b16 %v3174
      %v3770 = vunpack.c.l.b16 %v3175
      %v3771 = vunpack.c.l.b16 %v3176
      %v3772 = vunpack.c.h.b16 %v3176
      %v3773 = vunpack.c.l.b16 %v3177
      %v3774 = vunpack.c.h.b16 %v3177
      %v3775 = vunpack.c.l.b16 %v3178
      %v3776 = vunpack.c.h.b16 %v3178
      %v3777 = vunpack.c.l.b16 %v3179
      %v3778 = vunpack.c.h.b16 %v3179
      %v3779 = vunpack.c.l.b16 %v3180
      %v3780 = vpack.c.b16 %v3501, %v3492
      %v3781 = vpack.c.b16 %v3502, %v3493
      %v3782 = vpack.c.b16 %v3503, %v3494
      %v3783 = vpack.c.b16 %v3504, %v3495
      %v3784 = vpack.c.b16 %v3505, %v3496
      %v3785 = vpack.c.b16 %v3506, %v3497
      %v3786 = vpack.c.b16 %v3507, %v3498
      %v3787 = vpack.c.b16 %v3508, %v3499
      %v3788 = vpack.c.b16 %v3509, %v3500
      %v3789 = vpack.c.b16 %v3519, %v3510
      %v3790 = vpack.c.b16 %v3520, %v3511
      %v3791 = vpack.c.b16 %v3521, %v3512
      %v3792 = vpack.c.b16 %v3522, %v3513
      %v3793 = vpack.c.b16 %v3523, %v3514
      %v3794 = vpack.c.b16 %v3524, %v3515
      %v3795 = vpack.c.b16 %v3525, %v3516
      %v3796 = vpack.c.b16 %v3526, %v3517
      %v3797 = vpack.c.b16 %v3527, %v3518
      %v3798 = vpack.c.b16 %v3537, %v3528
      %v3799 = vpack.c.b16 %v3538, %v3529
      %v3800 = vpack.c.b16 %v3539, %v3530
      %v3801 = vpack.c.b16 %v3540, %v3531
      %v3802 = vpack.c.b16 %v3541, %v3532
      %v3803 = vpack.c.b16 %v3542, %v3533
      %v3804 = vpack.c.b16 %v3543, %v3534
      %v3805 = vpack.c.b16 %v3544, %v3535
      %v3806 = vpack.c.b16 %v3545, %v3536
      %v3807 = vpack.c.b16 %v3555, %v3546
      %v3808 = vpack.c.b16 %v3556, %v3547
      %v3809 = vpack.c.b16 %v3557, %v3548
      %v3810 = vpack.c.b16 %v3558, %v3549
      %v3811 = vpack.c.b16 %v3559, %v3550
      %v3812 = vpack.c.b16 %v3560, %v3551
      %v3813 = vpack.c.b16 %v3561, %v3552
      %v3814 = vpack.c.b16 %v3562, %v3553
      %v3815 = vpack.c.b16 %v3563, %v3554
      %v3816 = vpack.c.b16 %v3573, %v3564
      %v3817 = vpack.c.b16 %v3574, %v3565
      %v3818 = vpack.c.b16 %v3575, %v3566
      %v3819 = vpack.c.b16 %v3576, %v3567
      %v3820 = vpack.c.b16 %v3577, %v3568
      %v3821 = vpack.c.b16 %v3578, %v3569
      %v3822 = vpack.c.b16 %v3579, %v3570
      %v3823 = vpack.c.b16 %v3580, %v3571
      %v3824 = vpack.c.b16 %v3581, %v3572
      %v3825 = vpack.c.b16 %v3591, %v3582
      %v3826 = vpack.c.b16 %v3592, %v3583
      %v3827 = vpack.c.b16 %v3593, %v3584
      %v3828 = vpack.c.b16 %v3594, %v3585
      %v3829 = vpack.c.b16 %v3595, %v3586
      %v3830 = vpack.c.b16 %v3596, %v3587
      %v3831 = vpack.c.b16 %v3597, %v3588
      %v3832 = vpack.c.b16 %v3598, %v3589
      %v3833 = vpack.c.b16 %v3599, %v3590
      %v3834 = vpack.c.b16 %v3609, %v3600
      %v3835 = vpack.c.b16 %v3610, %v3601
      %v3836 = vpack.c.b16 %v3611, %v3602
      %v3837 = vpack.c.b16 %v3612, %v3603
      %v3838 = vpack.c.b16 %v3613, %v3604
      %v3839 = vpack.c.b16 %v3614, %v3605
      %v3840 = vpack.c.b16 %v3615, %v3606
      %v3841 = vpack.c.b16 %v3616, %v3607
      %v3842 = vpack.c.b16 %v3617, %v3608
      %v3843 = vpack.c.b16 %v3627, %v3618
      %v3844 = vpack.c.b16 %v3628, %v3619
      %v3845 = vpack.c.b16 %v3629, %v3620
      %v3846 = vpack.c.b16 %v3630, %v3621
      %v3847 = vpack.c.b16 %v3631, %v3622
      %v3848 = vpack.c.b16 %v3632, %v3623
      %v3849 = vpack.c.b16 %v3633, %v3624
      %v3850 = vpack.c.b16 %v3634, %v3625
      %v3851 = vpack.c.b16 %v3635, %v3626
      %v3852 = vpack.c.b16 %v3645, %v3636
      %v3853 = vpack.c.b16 %v3646, %v3637
      %v3854 = vpack.c.b16 %v3647, %v3638
      %v3855 = vpack.c.b16 %v3648, %v3639
      %v3856 = vpack.c.b16 %v3649, %v3640
      %v3857 = vpack.c.b16 %v3650, %v3641
      %v3858 = vpack.c.b16 %v3651, %v3642
      %v3859 = vpack.c.b16 %v3652, %v3643
      %v3860 = vpack.c.b16 %v3653, %v3644
      %v3861 = vpack.c.b16 %v3663, %v3654
      %v3862 = vpack.c.b16 %v3664, %v3655
      %v3863 = vpack.c.b16 %v3665, %v3656
      %v3864 = vpack.c.b16 %v3666, %v3657
      %v3865 = vpack.c.b16 %v3667, %v3658
      %v3866 = vpack.c.b16 %v3668, %v3659
      %v3867 = vpack.c.b16 %v3669, %v3660
      %v3868 = vpack.c.b16 %v3670, %v3661
      %v3869 = vpack.c.b16 %v3671, %v3662
      %v3870 = vpack.c.b16 %v3681, %v3672
      %v3871 = vpack.c.b16 %v3682, %v3673
      %v3872 = vpack.c.b16 %v3683, %v3674
      %v3873 = vpack.c.b16 %v3684, %v3675
      %v3874 = vpack.c.b16 %v3685, %v3676
      %v3875 = vpack.c.b16 %v3686, %v3677
      %v3876 = vpack.c.b16 %v3687, %v3678
      %v3877 = vpack.c.b16 %v3688, %v3679
      %v3878 = vpack.c.b16 %v3689, %v3680
      %v3879 = vpack.c.b16 %v3699, %v3690
      %v3880 = vpack.c.b16 %v3700, %v3691
      %v3881 = vpack.c.b16 %v3701, %v3692
      %v3882 = vpack.c.b16 %v3702, %v3693
      %v3883 = vpack.c.b16 %v3703, %v3694
      %v3884 = vpack.c.b16 %v3704, %v3695
      %v3885 = vpack.c.b16 %v3705, %v3696
      %v3886 = vpack.c.b16 %v3706, %v3697
      %v3887 = vpack.c.b16 %v3707, %v3698
      %v3888 = vpack.c.b16 %v3717, %v3708
      %v3889 = vpack.c.b16 %v3718, %v3709
      %v3890 = vpack.c.b16 %v3719, %v3710
      %v3891 = vpack.c.b16 %v3720, %v3711
      %v3892 = vpack.c.b16 %v3721, %v3712
      %v3893 = vpack.c.b16 %v3722, %v3713
      %v3894 = vpack.c.b16 %v3723, %v3714
      %v3895 = vpack.c.b16 %v3724, %v3715
      %v3896 = vpack.c.b16 %v3725, %v3716
      %v3897 = vpack.c.b16 %v3735, %v3726
      %v3898 = vpack.c.b16 %v3736, %v3727
      %v3899 = vpack.c.b16 %v3737, %v3728
      %v3900 = vpack.c.b16 %v3738, %v3729
      %v3901 = vpack.c.b16 %v3739, %v3730
      %v3902 = vpack.c.b16 %v3740, %v3731
      %v3903 = vpack.c.b16 %v3741, %v3732
      %v3904 = vpack.c.b16 %v3742, %v3733
      %v3905 = vpack.c.b16 %v3743, %v3734
      %v3906 = vpack.c.b16 %v3753, %v3744
      %v3907 = vpack.c.b16 %v3754, %v3745
      %v3908 = vpack.c.b16 %v3755, %v3746
      %v3909 = vpack.c.b16 %v3756, %v3747
      %v3910 = vpack.c.b16 %v3757, %v3748
      %v3911 = vpack.c.b16 %v3758, %v3749
      %v3912 = vpack.c.b16 %v3759, %v3750
      %v3913 = vpack.c.b16 %v3760, %v3751
      %v3914 = vpack.c.b16 %v3761, %v3752
      %v3915 = vpack.c.b16 %v3771, %v3762
      %v3916 = vpack.c.b16 %v3772, %v3763
      %v3917 = vpack.c.b16 %v3773, %v3764
      %v3918 = vpack.c.b16 %v3774, %v3765
      %v3919 = vpack.c.b16 %v3775, %v3766
      %v3920 = vpack.c.b16 %v3776, %v3767
      %v3921 = vpack.c.b16 %v3777, %v3768
      %v3922 = vpack.c.b16 %v3778, %v3769
      %v3923 = vpack.c.b16 %v3779, %v3770
      %v4212 = vunpack.c.l.b16 %v3181
      %v4213 = vunpack.c.l.b16 %v3182
      %v4214 = vunpack.c.l.b16 %v3183
      %v4215 = vunpack.c.l.b16 %v3184
      %v4216 = vunpack.c.l.b16 %v3185
      %v4217 = vunpack.c.l.b16 %v3186
      %v4218 = vunpack.c.l.b16 %v3187
      %v4219 = vunpack.c.l.b16 %v3188
      %v4220 = vunpack.c.l.b16 %v3189
      %v4221 = vunpack.c.l.b16 %v3190
      %v4222 = vunpack.c.l.b16 %v3191
      %v4223 = vunpack.c.l.b16 %v3192
      %v4224 = vunpack.c.l.b16 %v3193
      %v4225 = vunpack.c.l.b16 %v3194
      %v4226 = vunpack.c.l.b16 %v3195
      %v4227 = vunpack.c.l.b16 %v3196
      %v4228 = vunpack.c.l.b16 %v3197
      %v4229 = vunpack.c.l.b16 %v3198
      %v4230 = vunpack.c.l.b16 %v3199
      %v4231 = vunpack.c.l.b16 %v3200
      %v4232 = vunpack.c.l.b16 %v3201
      %v4233 = vunpack.c.l.b16 %v3202
      %v4234 = vunpack.c.l.b16 %v3203
      %v4235 = vunpack.c.l.b16 %v3204
      %v4236 = vunpack.c.l.b16 %v3205
      %v4237 = vunpack.c.l.b16 %v3206
      %v4238 = vunpack.c.l.b16 %v3207
      %v4239 = vunpack.c.l.b16 %v3208
      %v4240 = vunpack.c.l.b16 %v3209
      %v4241 = vunpack.c.l.b16 %v3210
      %v4242 = vunpack.c.l.b16 %v3211
      %v4243 = vunpack.c.l.b16 %v3212
      %v4244 = vunpack.c.l.b16 %v3213
      %v4245 = vunpack.c.l.b16 %v3214
      %v4246 = vunpack.c.l.b16 %v3215
      %v4247 = vunpack.c.l.b16 %v3216
      %v4248 = vunpack.c.l.b16 %v3217
      %v4249 = vunpack.c.l.b16 %v3218
      %v4250 = vunpack.c.l.b16 %v3219
      %v4251 = vunpack.c.l.b16 %v3220
      %v4252 = vunpack.c.l.b16 %v3221
      %v4253 = vunpack.c.l.b16 %v3222
      %v4254 = vunpack.c.l.b16 %v3223
      %v4255 = vunpack.c.l.b16 %v3224
      %v4256 = vunpack.c.l.b16 %v3225
      %v4257 = vunpack.c.l.b16 %v3226
      %v4258 = vunpack.c.l.b16 %v3227
      %v4259 = vunpack.c.l.b16 %v3228
      %v4260 = vunpack.c.l.b16 %v3229
      %v4261 = vunpack.c.l.b16 %v3230
      %v4262 = vunpack.c.l.b16 %v3231
      %v4263 = vunpack.c.l.b16 %v3232
      %v4264 = vunpack.c.l.b16 %v3233
      %v4265 = vunpack.c.l.b16 %v3234
      %v4266 = vunpack.c.l.b16 %v3235
      %v4267 = vunpack.c.l.b16 %v3236
      %v4268 = vunpack.c.l.b16 %v3237
      %v4269 = vunpack.c.l.b16 %v3238
      %v4270 = vunpack.c.l.b16 %v3239
      %v4271 = vunpack.c.l.b16 %v3240
      %v4272 = vunpack.c.l.b16 %v3241
      %v4273 = vunpack.c.l.b16 %v3242
      %v4274 = vunpack.c.l.b16 %v3243
      %v4275 = vunpack.c.l.b16 %v3244
      %v4276 = vunpack.c.l.b16 %v3245
      %v4277 = vunpack.c.l.b16 %v3246
      %v4278 = vunpack.c.l.b16 %v3247
      %v4279 = vunpack.c.l.b16 %v3248
      %v4280 = vunpack.c.l.b16 %v3249
      %v4281 = vunpack.c.l.b16 %v3250
      %v4282 = vunpack.c.l.b16 %v3251
      %v4283 = vunpack.c.l.b16 %v3252
      %v4284 = vunpack.c.l.b16 %v3253
      %v4285 = vunpack.c.l.b16 %v3254
      %v4286 = vunpack.c.l.b16 %v3255
      %v4287 = vunpack.c.l.b16 %v3256
      %v4288 = vunpack.c.l.b16 %v3257
      %v4289 = vunpack.c.l.b16 %v3258
      %v4290 = vunpack.c.l.b16 %v3259
      %v4291 = vunpack.c.l.b16 %v3260
      %v4292 = vunpack.c.l.b16 %v3261
      %v4293 = vunpack.c.l.b16 %v3262
      %v4294 = vunpack.c.l.b16 %v3263
      %v4295 = vunpack.c.l.b16 %v3264
      %v4296 = vunpack.c.l.b16 %v3265
      %v4297 = vunpack.c.l.b16 %v3266
      %v4298 = vunpack.c.l.b16 %v3267
      %v4299 = vunpack.c.l.b16 %v3268
      %v4300 = vunpack.c.l.b16 %v3269
      %v4301 = vunpack.c.l.b16 %v3270
      %v4302 = vunpack.c.l.b16 %v3271
      %v4303 = vunpack.c.l.b16 %v3272
      %v4304 = vunpack.c.l.b16 %v3273
      %v4305 = vunpack.c.l.b16 %v3274
      %v4306 = vunpack.c.l.b16 %v3275
      %v4307 = vunpack.c.l.b16 %v3276
      %v4308 = vunpack.c.l.b16 %v3277
      %v4309 = vunpack.c.l.b16 %v3278
      %v4310 = vunpack.c.l.b16 %v3279
      %v4311 = vunpack.c.l.b16 %v3280
      %v4312 = vunpack.c.l.b16 %v3281
      %v4313 = vunpack.c.l.b16 %v3282
      %v4314 = vunpack.c.l.b16 %v3283
      %v4315 = vunpack.c.l.b16 %v3284
      %v4316 = vunpack.c.l.b16 %v3285
      %v4317 = vunpack.c.l.b16 %v3286
      %v4318 = vunpack.c.l.b16 %v3287
      %v4319 = vunpack.c.l.b16 %v3288
      %v4320 = vunpack.c.l.b16 %v3289
      %v4321 = vunpack.c.l.b16 %v3290
      %v4322 = vunpack.c.l.b16 %v3291
      %v4323 = vunpack.c.l.b16 %v3292
      %v4324 = vunpack.c.l.b16 %v3293
      %v4325 = vunpack.c.l.b16 %v3294
      %v4326 = vunpack.c.l.b16 %v3295
      %v4327 = vunpack.c.l.b16 %v3296
      %v4328 = vunpack.c.l.b16 %v3297
      %v4329 = vunpack.c.l.b16 %v3298
      %v4330 = vunpack.c.l.b16 %v3299
      %v4331 = vunpack.c.l.b16 %v3300
      %v4332 = vunpack.c.l.b16 %v3301
      %v4333 = vunpack.c.l.b16 %v3302
      %v4334 = vunpack.c.l.b16 %v3303
      %v4335 = vunpack.c.l.b16 %v3304
      %v4336 = vunpack.c.l.b16 %v3305
      %v4337 = vunpack.c.l.b16 %v3306
      %v4338 = vunpack.c.l.b16 %v3307
      %v4339 = vunpack.c.l.b16 %v3308
      %v4340 = vunpack.c.l.b16 %v3309
      %v4341 = vunpack.c.l.b16 %v3310
      %v4342 = vunpack.c.l.b16 %v3311
      %v4343 = vunpack.c.l.b16 %v3312
      %v4344 = vunpack.c.l.b16 %v3313
      %v4345 = vunpack.c.l.b16 %v3314
      %v4346 = vunpack.c.l.b16 %v3315
      %v4347 = vunpack.c.l.b16 %v3316
      %v4348 = vunpack.c.l.b16 %v3317
      %v4349 = vunpack.c.l.b16 %v3318
      %v4350 = vunpack.c.l.b16 %v3319
      %v4351 = vunpack.c.l.b16 %v3320
      %v4352 = vunpack.c.l.b16 %v3321
      %v4353 = vunpack.c.l.b16 %v3322
      %v4354 = vunpack.c.l.b16 %v3323
      %v4355 = vunpack.c.l.b16 %v3324
      %v4356 = vpack.c.b16 %v4213, %v4212
      %v4357 = vpack.c.b16 %v4215, %v4214
      %v4358 = vpack.c.b16 %v4217, %v4216
      %v4359 = vpack.c.b16 %v4219, %v4218
      %v4360 = vpack.c.b16 %v4221, %v4220
      %v4361 = vpack.c.b16 %v4223, %v4222
      %v4362 = vpack.c.b16 %v4225, %v4224
      %v4363 = vpack.c.b16 %v4227, %v4226
      %v4364 = vpack.c.b16 %v4229, %v4228
      %v4365 = vpack.c.b16 %v4231, %v4230
      %v4366 = vpack.c.b16 %v4233, %v4232
      %v4367 = vpack.c.b16 %v4235, %v4234
      %v4368 = vpack.c.b16 %v4237, %v4236
      %v4369 = vpack.c.b16 %v4239, %v4238
      %v4370 = vpack.c.b16 %v4241, %v4240
      %v4371 = vpack.c.b16 %v4243, %v4242
      %v4372 = vpack.c.b16 %v4245, %v4244
      %v4373 = vpack.c.b16 %v4247, %v4246
      %v4374 = vpack.c.b16 %v4249, %v4248
      %v4375 = vpack.c.b16 %v4251, %v4250
      %v4376 = vpack.c.b16 %v4253, %v4252
      %v4377 = vpack.c.b16 %v4255, %v4254
      %v4378 = vpack.c.b16 %v4257, %v4256
      %v4379 = vpack.c.b16 %v4259, %v4258
      %v4380 = vpack.c.b16 %v4261, %v4260
      %v4381 = vpack.c.b16 %v4263, %v4262
      %v4382 = vpack.c.b16 %v4265, %v4264
      %v4383 = vpack.c.b16 %v4267, %v4266
      %v4384 = vpack.c.b16 %v4269, %v4268
      %v4385 = vpack.c.b16 %v4271, %v4270
      %v4386 = vpack.c.b16 %v4273, %v4272
      %v4387 = vpack.c.b16 %v4275, %v4274
      %v4388 = vpack.c.b16 %v4277, %v4276
      %v4389 = vpack.c.b16 %v4279, %v4278
      %v4390 = vpack.c.b16 %v4281, %v4280
      %v4391 = vpack.c.b16 %v4283, %v4282
      %v4392 = vpack.c.b16 %v4285, %v4284
      %v4393 = vpack.c.b16 %v4287, %v4286
      %v4394 = vpack.c.b16 %v4289, %v4288
      %v4395 = vpack.c.b16 %v4291, %v4290
      %v4396 = vpack.c.b16 %v4293, %v4292
      %v4397 = vpack.c.b16 %v4295, %v4294
      %v4398 = vpack.c.b16 %v4297, %v4296
      %v4399 = vpack.c.b16 %v4299, %v4298
      %v4400 = vpack.c.b16 %v4301, %v4300
      %v4401 = vpack.c.b16 %v4303, %v4302
      %v4402 = vpack.c.b16 %v4305, %v4304
      %v4403 = vpack.c.b16 %v4307, %v4306
      %v4404 = vpack.c.b16 %v4309, %v4308
      %v4405 = vpack.c.b16 %v4311, %v4310
      %v4406 = vpack.c.b16 %v4313, %v4312
      %v4407 = vpack.c.b16 %v4315, %v4314
      %v4408 = vpack.c.b16 %v4317, %v4316
      %v4409 = vpack.c.b16 %v4319, %v4318
      %v4410 = vpack.c.b16 %v4321, %v4320
      %v4411 = vpack.c.b16 %v4323, %v4322
      %v4412 = vpack.c.b16 %v4325, %v4324
      %v4413 = vpack.c.b16 %v4327, %v4326
      %v4414 = vpack.c.b16 %v4329, %v4328
      %v4415 = vpack.c.b16 %v4331, %v4330
      %v4416 = vpack.c.b16 %v4333, %v4332
      %v4417 = vpack.c.b16 %v4335, %v4334
      %v4418 = vpack.c.b16 %v4337, %v4336
      %v4419 = vpack.c.b16 %v4339, %v4338
      %v4420 = vpack.c.b16 %v4341, %v4340
      %v4421 = vpack.c.b16 %v4343, %v4342
      %v4422 = vpack.c.b16 %v4345, %v4344
      %v4423 = vpack.c.b16 %v4347, %v4346
      %v4424 = vpack.c.b16 %v4349, %v4348
      %v4425 = vpack.c.b16 %v4351, %v4350
      %v4426 = vpack.c.b16 %v4353, %v4352
      %v4427 = vpack.c.b16 %v4355, %v4354
      %4500 = vmatprep.subr.bf16.mxu0 0
      %4501 = vmatpush1.bf16.msra.mxu0 %v4363
      %4502 = vmatprep.subr.bf16.mxu0 0
      %4503 = vmatpush1.bf16.msra.mxu0 %v4362
      %4504 = vmatprep.subr.bf16.mxu0 0
      %4505 = vmatpush1.bf16.msra.mxu0 %v4361
      %4506 = vmatprep.subr.bf16.mxu0 0
      %4507 = vmatpush1.bf16.msra.mxu0 %v4360
      %4508 = vmatprep.subr.bf16.mxu0 0
      %4509 = vmatpush1.bf16.msra.mxu0 %v4359
      %4510 = vmatprep.subr.bf16.mxu0 0
      %4511 = vmatpush1.bf16.msra.mxu0 %v4358
      %4512 = vmatprep.subr.bf16.mxu0 0
      %4513 = vmatpush1.bf16.msra.mxu0 %v4357
      %4514 = vmatprep.subr.bf16.mxu0 0
      %4515 = vmatpush1.bf16.msra.mxu0 %v4356
      %4516 = vmatprep.subr.bf16.mxu0 0
      %4517 = vmatpush2.bf16.msra.mxu0 %v4371
      %4518 = vmatprep.subr.bf16.mxu0 0
      %4519 = vmatpush2.bf16.msra.mxu0 %v4370
      %4520 = vmatprep.subr.bf16.mxu0 0
      %4521 = vmatpush2.bf16.msra.mxu0 %v4369
      %4522 = vmatprep.subr.bf16.mxu0 0
      %4523 = vmatpush2.bf16.msra.mxu0 %v4368
      %4524 = vmatprep.subr.bf16.mxu0 0
      %4525 = vmatpush2.bf16.msra.mxu0 %v4367
      %4526 = vmatprep.subr.bf16.mxu0 0
      %4527 = vmatpush2.bf16.msra.mxu0 %v4366
      %4528 = vmatprep.subr.bf16.mxu0 0
      %4529 = vmatpush2.bf16.msra.mxu0 %v4365
      %4530 = vmatprep.subr.bf16.mxu0 0
      %4531 = vmatpush2.bf16.msra.mxu0 %v4364
      %4532 = vmatprep.mubr.bf16.mxu0 %v3781
      %4533 = vmatmul.mubr.bf16.gmra.mxu0 %v3780
      %v4534 = vpop.f32.mrf.mxu0
      %v4535 = vadd.f32 %v3330, %v4534
      %v4536 = vpop.f32.mrf.mxu0
      %v4537 = vpop.f32.mrf.mxu0
      %v4538 = vadd.f32 %v3330, %v4537
      %v4539 = vpop.f32.mrf.mxu0
      %4540 = vmatprep.mubr.bf16.mxu0 %v3790
      %4541 = vmatmul.mubr.bf16.gmra.mxu0 %v3789
      %v4542 = vpop.f32.mrf.mxu0
      %v4543 = vadd.f32 %v3330, %v4542
      %v4544 = vpop.f32.mrf.mxu0
      %v4545 = vpop.f32.mrf.mxu0
      %v4546 = vadd.f32 %v3330, %v4545
      %v4547 = vpop.f32.mrf.mxu0
      %4548 = vmatprep.mubr.bf16.mxu0 %v3799
      %4549 = vmatmul.mubr.bf16.gmra.mxu0 %v3798
      %v4550 = vpop.f32.mrf.mxu0
      %v4551 = vadd.f32 %v3330, %v4550
      %v4552 = vpop.f32.mrf.mxu0
      %v4553 = vpop.f32.mrf.mxu0
      %v4554 = vadd.f32 %v3330, %v4553
      %v4555 = vpop.f32.mrf.mxu0
      %4556 = vmatprep.mubr.bf16.mxu0 %v3808
      %4557 = vmatmul.mubr.bf16.gmra.mxu0 %v3807
      %v4558 = vpop.f32.mrf.mxu0
      %v4559 = vadd.f32 %v3330, %v4558
      %v4560 = vpop.f32.mrf.mxu0
      %v4561 = vpop.f32.mrf.mxu0
      %v4562 = vadd.f32 %v3330, %v4561
      %v4563 = vpop.f32.mrf.mxu0
      %4564 = vmatprep.mubr.bf16.mxu0 %v3817
      %4565 = vmatmul.mubr.bf16.gmra.mxu0 %v3816
      %v4566 = vpop.f32.mrf.mxu0
      %v4567 = vadd.f32 %v3330, %v4566
      %v4568 = vpop.f32.mrf.mxu0
      %v4569 = vpop.f32.mrf.mxu0
      %v4570 = vadd.f32 %v3330, %v4569
      %v4571 = vpop.f32.mrf.mxu0
      %4572 = vmatprep.mubr.bf16.mxu0 %v3826
      %4573 = vmatmul.mubr.bf16.gmra.mxu0 %v3825
      %v4574 = vpop.f32.mrf.mxu0
      %v4575 = vadd.f32 %v3330, %v4574
      %v4576 = vpop.f32.mrf.mxu0
      %v4577 = vpop.f32.mrf.mxu0
      %v4578 = vadd.f32 %v3330, %v4577
      %v4579 = vpop.f32.mrf.mxu0
      %4580 = vmatprep.mubr.bf16.mxu0 %v3835
      %4581 = vmatmul.mubr.bf16.gmra.mxu0 %v3834
      %v4582 = vpop.f32.mrf.mxu0
      %v4583 = vadd.f32 %v3330, %v4582
      %v4584 = vpop.f32.mrf.mxu0
      %v4585 = vpop.f32.mrf.mxu0
      %v4586 = vadd.f32 %v3330, %v4585
      %v4587 = vpop.f32.mrf.mxu0
      %4588 = vmatprep.mubr.bf16.mxu0 %v3844
      %4589 = vmatmul.mubr.bf16.gmra.mxu0 %v3843
      %v4590 = vpop.f32.mrf.mxu0
      %v4591 = vadd.f32 %v3330, %v4590
      %v4592 = vpop.f32.mrf.mxu0
      %v4593 = vpop.f32.mrf.mxu0
      %v4594 = vadd.f32 %v3330, %v4593
      %v4595 = vpop.f32.mrf.mxu0
      %4596 = vmatprep.mubr.bf16.mxu0 %v3853
      %4597 = vmatmul.mubr.bf16.gmra.mxu0 %v3852
      %v4598 = vpop.f32.mrf.mxu0
      %v4599 = vadd.f32 %v3330, %v4598
      %v4600 = vpop.f32.mrf.mxu0
      %v4601 = vpop.f32.mrf.mxu0
      %v4602 = vadd.f32 %v3330, %v4601
      %v4603 = vpop.f32.mrf.mxu0
      %4604 = vmatprep.mubr.bf16.mxu0 %v3862
      %4605 = vmatmul.mubr.bf16.gmra.mxu0 %v3861
      %v4606 = vpop.f32.mrf.mxu0
      %v4607 = vadd.f32 %v3330, %v4606
      %v4608 = vpop.f32.mrf.mxu0
      %v4609 = vpop.f32.mrf.mxu0
      %v4610 = vadd.f32 %v3330, %v4609
      %v4611 = vpop.f32.mrf.mxu0
      %4612 = vmatprep.mubr.bf16.mxu0 %v3871
      %4613 = vmatmul.mubr.bf16.gmra.mxu0 %v3870
      %v4614 = vpop.f32.mrf.mxu0
      %v4615 = vadd.f32 %v3330, %v4614
      %v4616 = vpop.f32.mrf.mxu0
      %v4617 = vpop.f32.mrf.mxu0
      %v4618 = vadd.f32 %v3330, %v4617
      %v4619 = vpop.f32.mrf.mxu0
      %4620 = vmatprep.mubr.bf16.mxu0 %v3880
      %4621 = vmatmul.mubr.bf16.gmra.mxu0 %v3879
      %v4622 = vpop.f32.mrf.mxu0
      %v4623 = vadd.f32 %v3330, %v4622
      %v4624 = vpop.f32.mrf.mxu0
      %v4625 = vpop.f32.mrf.mxu0
      %v4626 = vadd.f32 %v3330, %v4625
      %v4627 = vpop.f32.mrf.mxu0
      %4628 = vmatprep.mubr.bf16.mxu0 %v3889
      %4629 = vmatmul.mubr.bf16.gmra.mxu0 %v3888
      %v4630 = vpop.f32.mrf.mxu0
      %v4631 = vadd.f32 %v3330, %v4630
      %v4632 = vpop.f32.mrf.mxu0
      %v4633 = vpop.f32.mrf.mxu0
      %v4634 = vadd.f32 %v3330, %v4633
      %v4635 = vpop.f32.mrf.mxu0
      %4636 = vmatprep.mubr.bf16.mxu0 %v3898
      %4637 = vmatmul.mubr.bf16.gmra.mxu0 %v3897
      %v4638 = vpop.f32.mrf.mxu0
      %v4639 = vadd.f32 %v3330, %v4638
      %v4640 = vpop.f32.mrf.mxu0
      %v4641 = vpop.f32.mrf.mxu0
      %v4642 = vadd.f32 %v3330, %v4641
      %v4643 = vpop.f32.mrf.mxu0
      %4644 = vmatprep.mubr.bf16.mxu0 %v3907
      %4645 = vmatmul.mubr.bf16.gmra.mxu0 %v3906
      %v4646 = vpop.f32.mrf.mxu0
      %v4647 = vadd.f32 %v3330, %v4646
      %v4648 = vpop.f32.mrf.mxu0
      %v4649 = vpop.f32.mrf.mxu0
      %v4650 = vadd.f32 %v3330, %v4649
      %v4651 = vpop.f32.mrf.mxu0
      %4652 = vmatprep.mubr.bf16.mxu0 %v3916
      %4653 = vmatmul.mubr.bf16.gmra.mxu0 %v3915
      %v4654 = vpop.f32.mrf.mxu0
      %v4655 = vadd.f32 %v3330, %v4654
      %v4656 = vpop.f32.mrf.mxu0
      %v4657 = vpop.f32.mrf.mxu0
      %v4658 = vadd.f32 %v3330, %v4657
      %v4659 = vpop.f32.mrf.mxu0
      %4660 = vdwg.mxu0
      %4661 = vmatprep.subr.bf16.mxu0 0
      %4662 = vmatpush1.bf16.msra.mxu0 %v4379
      %4663 = vmatprep.subr.bf16.mxu0 0
      %4664 = vmatpush1.bf16.msra.mxu0 %v4378
      %4665 = vmatprep.subr.bf16.mxu0 0
      %4666 = vmatpush1.bf16.msra.mxu0 %v4377
      %4667 = vmatprep.subr.bf16.mxu0 0
      %4668 = vmatpush1.bf16.msra.mxu0 %v4376
      %4669 = vmatprep.subr.bf16.mxu0 0
      %4670 = vmatpush1.bf16.msra.mxu0 %v4375
      %4671 = vmatprep.subr.bf16.mxu0 0
      %4672 = vmatpush1.bf16.msra.mxu0 %v4374
      %4673 = vmatprep.subr.bf16.mxu0 0
      %4674 = vmatpush1.bf16.msra.mxu0 %v4373
      %4675 = vmatprep.subr.bf16.mxu0 0
      %4676 = vmatpush1.bf16.msra.mxu0 %v4372
      %4677 = vmatprep.subr.bf16.mxu0 0
      %4678 = vmatpush2.bf16.msra.mxu0 %v4387
      %4679 = vmatprep.subr.bf16.mxu0 0
      %4680 = vmatpush2.bf16.msra.mxu0 %v4386
      %4681 = vmatprep.subr.bf16.mxu0 0
      %4682 = vmatpush2.bf16.msra.mxu0 %v4385
      %4683 = vmatprep.subr.bf16.mxu0 0
      %4684 = vmatpush2.bf16.msra.mxu0 %v4384
      %4685 = vmatprep.subr.bf16.mxu0 0
      %4686 = vmatpush2.bf16.msra.mxu0 %v4383
      %4687 = vmatprep.subr.bf16.mxu0 0
      %4688 = vmatpush2.bf16.msra.mxu0 %v4382
      %4689 = vmatprep.subr.bf16.mxu0 0
      %4690 = vmatpush2.bf16.msra.mxu0 %v4381
      %4691 = vmatprep.subr.bf16.mxu0 0
      %4692 = vmatpush2.bf16.msra.mxu0 %v4380
      %4693 = vmatprep.mubr.bf16.mxu0 %v3783
      %4694 = vmatmul.mubr.bf16.gmra.mxu0 %v3782
      %v4695 = vpop.f32.mrf.mxu0
      %v4696 = vadd.f32 %v4535, %v4695
      %v4697 = vpop.f32.mrf.mxu0
      %v4698 = vpop.f32.mrf.mxu0
      %v4699 = vadd.f32 %v4538, %v4698
      %v4700 = vpop.f32.mrf.mxu0
      %4701 = vmatprep.mubr.bf16.mxu0 %v3792
      %4702 = vmatmul.mubr.bf16.gmra.mxu0 %v3791
      %v4703 = vpop.f32.mrf.mxu0
      %v4704 = vadd.f32 %v4543, %v4703
      %v4705 = vpop.f32.mrf.mxu0
      %v4706 = vpop.f32.mrf.mxu0
      %v4707 = vadd.f32 %v4546, %v4706
      %v4708 = vpop.f32.mrf.mxu0
      %4709 = vmatprep.mubr.bf16.mxu0 %v3801
      %4710 = vmatmul.mubr.bf16.gmra.mxu0 %v3800
      %v4711 = vpop.f32.mrf.mxu0
      %v4712 = vadd.f32 %v4551, %v4711
      %v4713 = vpop.f32.mrf.mxu0
      %v4714 = vpop.f32.mrf.mxu0
      %v4715 = vadd.f32 %v4554, %v4714
      %v4716 = vpop.f32.mrf.mxu0
      %4717 = vmatprep.mubr.bf16.mxu0 %v3810
      %4718 = vmatmul.mubr.bf16.gmra.mxu0 %v3809
      %v4719 = vpop.f32.mrf.mxu0
      %v4720 = vadd.f32 %v4559, %v4719
      %v4721 = vpop.f32.mrf.mxu0
      %v4722 = vpop.f32.mrf.mxu0
      %v4723 = vadd.f32 %v4562, %v4722
      %v4724 = vpop.f32.mrf.mxu0
      %4725 = vmatprep.mubr.bf16.mxu0 %v3819
      %4726 = vmatmul.mubr.bf16.gmra.mxu0 %v3818
      %v4727 = vpop.f32.mrf.mxu0
      %v4728 = vadd.f32 %v4567, %v4727
      %v4729 = vpop.f32.mrf.mxu0
      %v4730 = vpop.f32.mrf.mxu0
      %v4731 = vadd.f32 %v4570, %v4730
      %v4732 = vpop.f32.mrf.mxu0
      %4733 = vmatprep.mubr.bf16.mxu0 %v3828
      %4734 = vmatmul.mubr.bf16.gmra.mxu0 %v3827
      %v4735 = vpop.f32.mrf.mxu0
      %v4736 = vadd.f32 %v4575, %v4735
      %v4737 = vpop.f32.mrf.mxu0
      %v4738 = vpop.f32.mrf.mxu0
      %v4739 = vadd.f32 %v4578, %v4738
      %v4740 = vpop.f32.mrf.mxu0
      %4741 = vmatprep.mubr.bf16.mxu0 %v3837
      %4742 = vmatmul.mubr.bf16.gmra.mxu0 %v3836
      %v4743 = vpop.f32.mrf.mxu0
      %v4744 = vadd.f32 %v4583, %v4743
      %v4745 = vpop.f32.mrf.mxu0
      %v4746 = vpop.f32.mrf.mxu0
      %v4747 = vadd.f32 %v4586, %v4746
      %v4748 = vpop.f32.mrf.mxu0
      %4749 = vmatprep.mubr.bf16.mxu0 %v3846
      %4750 = vmatmul.mubr.bf16.gmra.mxu0 %v3845
      %v4751 = vpop.f32.mrf.mxu0
      %v4752 = vadd.f32 %v4591, %v4751
      %v4753 = vpop.f32.mrf.mxu0
      %v4754 = vpop.f32.mrf.mxu0
      %v4755 = vadd.f32 %v4594, %v4754
      %v4756 = vpop.f32.mrf.mxu0
      %4757 = vmatprep.mubr.bf16.mxu0 %v3855
      %4758 = vmatmul.mubr.bf16.gmra.mxu0 %v3854
      %v4759 = vpop.f32.mrf.mxu0
      %v4760 = vadd.f32 %v4599, %v4759
      %v4761 = vpop.f32.mrf.mxu0
      %v4762 = vpop.f32.mrf.mxu0
      %v4763 = vadd.f32 %v4602, %v4762
      %v4764 = vpop.f32.mrf.mxu0
      %4765 = vmatprep.mubr.bf16.mxu0 %v3864
      %4766 = vmatmul.mubr.bf16.gmra.mxu0 %v3863
      %v4767 = vpop.f32.mrf.mxu0
      %v4768 = vadd.f32 %v4607, %v4767
      %v4769 = vpop.f32.mrf.mxu0
      %v4770 = vpop.f32.mrf.mxu0
      %v4771 = vadd.f32 %v4610, %v4770
      %v4772 = vpop.f32.mrf.mxu0
      %4773 = vmatprep.mubr.bf16.mxu0 %v3873
      %4774 = vmatmul.mubr.bf16.gmra.mxu0 %v3872
      %v4775 = vpop.f32.mrf.mxu0
      %v4776 = vadd.f32 %v4615, %v4775
      %v4777 = vpop.f32.mrf.mxu0
      %v4778 = vpop.f32.mrf.mxu0
      %v4779 = vadd.f32 %v4618, %v4778
      %v4780 = vpop.f32.mrf.mxu0
      %4781 = vmatprep.mubr.bf16.mxu0 %v3882
      %4782 = vmatmul.mubr.bf16.gmra.mxu0 %v3881
      %v4783 = vpop.f32.mrf.mxu0
      %v4784 = vadd.f32 %v4623, %v4783
      %v4785 = vpop.f32.mrf.mxu0
      %v4786 = vpop.f32.mrf.mxu0
      %v4787 = vadd.f32 %v4626, %v4786
      %v4788 = vpop.f32.mrf.mxu0
      %4789 = vmatprep.mubr.bf16.mxu0 %v3891
      %4790 = vmatmul.mubr.bf16.gmra.mxu0 %v3890
      %v4791 = vpop.f32.mrf.mxu0
      %v4792 = vadd.f32 %v4631, %v4791
      %v4793 = vpop.f32.mrf.mxu0
      %v4794 = vpop.f32.mrf.mxu0
      %v4795 = vadd.f32 %v4634, %v4794
      %v4796 = vpop.f32.mrf.mxu0
      %4797 = vmatprep.mubr.bf16.mxu0 %v3900
      %4798 = vmatmul.mubr.bf16.gmra.mxu0 %v3899
      %v4799 = vpop.f32.mrf.mxu0
      %v4800 = vadd.f32 %v4639, %v4799
      %v4801 = vpop.f32.mrf.mxu0
      %v4802 = vpop.f32.mrf.mxu0
      %v4803 = vadd.f32 %v4642, %v4802
      %v4804 = vpop.f32.mrf.mxu0
      %4805 = vmatprep.mubr.bf16.mxu0 %v3909
      %4806 = vmatmul.mubr.bf16.gmra.mxu0 %v3908
      %v4807 = vpop.f32.mrf.mxu0
      %v4808 = vadd.f32 %v4647, %v4807
      %v4809 = vpop.f32.mrf.mxu0
      %v4810 = vpop.f32.mrf.mxu0
      %v4811 = vadd.f32 %v4650, %v4810
      %v4812 = vpop.f32.mrf.mxu0
      %4813 = vmatprep.mubr.bf16.mxu0 %v3918
      %4814 = vmatmul.mubr.bf16.gmra.mxu0 %v3917
      %v4815 = vpop.f32.mrf.mxu0
      %v4816 = vadd.f32 %v4655, %v4815
      %v4817 = vpop.f32.mrf.mxu0
      %v4818 = vpop.f32.mrf.mxu0
      %v4819 = vadd.f32 %v4658, %v4818
      %v4820 = vpop.f32.mrf.mxu0
      %4821 = vdwg.mxu0
      %4822 = vmatprep.subr.bf16.mxu0 0
      %4823 = vmatpush1.bf16.msra.mxu0 %v4395
      %4824 = vmatprep.subr.bf16.mxu0 0
      %4825 = vmatpush1.bf16.msra.mxu0 %v4394
      %4826 = vmatprep.subr.bf16.mxu0 0
      %4827 = vmatpush1.bf16.msra.mxu0 %v4393
      %4828 = vmatprep.subr.bf16.mxu0 0
      %4829 = vmatpush1.bf16.msra.mxu0 %v4392
      %4830 = vmatprep.subr.bf16.mxu0 0
      %4831 = vmatpush1.bf16.msra.mxu0 %v4391
      %4832 = vmatprep.subr.bf16.mxu0 0
      %4833 = vmatpush1.bf16.msra.mxu0 %v4390
      %4834 = vmatprep.subr.bf16.mxu0 0
      %4835 = vmatpush1.bf16.msra.mxu0 %v4389
      %4836 = vmatprep.subr.bf16.mxu0 0
      %4837 = vmatpush1.bf16.msra.mxu0 %v4388
      %4838 = vmatprep.subr.bf16.mxu0 0
      %4839 = vmatpush2.bf16.msra.mxu0 %v4403
      %4840 = vmatprep.subr.bf16.mxu0 0
      %4841 = vmatpush2.bf16.msra.mxu0 %v4402
      %4842 = vmatprep.subr.bf16.mxu0 0
      %4843 = vmatpush2.bf16.msra.mxu0 %v4401
      %4844 = vmatprep.subr.bf16.mxu0 0
      %4845 = vmatpush2.bf16.msra.mxu0 %v4400
      %4846 = vmatprep.subr.bf16.mxu0 0
      %4847 = vmatpush2.bf16.msra.mxu0 %v4399
      %4848 = vmatprep.subr.bf16.mxu0 0
      %4849 = vmatpush2.bf16.msra.mxu0 %v4398
      %4850 = vmatprep.subr.bf16.mxu0 0
      %4851 = vmatpush2.bf16.msra.mxu0 %v4397
      %4852 = vmatprep.subr.bf16.mxu0 0
      %4853 = vmatpush2.bf16.msra.mxu0 %v4396
      %4854 = vmatprep.mubr.bf16.mxu0 %v3785
      %4855 = vmatmul.mubr.bf16.gmra.mxu0 %v3784
      %v4856 = vpop.f32.mrf.mxu0
      %v4857 = vadd.f32 %v4696, %v4856
      %v4858 = vpop.f32.mrf.mxu0
      %v4859 = vpop.f32.mrf.mxu0
      %v4860 = vadd.f32 %v4699, %v4859
      %v4861 = vpop.f32.mrf.mxu0
      %4862 = vmatprep.mubr.bf16.mxu0 %v3794
      %4863 = vmatmul.mubr.bf16.gmra.mxu0 %v3793
      %v4864 = vpop.f32.mrf.mxu0
      %v4865 = vadd.f32 %v4704, %v4864
      %v4866 = vpop.f32.mrf.mxu0
      %v4867 = vpop.f32.mrf.mxu0
      %v4868 = vadd.f32 %v4707, %v4867
      %v4869 = vpop.f32.mrf.mxu0
      %4870 = vmatprep.mubr.bf16.mxu0 %v3803
      %4871 = vmatmul.mubr.bf16.gmra.mxu0 %v3802
      %v4872 = vpop.f32.mrf.mxu0
      %v4873 = vadd.f32 %v4712, %v4872
      %v4874 = vpop.f32.mrf.mxu0
      %v4875 = vpop.f32.mrf.mxu0
      %v4876 = vadd.f32 %v4715, %v4875
      %v4877 = vpop.f32.mrf.mxu0
      %4878 = vmatprep.mubr.bf16.mxu0 %v3812
      %4879 = vmatmul.mubr.bf16.gmra.mxu0 %v3811
      %v4880 = vpop.f32.mrf.mxu0
      %v4881 = vadd.f32 %v4720, %v4880
      %v4882 = vpop.f32.mrf.mxu0
      %v4883 = vpop.f32.mrf.mxu0
      %v4884 = vadd.f32 %v4723, %v4883
      %v4885 = vpop.f32.mrf.mxu0
      %4886 = vmatprep.mubr.bf16.mxu0 %v3821
      %4887 = vmatmul.mubr.bf16.gmra.mxu0 %v3820
      %v4888 = vpop.f32.mrf.mxu0
      %v4889 = vadd.f32 %v4728, %v4888
      %v4890 = vpop.f32.mrf.mxu0
      %v4891 = vpop.f32.mrf.mxu0
      %v4892 = vadd.f32 %v4731, %v4891
      %v4893 = vpop.f32.mrf.mxu0
      %4894 = vmatprep.mubr.bf16.mxu0 %v3830
      %4895 = vmatmul.mubr.bf16.gmra.mxu0 %v3829
      %v4896 = vpop.f32.mrf.mxu0
      %v4897 = vadd.f32 %v4736, %v4896
      %v4898 = vpop.f32.mrf.mxu0
      %v4899 = vpop.f32.mrf.mxu0
      %v4900 = vadd.f32 %v4739, %v4899
      %v4901 = vpop.f32.mrf.mxu0
      %4902 = vmatprep.mubr.bf16.mxu0 %v3839
      %4903 = vmatmul.mubr.bf16.gmra.mxu0 %v3838
      %v4904 = vpop.f32.mrf.mxu0
      %v4905 = vadd.f32 %v4744, %v4904
      %v4906 = vpop.f32.mrf.mxu0
      %v4907 = vpop.f32.mrf.mxu0
      %v4908 = vadd.f32 %v4747, %v4907
      %v4909 = vpop.f32.mrf.mxu0
      %4910 = vmatprep.mubr.bf16.mxu0 %v3848
      %4911 = vmatmul.mubr.bf16.gmra.mxu0 %v3847
      %v4912 = vpop.f32.mrf.mxu0
      %v4913 = vadd.f32 %v4752, %v4912
      %v4914 = vpop.f32.mrf.mxu0
      %v4915 = vpop.f32.mrf.mxu0
      %v4916 = vadd.f32 %v4755, %v4915
      %v4917 = vpop.f32.mrf.mxu0
      %4918 = vmatprep.mubr.bf16.mxu0 %v3857
      %4919 = vmatmul.mubr.bf16.gmra.mxu0 %v3856
      %v4920 = vpop.f32.mrf.mxu0
      %v4921 = vadd.f32 %v4760, %v4920
      %v4922 = vpop.f32.mrf.mxu0
      %v4923 = vpop.f32.mrf.mxu0
      %v4924 = vadd.f32 %v4763, %v4923
      %v4925 = vpop.f32.mrf.mxu0
      %4926 = vmatprep.mubr.bf16.mxu0 %v3866
      %4927 = vmatmul.mubr.bf16.gmra.mxu0 %v3865
      %v4928 = vpop.f32.mrf.mxu0
      %v4929 = vadd.f32 %v4768, %v4928
      %v4930 = vpop.f32.mrf.mxu0
      %v4931 = vpop.f32.mrf.mxu0
      %v4932 = vadd.f32 %v4771, %v4931
      %v4933 = vpop.f32.mrf.mxu0
      %4934 = vmatprep.mubr.bf16.mxu0 %v3875
      %4935 = vmatmul.mubr.bf16.gmra.mxu0 %v3874
      %v4936 = vpop.f32.mrf.mxu0
      %v4937 = vadd.f32 %v4776, %v4936
      %v4938 = vpop.f32.mrf.mxu0
      %v4939 = vpop.f32.mrf.mxu0
      %v4940 = vadd.f32 %v4779, %v4939
      %v4941 = vpop.f32.mrf.mxu0
      %4942 = vmatprep.mubr.bf16.mxu0 %v3884
      %4943 = vmatmul.mubr.bf16.gmra.mxu0 %v3883
      %v4944 = vpop.f32.mrf.mxu0
      %v4945 = vadd.f32 %v4784, %v4944
      %v4946 = vpop.f32.mrf.mxu0
      %v4947 = vpop.f32.mrf.mxu0
      %v4948 = vadd.f32 %v4787, %v4947
      %v4949 = vpop.f32.mrf.mxu0
      %4950 = vmatprep.mubr.bf16.mxu0 %v3893
      %4951 = vmatmul.mubr.bf16.gmra.mxu0 %v3892
      %v4952 = vpop.f32.mrf.mxu0
      %v4953 = vadd.f32 %v4792, %v4952
      %v4954 = vpop.f32.mrf.mxu0
      %v4955 = vpop.f32.mrf.mxu0
      %v4956 = vadd.f32 %v4795, %v4955
      %v4957 = vpop.f32.mrf.mxu0
      %4958 = vmatprep.mubr.bf16.mxu0 %v3902
      %4959 = vmatmul.mubr.bf16.gmra.mxu0 %v3901
      %v4960 = vpop.f32.mrf.mxu0
      %v4961 = vadd.f32 %v4800, %v4960
      %v4962 = vpop.f32.mrf.mxu0
      %v4963 = vpop.f32.mrf.mxu0
      %v4964 = vadd.f32 %v4803, %v4963
      %v4965 = vpop.f32.mrf.mxu0
      %4966 = vmatprep.mubr.bf16.mxu0 %v3911
      %4967 = vmatmul.mubr.bf16.gmra.mxu0 %v3910
      %v4968 = vpop.f32.mrf.mxu0
      %v4969 = vadd.f32 %v4808, %v4968
      %v4970 = vpop.f32.mrf.mxu0
      %v4971 = vpop.f32.mrf.mxu0
      %v4972 = vadd.f32 %v4811, %v4971
      %v4973 = vpop.f32.mrf.mxu0
      %4974 = vmatprep.mubr.bf16.mxu0 %v3920
      %4975 = vmatmul.mubr.bf16.gmra.mxu0 %v3919
      %v4976 = vpop.f32.mrf.mxu0
      %v4977 = vadd.f32 %v4816, %v4976
      %v4978 = vpop.f32.mrf.mxu0
      %v4979 = vpop.f32.mrf.mxu0
      %v4980 = vadd.f32 %v4819, %v4979
      %v4981 = vpop.f32.mrf.mxu0
      %4982 = vdwg.mxu0
      %4983 = vmatprep.subr.bf16.mxu0 0
      %4984 = vmatpush1.bf16.msra.mxu0 %v4411
      %4985 = vmatprep.subr.bf16.mxu0 0
      %4986 = vmatpush1.bf16.msra.mxu0 %v4410
      %4987 = vmatprep.subr.bf16.mxu0 0
      %4988 = vmatpush1.bf16.msra.mxu0 %v4409
      %4989 = vmatprep.subr.bf16.mxu0 0
      %4990 = vmatpush1.bf16.msra.mxu0 %v4408
      %4991 = vmatprep.subr.bf16.mxu0 0
      %4992 = vmatpush1.bf16.msra.mxu0 %v4407
      %4993 = vmatprep.subr.bf16.mxu0 0
      %4994 = vmatpush1.bf16.msra.mxu0 %v4406
      %4995 = vmatprep.subr.bf16.mxu0 0
      %4996 = vmatpush1.bf16.msra.mxu0 %v4405
      %4997 = vmatprep.subr.bf16.mxu0 0
      %4998 = vmatpush1.bf16.msra.mxu0 %v4404
      %4999 = vmatprep.subr.bf16.mxu0 0
      %5000 = vmatpush2.bf16.msra.mxu0 %v4419
      %5001 = vmatprep.subr.bf16.mxu0 0
      %5002 = vmatpush2.bf16.msra.mxu0 %v4418
      %5003 = vmatprep.subr.bf16.mxu0 0
      %5004 = vmatpush2.bf16.msra.mxu0 %v4417
      %5005 = vmatprep.subr.bf16.mxu0 0
      %5006 = vmatpush2.bf16.msra.mxu0 %v4416
      %5007 = vmatprep.subr.bf16.mxu0 0
      %5008 = vmatpush2.bf16.msra.mxu0 %v4415
      %5009 = vmatprep.subr.bf16.mxu0 0
      %5010 = vmatpush2.bf16.msra.mxu0 %v4414
      %5011 = vmatprep.subr.bf16.mxu0 0
      %5012 = vmatpush2.bf16.msra.mxu0 %v4413
      %5013 = vmatprep.subr.bf16.mxu0 0
      %5014 = vmatpush2.bf16.msra.mxu0 %v4412
      %5015 = vmatprep.mubr.bf16.mxu0 %v3787
      %5016 = vmatmul.mubr.bf16.gmra.mxu0 %v3786
      %v5017 = vpop.f32.mrf.mxu0
      %v5018 = vadd.f32 %v4857, %v5017
      %v5019 = vpop.f32.mrf.mxu0
      %v5020 = vpop.f32.mrf.mxu0
      %v5021 = vadd.f32 %v4860, %v5020
      %v5022 = vpop.f32.mrf.mxu0
      %5023 = vmatprep.mubr.bf16.mxu0 %v3796
      %5024 = vmatmul.mubr.bf16.gmra.mxu0 %v3795
      %v5025 = vpop.f32.mrf.mxu0
      %v5026 = vadd.f32 %v4865, %v5025
      %v5027 = vpop.f32.mrf.mxu0
      %v5028 = vpop.f32.mrf.mxu0
      %v5029 = vadd.f32 %v4868, %v5028
      %v5030 = vpop.f32.mrf.mxu0
      %5031 = vmatprep.mubr.bf16.mxu0 %v3805
      %5032 = vmatmul.mubr.bf16.gmra.mxu0 %v3804
      %v5033 = vpop.f32.mrf.mxu0
      %v5034 = vadd.f32 %v4873, %v5033
      %v5035 = vpop.f32.mrf.mxu0
      %v5036 = vpop.f32.mrf.mxu0
      %v5037 = vadd.f32 %v4876, %v5036
      %v5038 = vpop.f32.mrf.mxu0
      %5039 = vmatprep.mubr.bf16.mxu0 %v3814
      %5040 = vmatmul.mubr.bf16.gmra.mxu0 %v3813
      %v5041 = vpop.f32.mrf.mxu0
      %v5042 = vadd.f32 %v4881, %v5041
      %v5043 = vpop.f32.mrf.mxu0
      %v5044 = vpop.f32.mrf.mxu0
      %v5045 = vadd.f32 %v4884, %v5044
      %v5046 = vpop.f32.mrf.mxu0
      %5047 = vmatprep.mubr.bf16.mxu0 %v3823
      %5048 = vmatmul.mubr.bf16.gmra.mxu0 %v3822
      %v5049 = vpop.f32.mrf.mxu0
      %v5050 = vadd.f32 %v4889, %v5049
      %v5051 = vpop.f32.mrf.mxu0
      %v5052 = vpop.f32.mrf.mxu0
      %v5053 = vadd.f32 %v4892, %v5052
      %v5054 = vpop.f32.mrf.mxu0
      %5055 = vmatprep.mubr.bf16.mxu0 %v3832
      %5056 = vmatmul.mubr.bf16.gmra.mxu0 %v3831
      %v5057 = vpop.f32.mrf.mxu0
      %v5058 = vadd.f32 %v4897, %v5057
      %v5059 = vpop.f32.mrf.mxu0
      %v5060 = vpop.f32.mrf.mxu0
      %v5061 = vadd.f32 %v4900, %v5060
      %v5062 = vpop.f32.mrf.mxu0
      %5063 = vmatprep.mubr.bf16.mxu0 %v3841
      %5064 = vmatmul.mubr.bf16.gmra.mxu0 %v3840
      %v5065 = vpop.f32.mrf.mxu0
      %v5066 = vadd.f32 %v4905, %v5065
      %v5067 = vpop.f32.mrf.mxu0
      %v5068 = vpop.f32.mrf.mxu0
      %v5069 = vadd.f32 %v4908, %v5068
      %v5070 = vpop.f32.mrf.mxu0
      %5071 = vmatprep.mubr.bf16.mxu0 %v3850
      %5072 = vmatmul.mubr.bf16.gmra.mxu0 %v3849
      %v5073 = vpop.f32.mrf.mxu0
      %v5074 = vadd.f32 %v4913, %v5073
      %v5075 = vpop.f32.mrf.mxu0
      %v5076 = vpop.f32.mrf.mxu0
      %v5077 = vadd.f32 %v4916, %v5076
      %v5078 = vpop.f32.mrf.mxu0
      %5079 = vmatprep.mubr.bf16.mxu0 %v3859
      %5080 = vmatmul.mubr.bf16.gmra.mxu0 %v3858
      %v5081 = vpop.f32.mrf.mxu0
      %v5082 = vadd.f32 %v4921, %v5081
      %v5083 = vpop.f32.mrf.mxu0
      %v5084 = vpop.f32.mrf.mxu0
      %v5085 = vadd.f32 %v4924, %v5084
      %v5086 = vpop.f32.mrf.mxu0
      %5087 = vmatprep.mubr.bf16.mxu0 %v3868
      %5088 = vmatmul.mubr.bf16.gmra.mxu0 %v3867
      %v5089 = vpop.f32.mrf.mxu0
      %v5090 = vadd.f32 %v4929, %v5089
      %v5091 = vpop.f32.mrf.mxu0
      %v5092 = vpop.f32.mrf.mxu0
      %v5093 = vadd.f32 %v4932, %v5092
      %v5094 = vpop.f32.mrf.mxu0
      %5095 = vmatprep.mubr.bf16.mxu0 %v3877
      %5096 = vmatmul.mubr.bf16.gmra.mxu0 %v3876
      %v5097 = vpop.f32.mrf.mxu0
      %v5098 = vadd.f32 %v4937, %v5097
      %v5099 = vpop.f32.mrf.mxu0
      %v5100 = vpop.f32.mrf.mxu0
      %v5101 = vadd.f32 %v4940, %v5100
      %v5102 = vpop.f32.mrf.mxu0
      %5103 = vmatprep.mubr.bf16.mxu0 %v3886
      %5104 = vmatmul.mubr.bf16.gmra.mxu0 %v3885
      %v5105 = vpop.f32.mrf.mxu0
      %v5106 = vadd.f32 %v4945, %v5105
      %v5107 = vpop.f32.mrf.mxu0
      %v5108 = vpop.f32.mrf.mxu0
      %v5109 = vadd.f32 %v4948, %v5108
      %v5110 = vpop.f32.mrf.mxu0
      %5111 = vmatprep.mubr.bf16.mxu0 %v3895
      %5112 = vmatmul.mubr.bf16.gmra.mxu0 %v3894
      %v5113 = vpop.f32.mrf.mxu0
      %v5114 = vadd.f32 %v4953, %v5113
      %v5115 = vpop.f32.mrf.mxu0
      %v5116 = vpop.f32.mrf.mxu0
      %v5117 = vadd.f32 %v4956, %v5116
      %v5118 = vpop.f32.mrf.mxu0
      %5119 = vmatprep.mubr.bf16.mxu0 %v3904
      %5120 = vmatmul.mubr.bf16.gmra.mxu0 %v3903
      %v5121 = vpop.f32.mrf.mxu0
      %v5122 = vadd.f32 %v4961, %v5121
      %v5123 = vpop.f32.mrf.mxu0
      %v5124 = vpop.f32.mrf.mxu0
      %v5125 = vadd.f32 %v4964, %v5124
      %v5126 = vpop.f32.mrf.mxu0
      %5127 = vmatprep.mubr.bf16.mxu0 %v3913
      %5128 = vmatmul.mubr.bf16.gmra.mxu0 %v3912
      %v5129 = vpop.f32.mrf.mxu0
      %v5130 = vadd.f32 %v4969, %v5129
      %v5131 = vpop.f32.mrf.mxu0
      %v5132 = vpop.f32.mrf.mxu0
      %v5133 = vadd.f32 %v4972, %v5132
      %v5134 = vpop.f32.mrf.mxu0
      %5135 = vmatprep.mubr.bf16.mxu0 %v3922
      %5136 = vmatmul.mubr.bf16.gmra.mxu0 %v3921
      %v5137 = vpop.f32.mrf.mxu0
      %v5138 = vadd.f32 %v4977, %v5137
      %v5139 = vpop.f32.mrf.mxu0
      %v5140 = vpop.f32.mrf.mxu0
      %v5141 = vadd.f32 %v4980, %v5140
      %v5142 = vpop.f32.mrf.mxu0
      %5143 = vdwg.mxu0
      %5144 = vmatprep.subr.bf16.mxu0 0
      %5145 = vmatpush1.bf16.msra.mxu0 %v4427
      %5146 = vmatprep.subr.bf16.mxu0 0
      %5147 = vmatpush1.bf16.msra.mxu0 %v4426
      %5148 = vmatprep.subr.bf16.mxu0 0
      %5149 = vmatpush1.bf16.msra.mxu0 %v4425
      %5150 = vmatprep.subr.bf16.mxu0 0
      %5151 = vmatpush1.bf16.msra.mxu0 %v4424
      %5152 = vmatprep.subr.bf16.mxu0 0
      %5153 = vmatpush1.bf16.msra.mxu0 %v4423
      %5154 = vmatprep.subr.bf16.mxu0 0
      %5155 = vmatpush1.bf16.msra.mxu0 %v4422
      %5156 = vmatprep.subr.bf16.mxu0 0
      %5157 = vmatpush1.bf16.msra.mxu0 %v4421
      %5158 = vmatprep.subr.bf16.mxu0 0
      %5159 = vmatpush1.bf16.msra.mxu0 %v4420
      %5160 = vmatprep.subr.bf16.mxu0 0
      %5161 = vmatpush2.bf16.msra.mxu0 0
      %5162 = vmatprep.subr.bf16.mxu0 0
      %5163 = vmatpush2.bf16.msra.mxu0 0
      %5164 = vmatprep.subr.bf16.mxu0 0
      %5165 = vmatpush2.bf16.msra.mxu0 0
      %5166 = vmatprep.subr.bf16.mxu0 0
      %5167 = vmatpush2.bf16.msra.mxu0 0
      %5168 = vmatprep.subr.bf16.mxu0 0
      %5169 = vmatpush2.bf16.msra.mxu0 0
      %5170 = vmatprep.subr.bf16.mxu0 0
      %5171 = vmatpush2.bf16.msra.mxu0 0
      %5172 = vmatprep.subr.bf16.mxu0 0
      %5173 = vmatpush2.bf16.msra.mxu0 0
      %5174 = vmatprep.subr.bf16.mxu0 0
      %5175 = vmatpush2.bf16.msra.mxu0 0
      %5176 = vmatprep.mubr.bf16.mxu0 0
      %5177 = vmatmul.mubr.bf16.gmra.mxu0 %v3788
      %v5178 = vpop.f32.mrf.mxu0
      %v5179 = vadd.f32 %v5018, %v5178
      %v5180 = vpop.f32.mrf.mxu0
      %v5181 = vpop.f32.mrf.mxu0
      %v5182 = vadd.f32 %v5021, %v5181
      %v5183 = vpop.f32.mrf.mxu0
      %5184 = vmatprep.mubr.bf16.mxu0 0
      %5185 = vmatmul.mubr.bf16.gmra.mxu0 %v3797
      %v5186 = vpop.f32.mrf.mxu0
      %v5187 = vadd.f32 %v5026, %v5186
      %v5188 = vpop.f32.mrf.mxu0
      %v5189 = vpop.f32.mrf.mxu0
      %v5190 = vadd.f32 %v5029, %v5189
      %v5191 = vpop.f32.mrf.mxu0
      %5192 = vmatprep.mubr.bf16.mxu0 0
      %5193 = vmatmul.mubr.bf16.gmra.mxu0 %v3806
      %v5194 = vpop.f32.mrf.mxu0
      %v5195 = vadd.f32 %v5034, %v5194
      %v5196 = vpop.f32.mrf.mxu0
      %v5197 = vpop.f32.mrf.mxu0
      %v5198 = vadd.f32 %v5037, %v5197
      %v5199 = vpop.f32.mrf.mxu0
      %5200 = vmatprep.mubr.bf16.mxu0 0
      %5201 = vmatmul.mubr.bf16.gmra.mxu0 %v3815
      %v5202 = vpop.f32.mrf.mxu0
      %v5203 = vadd.f32 %v5042, %v5202
      %v5204 = vpop.f32.mrf.mxu0
      %v5205 = vpop.f32.mrf.mxu0
      %v5206 = vadd.f32 %v5045, %v5205
      %v5207 = vpop.f32.mrf.mxu0
      %5208 = vmatprep.mubr.bf16.mxu0 0
      %5209 = vmatmul.mubr.bf16.gmra.mxu0 %v3824
      %v5210 = vpop.f32.mrf.mxu0
      %v5211 = vadd.f32 %v5050, %v5210
      %v5212 = vpop.f32.mrf.mxu0
      %v5213 = vpop.f32.mrf.mxu0
      %v5214 = vadd.f32 %v5053, %v5213
      %v5215 = vpop.f32.mrf.mxu0
      %5216 = vmatprep.mubr.bf16.mxu0 0
      %5217 = vmatmul.mubr.bf16.gmra.mxu0 %v3833
      %v5218 = vpop.f32.mrf.mxu0
      %v5219 = vadd.f32 %v5058, %v5218
      %v5220 = vpop.f32.mrf.mxu0
      %v5221 = vpop.f32.mrf.mxu0
      %v5222 = vadd.f32 %v5061, %v5221
      %v5223 = vpop.f32.mrf.mxu0
      %5224 = vmatprep.mubr.bf16.mxu0 0
      %5225 = vmatmul.mubr.bf16.gmra.mxu0 %v3842
      %v5226 = vpop.f32.mrf.mxu0
      %v5227 = vadd.f32 %v5066, %v5226
      %v5228 = vpop.f32.mrf.mxu0
      %v5229 = vpop.f32.mrf.mxu0
      %v5230 = vadd.f32 %v5069, %v5229
      %v5231 = vpop.f32.mrf.mxu0
      %5232 = vmatprep.mubr.bf16.mxu0 0
      %5233 = vmatmul.mubr.bf16.gmra.mxu0 %v3851
      %v5234 = vpop.f32.mrf.mxu0
      %v5235 = vadd.f32 %v5074, %v5234
      %v5236 = vpop.f32.mrf.mxu0
      %v5237 = vpop.f32.mrf.mxu0
      %v5238 = vadd.f32 %v5077, %v5237
      %v5239 = vpop.f32.mrf.mxu0
      %5240 = vmatprep.mubr.bf16.mxu0 0
      %5241 = vmatmul.mubr.bf16.gmra.mxu0 %v3860
      %v5242 = vpop.f32.mrf.mxu0
      %v5243 = vadd.f32 %v5082, %v5242
      %v5244 = vpop.f32.mrf.mxu0
      %v5245 = vpop.f32.mrf.mxu0
      %v5246 = vadd.f32 %v5085, %v5245
      %v5247 = vpop.f32.mrf.mxu0
      %5248 = vmatprep.mubr.bf16.mxu0 0
      %5249 = vmatmul.mubr.bf16.gmra.mxu0 %v3869
      %v5250 = vpop.f32.mrf.mxu0
      %v5251 = vadd.f32 %v5090, %v5250
      %v5252 = vpop.f32.mrf.mxu0
      %v5253 = vpop.f32.mrf.mxu0
      %v5254 = vadd.f32 %v5093, %v5253
      %v5255 = vpop.f32.mrf.mxu0
      %5256 = vmatprep.mubr.bf16.mxu0 0
      %5257 = vmatmul.mubr.bf16.gmra.mxu0 %v3878
      %v5258 = vpop.f32.mrf.mxu0
      %v5259 = vadd.f32 %v5098, %v5258
      %v5260 = vpop.f32.mrf.mxu0
      %v5261 = vpop.f32.mrf.mxu0
      %v5262 = vadd.f32 %v5101, %v5261
      %v5263 = vpop.f32.mrf.mxu0
      %5264 = vmatprep.mubr.bf16.mxu0 0
      %5265 = vmatmul.mubr.bf16.gmra.mxu0 %v3887
      %v5266 = vpop.f32.mrf.mxu0
      %v5267 = vadd.f32 %v5106, %v5266
      %v5268 = vpop.f32.mrf.mxu0
      %v5269 = vpop.f32.mrf.mxu0
      %v5270 = vadd.f32 %v5109, %v5269
      %v5271 = vpop.f32.mrf.mxu0
      %5272 = vmatprep.mubr.bf16.mxu0 0
      %5273 = vmatmul.mubr.bf16.gmra.mxu0 %v3896
      %v5274 = vpop.f32.mrf.mxu0
      %v5275 = vadd.f32 %v5114, %v5274
      %v5276 = vpop.f32.mrf.mxu0
      %v5277 = vpop.f32.mrf.mxu0
      %v5278 = vadd.f32 %v5117, %v5277
      %v5279 = vpop.f32.mrf.mxu0
      %5280 = vmatprep.mubr.bf16.mxu0 0
      %5281 = vmatmul.mubr.bf16.gmra.mxu0 %v3905
      %v5282 = vpop.f32.mrf.mxu0
      %v5283 = vadd.f32 %v5122, %v5282
      %v5284 = vpop.f32.mrf.mxu0
      %v5285 = vpop.f32.mrf.mxu0
      %v5286 = vadd.f32 %v5125, %v5285
      %v5287 = vpop.f32.mrf.mxu0
      %5288 = vmatprep.mubr.bf16.mxu0 0
      %5289 = vmatmul.mubr.bf16.gmra.mxu0 %v3914
      %v5290 = vpop.f32.mrf.mxu0
      %v5291 = vadd.f32 %v5130, %v5290
      %v5292 = vpop.f32.mrf.mxu0
      %v5293 = vpop.f32.mrf.mxu0
      %v5294 = vadd.f32 %v5133, %v5293
      %v5295 = vpop.f32.mrf.mxu0
      %5296 = vmatprep.mubr.bf16.mxu0 0
      %5297 = vmatmul.mubr.bf16.gmra.mxu0 %v3923
      %v5298 = vpop.f32.mrf.mxu0
      %v5299 = vadd.f32 %v5138, %v5298
      %v5300 = vpop.f32.mrf.mxu0
      %v5301 = vpop.f32.mrf.mxu0
      %v5302 = vadd.f32 %v5141, %v5301
      %v5303 = vpop.f32.mrf.mxu0
      %5304 = vdwg.mxu0
      %v5305 = vpack.c.bf16 %v5182, %v5179
      %v5306 = vpack.c.bf16 %v5190, %v5187
      %v5307 = vpack.c.bf16 %v5198, %v5195
      %v5308 = vpack.c.bf16 %v5206, %v5203
      %v5309 = vpack.c.bf16 %v5214, %v5211
      %v5310 = vpack.c.bf16 %v5222, %v5219
      %v5311 = vpack.c.bf16 %v5230, %v5227
      %v5312 = vpack.c.bf16 %v5238, %v5235
      %v5313 = vpack.c.bf16 %v5246, %v5243
      %v5314 = vpack.c.bf16 %v5254, %v5251
      %v5315 = vpack.c.bf16 %v5262, %v5259
      %v5316 = vpack.c.bf16 %v5270, %v5267
      %v5317 = vpack.c.bf16 %v5278, %v5275
      %v5318 = vpack.c.bf16 %v5286, %v5283
      %v5319 = vpack.c.bf16 %v5294, %v5291
      %v5320 = vpack.c.bf16 %v5302, %v5299
      %v5321 = vld [vmem:[%s7] sm:$0xf]
      %v5322 = vld [vmem:[%s7 + $0x4] sm:$0xf]
      %v5323 = vld [vmem:[%s7 + $0x8] sm:$0xf]
      %v5324 = vld [vmem:[%s7 + $0xc] sm:$0xf]
      %v5325 = vld [vmem:[%s7 + $0x10] sm:$0xf]
      %v5326 = vld [vmem:[%s7 + $0x14] sm:$0xf]
      %v5327 = vld [vmem:[%s7 + $0x18] sm:$0xf]
      %v5328 = vld [vmem:[%s7 + $0x1c] sm:$0xf]
      %v5329 = vld [vmem:[%s7 + $0x20] sm:$0xf]
      %v5330 = vld [vmem:[%s7 + $0x24] sm:$0xf]
      %v5331 = vld [vmem:[%s7 + $0x28] sm:$0xf]
      %v5332 = vld [vmem:[%s7 + $0x2c] sm:$0xf]
      %v5333 = vld [vmem:[%s7 + $0x30] sm:$0xf]
      %v5334 = vld [vmem:[%s7 + $0x34] sm:$0xf]
      %v5335 = vld [vmem:[%s7 + $0x38] sm:$0xf]
      %v5336 = vld [vmem:[%s7 + $0x3c] sm:$0xf]
      %v5337 = vld [vmem:[%s7 + $0x40] sm:$0xf]
      %v5338 = vld [vmem:[%s7 + $0x44] sm:$0xf]
      %v5339 = vld [vmem:[%s7 + $0x48] sm:$0xf]
      %v5340 = vld [vmem:[%s7 + $0x4c] sm:$0xf]
      %v5341 = vld [vmem:[%s7 + $0x50] sm:$0xf]
      %v5342 = vld [vmem:[%s7 + $0x54] sm:$0xf]
      %v5343 = vld [vmem:[%s7 + $0x58] sm:$0xf]
      %v5344 = vld [vmem:[%s7 + $0x5c] sm:$0xf]
      %v5345 = vld [vmem:[%s7 + $0x60] sm:$0xf]
      %v5346 = vld [vmem:[%s7 + $0x64] sm:$0xf]
      %v5347 = vld [vmem:[%s7 + $0x68] sm:$0xf]
      %v5348 = vld [vmem:[%s7 + $0x6c] sm:$0xf]
      %v5349 = vld [vmem:[%s7 + $0x70] sm:$0xf]
      %v5350 = vld [vmem:[%s7 + $0x74] sm:$0xf]
      %v5351 = vld [vmem:[%s7 + $0x78] sm:$0xf]
      %v5352 = vld [vmem:[%s7 + $0x7c] sm:$0xf]
      %v5353 = vld [vmem:[%s7 + $0x80] sm:$0xf]
      %v5354 = vld [vmem:[%s7 + $0x84] sm:$0xf]
      %v5355 = vld [vmem:[%s7 + $0x88] sm:$0xf]
      %v5356 = vld [vmem:[%s7 + $0x8c] sm:$0xf]
      %v5357 = vld [vmem:[%s7 + $0x90] sm:$0xf]
      %v5358 = vld [vmem:[%s7 + $0x94] sm:$0xf]
      %v5359 = vld [vmem:[%s7 + $0x98] sm:$0xf]
      %v5360 = vld [vmem:[%s7 + $0x9c] sm:$0xf]
      %v5361 = vld [vmem:[%s7 + $0xa0] sm:$0xf]
      %v5362 = vld [vmem:[%s7 + $0xa4] sm:$0xf]
      %v5363 = vld [vmem:[%s7 + $0xa8] sm:$0xf]
      %v5364 = vld [vmem:[%s7 + $0xac] sm:$0xf]
      %v5365 = vld [vmem:[%s7 + $0xb0] sm:$0xf]
      %v5366 = vld [vmem:[%s7 + $0xb4] sm:$0xf]
      %v5367 = vld [vmem:[%s7 + $0xb8] sm:$0xf]
      %v5368 = vld [vmem:[%s7 + $0xbc] sm:$0xf]
      %v5369 = vld [vmem:[%s7 + $0xc0] sm:$0xf]
      %v5370 = vld [vmem:[%s7 + $0xc4] sm:$0xf]
      %v5371 = vld [vmem:[%s7 + $0xc8] sm:$0xf]
      %v5372 = vld [vmem:[%s7 + $0xcc] sm:$0xf]
      %v5373 = vld [vmem:[%s7 + $0xd0] sm:$0xf]
      %v5374 = vld [vmem:[%s7 + $0xd4] sm:$0xf]
      %v5375 = vld [vmem:[%s7 + $0xd8] sm:$0xf]
      %v5376 = vld [vmem:[%s7 + $0xdc] sm:$0xf]
      %v5377 = vld [vmem:[%s7 + $0xe0] sm:$0xf]
      %v5378 = vld [vmem:[%s7 + $0xe4] sm:$0xf]
      %v5379 = vld [vmem:[%s7 + $0xe8] sm:$0xf]
      %v5380 = vld [vmem:[%s7 + $0xec] sm:$0xf]
      %v5381 = vld [vmem:[%s7 + $0xf0] sm:$0xf]
      %v5382 = vld [vmem:[%s7 + $0xf4] sm:$0xf]
      %v5383 = vld [vmem:[%s7 + $0xf8] sm:$0xf]
      %v5384 = vld [vmem:[%s7 + $0xfc] sm:$0xf]
      %v5385 = vld [vmem:[%s7 + $0x100] sm:$0xf]
      %v5386 = vld [vmem:[%s7 + $0x104] sm:$0xf]
      %v5387 = vld [vmem:[%s7 + $0x108] sm:$0xf]
      %v5388 = vld [vmem:[%s7 + $0x10c] sm:$0xf]
      %v5389 = vld [vmem:[%s7 + $0x110] sm:$0xf]
      %v5390 = vld [vmem:[%s7 + $0x114] sm:$0xf]
      %v5391 = vld [vmem:[%s7 + $0x118] sm:$0xf]
      %v5392 = vld [vmem:[%s7 + $0x11c] sm:$0xf]
      %v5393 = vld [vmem:[%s7 + $0x120] sm:$0xf]
      %v5394 = vld [vmem:[%s7 + $0x124] sm:$0xf]
      %v5395 = vld [vmem:[%s7 + $0x128] sm:$0xf]
      %v5396 = vld [vmem:[%s7 + $0x12c] sm:$0xf]
      %v5397 = vld [vmem:[%s7 + $0x130] sm:$0xf]
      %v5398 = vld [vmem:[%s7 + $0x134] sm:$0xf]
      %v5399 = vld [vmem:[%s7 + $0x138] sm:$0xf]
      %v5400 = vld [vmem:[%s7 + $0x13c] sm:$0xf]
      %v5401 = vld [vmem:[%s7 + $0x140] sm:$0xf]
      %v5402 = vld [vmem:[%s7 + $0x144] sm:$0xf]
      %v5403 = vld [vmem:[%s7 + $0x148] sm:$0xf]
      %v5404 = vld [vmem:[%s7 + $0x14c] sm:$0xf]
      %v5405 = vld [vmem:[%s7 + $0x150] sm:$0xf]
      %v5406 = vld [vmem:[%s7 + $0x154] sm:$0xf]
      %v5407 = vld [vmem:[%s7 + $0x158] sm:$0xf]
      %v5408 = vld [vmem:[%s7 + $0x15c] sm:$0xf]
      %v5409 = vld [vmem:[%s7 + $0x160] sm:$0xf]
      %v5410 = vld [vmem:[%s7 + $0x164] sm:$0xf]
      %v5411 = vld [vmem:[%s7 + $0x168] sm:$0xf]
      %v5412 = vld [vmem:[%s7 + $0x16c] sm:$0xf]
      %v5413 = vld [vmem:[%s7 + $0x170] sm:$0xf]
      %v5414 = vld [vmem:[%s7 + $0x174] sm:$0xf]
      %v5415 = vld [vmem:[%s7 + $0x178] sm:$0xf]
      %v5416 = vld [vmem:[%s7 + $0x17c] sm:$0xf]
      %v5417 = vld [vmem:[%s7 + $0x180] sm:$0xf]
      %v5418 = vld [vmem:[%s7 + $0x184] sm:$0xf]
      %v5419 = vld [vmem:[%s7 + $0x188] sm:$0xf]
      %v5420 = vld [vmem:[%s7 + $0x18c] sm:$0xf]
      %v5421 = vld [vmem:[%s7 + $0x190] sm:$0xf]
      %v5422 = vld [vmem:[%s7 + $0x194] sm:$0xf]
      %v5423 = vld [vmem:[%s7 + $0x198] sm:$0xf]
      %v5424 = vld [vmem:[%s7 + $0x19c] sm:$0xf]
      %v5425 = vld [vmem:[%s7 + $0x1a0] sm:$0xf]
      %v5426 = vld [vmem:[%s7 + $0x1a4] sm:$0xf]
      %v5427 = vld [vmem:[%s7 + $0x1a8] sm:$0xf]
      %v5428 = vld [vmem:[%s7 + $0x1ac] sm:$0xf]
      %v5429 = vld [vmem:[%s7 + $0x1b0] sm:$0xf]
      %v5430 = vld [vmem:[%s7 + $0x1b4] sm:$0xf]
      %v5431 = vld [vmem:[%s7 + $0x1b8] sm:$0xf]
      %v5432 = vld [vmem:[%s7 + $0x1bc] sm:$0xf]
      %v5433 = vld [vmem:[%s7 + $0x1c0] sm:$0xf]
      %v5434 = vld [vmem:[%s7 + $0x1c4] sm:$0xf]
      %v5435 = vld [vmem:[%s7 + $0x1c8] sm:$0xf]
      %v5436 = vld [vmem:[%s7 + $0x1cc] sm:$0xf]
      %v5437 = vld [vmem:[%s7 + $0x1d0] sm:$0xf]
      %v5438 = vld [vmem:[%s7 + $0x1d4] sm:$0xf]
      %v5439 = vld [vmem:[%s7 + $0x1d8] sm:$0xf]
      %v5440 = vld [vmem:[%s7 + $0x1dc] sm:$0xf]
      %v5441 = vld [vmem:[%s7 + $0x1e0] sm:$0xf]
      %v5442 = vld [vmem:[%s7 + $0x1e4] sm:$0xf]
      %v5443 = vld [vmem:[%s7 + $0x1e8] sm:$0xf]
      %v5444 = vld [vmem:[%s7 + $0x1ec] sm:$0xf]
      %v5445 = vld [vmem:[%s7 + $0x1f0] sm:$0xf]
      %v5446 = vld [vmem:[%s7 + $0x1f4] sm:$0xf]
      %v5447 = vld [vmem:[%s7 + $0x1f8] sm:$0xf]
      %v5448 = vld [vmem:[%s7 + $0x1fc] sm:$0xf]
      %v5577 = vunpack.c.l.b16 %v5321
      %v5578 = vunpack.c.l.b16 %v5322
      %v5579 = vunpack.c.l.b16 %v5323
      %v5580 = vunpack.c.l.b16 %v5324
      %v5581 = vunpack.c.l.b16 %v5325
      %v5582 = vunpack.c.l.b16 %v5326
      %v5583 = vunpack.c.l.b16 %v5327
      %v5584 = vunpack.c.l.b16 %v5328
      %v5585 = vunpack.c.l.b16 %v5329
      %v5586 = vunpack.c.l.b16 %v5330
      %v5587 = vunpack.c.l.b16 %v5331
      %v5588 = vunpack.c.l.b16 %v5332
      %v5589 = vunpack.c.l.b16 %v5333
      %v5590 = vunpack.c.l.b16 %v5334
      %v5591 = vunpack.c.l.b16 %v5335
      %v5592 = vunpack.c.l.b16 %v5336
      %v5593 = vunpack.c.l.b16 %v5337
      %v5594 = vunpack.c.l.b16 %v5338
      %v5595 = vunpack.c.l.b16 %v5339
      %v5596 = vunpack.c.l.b16 %v5340
      %v5597 = vunpack.c.l.b16 %v5341
      %v5598 = vunpack.c.l.b16 %v5342
      %v5599 = vunpack.c.l.b16 %v5343
      %v5600 = vunpack.c.l.b16 %v5344
      %v5601 = vunpack.c.l.b16 %v5345
      %v5602 = vunpack.c.l.b16 %v5346
      %v5603 = vunpack.c.l.b16 %v5347
      %v5604 = vunpack.c.l.b16 %v5348
      %v5605 = vunpack.c.l.b16 %v5349
      %v5606 = vunpack.c.l.b16 %v5350
      %v5607 = vunpack.c.l.b16 %v5351
      %v5608 = vunpack.c.l.b16 %v5352
      %v5609 = vunpack.c.l.b16 %v5353
      %v5610 = vunpack.c.l.b16 %v5354
      %v5611 = vunpack.c.l.b16 %v5355
      %v5612 = vunpack.c.l.b16 %v5356
      %v5613 = vunpack.c.l.b16 %v5357
      %v5614 = vunpack.c.l.b16 %v5358
      %v5615 = vunpack.c.l.b16 %v5359
      %v5616 = vunpack.c.l.b16 %v5360
      %v5617 = vunpack.c.l.b16 %v5361
      %v5618 = vunpack.c.l.b16 %v5362
      %v5619 = vunpack.c.l.b16 %v5363
      %v5620 = vunpack.c.l.b16 %v5364
      %v5621 = vunpack.c.l.b16 %v5365
      %v5622 = vunpack.c.l.b16 %v5366
      %v5623 = vunpack.c.l.b16 %v5367
      %v5624 = vunpack.c.l.b16 %v5368
      %v5625 = vunpack.c.l.b16 %v5369
      %v5626 = vunpack.c.l.b16 %v5370
      %v5627 = vunpack.c.l.b16 %v5371
      %v5628 = vunpack.c.l.b16 %v5372
      %v5629 = vunpack.c.l.b16 %v5373
      %v5630 = vunpack.c.l.b16 %v5374
      %v5631 = vunpack.c.l.b16 %v5375
      %v5632 = vunpack.c.l.b16 %v5376
      %v5633 = vunpack.c.l.b16 %v5377
      %v5634 = vunpack.c.l.b16 %v5378
      %v5635 = vunpack.c.l.b16 %v5379
      %v5636 = vunpack.c.l.b16 %v5380
      %v5637 = vunpack.c.l.b16 %v5381
      %v5638 = vunpack.c.l.b16 %v5382
      %v5639 = vunpack.c.l.b16 %v5383
      %v5640 = vunpack.c.l.b16 %v5384
      %v5641 = vunpack.c.l.b16 %v5385
      %v5642 = vunpack.c.l.b16 %v5386
      %v5643 = vunpack.c.l.b16 %v5387
      %v5644 = vunpack.c.l.b16 %v5388
      %v5645 = vunpack.c.l.b16 %v5389
      %v5646 = vunpack.c.l.b16 %v5390
      %v5647 = vunpack.c.l.b16 %v5391
      %v5648 = vunpack.c.l.b16 %v5392
      %v5649 = vunpack.c.l.b16 %v5393
      %v5650 = vunpack.c.l.b16 %v5394
      %v5651 = vunpack.c.l.b16 %v5395
      %v5652 = vunpack.c.l.b16 %v5396
      %v5653 = vunpack.c.l.b16 %v5397
      %v5654 = vunpack.c.l.b16 %v5398
      %v5655 = vunpack.c.l.b16 %v5399
      %v5656 = vunpack.c.l.b16 %v5400
      %v5657 = vunpack.c.l.b16 %v5401
      %v5658 = vunpack.c.l.b16 %v5402
      %v5659 = vunpack.c.l.b16 %v5403
      %v5660 = vunpack.c.l.b16 %v5404
      %v5661 = vunpack.c.l.b16 %v5405
      %v5662 = vunpack.c.l.b16 %v5406
      %v5663 = vunpack.c.l.b16 %v5407
      %v5664 = vunpack.c.l.b16 %v5408
      %v5665 = vunpack.c.l.b16 %v5409
      %v5666 = vunpack.c.l.b16 %v5410
      %v5667 = vunpack.c.l.b16 %v5411
      %v5668 = vunpack.c.l.b16 %v5412
      %v5669 = vunpack.c.l.b16 %v5413
      %v5670 = vunpack.c.l.b16 %v5414
      %v5671 = vunpack.c.l.b16 %v5415
      %v5672 = vunpack.c.l.b16 %v5416
      %v5673 = vunpack.c.l.b16 %v5417
      %v5674 = vunpack.c.l.b16 %v5418
      %v5675 = vunpack.c.l.b16 %v5419
      %v5676 = vunpack.c.l.b16 %v5420
      %v5677 = vunpack.c.l.b16 %v5421
      %v5678 = vunpack.c.l.b16 %v5422
      %v5679 = vunpack.c.l.b16 %v5423
      %v5680 = vunpack.c.l.b16 %v5424
      %v5681 = vunpack.c.l.b16 %v5425
      %v5682 = vunpack.c.l.b16 %v5426
      %v5683 = vunpack.c.l.b16 %v5427
      %v5684 = vunpack.c.l.b16 %v5428
      %v5685 = vunpack.c.l.b16 %v5429
      %v5686 = vunpack.c.l.b16 %v5430
      %v5687 = vunpack.c.l.b16 %v5431
      %v5688 = vunpack.c.l.b16 %v5432
      %v5689 = vunpack.c.l.b16 %v5433
      %v5690 = vunpack.c.l.b16 %v5434
      %v5691 = vunpack.c.l.b16 %v5435
      %v5692 = vunpack.c.l.b16 %v5436
      %v5693 = vunpack.c.l.b16 %v5437
      %v5694 = vunpack.c.l.b16 %v5438
      %v5695 = vunpack.c.l.b16 %v5439
      %v5696 = vunpack.c.l.b16 %v5440
      %v5697 = vunpack.c.l.b16 %v5441
      %v5698 = vunpack.c.l.b16 %v5442
      %v5699 = vunpack.c.l.b16 %v5443
      %v5700 = vunpack.c.l.b16 %v5444
      %v5701 = vunpack.c.l.b16 %v5445
      %v5702 = vunpack.c.l.b16 %v5446
      %v5703 = vunpack.c.l.b16 %v5447
      %v5704 = vunpack.c.l.b16 %v5448
      %v5705 = vpack.c.b16 %v5578, %v5577
      %v5706 = vpack.c.b16 %v5580, %v5579
      %v5707 = vpack.c.b16 %v5582, %v5581
      %v5708 = vpack.c.b16 %v5584, %v5583
      %v5709 = vpack.c.b16 %v5586, %v5585
      %v5710 = vpack.c.b16 %v5588, %v5587
      %v5711 = vpack.c.b16 %v5590, %v5589
      %v5712 = vpack.c.b16 %v5592, %v5591
      %v5713 = vpack.c.b16 %v5594, %v5593
      %v5714 = vpack.c.b16 %v5596, %v5595
      %v5715 = vpack.c.b16 %v5598, %v5597
      %v5716 = vpack.c.b16 %v5600, %v5599
      %v5717 = vpack.c.b16 %v5602, %v5601
      %v5718 = vpack.c.b16 %v5604, %v5603
      %v5719 = vpack.c.b16 %v5606, %v5605
      %v5720 = vpack.c.b16 %v5608, %v5607
      %v5721 = vpack.c.b16 %v5610, %v5609
      %v5722 = vpack.c.b16 %v5612, %v5611
      %v5723 = vpack.c.b16 %v5614, %v5613
      %v5724 = vpack.c.b16 %v5616, %v5615
      %v5725 = vpack.c.b16 %v5618, %v5617
      %v5726 = vpack.c.b16 %v5620, %v5619
      %v5727 = vpack.c.b16 %v5622, %v5621
      %v5728 = vpack.c.b16 %v5624, %v5623
      %v5729 = vpack.c.b16 %v5626, %v5625
      %v5730 = vpack.c.b16 %v5628, %v5627
      %v5731 = vpack.c.b16 %v5630, %v5629
      %v5732 = vpack.c.b16 %v5632, %v5631
      %v5733 = vpack.c.b16 %v5634, %v5633
      %v5734 = vpack.c.b16 %v5636, %v5635
      %v5735 = vpack.c.b16 %v5638, %v5637
      %v5736 = vpack.c.b16 %v5640, %v5639
      %v5737 = vpack.c.b16 %v5642, %v5641
      %v5738 = vpack.c.b16 %v5644, %v5643
      %v5739 = vpack.c.b16 %v5646, %v5645
      %v5740 = vpack.c.b16 %v5648, %v5647
      %v5741 = vpack.c.b16 %v5650, %v5649
      %v5742 = vpack.c.b16 %v5652, %v5651
      %v5743 = vpack.c.b16 %v5654, %v5653
      %v5744 = vpack.c.b16 %v5656, %v5655
      %v5745 = vpack.c.b16 %v5658, %v5657
      %v5746 = vpack.c.b16 %v5660, %v5659
      %v5747 = vpack.c.b16 %v5662, %v5661
      %v5748 = vpack.c.b16 %v5664, %v5663
      %v5749 = vpack.c.b16 %v5666, %v5665
      %v5750 = vpack.c.b16 %v5668, %v5667
      %v5751 = vpack.c.b16 %v5670, %v5669
      %v5752 = vpack.c.b16 %v5672, %v5671
      %v5753 = vpack.c.b16 %v5674, %v5673
      %v5754 = vpack.c.b16 %v5676, %v5675
      %v5755 = vpack.c.b16 %v5678, %v5677
      %v5756 = vpack.c.b16 %v5680, %v5679
      %v5757 = vpack.c.b16 %v5682, %v5681
      %v5758 = vpack.c.b16 %v5684, %v5683
      %v5759 = vpack.c.b16 %v5686, %v5685
      %v5760 = vpack.c.b16 %v5688, %v5687
      %v5761 = vpack.c.b16 %v5690, %v5689
      %v5762 = vpack.c.b16 %v5692, %v5691
      %v5763 = vpack.c.b16 %v5694, %v5693
      %v5764 = vpack.c.b16 %v5696, %v5695
      %v5765 = vpack.c.b16 %v5698, %v5697
      %v5766 = vpack.c.b16 %v5700, %v5699
      %v5767 = vpack.c.b16 %v5702, %v5701
      %v5768 = vpack.c.b16 %v5704, %v5703
      %5833 = vmatprep.subr.bf16.mxu0 0
      %5834 = vmatpush1.bf16.xpose.msra.mxu0 %v5312
      %5835 = vmatprep.subr.bf16.mxu0 0
      %5836 = vmatpush1.bf16.xpose.msra.mxu0 %v5311
      %5837 = vmatprep.subr.bf16.mxu0 0
      %5838 = vmatpush1.bf16.xpose.msra.mxu0 %v5310
      %5839 = vmatprep.subr.bf16.mxu0 0
      %5840 = vmatpush1.bf16.xpose.msra.mxu0 %v5309
      %5841 = vmatprep.subr.bf16.mxu0 0
      %5842 = vmatpush1.bf16.xpose.msra.mxu0 %v5308
      %5843 = vmatprep.subr.bf16.mxu0 0
      %5844 = vmatpush1.bf16.xpose.msra.mxu0 %v5307
      %5845 = vmatprep.subr.bf16.mxu0 0
      %5846 = vmatpush1.bf16.xpose.msra.mxu0 %v5306
      %5847 = vmatprep.subr.bf16.mxu0 0
      %5848 = vmatpush1.bf16.xpose.msra.mxu0 %v5305
      %5849 = vmatprep.subr.bf16.mxu0 0
      %5850 = vmatpush2.bf16.xpose.msra.mxu0 %v5320
      %5851 = vmatprep.subr.bf16.mxu0 0
      %5852 = vmatpush2.bf16.xpose.msra.mxu0 %v5319
      %5853 = vmatprep.subr.bf16.mxu0 0
      %5854 = vmatpush2.bf16.xpose.msra.mxu0 %v5318
      %5855 = vmatprep.subr.bf16.mxu0 0
      %5856 = vmatpush2.bf16.xpose.msra.mxu0 %v5317
      %5857 = vmatprep.subr.bf16.mxu0 0
      %5858 = vmatpush2.bf16.xpose.msra.mxu0 %v5316
      %5859 = vmatprep.subr.bf16.mxu0 0
      %5860 = vmatpush2.bf16.xpose.msra.mxu0 %v5315
      %5861 = vmatprep.subr.bf16.mxu0 0
      %5862 = vmatpush2.bf16.xpose.msra.mxu0 %v5314
      %5863 = vmatprep.subr.bf16.mxu0 0
      %5864 = vmatpush2.bf16.xpose.msra.mxu0 %v5313
      %5865 = vmatprep.mubr.bf16.mxu0 0
      %5866 = vmatmul.mubr.bf16.gmra.mxu0 %v5705
      %v5867 = vpop.f32.mrf.mxu0
      %v5868 = vadd.f32 0.0, %v5867
      %v5869 = vpop.f32.mrf.mxu0
      %v5870 = vadd.f32 0.0, %v5869
      %v5871 = vpop.f32.mrf.mxu0
      %v5872 = vadd.f32 0.0, %v5871
      %v5873 = vpop.f32.mrf.mxu0
      %v5874 = vadd.f32 0.0, %v5873
      %5875 = vmatprep.mubr.bf16.mxu0 0
      %5876 = vmatmul.mubr.bf16.gmra.mxu0 %v5706
      %v5877 = vpop.f32.mrf.mxu0
      %v5878 = vadd.f32 0.0, %v5877
      %v5879 = vpop.f32.mrf.mxu0
      %v5880 = vadd.f32 0.0, %v5879
      %v5881 = vpop.f32.mrf.mxu0
      %v5882 = vadd.f32 0.0, %v5881
      %v5883 = vpop.f32.mrf.mxu0
      %v5884 = vadd.f32 0.0, %v5883
      %5885 = vmatprep.mubr.bf16.mxu0 0
      %5886 = vmatmul.mubr.bf16.gmra.mxu0 %v5707
      %v5887 = vpop.f32.mrf.mxu0
      %v5888 = vadd.f32 0.0, %v5887
      %v5889 = vpop.f32.mrf.mxu0
      %v5890 = vadd.f32 0.0, %v5889
      %v5891 = vpop.f32.mrf.mxu0
      %v5892 = vadd.f32 0.0, %v5891
      %v5893 = vpop.f32.mrf.mxu0
      %v5894 = vadd.f32 0.0, %v5893
      %5895 = vmatprep.mubr.bf16.mxu0 0
      %5896 = vmatmul.mubr.bf16.gmra.mxu0 %v5708
      %v5897 = vpop.f32.mrf.mxu0
      %v5898 = vadd.f32 0.0, %v5897
      %v5899 = vpop.f32.mrf.mxu0
      %v5900 = vadd.f32 0.0, %v5899
      %v5901 = vpop.f32.mrf.mxu0
      %v5902 = vadd.f32 0.0, %v5901
      %v5903 = vpop.f32.mrf.mxu0
      %v5904 = vadd.f32 0.0, %v5903
      %5905 = vmatprep.mubr.bf16.mxu0 0
      %5906 = vmatmul.mubr.bf16.gmra.mxu0 %v5709
      %v5907 = vpop.f32.mrf.mxu0
      %v5908 = vadd.f32 0.0, %v5907
      %v5909 = vpop.f32.mrf.mxu0
      %v5910 = vadd.f32 0.0, %v5909
      %v5911 = vpop.f32.mrf.mxu0
      %v5912 = vadd.f32 0.0, %v5911
      %v5913 = vpop.f32.mrf.mxu0
      %v5914 = vadd.f32 0.0, %v5913
      %5915 = vmatprep.mubr.bf16.mxu0 0
      %5916 = vmatmul.mubr.bf16.gmra.mxu0 %v5710
      %v5917 = vpop.f32.mrf.mxu0
      %v5918 = vadd.f32 0.0, %v5917
      %v5919 = vpop.f32.mrf.mxu0
      %v5920 = vadd.f32 0.0, %v5919
      %v5921 = vpop.f32.mrf.mxu0
      %v5922 = vadd.f32 0.0, %v5921
      %v5923 = vpop.f32.mrf.mxu0
      %v5924 = vadd.f32 0.0, %v5923
      %5925 = vmatprep.mubr.bf16.mxu0 0
      %5926 = vmatmul.mubr.bf16.gmra.mxu0 %v5711
      %v5927 = vpop.f32.mrf.mxu0
      %v5928 = vadd.f32 0.0, %v5927
      %v5929 = vpop.f32.mrf.mxu0
      %v5930 = vadd.f32 0.0, %v5929
      %v5931 = vpop.f32.mrf.mxu0
      %v5932 = vadd.f32 0.0, %v5931
      %v5933 = vpop.f32.mrf.mxu0
      %v5934 = vadd.f32 0.0, %v5933
      %5935 = vmatprep.mubr.bf16.mxu0 0
      %5936 = vmatmul.mubr.bf16.gmra.mxu0 %v5712
      %v5937 = vpop.f32.mrf.mxu0
      %v5938 = vadd.f32 0.0, %v5937
      %v5939 = vpop.f32.mrf.mxu0
      %v5940 = vadd.f32 0.0, %v5939
      %v5941 = vpop.f32.mrf.mxu0
      %v5942 = vadd.f32 0.0, %v5941
      %v5943 = vpop.f32.mrf.mxu0
      %v5944 = vadd.f32 0.0, %v5943
      %5945 = vmatprep.mubr.bf16.mxu0 0
      %5946 = vmatmul.mubr.bf16.gmra.mxu0 %v5713
      %v5947 = vpop.f32.mrf.mxu0
      %v5948 = vadd.f32 0.0, %v5947
      %v5949 = vpop.f32.mrf.mxu0
      %v5950 = vadd.f32 0.0, %v5949
      %v5951 = vpop.f32.mrf.mxu0
      %v5952 = vadd.f32 0.0, %v5951
      %v5953 = vpop.f32.mrf.mxu0
      %v5954 = vadd.f32 0.0, %v5953
      %5955 = vmatprep.mubr.bf16.mxu0 0
      %5956 = vmatmul.mubr.bf16.gmra.mxu0 %v5714
      %v5957 = vpop.f32.mrf.mxu0
      %v5958 = vadd.f32 0.0, %v5957
      %v5959 = vpop.f32.mrf.mxu0
      %v5960 = vadd.f32 0.0, %v5959
      %v5961 = vpop.f32.mrf.mxu0
      %v5962 = vadd.f32 0.0, %v5961
      %v5963 = vpop.f32.mrf.mxu0
      %v5964 = vadd.f32 0.0, %v5963
      %5965 = vmatprep.mubr.bf16.mxu0 0
      %5966 = vmatmul.mubr.bf16.gmra.mxu0 %v5715
      %v5967 = vpop.f32.mrf.mxu0
      %v5968 = vadd.f32 0.0, %v5967
      %v5969 = vpop.f32.mrf.mxu0
      %v5970 = vadd.f32 0.0, %v5969
      %v5971 = vpop.f32.mrf.mxu0
      %v5972 = vadd.f32 0.0, %v5971
      %v5973 = vpop.f32.mrf.mxu0
      %v5974 = vadd.f32 0.0, %v5973
      %5975 = vmatprep.mubr.bf16.mxu0 0
      %5976 = vmatmul.mubr.bf16.gmra.mxu0 %v5716
      %v5977 = vpop.f32.mrf.mxu0
      %v5978 = vadd.f32 0.0, %v5977
      %v5979 = vpop.f32.mrf.mxu0
      %v5980 = vadd.f32 0.0, %v5979
      %v5981 = vpop.f32.mrf.mxu0
      %v5982 = vadd.f32 0.0, %v5981
      %v5983 = vpop.f32.mrf.mxu0
      %v5984 = vadd.f32 0.0, %v5983
      %5985 = vmatprep.mubr.bf16.mxu0 0
      %5986 = vmatmul.mubr.bf16.gmra.mxu0 %v5717
      %v5987 = vpop.f32.mrf.mxu0
      %v5988 = vadd.f32 0.0, %v5987
      %v5989 = vpop.f32.mrf.mxu0
      %v5990 = vadd.f32 0.0, %v5989
      %v5991 = vpop.f32.mrf.mxu0
      %v5992 = vadd.f32 0.0, %v5991
      %v5993 = vpop.f32.mrf.mxu0
      %v5994 = vadd.f32 0.0, %v5993
      %5995 = vmatprep.mubr.bf16.mxu0 0
      %5996 = vmatmul.mubr.bf16.gmra.mxu0 %v5718
      %v5997 = vpop.f32.mrf.mxu0
      %v5998 = vadd.f32 0.0, %v5997
      %v5999 = vpop.f32.mrf.mxu0
      %v6000 = vadd.f32 0.0, %v5999
      %v6001 = vpop.f32.mrf.mxu0
      %v6002 = vadd.f32 0.0, %v6001
      %v6003 = vpop.f32.mrf.mxu0
      %v6004 = vadd.f32 0.0, %v6003
      %6005 = vmatprep.mubr.bf16.mxu0 0
      %6006 = vmatmul.mubr.bf16.gmra.mxu0 %v5719
      %v6007 = vpop.f32.mrf.mxu0
      %v6008 = vadd.f32 0.0, %v6007
      %v6009 = vpop.f32.mrf.mxu0
      %v6010 = vadd.f32 0.0, %v6009
      %v6011 = vpop.f32.mrf.mxu0
      %v6012 = vadd.f32 0.0, %v6011
      %v6013 = vpop.f32.mrf.mxu0
      %v6014 = vadd.f32 0.0, %v6013
      %6015 = vmatprep.mubr.bf16.mxu0 0
      %6016 = vmatmul.mubr.bf16.gmra.mxu0 %v5720
      %v6017 = vpop.f32.mrf.mxu0
      %v6018 = vadd.f32 0.0, %v6017
      %v6019 = vpop.f32.mrf.mxu0
      %v6020 = vadd.f32 0.0, %v6019
      %v6021 = vpop.f32.mrf.mxu0
      %v6022 = vadd.f32 0.0, %v6021
      %v6023 = vpop.f32.mrf.mxu0
      %v6024 = vadd.f32 0.0, %v6023
      %6025 = vmatprep.mubr.bf16.mxu0 0
      %6026 = vmatmul.mubr.bf16.gmra.mxu0 %v5721
      %v6027 = vpop.f32.mrf.mxu0
      %v6028 = vadd.f32 0.0, %v6027
      %v6029 = vpop.f32.mrf.mxu0
      %v6030 = vadd.f32 0.0, %v6029
      %v6031 = vpop.f32.mrf.mxu0
      %v6032 = vadd.f32 0.0, %v6031
      %v6033 = vpop.f32.mrf.mxu0
      %v6034 = vadd.f32 0.0, %v6033
      %6035 = vmatprep.mubr.bf16.mxu0 0
      %6036 = vmatmul.mubr.bf16.gmra.mxu0 %v5722
      %v6037 = vpop.f32.mrf.mxu0
      %v6038 = vadd.f32 0.0, %v6037
      %v6039 = vpop.f32.mrf.mxu0
      %v6040 = vadd.f32 0.0, %v6039
      %v6041 = vpop.f32.mrf.mxu0
      %v6042 = vadd.f32 0.0, %v6041
      %v6043 = vpop.f32.mrf.mxu0
      %v6044 = vadd.f32 0.0, %v6043
      %6045 = vmatprep.mubr.bf16.mxu0 0
      %6046 = vmatmul.mubr.bf16.gmra.mxu0 %v5723
      %v6047 = vpop.f32.mrf.mxu0
      %v6048 = vadd.f32 0.0, %v6047
      %v6049 = vpop.f32.mrf.mxu0
      %v6050 = vadd.f32 0.0, %v6049
      %v6051 = vpop.f32.mrf.mxu0
      %v6052 = vadd.f32 0.0, %v6051
      %v6053 = vpop.f32.mrf.mxu0
      %v6054 = vadd.f32 0.0, %v6053
      %6055 = vmatprep.mubr.bf16.mxu0 0
      %6056 = vmatmul.mubr.bf16.gmra.mxu0 %v5724
      %v6057 = vpop.f32.mrf.mxu0
      %v6058 = vadd.f32 0.0, %v6057
      %v6059 = vpop.f32.mrf.mxu0
      %v6060 = vadd.f32 0.0, %v6059
      %v6061 = vpop.f32.mrf.mxu0
      %v6062 = vadd.f32 0.0, %v6061
      %v6063 = vpop.f32.mrf.mxu0
      %v6064 = vadd.f32 0.0, %v6063
      %6065 = vmatprep.mubr.bf16.mxu0 0
      %6066 = vmatmul.mubr.bf16.gmra.mxu0 %v5725
      %v6067 = vpop.f32.mrf.mxu0
      %v6068 = vadd.f32 0.0, %v6067
      %v6069 = vpop.f32.mrf.mxu0
      %v6070 = vadd.f32 0.0, %v6069
      %v6071 = vpop.f32.mrf.mxu0
      %v6072 = vadd.f32 0.0, %v6071
      %v6073 = vpop.f32.mrf.mxu0
      %v6074 = vadd.f32 0.0, %v6073
      %6075 = vmatprep.mubr.bf16.mxu0 0
      %6076 = vmatmul.mubr.bf16.gmra.mxu0 %v5726
      %v6077 = vpop.f32.mrf.mxu0
      %v6078 = vadd.f32 0.0, %v6077
      %v6079 = vpop.f32.mrf.mxu0
      %v6080 = vadd.f32 0.0, %v6079
      %v6081 = vpop.f32.mrf.mxu0
      %v6082 = vadd.f32 0.0, %v6081
      %v6083 = vpop.f32.mrf.mxu0
      %v6084 = vadd.f32 0.0, %v6083
      %6085 = vmatprep.mubr.bf16.mxu0 0
      %6086 = vmatmul.mubr.bf16.gmra.mxu0 %v5727
      %v6087 = vpop.f32.mrf.mxu0
      %v6088 = vadd.f32 0.0, %v6087
      %v6089 = vpop.f32.mrf.mxu0
      %v6090 = vadd.f32 0.0, %v6089
      %v6091 = vpop.f32.mrf.mxu0
      %v6092 = vadd.f32 0.0, %v6091
      %v6093 = vpop.f32.mrf.mxu0
      %v6094 = vadd.f32 0.0, %v6093
      %6095 = vmatprep.mubr.bf16.mxu0 0
      %6096 = vmatmul.mubr.bf16.gmra.mxu0 %v5728
      %v6097 = vpop.f32.mrf.mxu0
      %v6098 = vadd.f32 0.0, %v6097
      %v6099 = vpop.f32.mrf.mxu0
      %v6100 = vadd.f32 0.0, %v6099
      %v6101 = vpop.f32.mrf.mxu0
      %v6102 = vadd.f32 0.0, %v6101
      %v6103 = vpop.f32.mrf.mxu0
      %v6104 = vadd.f32 0.0, %v6103
      %6105 = vmatprep.mubr.bf16.mxu0 0
      %6106 = vmatmul.mubr.bf16.gmra.mxu0 %v5729
      %v6107 = vpop.f32.mrf.mxu0
      %v6108 = vadd.f32 0.0, %v6107
      %v6109 = vpop.f32.mrf.mxu0
      %v6110 = vadd.f32 0.0, %v6109
      %v6111 = vpop.f32.mrf.mxu0
      %v6112 = vadd.f32 0.0, %v6111
      %v6113 = vpop.f32.mrf.mxu0
      %v6114 = vadd.f32 0.0, %v6113
      %6115 = vmatprep.mubr.bf16.mxu0 0
      %6116 = vmatmul.mubr.bf16.gmra.mxu0 %v5730
      %v6117 = vpop.f32.mrf.mxu0
      %v6118 = vadd.f32 0.0, %v6117
      %v6119 = vpop.f32.mrf.mxu0
      %v6120 = vadd.f32 0.0, %v6119
      %v6121 = vpop.f32.mrf.mxu0
      %v6122 = vadd.f32 0.0, %v6121
      %v6123 = vpop.f32.mrf.mxu0
      %v6124 = vadd.f32 0.0, %v6123
      %6125 = vmatprep.mubr.bf16.mxu0 0
      %6126 = vmatmul.mubr.bf16.gmra.mxu0 %v5731
      %v6127 = vpop.f32.mrf.mxu0
      %v6128 = vadd.f32 0.0, %v6127
      %v6129 = vpop.f32.mrf.mxu0
      %v6130 = vadd.f32 0.0, %v6129
      %v6131 = vpop.f32.mrf.mxu0
      %v6132 = vadd.f32 0.0, %v6131
      %v6133 = vpop.f32.mrf.mxu0
      %v6134 = vadd.f32 0.0, %v6133
      %6135 = vmatprep.mubr.bf16.mxu0 0
      %6136 = vmatmul.mubr.bf16.gmra.mxu0 %v5732
      %v6137 = vpop.f32.mrf.mxu0
      %v6138 = vadd.f32 0.0, %v6137
      %v6139 = vpop.f32.mrf.mxu0
      %v6140 = vadd.f32 0.0, %v6139
      %v6141 = vpop.f32.mrf.mxu0
      %v6142 = vadd.f32 0.0, %v6141
      %v6143 = vpop.f32.mrf.mxu0
      %v6144 = vadd.f32 0.0, %v6143
      %6145 = vmatprep.mubr.bf16.mxu0 0
      %6146 = vmatmul.mubr.bf16.gmra.mxu0 %v5733
      %v6147 = vpop.f32.mrf.mxu0
      %v6148 = vadd.f32 0.0, %v6147
      %v6149 = vpop.f32.mrf.mxu0
      %v6150 = vadd.f32 0.0, %v6149
      %v6151 = vpop.f32.mrf.mxu0
      %v6152 = vadd.f32 0.0, %v6151
      %v6153 = vpop.f32.mrf.mxu0
      %v6154 = vadd.f32 0.0, %v6153
      %6155 = vmatprep.mubr.bf16.mxu0 0
      %6156 = vmatmul.mubr.bf16.gmra.mxu0 %v5734
      %v6157 = vpop.f32.mrf.mxu0
      %v6158 = vadd.f32 0.0, %v6157
      %v6159 = vpop.f32.mrf.mxu0
      %v6160 = vadd.f32 0.0, %v6159
      %v6161 = vpop.f32.mrf.mxu0
      %v6162 = vadd.f32 0.0, %v6161
      %v6163 = vpop.f32.mrf.mxu0
      %v6164 = vadd.f32 0.0, %v6163
      %6165 = vmatprep.mubr.bf16.mxu0 0
      %6166 = vmatmul.mubr.bf16.gmra.mxu0 %v5735
      %v6167 = vpop.f32.mrf.mxu0
      %v6168 = vadd.f32 0.0, %v6167
      %v6169 = vpop.f32.mrf.mxu0
      %v6170 = vadd.f32 0.0, %v6169
      %v6171 = vpop.f32.mrf.mxu0
      %v6172 = vadd.f32 0.0, %v6171
      %v6173 = vpop.f32.mrf.mxu0
      %v6174 = vadd.f32 0.0, %v6173
      %6175 = vmatprep.mubr.bf16.mxu0 0
      %6176 = vmatmul.mubr.bf16.gmra.mxu0 %v5736
      %v6177 = vpop.f32.mrf.mxu0
      %v6178 = vadd.f32 0.0, %v6177
      %v6179 = vpop.f32.mrf.mxu0
      %v6180 = vadd.f32 0.0, %v6179
      %v6181 = vpop.f32.mrf.mxu0
      %v6182 = vadd.f32 0.0, %v6181
      %v6183 = vpop.f32.mrf.mxu0
      %v6184 = vadd.f32 0.0, %v6183
      %6185 = vmatprep.mubr.bf16.mxu0 0
      %6186 = vmatmul.mubr.bf16.gmra.mxu0 %v5737
      %v6187 = vpop.f32.mrf.mxu0
      %v6188 = vadd.f32 0.0, %v6187
      %v6189 = vpop.f32.mrf.mxu0
      %v6190 = vadd.f32 0.0, %v6189
      %v6191 = vpop.f32.mrf.mxu0
      %v6192 = vadd.f32 0.0, %v6191
      %v6193 = vpop.f32.mrf.mxu0
      %v6194 = vadd.f32 0.0, %v6193
      %6195 = vmatprep.mubr.bf16.mxu0 0
      %6196 = vmatmul.mubr.bf16.gmra.mxu0 %v5738
      %v6197 = vpop.f32.mrf.mxu0
      %v6198 = vadd.f32 0.0, %v6197
      %v6199 = vpop.f32.mrf.mxu0
      %v6200 = vadd.f32 0.0, %v6199
      %v6201 = vpop.f32.mrf.mxu0
      %v6202 = vadd.f32 0.0, %v6201
      %v6203 = vpop.f32.mrf.mxu0
      %v6204 = vadd.f32 0.0, %v6203
      %6205 = vmatprep.mubr.bf16.mxu0 0
      %6206 = vmatmul.mubr.bf16.gmra.mxu0 %v5739
      %v6207 = vpop.f32.mrf.mxu0
      %v6208 = vadd.f32 0.0, %v6207
      %v6209 = vpop.f32.mrf.mxu0
      %v6210 = vadd.f32 0.0, %v6209
      %v6211 = vpop.f32.mrf.mxu0
      %v6212 = vadd.f32 0.0, %v6211
      %v6213 = vpop.f32.mrf.mxu0
      %v6214 = vadd.f32 0.0, %v6213
      %6215 = vmatprep.mubr.bf16.mxu0 0
      %6216 = vmatmul.mubr.bf16.gmra.mxu0 %v5740
      %v6217 = vpop.f32.mrf.mxu0
      %v6218 = vadd.f32 0.0, %v6217
      %v6219 = vpop.f32.mrf.mxu0
      %v6220 = vadd.f32 0.0, %v6219
      %v6221 = vpop.f32.mrf.mxu0
      %v6222 = vadd.f32 0.0, %v6221
      %v6223 = vpop.f32.mrf.mxu0
      %v6224 = vadd.f32 0.0, %v6223
      %6225 = vmatprep.mubr.bf16.mxu0 0
      %6226 = vmatmul.mubr.bf16.gmra.mxu0 %v5741
      %v6227 = vpop.f32.mrf.mxu0
      %v6228 = vadd.f32 0.0, %v6227
      %v6229 = vpop.f32.mrf.mxu0
      %v6230 = vadd.f32 0.0, %v6229
      %v6231 = vpop.f32.mrf.mxu0
      %v6232 = vadd.f32 0.0, %v6231
      %v6233 = vpop.f32.mrf.mxu0
      %v6234 = vadd.f32 0.0, %v6233
      %6235 = vmatprep.mubr.bf16.mxu0 0
      %6236 = vmatmul.mubr.bf16.gmra.mxu0 %v5742
      %v6237 = vpop.f32.mrf.mxu0
      %v6238 = vadd.f32 0.0, %v6237
      %v6239 = vpop.f32.mrf.mxu0
      %v6240 = vadd.f32 0.0, %v6239
      %v6241 = vpop.f32.mrf.mxu0
      %v6242 = vadd.f32 0.0, %v6241
      %v6243 = vpop.f32.mrf.mxu0
      %v6244 = vadd.f32 0.0, %v6243
      %6245 = vmatprep.mubr.bf16.mxu0 0
      %6246 = vmatmul.mubr.bf16.gmra.mxu0 %v5743
      %v6247 = vpop.f32.mrf.mxu0
      %v6248 = vadd.f32 0.0, %v6247
      %v6249 = vpop.f32.mrf.mxu0
      %v6250 = vadd.f32 0.0, %v6249
      %v6251 = vpop.f32.mrf.mxu0
      %v6252 = vadd.f32 0.0, %v6251
      %v6253 = vpop.f32.mrf.mxu0
      %v6254 = vadd.f32 0.0, %v6253
      %6255 = vmatprep.mubr.bf16.mxu0 0
      %6256 = vmatmul.mubr.bf16.gmra.mxu0 %v5744
      %v6257 = vpop.f32.mrf.mxu0
      %v6258 = vadd.f32 0.0, %v6257
      %v6259 = vpop.f32.mrf.mxu0
      %v6260 = vadd.f32 0.0, %v6259
      %v6261 = vpop.f32.mrf.mxu0
      %v6262 = vadd.f32 0.0, %v6261
      %v6263 = vpop.f32.mrf.mxu0
      %v6264 = vadd.f32 0.0, %v6263
      %6265 = vmatprep.mubr.bf16.mxu0 0
      %6266 = vmatmul.mubr.bf16.gmra.mxu0 %v5745
      %v6267 = vpop.f32.mrf.mxu0
      %v6268 = vadd.f32 0.0, %v6267
      %v6269 = vpop.f32.mrf.mxu0
      %v6270 = vadd.f32 0.0, %v6269
      %v6271 = vpop.f32.mrf.mxu0
      %v6272 = vadd.f32 0.0, %v6271
      %v6273 = vpop.f32.mrf.mxu0
      %v6274 = vadd.f32 0.0, %v6273
      %6275 = vmatprep.mubr.bf16.mxu0 0
      %6276 = vmatmul.mubr.bf16.gmra.mxu0 %v5746
      %v6277 = vpop.f32.mrf.mxu0
      %v6278 = vadd.f32 0.0, %v6277
      %v6279 = vpop.f32.mrf.mxu0
      %v6280 = vadd.f32 0.0, %v6279
      %v6281 = vpop.f32.mrf.mxu0
      %v6282 = vadd.f32 0.0, %v6281
      %v6283 = vpop.f32.mrf.mxu0
      %v6284 = vadd.f32 0.0, %v6283
      %6285 = vmatprep.mubr.bf16.mxu0 0
      %6286 = vmatmul.mubr.bf16.gmra.mxu0 %v5747
      %v6287 = vpop.f32.mrf.mxu0
      %v6288 = vadd.f32 0.0, %v6287
      %v6289 = vpop.f32.mrf.mxu0
      %v6290 = vadd.f32 0.0, %v6289
      %v6291 = vpop.f32.mrf.mxu0
      %v6292 = vadd.f32 0.0, %v6291
      %v6293 = vpop.f32.mrf.mxu0
      %v6294 = vadd.f32 0.0, %v6293
      %6295 = vmatprep.mubr.bf16.mxu0 0
      %6296 = vmatmul.mubr.bf16.gmra.mxu0 %v5748
      %v6297 = vpop.f32.mrf.mxu0
      %v6298 = vadd.f32 0.0, %v6297
      %v6299 = vpop.f32.mrf.mxu0
      %v6300 = vadd.f32 0.0, %v6299
      %v6301 = vpop.f32.mrf.mxu0
      %v6302 = vadd.f32 0.0, %v6301
      %v6303 = vpop.f32.mrf.mxu0
      %v6304 = vadd.f32 0.0, %v6303
      %6305 = vmatprep.mubr.bf16.mxu0 0
      %6306 = vmatmul.mubr.bf16.gmra.mxu0 %v5749
      %v6307 = vpop.f32.mrf.mxu0
      %v6308 = vadd.f32 0.0, %v6307
      %v6309 = vpop.f32.mrf.mxu0
      %v6310 = vadd.f32 0.0, %v6309
      %v6311 = vpop.f32.mrf.mxu0
      %v6312 = vadd.f32 0.0, %v6311
      %v6313 = vpop.f32.mrf.mxu0
      %v6314 = vadd.f32 0.0, %v6313
      %6315 = vmatprep.mubr.bf16.mxu0 0
      %6316 = vmatmul.mubr.bf16.gmra.mxu0 %v5750
      %v6317 = vpop.f32.mrf.mxu0
      %v6318 = vadd.f32 0.0, %v6317
      %v6319 = vpop.f32.mrf.mxu0
      %v6320 = vadd.f32 0.0, %v6319
      %v6321 = vpop.f32.mrf.mxu0
      %v6322 = vadd.f32 0.0, %v6321
      %v6323 = vpop.f32.mrf.mxu0
      %v6324 = vadd.f32 0.0, %v6323
      %6325 = vmatprep.mubr.bf16.mxu0 0
      %6326 = vmatmul.mubr.bf16.gmra.mxu0 %v5751
      %v6327 = vpop.f32.mrf.mxu0
      %v6328 = vadd.f32 0.0, %v6327
      %v6329 = vpop.f32.mrf.mxu0
      %v6330 = vadd.f32 0.0, %v6329
      %v6331 = vpop.f32.mrf.mxu0
      %v6332 = vadd.f32 0.0, %v6331
      %v6333 = vpop.f32.mrf.mxu0
      %v6334 = vadd.f32 0.0, %v6333
      %6335 = vmatprep.mubr.bf16.mxu0 0
      %6336 = vmatmul.mubr.bf16.gmra.mxu0 %v5752
      %v6337 = vpop.f32.mrf.mxu0
      %v6338 = vadd.f32 0.0, %v6337
      %v6339 = vpop.f32.mrf.mxu0
      %v6340 = vadd.f32 0.0, %v6339
      %v6341 = vpop.f32.mrf.mxu0
      %v6342 = vadd.f32 0.0, %v6341
      %v6343 = vpop.f32.mrf.mxu0
      %v6344 = vadd.f32 0.0, %v6343
      %6345 = vmatprep.mubr.bf16.mxu0 0
      %6346 = vmatmul.mubr.bf16.gmra.mxu0 %v5753
      %v6347 = vpop.f32.mrf.mxu0
      %v6348 = vadd.f32 0.0, %v6347
      %v6349 = vpop.f32.mrf.mxu0
      %v6350 = vadd.f32 0.0, %v6349
      %v6351 = vpop.f32.mrf.mxu0
      %v6352 = vadd.f32 0.0, %v6351
      %v6353 = vpop.f32.mrf.mxu0
      %v6354 = vadd.f32 0.0, %v6353
      %6355 = vmatprep.mubr.bf16.mxu0 0
      %6356 = vmatmul.mubr.bf16.gmra.mxu0 %v5754
      %v6357 = vpop.f32.mrf.mxu0
      %v6358 = vadd.f32 0.0, %v6357
      %v6359 = vpop.f32.mrf.mxu0
      %v6360 = vadd.f32 0.0, %v6359
      %v6361 = vpop.f32.mrf.mxu0
      %v6362 = vadd.f32 0.0, %v6361
      %v6363 = vpop.f32.mrf.mxu0
      %v6364 = vadd.f32 0.0, %v6363
      %6365 = vmatprep.mubr.bf16.mxu0 0
      %6366 = vmatmul.mubr.bf16.gmra.mxu0 %v5755
      %v6367 = vpop.f32.mrf.mxu0
      %v6368 = vadd.f32 0.0, %v6367
      %v6369 = vpop.f32.mrf.mxu0
      %v6370 = vadd.f32 0.0, %v6369
      %v6371 = vpop.f32.mrf.mxu0
      %v6372 = vadd.f32 0.0, %v6371
      %v6373 = vpop.f32.mrf.mxu0
      %v6374 = vadd.f32 0.0, %v6373
      %6375 = vmatprep.mubr.bf16.mxu0 0
      %6376 = vmatmul.mubr.bf16.gmra.mxu0 %v5756
      %v6377 = vpop.f32.mrf.mxu0
      %v6378 = vadd.f32 0.0, %v6377
      %v6379 = vpop.f32.mrf.mxu0
      %v6380 = vadd.f32 0.0, %v6379
      %v6381 = vpop.f32.mrf.mxu0
      %v6382 = vadd.f32 0.0, %v6381
      %v6383 = vpop.f32.mrf.mxu0
      %v6384 = vadd.f32 0.0, %v6383
      %6385 = vmatprep.mubr.bf16.mxu0 0
      %6386 = vmatmul.mubr.bf16.gmra.mxu0 %v5757
      %v6387 = vpop.f32.mrf.mxu0
      %v6388 = vadd.f32 0.0, %v6387
      %v6389 = vpop.f32.mrf.mxu0
      %v6390 = vadd.f32 0.0, %v6389
      %v6391 = vpop.f32.mrf.mxu0
      %v6392 = vadd.f32 0.0, %v6391
      %v6393 = vpop.f32.mrf.mxu0
      %v6394 = vadd.f32 0.0, %v6393
      %6395 = vmatprep.mubr.bf16.mxu0 0
      %6396 = vmatmul.mubr.bf16.gmra.mxu0 %v5758
      %v6397 = vpop.f32.mrf.mxu0
      %v6398 = vadd.f32 0.0, %v6397
      %v6399 = vpop.f32.mrf.mxu0
      %v6400 = vadd.f32 0.0, %v6399
      %v6401 = vpop.f32.mrf.mxu0
      %v6402 = vadd.f32 0.0, %v6401
      %v6403 = vpop.f32.mrf.mxu0
      %v6404 = vadd.f32 0.0, %v6403
      %6405 = vmatprep.mubr.bf16.mxu0 0
      %6406 = vmatmul.mubr.bf16.gmra.mxu0 %v5759
      %v6407 = vpop.f32.mrf.mxu0
      %v6408 = vadd.f32 0.0, %v6407
      %v6409 = vpop.f32.mrf.mxu0
      %v6410 = vadd.f32 0.0, %v6409
      %v6411 = vpop.f32.mrf.mxu0
      %v6412 = vadd.f32 0.0, %v6411
      %v6413 = vpop.f32.mrf.mxu0
      %v6414 = vadd.f32 0.0, %v6413
      %6415 = vmatprep.mubr.bf16.mxu0 0
      %6416 = vmatmul.mubr.bf16.gmra.mxu0 %v5760
      %v6417 = vpop.f32.mrf.mxu0
      %v6418 = vadd.f32 0.0, %v6417
      %v6419 = vpop.f32.mrf.mxu0
      %v6420 = vadd.f32 0.0, %v6419
      %v6421 = vpop.f32.mrf.mxu0
      %v6422 = vadd.f32 0.0, %v6421
      %v6423 = vpop.f32.mrf.mxu0
      %v6424 = vadd.f32 0.0, %v6423
      %6425 = vmatprep.mubr.bf16.mxu0 0
      %6426 = vmatmul.mubr.bf16.gmra.mxu0 %v5761
      %v6427 = vpop.f32.mrf.mxu0
      %v6428 = vadd.f32 0.0, %v6427
      %v6429 = vpop.f32.mrf.mxu0
      %v6430 = vadd.f32 0.0, %v6429
      %v6431 = vpop.f32.mrf.mxu0
      %v6432 = vadd.f32 0.0, %v6431
      %v6433 = vpop.f32.mrf.mxu0
      %v6434 = vadd.f32 0.0, %v6433
      %6435 = vmatprep.mubr.bf16.mxu0 0
      %6436 = vmatmul.mubr.bf16.gmra.mxu0 %v5762
      %v6437 = vpop.f32.mrf.mxu0
      %v6438 = vadd.f32 0.0, %v6437
      %v6439 = vpop.f32.mrf.mxu0
      %v6440 = vadd.f32 0.0, %v6439
      %v6441 = vpop.f32.mrf.mxu0
      %v6442 = vadd.f32 0.0, %v6441
      %v6443 = vpop.f32.mrf.mxu0
      %v6444 = vadd.f32 0.0, %v6443
      %6445 = vmatprep.mubr.bf16.mxu0 0
      %6446 = vmatmul.mubr.bf16.gmra.mxu0 %v5763
      %v6447 = vpop.f32.mrf.mxu0
      %v6448 = vadd.f32 0.0, %v6447
      %v6449 = vpop.f32.mrf.mxu0
      %v6450 = vadd.f32 0.0, %v6449
      %v6451 = vpop.f32.mrf.mxu0
      %v6452 = vadd.f32 0.0, %v6451
      %v6453 = vpop.f32.mrf.mxu0
      %v6454 = vadd.f32 0.0, %v6453
      %6455 = vmatprep.mubr.bf16.mxu0 0
      %6456 = vmatmul.mubr.bf16.gmra.mxu0 %v5764
      %v6457 = vpop.f32.mrf.mxu0
      %v6458 = vadd.f32 0.0, %v6457
      %v6459 = vpop.f32.mrf.mxu0
      %v6460 = vadd.f32 0.0, %v6459
      %v6461 = vpop.f32.mrf.mxu0
      %v6462 = vadd.f32 0.0, %v6461
      %v6463 = vpop.f32.mrf.mxu0
      %v6464 = vadd.f32 0.0, %v6463
      %6465 = vmatprep.mubr.bf16.mxu0 0
      %6466 = vmatmul.mubr.bf16.gmra.mxu0 %v5765
      %v6467 = vpop.f32.mrf.mxu0
      %v6468 = vadd.f32 0.0, %v6467
      %v6469 = vpop.f32.mrf.mxu0
      %v6470 = vadd.f32 0.0, %v6469
      %v6471 = vpop.f32.mrf.mxu0
      %v6472 = vadd.f32 0.0, %v6471
      %v6473 = vpop.f32.mrf.mxu0
      %v6474 = vadd.f32 0.0, %v6473
      %6475 = vmatprep.mubr.bf16.mxu0 0
      %6476 = vmatmul.mubr.bf16.gmra.mxu0 %v5766
      %v6477 = vpop.f32.mrf.mxu0
      %v6478 = vadd.f32 0.0, %v6477
      %v6479 = vpop.f32.mrf.mxu0
      %v6480 = vadd.f32 0.0, %v6479
      %v6481 = vpop.f32.mrf.mxu0
      %v6482 = vadd.f32 0.0, %v6481
      %v6483 = vpop.f32.mrf.mxu0
      %v6484 = vadd.f32 0.0, %v6483
      %6485 = vmatprep.mubr.bf16.mxu0 0
      %6486 = vmatmul.mubr.bf16.gmra.mxu0 %v5767
      %v6487 = vpop.f32.mrf.mxu0
      %v6488 = vadd.f32 0.0, %v6487
      %v6489 = vpop.f32.mrf.mxu0
      %v6490 = vadd.f32 0.0, %v6489
      %v6491 = vpop.f32.mrf.mxu0
      %v6492 = vpop.f32.mrf.mxu0
      %6493 = vmatprep.mubr.bf16.mxu0 0
      %6494 = vmatmul.mubr.bf16.gmra.mxu0 %v5768
      %v6495 = vpop.f32.mrf.mxu0
      %v6496 = vpop.f32.mrf.mxu0
      %v6497 = vpop.f32.mrf.mxu0
      %v6498 = vpop.f32.mrf.mxu0
      %6499 = vdwg.mxu0
      %v6500 = vld [vmem:[%s8] sm:$0xff]
      %v6501 = vld [vmem:[%s8 + $0x8] sm:$0xff]
      %v6502 = vld [vmem:[%s8 + $0x10] sm:$0xff]
      %v6503 = vld [vmem:[%s8 + $0x18] sm:$0xff]
      %v6504 = vld [vmem:[%s8 + $0x20] sm:$0xff]
      %v6505 = vld [vmem:[%s8 + $0x28] sm:$0xff]
      %v6506 = vld [vmem:[%s8 + $0x30] sm:$0xff]
      %v6507 = vld [vmem:[%s8 + $0x38] sm:$0xff]
      %v6508 = vld [vmem:[%s8 + $0x40] sm:$0xff]
      %v6509 = vld [vmem:[%s8 + $0x48] sm:$0xff]
      %v6510 = vld [vmem:[%s8 + $0x50] sm:$0xff]
      %v6511 = vld [vmem:[%s8 + $0x58] sm:$0xff]
      %v6512 = vld [vmem:[%s8 + $0x60] sm:$0xff]
      %v6513 = vld [vmem:[%s8 + $0x68] sm:$0xff]
      %v6514 = vld [vmem:[%s8 + $0x70] sm:$0xff]
      %v6515 = vld [vmem:[%s8 + $0x78] sm:$0xff]
      %v6516 = vld [vmem:[%s8 + $0x80] sm:$0xff]
      %v6517 = vld [vmem:[%s8 + $0x88] sm:$0xff]
      %v6518 = vld [vmem:[%s8 + $0x90] sm:$0xff]
      %v6519 = vld [vmem:[%s8 + $0x98] sm:$0xff]
      %v6520 = vld [vmem:[%s8 + $0xa0] sm:$0xff]
      %v6521 = vld [vmem:[%s8 + $0xa8] sm:$0xff]
      %v6522 = vld [vmem:[%s8 + $0xb0] sm:$0xff]
      %v6523 = vld [vmem:[%s8 + $0xb8] sm:$0xff]
      %v6524 = vld [vmem:[%s8 + $0xc0] sm:$0xff]
      %v6525 = vld [vmem:[%s8 + $0xc8] sm:$0xff]
      %v6526 = vld [vmem:[%s8 + $0xd0] sm:$0xff]
      %v6527 = vld [vmem:[%s8 + $0xd8] sm:$0xff]
      %v6528 = vld [vmem:[%s8 + $0xe0] sm:$0xff]
      %v6529 = vld [vmem:[%s8 + $0xe8] sm:$0xff]
      %v6530 = vld [vmem:[%s8 + $0xf0] sm:$0xff]
      %v6531 = vld [vmem:[%s8 + $0xf8] sm:$0xff]
      %v6532 = vld [vmem:[%s8 + $0x100] sm:$0xff]
      %v6533 = vld [vmem:[%s8 + $0x108] sm:$0xff]
      %v6534 = vld [vmem:[%s8 + $0x110] sm:$0xff]
      %v6535 = vld [vmem:[%s8 + $0x118] sm:$0xff]
      %v6536 = vld [vmem:[%s8 + $0x120] sm:$0xff]
      %v6537 = vld [vmem:[%s8 + $0x128] sm:$0xff]
      %v6538 = vld [vmem:[%s8 + $0x130] sm:$0xff]
      %v6539 = vld [vmem:[%s8 + $0x138] sm:$0xff]
      %v6540 = vld [vmem:[%s8 + $0x140] sm:$0xff]
      %v6541 = vld [vmem:[%s8 + $0x148] sm:$0xff]
      %v6542 = vld [vmem:[%s8 + $0x150] sm:$0xff]
      %v6543 = vld [vmem:[%s8 + $0x158] sm:$0xff]
      %v6544 = vld [vmem:[%s8 + $0x160] sm:$0xff]
      %v6545 = vld [vmem:[%s8 + $0x168] sm:$0xff]
      %v6546 = vld [vmem:[%s8 + $0x170] sm:$0xff]
      %v6547 = vld [vmem:[%s8 + $0x178] sm:$0xff]
      %v6548 = vld [vmem:[%s8 + $0x180] sm:$0xff]
      %v6549 = vld [vmem:[%s8 + $0x188] sm:$0xff]
      %v6550 = vld [vmem:[%s8 + $0x190] sm:$0xff]
      %v6551 = vld [vmem:[%s8 + $0x198] sm:$0xff]
      %v6552 = vld [vmem:[%s8 + $0x1a0] sm:$0xff]
      %v6553 = vld [vmem:[%s8 + $0x1a8] sm:$0xff]
      %v6554 = vld [vmem:[%s8 + $0x1b0] sm:$0xff]
      %v6555 = vld [vmem:[%s8 + $0x1b8] sm:$0xff]
      %v6556 = vld [vmem:[%s8 + $0x1c0] sm:$0xff]
      %v6557 = vld [vmem:[%s8 + $0x1c8] sm:$0xff]
      %v6558 = vld [vmem:[%s8 + $0x1d0] sm:$0xff]
      %v6559 = vld [vmem:[%s8 + $0x1d8] sm:$0xff]
      %v6560 = vld [vmem:[%s8 + $0x1e0] sm:$0xff]
      %v6561 = vld [vmem:[%s8 + $0x1e8] sm:$0xff]
      %v6562 = vld [vmem:[%s8 + $0x1f0] sm:$0xff]
      %v6563 = vld [vmem:[%s8 + $0x1f8] sm:$0xff]
      %v6564 = vld [vmem:[%s8 + $0x200] sm:$0xff]
      %v6565 = vld [vmem:[%s8 + $0x208] sm:$0xff]
      %v6566 = vld [vmem:[%s8 + $0x210] sm:$0xff]
      %v6567 = vld [vmem:[%s8 + $0x218] sm:$0xff]
      %v6568 = vld [vmem:[%s8 + $0x220] sm:$0xff]
      %v6569 = vld [vmem:[%s8 + $0x228] sm:$0xff]
      %v6570 = vld [vmem:[%s8 + $0x230] sm:$0xff]
      %v6571 = vld [vmem:[%s8 + $0x238] sm:$0xff]
      %v6572 = vld [vmem:[%s8 + $0x240] sm:$0xff]
      %v6573 = vld [vmem:[%s8 + $0x248] sm:$0xff]
      %v6574 = vld [vmem:[%s8 + $0x250] sm:$0xff]
      %v6575 = vld [vmem:[%s8 + $0x258] sm:$0xff]
      %v6576 = vld [vmem:[%s8 + $0x260] sm:$0xff]
      %v6577 = vld [vmem:[%s8 + $0x268] sm:$0xff]
      %v6578 = vld [vmem:[%s8 + $0x270] sm:$0xff]
      %v6579 = vld [vmem:[%s8 + $0x278] sm:$0xff]
      %v6580 = vld [vmem:[%s8 + $0x280] sm:$0xff]
      %v6581 = vld [vmem:[%s8 + $0x288] sm:$0xff]
      %v6582 = vld [vmem:[%s8 + $0x290] sm:$0xff]
      %v6583 = vld [vmem:[%s8 + $0x298] sm:$0xff]
      %v6584 = vld [vmem:[%s8 + $0x2a0] sm:$0xff]
      %v6585 = vld [vmem:[%s8 + $0x2a8] sm:$0xff]
      %v6586 = vld [vmem:[%s8 + $0x2b0] sm:$0xff]
      %v6587 = vld [vmem:[%s8 + $0x2b8] sm:$0xff]
      %v6588 = vld [vmem:[%s8 + $0x2c0] sm:$0xff]
      %v6589 = vld [vmem:[%s8 + $0x2c8] sm:$0xff]
      %v6590 = vld [vmem:[%s8 + $0x2d0] sm:$0xff]
      %v6591 = vld [vmem:[%s8 + $0x2d8] sm:$0xff]
      %v6592 = vld [vmem:[%s8 + $0x2e0] sm:$0xff]
      %v6593 = vld [vmem:[%s8 + $0x2e8] sm:$0xff]
      %v6594 = vld [vmem:[%s8 + $0x2f0] sm:$0xff]
      %v6595 = vld [vmem:[%s8 + $0x2f8] sm:$0xff]
      %v6596 = vld [vmem:[%s8 + $0x300] sm:$0xff]
      %v6597 = vld [vmem:[%s8 + $0x308] sm:$0xff]
      %v6598 = vld [vmem:[%s8 + $0x310] sm:$0xff]
      %v6599 = vld [vmem:[%s8 + $0x318] sm:$0xff]
      %v6600 = vld [vmem:[%s8 + $0x320] sm:$0xff]
      %v6601 = vld [vmem:[%s8 + $0x328] sm:$0xff]
      %v6602 = vld [vmem:[%s8 + $0x330] sm:$0xff]
      %v6603 = vld [vmem:[%s8 + $0x338] sm:$0xff]
      %v6604 = vld [vmem:[%s8 + $0x340] sm:$0xff]
      %v6605 = vld [vmem:[%s8 + $0x348] sm:$0xff]
      %v6606 = vld [vmem:[%s8 + $0x350] sm:$0xff]
      %v6607 = vld [vmem:[%s8 + $0x358] sm:$0xff]
      %v6608 = vld [vmem:[%s8 + $0x360] sm:$0xff]
      %v6609 = vld [vmem:[%s8 + $0x368] sm:$0xff]
      %v6610 = vld [vmem:[%s8 + $0x370] sm:$0xff]
      %v6611 = vld [vmem:[%s8 + $0x378] sm:$0xff]
      %v6612 = vld [vmem:[%s8 + $0x380] sm:$0xff]
      %v6613 = vld [vmem:[%s8 + $0x388] sm:$0xff]
      %v6614 = vld [vmem:[%s8 + $0x390] sm:$0xff]
      %v6615 = vld [vmem:[%s8 + $0x398] sm:$0xff]
      %v6616 = vld [vmem:[%s8 + $0x3a0] sm:$0xff]
      %v6617 = vld [vmem:[%s8 + $0x3a8] sm:$0xff]
      %v6618 = vld [vmem:[%s8 + $0x3b0] sm:$0xff]
      %v6619 = vld [vmem:[%s8 + $0x3b8] sm:$0xff]
      %v6620 = vld [vmem:[%s8 + $0x3c0] sm:$0xff]
      %v6621 = vld [vmem:[%s8 + $0x3c8] sm:$0xff]
      %v6622 = vld [vmem:[%s8 + $0x3d0] sm:$0xff]
      %v6623 = vld [vmem:[%s8 + $0x3d8] sm:$0xff]
      %v6624 = vld [vmem:[%s8 + $0x3e0] sm:$0xff]
      %6626 = vset.pattern.permute.xlu0 0
      %6627 = vperm.xlu0 %6626, %v6500
      %v6628 = vpop.permute.xlu0 %6627
      %6631 = vset.pattern.permute.xlu0 0
      %6632 = vperm.xlu0 %6631, %v6501
      %v6633 = vpop.permute.xlu0 %6632
      %6636 = vset.pattern.permute.xlu0 0
      %6637 = vperm.xlu0 %6636, %v6502
      %v6638 = vpop.permute.xlu0 %6637
      %6641 = vset.pattern.permute.xlu0 0
      %6642 = vperm.xlu0 %6641, %v6503
      %v6643 = vpop.permute.xlu0 %6642
      %6646 = vset.pattern.permute.xlu0 0
      %6647 = vperm.xlu0 %6646, %v6504
      %v6648 = vpop.permute.xlu0 %6647
      %6651 = vset.pattern.permute.xlu0 0
      %6652 = vperm.xlu0 %6651, %v6505
      %v6653 = vpop.permute.xlu0 %6652
      %6656 = vset.pattern.permute.xlu0 0
      %6657 = vperm.xlu0 %6656, %v6506
      %v6658 = vpop.permute.xlu0 %6657
      %6661 = vset.pattern.permute.xlu0 0
      %6662 = vperm.xlu0 %6661, %v6507
      %v6663 = vpop.permute.xlu0 %6662
      %6666 = vset.pattern.permute.xlu0 0
      %6667 = vperm.xlu0 %6666, %v6508
      %v6668 = vpop.permute.xlu0 %6667
      %6671 = vset.pattern.permute.xlu0 0
      %6672 = vperm.xlu0 %6671, %v6509
      %v6673 = vpop.permute.xlu0 %6672
      %6676 = vset.pattern.permute.xlu0 0
      %6677 = vperm.xlu0 %6676, %v6510
      %v6678 = vpop.permute.xlu0 %6677
      %6681 = vset.pattern.permute.xlu0 0
      %6682 = vperm.xlu0 %6681, %v6511
      %v6683 = vpop.permute.xlu0 %6682
      %6686 = vset.pattern.permute.xlu0 0
      %6687 = vperm.xlu0 %6686, %v6512
      %v6688 = vpop.permute.xlu0 %6687
      %6691 = vset.pattern.permute.xlu0 0
      %6692 = vperm.xlu0 %6691, %v6513
      %v6693 = vpop.permute.xlu0 %6692
      %6696 = vset.pattern.permute.xlu0 0
      %6697 = vperm.xlu0 %6696, %v6514
      %v6698 = vpop.permute.xlu0 %6697
      %6701 = vset.pattern.permute.xlu0 0
      %6702 = vperm.xlu0 %6701, %v6515
      %v6703 = vpop.permute.xlu0 %6702
      %6706 = vset.pattern.permute.xlu0 0
      %6707 = vperm.xlu0 %6706, %v6516
      %v6708 = vpop.permute.xlu0 %6707
      %6711 = vset.pattern.permute.xlu0 0
      %6712 = vperm.xlu0 %6711, %v6517
      %v6713 = vpop.permute.xlu0 %6712
      %6716 = vset.pattern.permute.xlu0 0
      %6717 = vperm.xlu0 %6716, %v6518
      %v6718 = vpop.permute.xlu0 %6717
      %6721 = vset.pattern.permute.xlu0 0
      %6722 = vperm.xlu0 %6721, %v6519
      %v6723 = vpop.permute.xlu0 %6722
      %6726 = vset.pattern.permute.xlu0 0
      %6727 = vperm.xlu0 %6726, %v6520
      %v6728 = vpop.permute.xlu0 %6727
      %6731 = vset.pattern.permute.xlu0 0
      %6732 = vperm.xlu0 %6731, %v6521
      %v6733 = vpop.permute.xlu0 %6732
      %6736 = vset.pattern.permute.xlu0 0
      %6737 = vperm.xlu0 %6736, %v6522
      %v6738 = vpop.permute.xlu0 %6737
      %6741 = vset.pattern.permute.xlu0 0
      %6742 = vperm.xlu0 %6741, %v6523
      %v6743 = vpop.permute.xlu0 %6742
      %6746 = vset.pattern.permute.xlu0 0
      %6747 = vperm.xlu0 %6746, %v6524
      %v6748 = vpop.permute.xlu0 %6747
      %6751 = vset.pattern.permute.xlu0 0
      %6752 = vperm.xlu0 %6751, %v6525
      %v6753 = vpop.permute.xlu0 %6752
      %6756 = vset.pattern.permute.xlu0 0
      %6757 = vperm.xlu0 %6756, %v6526
      %v6758 = vpop.permute.xlu0 %6757
      %6761 = vset.pattern.permute.xlu0 0
      %6762 = vperm.xlu0 %6761, %v6527
      %v6763 = vpop.permute.xlu0 %6762
      %6766 = vset.pattern.permute.xlu0 0
      %6767 = vperm.xlu0 %6766, %v6528
      %v6768 = vpop.permute.xlu0 %6767
      %6771 = vset.pattern.permute.xlu0 0
      %6772 = vperm.xlu0 %6771, %v6529
      %v6773 = vpop.permute.xlu0 %6772
      %6776 = vset.pattern.permute.xlu0 0
      %6777 = vperm.xlu0 %6776, %v6530
      %v6778 = vpop.permute.xlu0 %6777
      %6781 = vset.pattern.permute.xlu0 0
      %6782 = vperm.xlu0 %6781, %v6531
      %v6783 = vpop.permute.xlu0 %6782
      %6786 = vset.pattern.permute.xlu0 0
      %6787 = vperm.xlu0 %6786, %v6532
      %v6788 = vpop.permute.xlu0 %6787
      %6791 = vset.pattern.permute.xlu0 0
      %6792 = vperm.xlu0 %6791, %v6533
      %v6793 = vpop.permute.xlu0 %6792
      %6796 = vset.pattern.permute.xlu0 0
      %6797 = vperm.xlu0 %6796, %v6534
      %v6798 = vpop.permute.xlu0 %6797
      %6801 = vset.pattern.permute.xlu0 0
      %6802 = vperm.xlu0 %6801, %v6535
      %v6803 = vpop.permute.xlu0 %6802
      %6806 = vset.pattern.permute.xlu0 0
      %6807 = vperm.xlu0 %6806, %v6536
      %v6808 = vpop.permute.xlu0 %6807
      %6811 = vset.pattern.permute.xlu0 0
      %6812 = vperm.xlu0 %6811, %v6537
      %v6813 = vpop.permute.xlu0 %6812
      %6816 = vset.pattern.permute.xlu0 0
      %6817 = vperm.xlu0 %6816, %v6538
      %v6818 = vpop.permute.xlu0 %6817
      %6821 = vset.pattern.permute.xlu0 0
      %6822 = vperm.xlu0 %6821, %v6539
      %v6823 = vpop.permute.xlu0 %6822
      %6826 = vset.pattern.permute.xlu0 0
      %6827 = vperm.xlu0 %6826, %v6540
      %v6828 = vpop.permute.xlu0 %6827
      %6831 = vset.pattern.permute.xlu0 0
      %6832 = vperm.xlu0 %6831, %v6541
      %v6833 = vpop.permute.xlu0 %6832
      %6836 = vset.pattern.permute.xlu0 0
      %6837 = vperm.xlu0 %6836, %v6542
      %v6838 = vpop.permute.xlu0 %6837
      %6841 = vset.pattern.permute.xlu0 0
      %6842 = vperm.xlu0 %6841, %v6543
      %v6843 = vpop.permute.xlu0 %6842
      %6846 = vset.pattern.permute.xlu0 0
      %6847 = vperm.xlu0 %6846, %v6544
      %v6848 = vpop.permute.xlu0 %6847
      %6851 = vset.pattern.permute.xlu0 0
      %6852 = vperm.xlu0 %6851, %v6545
      %v6853 = vpop.permute.xlu0 %6852
      %6856 = vset.pattern.permute.xlu0 0
      %6857 = vperm.xlu0 %6856, %v6546
      %v6858 = vpop.permute.xlu0 %6857
      %6861 = vset.pattern.permute.xlu0 0
      %6862 = vperm.xlu0 %6861, %v6547
      %v6863 = vpop.permute.xlu0 %6862
      %6866 = vset.pattern.permute.xlu0 0
      %6867 = vperm.xlu0 %6866, %v6548
      %v6868 = vpop.permute.xlu0 %6867
      %6871 = vset.pattern.permute.xlu0 0
      %6872 = vperm.xlu0 %6871, %v6549
      %v6873 = vpop.permute.xlu0 %6872
      %6876 = vset.pattern.permute.xlu0 0
      %6877 = vperm.xlu0 %6876, %v6550
      %v6878 = vpop.permute.xlu0 %6877
      %6881 = vset.pattern.permute.xlu0 0
      %6882 = vperm.xlu0 %6881, %v6551
      %v6883 = vpop.permute.xlu0 %6882
      %6886 = vset.pattern.permute.xlu0 0
      %6887 = vperm.xlu0 %6886, %v6552
      %v6888 = vpop.permute.xlu0 %6887
      %6891 = vset.pattern.permute.xlu0 0
      %6892 = vperm.xlu0 %6891, %v6553
      %v6893 = vpop.permute.xlu0 %6892
      %6896 = vset.pattern.permute.xlu0 0
      %6897 = vperm.xlu0 %6896, %v6554
      %v6898 = vpop.permute.xlu0 %6897
      %6901 = vset.pattern.permute.xlu0 0
      %6902 = vperm.xlu0 %6901, %v6555
      %v6903 = vpop.permute.xlu0 %6902
      %6906 = vset.pattern.permute.xlu0 0
      %6907 = vperm.xlu0 %6906, %v6556
      %v6908 = vpop.permute.xlu0 %6907
      %6911 = vset.pattern.permute.xlu0 0
      %6912 = vperm.xlu0 %6911, %v6557
      %v6913 = vpop.permute.xlu0 %6912
      %6916 = vset.pattern.permute.xlu0 0
      %6917 = vperm.xlu0 %6916, %v6558
      %v6918 = vpop.permute.xlu0 %6917
      %6921 = vset.pattern.permute.xlu0 0
      %6922 = vperm.xlu0 %6921, %v6559
      %v6923 = vpop.permute.xlu0 %6922
      %6926 = vset.pattern.permute.xlu0 0
      %6927 = vperm.xlu0 %6926, %v6560
      %v6928 = vpop.permute.xlu0 %6927
      %6931 = vset.pattern.permute.xlu0 0
      %6932 = vperm.xlu0 %6931, %v6561
      %v6933 = vpop.permute.xlu0 %6932
      %6936 = vset.pattern.permute.xlu0 0
      %6937 = vperm.xlu0 %6936, %v6562
      %v6938 = vpop.permute.xlu0 %6937
      %6941 = vset.pattern.permute.xlu0 0
      %6942 = vperm.xlu0 %6941, %v6563
      %v6943 = vpop.permute.xlu0 %6942
      %6946 = vset.pattern.permute.xlu0 0
      %6947 = vperm.xlu0 %6946, %v6564
      %v6948 = vpop.permute.xlu0 %6947
      %6951 = vset.pattern.permute.xlu0 0
      %6952 = vperm.xlu0 %6951, %v6565
      %v6953 = vpop.permute.xlu0 %6952
      %6956 = vset.pattern.permute.xlu0 0
      %6957 = vperm.xlu0 %6956, %v6566
      %v6958 = vpop.permute.xlu0 %6957
      %6961 = vset.pattern.permute.xlu0 0
      %6962 = vperm.xlu0 %6961, %v6567
      %v6963 = vpop.permute.xlu0 %6962
      %6966 = vset.pattern.permute.xlu0 0
      %6967 = vperm.xlu0 %6966, %v6568
      %v6968 = vpop.permute.xlu0 %6967
      %6971 = vset.pattern.permute.xlu0 0
      %6972 = vperm.xlu0 %6971, %v6569
      %v6973 = vpop.permute.xlu0 %6972
      %6976 = vset.pattern.permute.xlu0 0
      %6977 = vperm.xlu0 %6976, %v6570
      %v6978 = vpop.permute.xlu0 %6977
      %6981 = vset.pattern.permute.xlu0 0
      %6982 = vperm.xlu0 %6981, %v6571
      %v6983 = vpop.permute.xlu0 %6982
      %6986 = vset.pattern.permute.xlu0 0
      %6987 = vperm.xlu0 %6986, %v6572
      %v6988 = vpop.permute.xlu0 %6987
      %6991 = vset.pattern.permute.xlu0 0
      %6992 = vperm.xlu0 %6991, %v6573
      %v6993 = vpop.permute.xlu0 %6992
      %6996 = vset.pattern.permute.xlu0 0
      %6997 = vperm.xlu0 %6996, %v6574
      %v6998 = vpop.permute.xlu0 %6997
      %7001 = vset.pattern.permute.xlu0 0
      %7002 = vperm.xlu0 %7001, %v6575
      %v7003 = vpop.permute.xlu0 %7002
      %7006 = vset.pattern.permute.xlu0 0
      %7007 = vperm.xlu0 %7006, %v6576
      %v7008 = vpop.permute.xlu0 %7007
      %7011 = vset.pattern.permute.xlu0 0
      %7012 = vperm.xlu0 %7011, %v6577
      %v7013 = vpop.permute.xlu0 %7012
      %7016 = vset.pattern.permute.xlu0 0
      %7017 = vperm.xlu0 %7016, %v6578
      %v7018 = vpop.permute.xlu0 %7017
      %7021 = vset.pattern.permute.xlu0 0
      %7022 = vperm.xlu0 %7021, %v6579
      %v7023 = vpop.permute.xlu0 %7022
      %7026 = vset.pattern.permute.xlu0 0
      %7027 = vperm.xlu0 %7026, %v6580
      %v7028 = vpop.permute.xlu0 %7027
      %7031 = vset.pattern.permute.xlu0 0
      %7032 = vperm.xlu0 %7031, %v6581
      %v7033 = vpop.permute.xlu0 %7032
      %7036 = vset.pattern.permute.xlu0 0
      %7037 = vperm.xlu0 %7036, %v6582
      %v7038 = vpop.permute.xlu0 %7037
      %7041 = vset.pattern.permute.xlu0 0
      %7042 = vperm.xlu0 %7041, %v6583
      %v7043 = vpop.permute.xlu0 %7042
      %7046 = vset.pattern.permute.xlu0 0
      %7047 = vperm.xlu0 %7046, %v6584
      %v7048 = vpop.permute.xlu0 %7047
      %7051 = vset.pattern.permute.xlu0 0
      %7052 = vperm.xlu0 %7051, %v6585
      %v7053 = vpop.permute.xlu0 %7052
      %7056 = vset.pattern.permute.xlu0 0
      %7057 = vperm.xlu0 %7056, %v6586
      %v7058 = vpop.permute.xlu0 %7057
      %7061 = vset.pattern.permute.xlu0 0
      %7062 = vperm.xlu0 %7061, %v6587
      %v7063 = vpop.permute.xlu0 %7062
      %7066 = vset.pattern.permute.xlu0 0
      %7067 = vperm.xlu0 %7066, %v6588
      %v7068 = vpop.permute.xlu0 %7067
      %7071 = vset.pattern.permute.xlu0 0
      %7072 = vperm.xlu0 %7071, %v6589
      %v7073 = vpop.permute.xlu0 %7072
      %7076 = vset.pattern.permute.xlu0 0
      %7077 = vperm.xlu0 %7076, %v6590
      %v7078 = vpop.permute.xlu0 %7077
      %7081 = vset.pattern.permute.xlu0 0
      %7082 = vperm.xlu0 %7081, %v6591
      %v7083 = vpop.permute.xlu0 %7082
      %7086 = vset.pattern.permute.xlu0 0
      %7087 = vperm.xlu0 %7086, %v6592
      %v7088 = vpop.permute.xlu0 %7087
      %7091 = vset.pattern.permute.xlu0 0
      %7092 = vperm.xlu0 %7091, %v6593
      %v7093 = vpop.permute.xlu0 %7092
      %7096 = vset.pattern.permute.xlu0 0
      %7097 = vperm.xlu0 %7096, %v6594
      %v7098 = vpop.permute.xlu0 %7097
      %7101 = vset.pattern.permute.xlu0 0
      %7102 = vperm.xlu0 %7101, %v6595
      %v7103 = vpop.permute.xlu0 %7102
      %7106 = vset.pattern.permute.xlu0 0
      %7107 = vperm.xlu0 %7106, %v6596
      %v7108 = vpop.permute.xlu0 %7107
      %7111 = vset.pattern.permute.xlu0 0
      %7112 = vperm.xlu0 %7111, %v6597
      %v7113 = vpop.permute.xlu0 %7112
      %7116 = vset.pattern.permute.xlu0 0
      %7117 = vperm.xlu0 %7116, %v6598
      %v7118 = vpop.permute.xlu0 %7117
      %7121 = vset.pattern.permute.xlu0 0
      %7122 = vperm.xlu0 %7121, %v6599
      %v7123 = vpop.permute.xlu0 %7122
      %7126 = vset.pattern.permute.xlu0 0
      %7127 = vperm.xlu0 %7126, %v6600
      %v7128 = vpop.permute.xlu0 %7127
      %7131 = vset.pattern.permute.xlu0 0
      %7132 = vperm.xlu0 %7131, %v6601
      %v7133 = vpop.permute.xlu0 %7132
      %7136 = vset.pattern.permute.xlu0 0
      %7137 = vperm.xlu0 %7136, %v6602
      %v7138 = vpop.permute.xlu0 %7137
      %7141 = vset.pattern.permute.xlu0 0
      %7142 = vperm.xlu0 %7141, %v6603
      %v7143 = vpop.permute.xlu0 %7142
      %7146 = vset.pattern.permute.xlu0 0
      %7147 = vperm.xlu0 %7146, %v6604
      %v7148 = vpop.permute.xlu0 %7147
      %7151 = vset.pattern.permute.xlu0 0
      %7152 = vperm.xlu0 %7151, %v6605
      %v7153 = vpop.permute.xlu0 %7152
      %7156 = vset.pattern.permute.xlu0 0
      %7157 = vperm.xlu0 %7156, %v6606
      %v7158 = vpop.permute.xlu0 %7157
      %7161 = vset.pattern.permute.xlu0 0
      %7162 = vperm.xlu0 %7161, %v6607
      %v7163 = vpop.permute.xlu0 %7162
      %7166 = vset.pattern.permute.xlu0 0
      %7167 = vperm.xlu0 %7166, %v6608
      %v7168 = vpop.permute.xlu0 %7167
      %7171 = vset.pattern.permute.xlu0 0
      %7172 = vperm.xlu0 %7171, %v6609
      %v7173 = vpop.permute.xlu0 %7172
      %7176 = vset.pattern.permute.xlu0 0
      %7177 = vperm.xlu0 %7176, %v6610
      %v7178 = vpop.permute.xlu0 %7177
      %7181 = vset.pattern.permute.xlu0 0
      %7182 = vperm.xlu0 %7181, %v6611
      %v7183 = vpop.permute.xlu0 %7182
      %7186 = vset.pattern.permute.xlu0 0
      %7187 = vperm.xlu0 %7186, %v6612
      %v7188 = vpop.permute.xlu0 %7187
      %7191 = vset.pattern.permute.xlu0 0
      %7192 = vperm.xlu0 %7191, %v6613
      %v7193 = vpop.permute.xlu0 %7192
      %7196 = vset.pattern.permute.xlu0 0
      %7197 = vperm.xlu0 %7196, %v6614
      %v7198 = vpop.permute.xlu0 %7197
      %7201 = vset.pattern.permute.xlu0 0
      %7202 = vperm.xlu0 %7201, %v6615
      %v7203 = vpop.permute.xlu0 %7202
      %7206 = vset.pattern.permute.xlu0 0
      %7207 = vperm.xlu0 %7206, %v6616
      %v7208 = vpop.permute.xlu0 %7207
      %7211 = vset.pattern.permute.xlu0 0
      %7212 = vperm.xlu0 %7211, %v6617
      %v7213 = vpop.permute.xlu0 %7212
      %7216 = vset.pattern.permute.xlu0 0
      %7217 = vperm.xlu0 %7216, %v6618
      %v7218 = vpop.permute.xlu0 %7217
      %7221 = vset.pattern.permute.xlu0 0
      %7222 = vperm.xlu0 %7221, %v6619
      %v7223 = vpop.permute.xlu0 %7222
      %7226 = vset.pattern.permute.xlu0 0
      %7227 = vperm.xlu0 %7226, %v6620
      %v7228 = vpop.permute.xlu0 %7227
      %7231 = vset.pattern.permute.xlu0 0
      %7232 = vperm.xlu0 %7231, %v6621
      %v7233 = vpop.permute.xlu0 %7232
      %7236 = vset.pattern.permute.xlu0 0
      %7237 = vperm.xlu0 %7236, %v6622
      %v7238 = vpop.permute.xlu0 %7237
      %7241 = vset.pattern.permute.xlu0 0
      %7242 = vperm.xlu0 %7241, %v6623
      %v7243 = vpop.permute.xlu0 %7242
      %7246 = vset.pattern.permute.xlu0 0
      %7247 = vperm.xlu0 %7246, %v6624
      %v7248 = vpop.permute.xlu0 %7247
      %v7250 = vadd.f32 %v5868, %v6628
      %v7251 = vadd.f32 %v5870, %v6628
      %v7252 = vadd.f32 %v5872, %v6633
      %v7253 = vadd.f32 %v5874, %v6633
      %v7254 = vadd.f32 %v5878, %v6638
      %v7255 = vadd.f32 %v5880, %v6638
      %v7256 = vadd.f32 %v5882, %v6643
      %v7257 = vadd.f32 %v5884, %v6643
      %v7258 = vadd.f32 %v5888, %v6648
      %v7259 = vadd.f32 %v5890, %v6648
      %v7260 = vadd.f32 %v5892, %v6653
      %v7261 = vadd.f32 %v5894, %v6653
      %v7262 = vadd.f32 %v5898, %v6658
      %v7263 = vadd.f32 %v5900, %v6658
      %v7264 = vadd.f32 %v5902, %v6663
      %v7265 = vadd.f32 %v5904, %v6663
      %v7266 = vadd.f32 %v5908, %v6668
      %v7267 = vadd.f32 %v5910, %v6668
      %v7268 = vadd.f32 %v5912, %v6673
      %v7269 = vadd.f32 %v5914, %v6673
      %v7270 = vadd.f32 %v5918, %v6678
      %v7271 = vadd.f32 %v5920, %v6678
      %v7272 = vadd.f32 %v5922, %v6683
      %v7273 = vadd.f32 %v5924, %v6683
      %v7274 = vadd.f32 %v5928, %v6688
      %v7275 = vadd.f32 %v5930, %v6688
      %v7276 = vadd.f32 %v5932, %v6693
      %v7277 = vadd.f32 %v5934, %v6693
      %v7278 = vadd.f32 %v5938, %v6698
      %v7279 = vadd.f32 %v5940, %v6698
      %v7280 = vadd.f32 %v5942, %v6703
      %v7281 = vadd.f32 %v5944, %v6703
      %v7282 = vadd.f32 %v5948, %v6708
      %v7283 = vadd.f32 %v5950, %v6708
      %v7284 = vadd.f32 %v5952, %v6713
      %v7285 = vadd.f32 %v5954, %v6713
      %v7286 = vadd.f32 %v5958, %v6718
      %v7287 = vadd.f32 %v5960, %v6718
      %v7288 = vadd.f32 %v5962, %v6723
      %v7289 = vadd.f32 %v5964, %v6723
      %v7290 = vadd.f32 %v5968, %v6728
      %v7291 = vadd.f32 %v5970, %v6728
      %v7292 = vadd.f32 %v5972, %v6733
      %v7293 = vadd.f32 %v5974, %v6733
      %v7294 = vadd.f32 %v5978, %v6738
      %v7295 = vadd.f32 %v5980, %v6738
      %v7296 = vadd.f32 %v5982, %v6743
      %v7297 = vadd.f32 %v5984, %v6743
      %v7298 = vadd.f32 %v5988, %v6748
      %v7299 = vadd.f32 %v5990, %v6748
      %v7300 = vadd.f32 %v5992, %v6753
      %v7301 = vadd.f32 %v5994, %v6753
      %v7302 = vadd.f32 %v5998, %v6758
      %v7303 = vadd.f32 %v6000, %v6758
      %v7304 = vadd.f32 %v6002, %v6763
      %v7305 = vadd.f32 %v6004, %v6763
      %v7306 = vadd.f32 %v6008, %v6768
      %v7307 = vadd.f32 %v6010, %v6768
      %v7308 = vadd.f32 %v6012, %v6773
      %v7309 = vadd.f32 %v6014, %v6773
      %v7310 = vadd.f32 %v6018, %v6778
      %v7311 = vadd.f32 %v6020, %v6778
      %v7312 = vadd.f32 %v6022, %v6783
      %v7313 = vadd.f32 %v6024, %v6783
      %v7314 = vadd.f32 %v6028, %v6788
      %v7315 = vadd.f32 %v6030, %v6788
      %v7316 = vadd.f32 %v6032, %v6793
      %v7317 = vadd.f32 %v6034, %v6793
      %v7318 = vadd.f32 %v6038, %v6798
      %v7319 = vadd.f32 %v6040, %v6798
      %v7320 = vadd.f32 %v6042, %v6803
      %v7321 = vadd.f32 %v6044, %v6803
      %v7322 = vadd.f32 %v6048, %v6808
      %v7323 = vadd.f32 %v6050, %v6808
      %v7324 = vadd.f32 %v6052, %v6813
      %v7325 = vadd.f32 %v6054, %v6813
      %v7326 = vadd.f32 %v6058, %v6818
      %v7327 = vadd.f32 %v6060, %v6818
      %v7328 = vadd.f32 %v6062, %v6823
      %v7329 = vadd.f32 %v6064, %v6823
      %v7330 = vadd.f32 %v6068, %v6828
      %v7331 = vadd.f32 %v6070, %v6828
      %v7332 = vadd.f32 %v6072, %v6833
      %v7333 = vadd.f32 %v6074, %v6833
      %v7334 = vadd.f32 %v6078, %v6838
      %v7335 = vadd.f32 %v6080, %v6838
      %v7336 = vadd.f32 %v6082, %v6843
      %v7337 = vadd.f32 %v6084, %v6843
      %v7338 = vadd.f32 %v6088, %v6848
      %v7339 = vadd.f32 %v6090, %v6848
      %v7340 = vadd.f32 %v6092, %v6853
      %v7341 = vadd.f32 %v6094, %v6853
      %v7342 = vadd.f32 %v6098, %v6858
      %v7343 = vadd.f32 %v6100, %v6858
      %v7344 = vadd.f32 %v6102, %v6863
      %v7345 = vadd.f32 %v6104, %v6863
      %v7346 = vadd.f32 %v6108, %v6868
      %v7347 = vadd.f32 %v6110, %v6868
      %v7348 = vadd.f32 %v6112, %v6873
      %v7349 = vadd.f32 %v6114, %v6873
      %v7350 = vadd.f32 %v6118, %v6878
      %v7351 = vadd.f32 %v6120, %v6878
      %v7352 = vadd.f32 %v6122, %v6883
      %v7353 = vadd.f32 %v6124, %v6883
      %v7354 = vadd.f32 %v6128, %v6888
      %v7355 = vadd.f32 %v6130, %v6888
      %v7356 = vadd.f32 %v6132, %v6893
      %v7357 = vadd.f32 %v6134, %v6893
      %v7358 = vadd.f32 %v6138, %v6898
      %v7359 = vadd.f32 %v6140, %v6898
      %v7360 = vadd.f32 %v6142, %v6903
      %v7361 = vadd.f32 %v6144, %v6903
      %v7362 = vadd.f32 %v6148, %v6908
      %v7363 = vadd.f32 %v6150, %v6908
      %v7364 = vadd.f32 %v6152, %v6913
      %v7365 = vadd.f32 %v6154, %v6913
      %v7366 = vadd.f32 %v6158, %v6918
      %v7367 = vadd.f32 %v6160, %v6918
      %v7368 = vadd.f32 %v6162, %v6923
      %v7369 = vadd.f32 %v6164, %v6923
      %v7370 = vadd.f32 %v6168, %v6928
      %v7371 = vadd.f32 %v6170, %v6928
      %v7372 = vadd.f32 %v6172, %v6933
      %v7373 = vadd.f32 %v6174, %v6933
      %v7374 = vadd.f32 %v6178, %v6938
      %v7375 = vadd.f32 %v6180, %v6938
      %v7376 = vadd.f32 %v6182, %v6943
      %v7377 = vadd.f32 %v6184, %v6943
      %v7378 = vadd.f32 %v6188, %v6948
      %v7379 = vadd.f32 %v6190, %v6948
      %v7380 = vadd.f32 %v6192, %v6953
      %v7381 = vadd.f32 %v6194, %v6953
      %v7382 = vadd.f32 %v6198, %v6958
      %v7383 = vadd.f32 %v6200, %v6958
      %v7384 = vadd.f32 %v6202, %v6963
      %v7385 = vadd.f32 %v6204, %v6963
      %v7386 = vadd.f32 %v6208, %v6968
      %v7387 = vadd.f32 %v6210, %v6968
      %v7388 = vadd.f32 %v6212, %v6973
      %v7389 = vadd.f32 %v6214, %v6973
      %v7390 = vadd.f32 %v6218, %v6978
      %v7391 = vadd.f32 %v6220, %v6978
      %v7392 = vadd.f32 %v6222, %v6983
      %v7393 = vadd.f32 %v6224, %v6983
      %v7394 = vadd.f32 %v6228, %v6988
      %v7395 = vadd.f32 %v6230, %v6988
      %v7396 = vadd.f32 %v6232, %v6993
      %v7397 = vadd.f32 %v6234, %v6993
      %v7398 = vadd.f32 %v6238, %v6998
      %v7399 = vadd.f32 %v6240, %v6998
      %v7400 = vadd.f32 %v6242, %v7003
      %v7401 = vadd.f32 %v6244, %v7003
      %v7402 = vadd.f32 %v6248, %v7008
      %v7403 = vadd.f32 %v6250, %v7008
      %v7404 = vadd.f32 %v6252, %v7013
      %v7405 = vadd.f32 %v6254, %v7013
      %v7406 = vadd.f32 %v6258, %v7018
      %v7407 = vadd.f32 %v6260, %v7018
      %v7408 = vadd.f32 %v6262, %v7023
      %v7409 = vadd.f32 %v6264, %v7023
      %v7410 = vadd.f32 %v6268, %v7028
      %v7411 = vadd.f32 %v6270, %v7028
      %v7412 = vadd.f32 %v6272, %v7033
      %v7413 = vadd.f32 %v6274, %v7033
      %v7414 = vadd.f32 %v6278, %v7038
      %v7415 = vadd.f32 %v6280, %v7038
      %v7416 = vadd.f32 %v6282, %v7043
      %v7417 = vadd.f32 %v6284, %v7043
      %v7418 = vadd.f32 %v6288, %v7048
      %v7419 = vadd.f32 %v6290, %v7048
      %v7420 = vadd.f32 %v6292, %v7053
      %v7421 = vadd.f32 %v6294, %v7053
      %v7422 = vadd.f32 %v6298, %v7058
      %v7423 = vadd.f32 %v6300, %v7058
      %v7424 = vadd.f32 %v6302, %v7063
      %v7425 = vadd.f32 %v6304, %v7063
      %v7426 = vadd.f32 %v6308, %v7068
      %v7427 = vadd.f32 %v6310, %v7068
      %v7428 = vadd.f32 %v6312, %v7073
      %v7429 = vadd.f32 %v6314, %v7073
      %v7430 = vadd.f32 %v6318, %v7078
      %v7431 = vadd.f32 %v6320, %v7078
      %v7432 = vadd.f32 %v6322, %v7083
      %v7433 = vadd.f32 %v6324, %v7083
      %v7434 = vadd.f32 %v6328, %v7088
      %v7435 = vadd.f32 %v6330, %v7088
      %v7436 = vadd.f32 %v6332, %v7093
      %v7437 = vadd.f32 %v6334, %v7093
      %v7438 = vadd.f32 %v6338, %v7098
      %v7439 = vadd.f32 %v6340, %v7098
      %v7440 = vadd.f32 %v6342, %v7103
      %v7441 = vadd.f32 %v6344, %v7103
      %v7442 = vadd.f32 %v6348, %v7108
      %v7443 = vadd.f32 %v6350, %v7108
      %v7444 = vadd.f32 %v6352, %v7113
      %v7445 = vadd.f32 %v6354, %v7113
      %v7446 = vadd.f32 %v6358, %v7118
      %v7447 = vadd.f32 %v6360, %v7118
      %v7448 = vadd.f32 %v6362, %v7123
      %v7449 = vadd.f32 %v6364, %v7123
      %v7450 = vadd.f32 %v6368, %v7128
      %v7451 = vadd.f32 %v6370, %v7128
      %v7452 = vadd.f32 %v6372, %v7133
      %v7453 = vadd.f32 %v6374, %v7133
      %v7454 = vadd.f32 %v6378, %v7138
      %v7455 = vadd.f32 %v6380, %v7138
      %v7456 = vadd.f32 %v6382, %v7143
      %v7457 = vadd.f32 %v6384, %v7143
      %v7458 = vadd.f32 %v6388, %v7148
      %v7459 = vadd.f32 %v6390, %v7148
      %v7460 = vadd.f32 %v6392, %v7153
      %v7461 = vadd.f32 %v6394, %v7153
      %v7462 = vadd.f32 %v6398, %v7158
      %v7463 = vadd.f32 %v6400, %v7158
      %v7464 = vadd.f32 %v6402, %v7163
      %v7465 = vadd.f32 %v6404, %v7163
      %v7466 = vadd.f32 %v6408, %v7168
      %v7467 = vadd.f32 %v6410, %v7168
      %v7468 = vadd.f32 %v6412, %v7173
      %v7469 = vadd.f32 %v6414, %v7173
      %v7470 = vadd.f32 %v6418, %v7178
      %v7471 = vadd.f32 %v6420, %v7178
      %v7472 = vadd.f32 %v6422, %v7183
      %v7473 = vadd.f32 %v6424, %v7183
      %v7474 = vadd.f32 %v6428, %v7188
      %v7475 = vadd.f32 %v6430, %v7188
      %v7476 = vadd.f32 %v6432, %v7193
      %v7477 = vadd.f32 %v6434, %v7193
      %v7478 = vadd.f32 %v6438, %v7198
      %v7479 = vadd.f32 %v6440, %v7198
      %v7480 = vadd.f32 %v6442, %v7203
      %v7481 = vadd.f32 %v6444, %v7203
      %v7482 = vadd.f32 %v6448, %v7208
      %v7483 = vadd.f32 %v6450, %v7208
      %v7484 = vadd.f32 %v6452, %v7213
      %v7485 = vadd.f32 %v6454, %v7213
      %v7486 = vadd.f32 %v6458, %v7218
      %v7487 = vadd.f32 %v6460, %v7218
      %v7488 = vadd.f32 %v6462, %v7223
      %v7489 = vadd.f32 %v6464, %v7223
      %v7490 = vadd.f32 %v6468, %v7228
      %v7491 = vadd.f32 %v6470, %v7228
      %v7492 = vadd.f32 %v6472, %v7233
      %v7493 = vadd.f32 %v6474, %v7233
      %v7494 = vadd.f32 %v6478, %v7238
      %v7495 = vadd.f32 %v6480, %v7238
      %v7496 = vadd.f32 %v6482, %v7243
      %v7497 = vadd.f32 %v6484, %v7243
      %v7498 = vadd.f32 %v6488, %v7248
      %v7499 = vadd.f32 %v6490, %v7248
      %7500 = vst [vmem:[%s332] sm:$0xff] %v7250
      %7501 = vst [vmem:[%s332 + $0x8] sm:$0xff] %v7251
      %7502 = vst [vmem:[%s332 + $0x10] sm:$0xff] %v7252
      %7503 = vst [vmem:[%s332 + $0x18] sm:$0xff] %v7253
      %7504 = vst [vmem:[%s332 + $0x20] sm:$0xff] %v7254
      %7505 = vst [vmem:[%s332 + $0x28] sm:$0xff] %v7255
      %7506 = vst [vmem:[%s332 + $0x30] sm:$0xff] %v7256
      %7507 = vst [vmem:[%s332 + $0x38] sm:$0xff] %v7257
      %7508 = vst [vmem:[%s332 + $0x40] sm:$0xff] %v7258
      %7509 = vst [vmem:[%s332 + $0x48] sm:$0xff] %v7259
      %7510 = vst [vmem:[%s332 + $0x50] sm:$0xff] %v7260
      %7511 = vst [vmem:[%s332 + $0x58] sm:$0xff] %v7261
      %7512 = vst [vmem:[%s332 + $0x60] sm:$0xff] %v7262
      %7513 = vst [vmem:[%s332 + $0x68] sm:$0xff] %v7263
      %7514 = vst [vmem:[%s332 + $0x70] sm:$0xff] %v7264
      %7515 = vst [vmem:[%s332 + $0x78] sm:$0xff] %v7265
      %7516 = vst [vmem:[%s332 + $0x80] sm:$0xff] %v7266
      %7517 = vst [vmem:[%s332 + $0x88] sm:$0xff] %v7267
      %7518 = vst [vmem:[%s332 + $0x90] sm:$0xff] %v7268
      %7519 = vst [vmem:[%s332 + $0x98] sm:$0xff] %v7269
      %7520 = vst [vmem:[%s332 + $0xa0] sm:$0xff] %v7270
      %7521 = vst [vmem:[%s332 + $0xa8] sm:$0xff] %v7271
      %7522 = vst [vmem:[%s332 + $0xb0] sm:$0xff] %v7272
      %7523 = vst [vmem:[%s332 + $0xb8] sm:$0xff] %v7273
      %7524 = vst [vmem:[%s332 + $0xc0] sm:$0xff] %v7274
      %7525 = vst [vmem:[%s332 + $0xc8] sm:$0xff] %v7275
      %7526 = vst [vmem:[%s332 + $0xd0] sm:$0xff] %v7276
      %7527 = vst [vmem:[%s332 + $0xd8] sm:$0xff] %v7277
      %7528 = vst [vmem:[%s332 + $0xe0] sm:$0xff] %v7278
      %7529 = vst [vmem:[%s332 + $0xe8] sm:$0xff] %v7279
      %7530 = vst [vmem:[%s332 + $0xf0] sm:$0xff] %v7280
      %7531 = vst [vmem:[%s332 + $0xf8] sm:$0xff] %v7281
      %7532 = vst [vmem:[%s332 + $0x100] sm:$0xff] %v7282
      %7533 = vst [vmem:[%s332 + $0x108] sm:$0xff] %v7283
      %7534 = vst [vmem:[%s332 + $0x110] sm:$0xff] %v7284
      %7535 = vst [vmem:[%s332 + $0x118] sm:$0xff] %v7285
      %7536 = vst [vmem:[%s332 + $0x120] sm:$0xff] %v7286
      %7537 = vst [vmem:[%s332 + $0x128] sm:$0xff] %v7287
      %7538 = vst [vmem:[%s332 + $0x130] sm:$0xff] %v7288
      %7539 = vst [vmem:[%s332 + $0x138] sm:$0xff] %v7289
      %7540 = vst [vmem:[%s332 + $0x140] sm:$0xff] %v7290
      %7541 = vst [vmem:[%s332 + $0x148] sm:$0xff] %v7291
      %7542 = vst [vmem:[%s332 + $0x150] sm:$0xff] %v7292
      %7543 = vst [vmem:[%s332 + $0x158] sm:$0xff] %v7293
      %7544 = vst [vmem:[%s332 + $0x160] sm:$0xff] %v7294
      %7545 = vst [vmem:[%s332 + $0x168] sm:$0xff] %v7295
      %7546 = vst [vmem:[%s332 + $0x170] sm:$0xff] %v7296
      %7547 = vst [vmem:[%s332 + $0x178] sm:$0xff] %v7297
      %7548 = vst [vmem:[%s332 + $0x180] sm:$0xff] %v7298
      %7549 = vst [vmem:[%s332 + $0x188] sm:$0xff] %v7299
      %7550 = vst [vmem:[%s332 + $0x190] sm:$0xff] %v7300
      %7551 = vst [vmem:[%s332 + $0x198] sm:$0xff] %v7301
      %7552 = vst [vmem:[%s332 + $0x1a0] sm:$0xff] %v7302
      %7553 = vst [vmem:[%s332 + $0x1a8] sm:$0xff] %v7303
      %7554 = vst [vmem:[%s332 + $0x1b0] sm:$0xff] %v7304
      %7555 = vst [vmem:[%s332 + $0x1b8] sm:$0xff] %v7305
      %7556 = vst [vmem:[%s332 + $0x1c0] sm:$0xff] %v7306
      %7557 = vst [vmem:[%s332 + $0x1c8] sm:$0xff] %v7307
      %7558 = vst [vmem:[%s332 + $0x1d0] sm:$0xff] %v7308
      %7559 = vst [vmem:[%s332 + $0x1d8] sm:$0xff] %v7309
      %7560 = vst [vmem:[%s332 + $0x1e0] sm:$0xff] %v7310
      %7561 = vst [vmem:[%s332 + $0x1e8] sm:$0xff] %v7311
      %7562 = vst [vmem:[%s332 + $0x1f0] sm:$0xff] %v7312
      %7563 = vst [vmem:[%s332 + $0x1f8] sm:$0xff] %v7313
      %7564 = vst [vmem:[%s332 + $0x200] sm:$0xff] %v7314
      %7565 = vst [vmem:[%s332 + $0x208] sm:$0xff] %v7315
      %7566 = vst [vmem:[%s332 + $0x210] sm:$0xff] %v7316
      %7567 = vst [vmem:[%s332 + $0x218] sm:$0xff] %v7317
      %7568 = vst [vmem:[%s332 + $0x220] sm:$0xff] %v7318
      %7569 = vst [vmem:[%s332 + $0x228] sm:$0xff] %v7319
      %7570 = vst [vmem:[%s332 + $0x230] sm:$0xff] %v7320
      %7571 = vst [vmem:[%s332 + $0x238] sm:$0xff] %v7321
      %7572 = vst [vmem:[%s332 + $0x240] sm:$0xff] %v7322
      %7573 = vst [vmem:[%s332 + $0x248] sm:$0xff] %v7323
      %7574 = vst [vmem:[%s332 + $0x250] sm:$0xff] %v7324
      %7575 = vst [vmem:[%s332 + $0x258] sm:$0xff] %v7325
      %7576 = vst [vmem:[%s332 + $0x260] sm:$0xff] %v7326
      %7577 = vst [vmem:[%s332 + $0x268] sm:$0xff] %v7327
      %7578 = vst [vmem:[%s332 + $0x270] sm:$0xff] %v7328
      %7579 = vst [vmem:[%s332 + $0x278] sm:$0xff] %v7329
      %7580 = vst [vmem:[%s332 + $0x280] sm:$0xff] %v7330
      %7581 = vst [vmem:[%s332 + $0x288] sm:$0xff] %v7331
      %7582 = vst [vmem:[%s332 + $0x290] sm:$0xff] %v7332
      %7583 = vst [vmem:[%s332 + $0x298] sm:$0xff] %v7333
      %7584 = vst [vmem:[%s332 + $0x2a0] sm:$0xff] %v7334
      %7585 = vst [vmem:[%s332 + $0x2a8] sm:$0xff] %v7335
      %7586 = vst [vmem:[%s332 + $0x2b0] sm:$0xff] %v7336
      %7587 = vst [vmem:[%s332 + $0x2b8] sm:$0xff] %v7337
      %7588 = vst [vmem:[%s332 + $0x2c0] sm:$0xff] %v7338
      %7589 = vst [vmem:[%s332 + $0x2c8] sm:$0xff] %v7339
      %7590 = vst [vmem:[%s332 + $0x2d0] sm:$0xff] %v7340
      %7591 = vst [vmem:[%s332 + $0x2d8] sm:$0xff] %v7341
      %7592 = vst [vmem:[%s332 + $0x2e0] sm:$0xff] %v7342
      %7593 = vst [vmem:[%s332 + $0x2e8] sm:$0xff] %v7343
      %7594 = vst [vmem:[%s332 + $0x2f0] sm:$0xff] %v7344
      %7595 = vst [vmem:[%s332 + $0x2f8] sm:$0xff] %v7345
      %7596 = vst [vmem:[%s332 + $0x300] sm:$0xff] %v7346
      %7597 = vst [vmem:[%s332 + $0x308] sm:$0xff] %v7347
      %7598 = vst [vmem:[%s332 + $0x310] sm:$0xff] %v7348
      %7599 = vst [vmem:[%s332 + $0x318] sm:$0xff] %v7349
      %7600 = vst [vmem:[%s332 + $0x320] sm:$0xff] %v7350
      %7601 = vst [vmem:[%s332 + $0x328] sm:$0xff] %v7351
      %7602 = vst [vmem:[%s332 + $0x330] sm:$0xff] %v7352
      %7603 = vst [vmem:[%s332 + $0x338] sm:$0xff] %v7353
      %7604 = vst [vmem:[%s332 + $0x340] sm:$0xff] %v7354
      %7605 = vst [vmem:[%s332 + $0x348] sm:$0xff] %v7355
      %7606 = vst [vmem:[%s332 + $0x350] sm:$0xff] %v7356
      %7607 = vst [vmem:[%s332 + $0x358] sm:$0xff] %v7357
      %7608 = vst [vmem:[%s332 + $0x360] sm:$0xff] %v7358
      %7609 = vst [vmem:[%s332 + $0x368] sm:$0xff] %v7359
      %7610 = vst [vmem:[%s332 + $0x370] sm:$0xff] %v7360
      %7611 = vst [vmem:[%s332 + $0x378] sm:$0xff] %v7361
      %7612 = vst [vmem:[%s332 + $0x380] sm:$0xff] %v7362
      %7613 = vst [vmem:[%s332 + $0x388] sm:$0xff] %v7363
      %7614 = vst [vmem:[%s332 + $0x390] sm:$0xff] %v7364
      %7615 = vst [vmem:[%s332 + $0x398] sm:$0xff] %v7365
      %7616 = vst [vmem:[%s332 + $0x3a0] sm:$0xff] %v7366
      %7617 = vst [vmem:[%s332 + $0x3a8] sm:$0xff] %v7367
      %7618 = vst [vmem:[%s332 + $0x3b0] sm:$0xff] %v7368
      %7619 = vst [vmem:[%s332 + $0x3b8] sm:$0xff] %v7369
      %7620 = vst [vmem:[%s332 + $0x3c0] sm:$0xff] %v7370
      %7621 = vst [vmem:[%s332 + $0x3c8] sm:$0xff] %v7371
      %7622 = vst [vmem:[%s332 + $0x3d0] sm:$0xff] %v7372
      %7623 = vst [vmem:[%s332 + $0x3d8] sm:$0xff] %v7373
      %7624 = vst [vmem:[%s332 + $0x3e0] sm:$0xff] %v7374
      %7625 = vst [vmem:[%s332 + $0x3e8] sm:$0xff] %v7375
      %7626 = vst [vmem:[%s332 + $0x3f0] sm:$0xff] %v7376
      %7627 = vst [vmem:[%s332 + $0x3f8] sm:$0xff] %v7377
      %7628 = vst [vmem:[%s332 + $0x400] sm:$0xff] %v7378
      %7629 = vst [vmem:[%s332 + $0x408] sm:$0xff] %v7379
      %7630 = vst [vmem:[%s332 + $0x410] sm:$0xff] %v7380
      %7631 = vst [vmem:[%s332 + $0x418] sm:$0xff] %v7381
      %7632 = vst [vmem:[%s332 + $0x420] sm:$0xff] %v7382
      %7633 = vst [vmem:[%s332 + $0x428] sm:$0xff] %v7383
      %7634 = vst [vmem:[%s332 + $0x430] sm:$0xff] %v7384
      %7635 = vst [vmem:[%s332 + $0x438] sm:$0xff] %v7385
      %7636 = vst [vmem:[%s332 + $0x440] sm:$0xff] %v7386
      %7637 = vst [vmem:[%s332 + $0x448] sm:$0xff] %v7387
      %7638 = vst [vmem:[%s332 + $0x450] sm:$0xff] %v7388
      %7639 = vst [vmem:[%s332 + $0x458] sm:$0xff] %v7389
      %7640 = vst [vmem:[%s332 + $0x460] sm:$0xff] %v7390
      %7641 = vst [vmem:[%s332 + $0x468] sm:$0xff] %v7391
      %7642 = vst [vmem:[%s332 + $0x470] sm:$0xff] %v7392
      %7643 = vst [vmem:[%s332 + $0x478] sm:$0xff] %v7393
      %7644 = vst [vmem:[%s332 + $0x480] sm:$0xff] %v7394
      %7645 = vst [vmem:[%s332 + $0x488] sm:$0xff] %v7395
      %7646 = vst [vmem:[%s332 + $0x490] sm:$0xff] %v7396
      %7647 = vst [vmem:[%s332 + $0x498] sm:$0xff] %v7397
      %7648 = vst [vmem:[%s332 + $0x4a0] sm:$0xff] %v7398
      %7649 = vst [vmem:[%s332 + $0x4a8] sm:$0xff] %v7399
      %7650 = vst [vmem:[%s332 + $0x4b0] sm:$0xff] %v7400
      %7651 = vst [vmem:[%s332 + $0x4b8] sm:$0xff] %v7401
      %7652 = vst [vmem:[%s332 + $0x4c0] sm:$0xff] %v7402
      %7653 = vst [vmem:[%s332 + $0x4c8] sm:$0xff] %v7403
      %7654 = vst [vmem:[%s332 + $0x4d0] sm:$0xff] %v7404
      %7655 = vst [vmem:[%s332 + $0x4d8] sm:$0xff] %v7405
      %7656 = vst [vmem:[%s332 + $0x4e0] sm:$0xff] %v7406
      %7657 = vst [vmem:[%s332 + $0x4e8] sm:$0xff] %v7407
      %7658 = vst [vmem:[%s332 + $0x4f0] sm:$0xff] %v7408
      %7659 = vst [vmem:[%s332 + $0x4f8] sm:$0xff] %v7409
      %7660 = vst [vmem:[%s332 + $0x500] sm:$0xff] %v7410
      %7661 = vst [vmem:[%s332 + $0x508] sm:$0xff] %v7411
      %7662 = vst [vmem:[%s332 + $0x510] sm:$0xff] %v7412
      %7663 = vst [vmem:[%s332 + $0x518] sm:$0xff] %v7413
      %7664 = vst [vmem:[%s332 + $0x520] sm:$0xff] %v7414
      %7665 = vst [vmem:[%s332 + $0x528] sm:$0xff] %v7415
      %7666 = vst [vmem:[%s332 + $0x530] sm:$0xff] %v7416
      %7667 = vst [vmem:[%s332 + $0x538] sm:$0xff] %v7417
      %7668 = vst [vmem:[%s332 + $0x540] sm:$0xff] %v7418
      %7669 = vst [vmem:[%s332 + $0x548] sm:$0xff] %v7419
      %7670 = vst [vmem:[%s332 + $0x550] sm:$0xff] %v7420
      %7671 = vst [vmem:[%s332 + $0x558] sm:$0xff] %v7421
      %7672 = vst [vmem:[%s332 + $0x560] sm:$0xff] %v7422
      %7673 = vst [vmem:[%s332 + $0x568] sm:$0xff] %v7423
      %7674 = vst [vmem:[%s332 + $0x570] sm:$0xff] %v7424
      %7675 = vst [vmem:[%s332 + $0x578] sm:$0xff] %v7425
      %7676 = vst [vmem:[%s332 + $0x580] sm:$0xff] %v7426
      %7677 = vst [vmem:[%s332 + $0x588] sm:$0xff] %v7427
      %7678 = vst [vmem:[%s332 + $0x590] sm:$0xff] %v7428
      %7679 = vst [vmem:[%s332 + $0x598] sm:$0xff] %v7429
      %7680 = vst [vmem:[%s332 + $0x5a0] sm:$0xff] %v7430
      %7681 = vst [vmem:[%s332 + $0x5a8] sm:$0xff] %v7431
      %7682 = vst [vmem:[%s332 + $0x5b0] sm:$0xff] %v7432
      %7683 = vst [vmem:[%s332 + $0x5b8] sm:$0xff] %v7433
      %7684 = vst [vmem:[%s332 + $0x5c0] sm:$0xff] %v7434
      %7685 = vst [vmem:[%s332 + $0x5c8] sm:$0xff] %v7435
      %7686 = vst [vmem:[%s332 + $0x5d0] sm:$0xff] %v7436
      %7687 = vst [vmem:[%s332 + $0x5d8] sm:$0xff] %v7437
      %7688 = vst [vmem:[%s332 + $0x5e0] sm:$0xff] %v7438
      %7689 = vst [vmem:[%s332 + $0x5e8] sm:$0xff] %v7439
      %7690 = vst [vmem:[%s332 + $0x5f0] sm:$0xff] %v7440
      %7691 = vst [vmem:[%s332 + $0x5f8] sm:$0xff] %v7441
      %7692 = vst [vmem:[%s332 + $0x600] sm:$0xff] %v7442
      %7693 = vst [vmem:[%s332 + $0x608] sm:$0xff] %v7443
      %7694 = vst [vmem:[%s332 + $0x610] sm:$0xff] %v7444
      %7695 = vst [vmem:[%s332 + $0x618] sm:$0xff] %v7445
      %7696 = vst [vmem:[%s332 + $0x620] sm:$0xff] %v7446
      %7697 = vst [vmem:[%s332 + $0x628] sm:$0xff] %v7447
      %7698 = vst [vmem:[%s332 + $0x630] sm:$0xff] %v7448
      %7699 = vst [vmem:[%s332 + $0x638] sm:$0xff] %v7449
      %7700 = vst [vmem:[%s332 + $0x640] sm:$0xff] %v7450
      %7701 = vst [vmem:[%s332 + $0x648] sm:$0xff] %v7451
      %7702 = vst [vmem:[%s332 + $0x650] sm:$0xff] %v7452
      %7703 = vst [vmem:[%s332 + $0x658] sm:$0xff] %v7453
      %7704 = vst [vmem:[%s332 + $0x660] sm:$0xff] %v7454
      %7705 = vst [vmem:[%s332 + $0x668] sm:$0xff] %v7455
      %7706 = vst [vmem:[%s332 + $0x670] sm:$0xff] %v7456
      %7707 = vst [vmem:[%s332 + $0x678] sm:$0xff] %v7457
      %7708 = vst [vmem:[%s332 + $0x680] sm:$0xff] %v7458
      %7709 = vst [vmem:[%s332 + $0x688] sm:$0xff] %v7459
      %7710 = vst [vmem:[%s332 + $0x690] sm:$0xff] %v7460
      %7711 = vst [vmem:[%s332 + $0x698] sm:$0xff] %v7461
      %7712 = vst [vmem:[%s332 + $0x6a0] sm:$0xff] %v7462
      %7713 = vst [vmem:[%s332 + $0x6a8] sm:$0xff] %v7463
      %7714 = vst [vmem:[%s332 + $0x6b0] sm:$0xff] %v7464
      %7715 = vst [vmem:[%s332 + $0x6b8] sm:$0xff] %v7465
      %7716 = vst [vmem:[%s332 + $0x6c0] sm:$0xff] %v7466
      %7717 = vst [vmem:[%s332 + $0x6c8] sm:$0xff] %v7467
      %7718 = vst [vmem:[%s332 + $0x6d0] sm:$0xff] %v7468
      %7719 = vst [vmem:[%s332 + $0x6d8] sm:$0xff] %v7469
      %7720 = vst [vmem:[%s332 + $0x6e0] sm:$0xff] %v7470
      %7721 = vst [vmem:[%s332 + $0x6e8] sm:$0xff] %v7471
      %7722 = vst [vmem:[%s332 + $0x6f0] sm:$0xff] %v7472
      %7723 = vst [vmem:[%s332 + $0x6f8] sm:$0xff] %v7473
      %7724 = vst [vmem:[%s332 + $0x700] sm:$0xff] %v7474
      %7725 = vst [vmem:[%s332 + $0x708] sm:$0xff] %v7475
      %7726 = vst [vmem:[%s332 + $0x710] sm:$0xff] %v7476
      %7727 = vst [vmem:[%s332 + $0x718] sm:$0xff] %v7477
      %7728 = vst [vmem:[%s332 + $0x720] sm:$0xff] %v7478
      %7729 = vst [vmem:[%s332 + $0x728] sm:$0xff] %v7479
      %7730 = vst [vmem:[%s332 + $0x730] sm:$0xff] %v7480
      %7731 = vst [vmem:[%s332 + $0x738] sm:$0xff] %v7481
      %7732 = vst [vmem:[%s332 + $0x740] sm:$0xff] %v7482
      %7733 = vst [vmem:[%s332 + $0x748] sm:$0xff] %v7483
      %7734 = vst [vmem:[%s332 + $0x750] sm:$0xff] %v7484
      %7735 = vst [vmem:[%s332 + $0x758] sm:$0xff] %v7485
      %7736 = vst [vmem:[%s332 + $0x760] sm:$0xff] %v7486
      %7737 = vst [vmem:[%s332 + $0x768] sm:$0xff] %v7487
      %7738 = vst [vmem:[%s332 + $0x770] sm:$0xff] %v7488
      %7739 = vst [vmem:[%s332 + $0x778] sm:$0xff] %v7489
      %7740 = vst [vmem:[%s332 + $0x780] sm:$0xff] %v7490
      %7741 = vst [vmem:[%s332 + $0x788] sm:$0xff] %v7491
      %7742 = vst [vmem:[%s332 + $0x790] sm:$0xff] %v7492
      %7743 = vst [vmem:[%s332 + $0x798] sm:$0xff] %v7493
      %7744 = vst [vmem:[%s332 + $0x7a0] sm:$0xff] %v7494
      %7745 = vst [vmem:[%s332 + $0x7a8] sm:$0xff] %v7495
      %7746 = vst [vmem:[%s332 + $0x7b0] sm:$0xff] %v7496
      %7747 = vst [vmem:[%s332 + $0x7b8] sm:$0xff] %v7497
      %7748 = vst [vmem:[%s332 + $0x7c0] sm:$0xff] %v7498
      %7749 = vst [vmem:[%s332 + $0x7c8] sm:$0xff] %v7499
      %p7750 = scmp.lt.s32.totalorder %s20, 1
      %s7751 = scalar_select %p7750, %s20, 1
      %s7752 = smul.addr %s7751, 250
      %s7753 = smul.addr %s7752, 8
      %s7754 = scalar_lea.vmem %s9, %s7753
      // Predicated region
      $region57: #{model_forward.1} parent=55 // pred_check
        %p7755 = pneg %p232
      $region58: #{model_forward.1} parent=55 // pred_check_branch
        %7757 = sbr.rel (%p7755) target = $region60
      $region59: #{model_forward.1} parent=55 // pred_region
        _
      $region60: #{model_forward.1} parent=55 // pred_fallthru
        _
    $region56: #{model_forward.1} parent=5 // pred_fallthru
      _
    %p7758 = scmp.le.s32.totalorder 2, %s15
    // Predicated region
    $region61: #{model_forward.1} parent=5 // pred_check
      %p7759 = pneg %p7758
    $region62: #{model_forward.1} parent=5 // pred_check_branch
      %7761 = sbr.rel (%p7759) target = $region64
    $region63: #{model_forward.1} parent=5 // pred_region
      %s7762 = ssub.s32 %s15, 2
      // Predicated region
      $region65: #{model_forward.1} parent=63 // pred_check
        %p7763 = pneg %p238
      $region66: #{model_forward.1} parent=63 // pred_check_branch
        %7765 = sbr.rel (%p7763) target = $region68
      $region67: #{model_forward.1} parent=63 // pred_region
        %p7766 = scmp.lt.s32.totalorder %s21, 1
        %s7767 = scalar_select %p7766, %s21, 1
        %s7768 = smul.addr %s7767, 250
        %s7769 = smul.addr %s7768, 8
        %s7770 = scalar_lea.vmem %s9, %s7769
      $region68: #{model_forward.1} parent=63 // pred_fallthru
        _
    $region64: #{model_forward.1} parent=5 // pred_fallthru
      _
  $region6: #{model_forward.1} parent=0 // loop_footer
    %s19 = sadd.s32 1, %s15
  $region7: #{model_forward.1} parent=0 // loop_footer_branch
    %14 = sbr.rel target = $region3
  $region8: #{model_forward.1} parent=0 // loop_exit
    _

</llo_original>
